<compile_context>
chip_gen: v5e
topology: v5e:2x2
jax: 0.10.0
libtpu: 0.0.40
codegen_flags: <defaults>
</compile_context>

<pallas_src>
import jax
import jax.numpy as jnp
from jax.experimental import pallas as pl
from jax.experimental.pallas import tpu as pltpu


# ---------------- Pallas kernel (whole network, one batch tile) ----------------

def fused_kernel(xw_ref, a_ref, w2m_ref, b3_ref, w56t_ref, o_ref):
    # xw_ref : (17, tb, 384) bf16   per-oh lane-aligned image windows
    # a_ref  : (384, 476)    bf16   banded conv1 weights (K zero-padded 336->384)
    # w2m_ref: (17, 476, 21) bf16   conv2 weights folded with w3 (per output row)
    # b3_ref : (1, 21)  f32,  w56t_ref: (21, 10) f32
    tb = xw_ref.shape[1]
    a_mat = a_ref[...]                                    # loop-invariant RHS
    acc0 = jnp.zeros((tb, 21), jnp.float32)
    acc1 = jnp.zeros((tb, 21), jnp.float32)
    for oh in range(17):
        x_win = xw_ref[oh]                                # (tb, 384), aligned
        h = jnp.dot(x_win, a_mat, preferred_element_type=jnp.float32)
        h = jnp.maximum(h, 0.0).astype(jnp.bfloat16)      # (tb, 476)
        p = jnp.dot(h, w2m_ref[oh],
                    preferred_element_type=jnp.float32)   # (tb, 21)
        if oh % 2 == 0:
            acc0 = acc0 + p
        else:
            acc1 = acc1 + p
    # f3 bias + f4 ReLU (w3 already folded into the conv2 slabs)
    z = jnp.maximum(acc0 + acc1 + b3_ref[...], 0.0)       # (tb, 21)
    # f5 + f6 folded: Linear(21 -> 10), kept f32 (tiny)
    z = jnp.dot(z, w56t_ref[...], preferred_element_type=jnp.float32)
    # f7: LogSoftmax(dim=1)
    m = jnp.max(z, axis=1, keepdims=True)
    s = z - m
    o_ref[...] = s - jnp.log(jnp.sum(jnp.exp(s), axis=1, keepdims=True))


# ---------------- host-side weight / input re-layout ----------------

def _build_conv1_band(w1):
    # w1: (28, 1, 12, 12) -> A (384, 476), rows 336..383 are zero padding.
    # A[dh*28 + w, ow*28 + ci] = w1[ci, 0, dh, w - ow]  if 0 <= w - ow < 12 else 0
    w1_dkc = w1.reshape(28, 12, 12).transpose(1, 2, 0)    # (dh, dw, ci)
    blocks = []
    for ow in range(17):
        b = jnp.zeros((12, 28, 28), jnp.float32)          # (dh, w, ci)
        b = b.at[:, ow:ow + 12, :].set(w1_dkc)
        blocks.append(b.reshape(12 * 28, 28))
    a = jnp.concatenate(blocks, axis=1)                   # (336, 476)
    return jnp.pad(a, ((0, 48), (0, 0)))                  # (384, 476)


def _build_conv2_w3_slabs(w2, w3):
    # w2: (10, 28, 17, 17) -> (17, 476, 10), index [kh, kw*28 + ci, co],
    # then fold the (exact) f3 weight: slab[kh] @ w3.T -> (17, 476, 21).
    w2m = w2.transpose(2, 3, 1, 0).reshape(17, 17 * 28, 10).astype(jnp.float32)
    return jnp.einsum("kro,oc->krc", w2m, w3.T.astype(jnp.float32))


def _build_windows(x2d_padded):
    # (n_pad, 784) -> (17, n_pad, 384): window oh = flattened rows oh..oh+11,
    # zero-padded from 336 to 384 lanes so every per-oh slab is lane-aligned.
    idx = jnp.arange(17)[:, None] * 28 + jnp.arange(336)[None, :]  # (17, 336)
    xw = x2d_padded[:, idx]                               # (n_pad, 17, 336)
    xw = jnp.pad(xw, ((0, 0), (0, 0), (0, 48)))           # (n_pad, 17, 384)
    return xw.transpose(1, 0, 2)                          # (17, n_pad, 384)


# ---------------- wrapper ----------------

def conv2dthenlinear_93(x, params, tb=None):
    N = x.shape[0]
    if tb is None:
        # Big tiles for MXU efficiency, but >= 2 grid steps when the batch
        # allows it so v7x's two TensorCores both get work.
        tb = min(256, max(8, pl.cdiv(pl.cdiv(N, 2), 8) * 8))
    x2d = x.reshape(N, 28 * 28).astype(jnp.float32)
    n_pad = pl.cdiv(N, tb) * tb
    if n_pad != N:
        x2d = jnp.pad(x2d, ((0, n_pad - N), (0, 0)))

    xw = _build_windows(x2d).astype(jnp.bfloat16)             # (17, n_pad, 384)
    a_band = _build_conv1_band(params["w1"]).astype(jnp.bfloat16)    # (384, 476)
    w2m3 = _build_conv2_w3_slabs(params["w2"], params["w3"]).astype(jnp.bfloat16)
    b3 = params["b3"].reshape(1, 21).astype(jnp.float32)
    w56t = (params["w5"].T @ params["w6"].T).astype(jnp.float32)     # (21, 10)

    grid = (n_pad // tb,)
    out = pl.pallas_call(
        fused_kernel,
        out_shape=jax.ShapeDtypeStruct((n_pad, 10), jnp.float32),
        grid_spec=pltpu.PrefetchScalarGridSpec(
            num_scalar_prefetch=0,
            grid=grid,
            in_specs=[
                pl.BlockSpec((17, tb, 384), lambda i: (0, i, 0)),
                pl.BlockSpec((384, 476), lambda i: (0, 0)),
                pl.BlockSpec((17, 476, 21), lambda i: (0, 0, 0)),
                pl.BlockSpec((1, 21), lambda i: (0, 0)),
                pl.BlockSpec((21, 10), lambda i: (0, 0)),
            ],
            out_specs=pl.BlockSpec((tb, 10), lambda i: (i, 0)),
        ),
        compiler_params=pltpu.CompilerParams(
            dimension_semantics=("parallel",),
        ),
    )(xw, a_band, w2m3, b3, w56t)
    return out[:N]


# ---------------- params & reference ----------------

def init_params(key):
    ks = jax.random.split(key, 6)

    def uinit(k, shape, fan_in):
        bound = 1.0 / jnp.sqrt(jnp.float32(fan_in))
        return jax.random.uniform(k, shape, jnp.float32, -bound, bound)

    return dict(
        w1=uinit(ks[0], (28, 1, 12, 12), 1 * 12 * 12),
        w2=uinit(ks[1], (10, 28, 17, 17), 28 * 17 * 17),
        w3=uinit(ks[2], (21, 10), 10),
        b3=uinit(ks[3], (21,), 10),
        w5=uinit(ks[4], (21, 21), 21),
        w6=uinit(ks[5], (10, 21), 21),
    )


def reference(x, params):
    N = x.shape[0]
    x = x.reshape(N, 1, 28, 28).astype(jnp.float32)
    y = jax.lax.conv_general_dilated(
        x, params["w1"], (1, 1), "VALID",
        dimension_numbers=("NCHW", "OIHW", "NCHW"))
    y = jnp.maximum(y, 0.0)
    y = jax.lax.conv_general_dilated(
        y, params["w2"], (1, 1), "VALID",
        dimension_numbers=("NCHW", "OIHW", "NCHW"))
    y = y.reshape(N, 10)
    y = jnp.maximum(y @ params["w3"].T + params["b3"], 0.0)
    y = y @ params["w5"].T
    y = y @ params["w6"].T
    return jax.nn.log_softmax(y, axis=1)


if __name__ == "__main__":
    key = jax.random.PRNGKey(0)
    pkey, xkey, xkey2 = jax.random.split(key, 3)
    params = init_params(pkey)

    # bf16 MXU operands (f32 accumulation): estimated error ~5e-4 on the
    # log-probs; use a 2e-3 tolerance to leave margin over the f32 reference.
    TOL = 2e-3

    # Small-batch test (single grid step).
    x = jax.random.normal(xkey, (2, 1, 28, 28), jnp.float32)
    out = jax.block_until_ready(conv2dthenlinear_93(x, params))
    ref = jax.block_until_ready(reference(x, params))
    assert out.shape == (2, 10), out.shape
    assert jnp.allclose(out, ref, atol=TOL, rtol=TOL), (
        "mismatch", float(jnp.max(jnp.abs(out - ref))))

    # Multi-step test (exercises batch padding + >=2 grid steps / megacore path).
    xb = jax.random.normal(xkey2, (200, 1, 28, 28), jnp.float32)
    outb = jax.block_until_ready(conv2dthenlinear_93(xb, params))
    refb = jax.block_until_ready(reference(xb, params))
    assert outb.shape == (200, 10), outb.shape
    assert jnp.allclose(outb, refb, atol=TOL, rtol=TOL), (
        "mismatch-big", float(jnp.max(jnp.abs(outb - refb))))

    print("KERNEL_OK")
</pallas_src>

<mosaic_0001>
module attributes {stable_mosaic.version = 11 : i64} {
  func.func @fused_kernel(%arg0: i32, %arg1: memref<17x8x384xbf16, #tpu.memory_space<vmem>>, %arg2: memref<384x476xbf16, #tpu.memory_space<vmem>>, %arg3: memref<17x476x21xbf16, #tpu.memory_space<vmem>>, %arg4: memref<1x21xf32, #tpu.memory_space<vmem>>, %arg5: memref<21x10xf32, #tpu.memory_space<vmem>>, %arg6: memref<8x10xf32, #tpu.memory_space<vmem>>) attributes {dimension_semantics = [#tpu.dimension_semantics<parallel>], iteration_bounds = array<i64: 1>, scalar_prefetch = 0 : i64, scratch_operands = 0 : i64, tpu.core_type = #tpu.core_type<tc>, window_params = [{transform_indices = @transform_0, window_bounds = array<i64: 17, 8, 384>}, {pipeline_mode = #tpu.pipeline_mode<synchronous>, transform_indices = @transform_1, window_bounds = array<i64: 384, 476>}, {pipeline_mode = #tpu.pipeline_mode<synchronous>, transform_indices = @transform_2, window_bounds = array<i64: 17, 476, 21>}, {pipeline_mode = #tpu.pipeline_mode<synchronous>, transform_indices = @transform_3, window_bounds = array<i64: 1, 21>}, {pipeline_mode = #tpu.pipeline_mode<synchronous>, transform_indices = @transform_4, window_bounds = array<i64: 21, 10>}, {transform_indices = @transform_5, window_bounds = array<i64: 8, 10>}]} {
    %c0 = arith.constant 0 : index
    %c0_0 = arith.constant 0 : index
    %0 = vector.load %arg2[%c0, %c0_0] : memref<384x476xbf16, #tpu.memory_space<vmem>>, vector<384x476xbf16>
    %cst = arith.constant 0.000000e+00 : f32
    %1 = vector.broadcast %cst : f32 to vector<8x21xf32>
    %cst_1 = arith.constant 0.000000e+00 : f32
    %2 = vector.broadcast %cst_1 : f32 to vector<8x21xf32>
    %c0_2 = arith.constant 0 : index
    %c0_3 = arith.constant 0 : index
    %c0_4 = arith.constant 0 : index
    %3 = vector.load %arg1[%c0_2, %c0_3, %c0_4] : memref<17x8x384xbf16, #tpu.memory_space<vmem>>, vector<1x8x384xbf16>
    %4 = vector.shape_cast %3 : vector<1x8x384xbf16> to vector<8x384xbf16>
    %cst_5 = arith.constant dense<0.000000e+00> : vector<8x476xf32>
    %5 = tpu.matmul %4, %0, %cst_5 {dimension_numbers = #tpu.dot_dimension_numbers<[1], [0], [0], [1], [0, 0, 1, 1], [], []>} : vector<8x384xbf16>, vector<384x476xbf16>, vector<8x476xf32> -> vector<8x476xf32>
    %cst_6 = arith.constant 0.000000e+00 : f32
    %6 = vector.broadcast %cst_6 : f32 to vector<8x476xf32>
    %7 = arith.maximumf %5, %6 : vector<8x476xf32>
    %8 = arith.truncf %7 : vector<8x476xf32> to vector<8x476xbf16>
    %c0_7 = arith.constant 0 : index
    %c0_8 = arith.constant 0 : index
    %c0_9 = arith.constant 0 : index
    %9 = vector.load %arg3[%c0_7, %c0_8, %c0_9] : memref<17x476x21xbf16, #tpu.memory_space<vmem>>, vector<1x476x21xbf16>
    %10 = vector.shape_cast %9 : vector<1x476x21xbf16> to vector<476x21xbf16>
    %cst_10 = arith.constant dense<0.000000e+00> : vector<8x21xf32>
    %11 = tpu.matmul %8, %10, %cst_10 {dimension_numbers = #tpu.dot_dimension_numbers<[1], [0], [0], [1], [0, 0, 1, 1], [], []>} : vector<8x476xbf16>, vector<476x21xbf16>, vector<8x21xf32> -> vector<8x21xf32>
    %12 = arith.addf %1, %11 : vector<8x21xf32>
    %c1 = arith.constant 1 : index
    %c0_11 = arith.constant 0 : index
    %c0_12 = arith.constant 0 : index
    %13 = vector.load %arg1[%c1, %c0_11, %c0_12] : memref<17x8x384xbf16, #tpu.memory_space<vmem>>, vector<1x8x384xbf16>
    %14 = vector.shape_cast %13 : vector<1x8x384xbf16> to vector<8x384xbf16>
    %cst_13 = arith.constant dense<0.000000e+00> : vector<8x476xf32>
    %15 = tpu.matmul %14, %0, %cst_13 {dimension_numbers = #tpu.dot_dimension_numbers<[1], [0], [0], [1], [0, 0, 1, 1], [], []>} : vector<8x384xbf16>, vector<384x476xbf16>, vector<8x476xf32> -> vector<8x476xf32>
    %cst_14 = arith.constant 0.000000e+00 : f32
    %16 = vector.broadcast %cst_14 : f32 to vector<8x476xf32>
    %17 = arith.maximumf %15, %16 : vector<8x476xf32>
    %18 = arith.truncf %17 : vector<8x476xf32> to vector<8x476xbf16>
    %c1_15 = arith.constant 1 : index
    %c0_16 = arith.constant 0 : index
    %c0_17 = arith.constant 0 : index
    %19 = vector.load %arg3[%c1_15, %c0_16, %c0_17] : memref<17x476x21xbf16, #tpu.memory_space<vmem>>, vector<1x476x21xbf16>
    %20 = vector.shape_cast %19 : vector<1x476x21xbf16> to vector<476x21xbf16>
    %cst_18 = arith.constant dense<0.000000e+00> : vector<8x21xf32>
    %21 = tpu.matmul %18, %20, %cst_18 {dimension_numbers = #tpu.dot_dimension_numbers<[1], [0], [0], [1], [0, 0, 1, 1], [], []>} : vector<8x476xbf16>, vector<476x21xbf16>, vector<8x21xf32> -> vector<8x21xf32>
    %22 = arith.addf %2, %21 : vector<8x21xf32>
    %c2 = arith.constant 2 : index
    %c0_19 = arith.constant 0 : index
    %c0_20 = arith.constant 0 : index
    %23 = vector.load %arg1[%c2, %c0_19, %c0_20] : memref<17x8x384xbf16, #tpu.memory_space<vmem>>, vector<1x8x384xbf16>
    %24 = vector.shape_cast %23 : vector<1x8x384xbf16> to vector<8x384xbf16>
    %cst_21 = arith.constant dense<0.000000e+00> : vector<8x476xf32>
    %25 = tpu.matmul %24, %0, %cst_21 {dimension_numbers = #tpu.dot_dimension_numbers<[1], [0], [0], [1], [0, 0, 1, 1], [], []>} : vector<8x384xbf16>, vector<384x476xbf16>, vector<8x476xf32> -> vector<8x476xf32>
    %cst_22 = arith.constant 0.000000e+00 : f32
    %26 = vector.broadcast %cst_22 : f32 to vector<8x476xf32>
    %27 = arith.maximumf %25, %26 : vector<8x476xf32>
    %28 = arith.truncf %27 : vector<8x476xf32> to vector<8x476xbf16>
    %c2_23 = arith.constant 2 : index
    %c0_24 = arith.constant 0 : index
    %c0_25 = arith.constant 0 : index
    %29 = vector.load %arg3[%c2_23, %c0_24, %c0_25] : memref<17x476x21xbf16, #tpu.memory_space<vmem>>, vector<1x476x21xbf16>
    %30 = vector.shape_cast %29 : vector<1x476x21xbf16> to vector<476x21xbf16>
    %cst_26 = arith.constant dense<0.000000e+00> : vector<8x21xf32>
    %31 = tpu.matmul %28, %30, %cst_26 {dimension_numbers = #tpu.dot_dimension_numbers<[1], [0], [0], [1], [0, 0, 1, 1], [], []>} : vector<8x476xbf16>, vector<476x21xbf16>, vector<8x21xf32> -> vector<8x21xf32>
    %32 = arith.addf %12, %31 : vector<8x21xf32>
    %c3 = arith.constant 3 : index
    %c0_27 = arith.constant 0 : index
    %c0_28 = arith.constant 0 : index
    %33 = vector.load %arg1[%c3, %c0_27, %c0_28] : memref<17x8x384xbf16, #tpu.memory_space<vmem>>, vector<1x8x384xbf16>
    %34 = vector.shape_cast %33 : vector<1x8x384xbf16> to vector<8x384xbf16>
    %cst_29 = arith.constant dense<0.000000e+00> : vector<8x476xf32>
    %35 = tpu.matmul %34, %0, %cst_29 {dimension_numbers = #tpu.dot_dimension_numbers<[1], [0], [0], [1], [0, 0, 1, 1], [], []>} : vector<8x384xbf16>, vector<384x476xbf16>, vector<8x476xf32> -> vector<8x476xf32>
    %cst_30 = arith.constant 0.000000e+00 : f32
    %36 = vector.broadcast %cst_30 : f32 to vector<8x476xf32>
    %37 = arith.maximumf %35, %36 : vector<8x476xf32>
    %38 = arith.truncf %37 : vector<8x476xf32> to vector<8x476xbf16>
    %c3_31 = arith.constant 3 : index
    %c0_32 = arith.constant 0 : index
    %c0_33 = arith.constant 0 : index
    %39 = vector.load %arg3[%c3_31, %c0_32, %c0_33] : memref<17x476x21xbf16, #tpu.memory_space<vmem>>, vector<1x476x21xbf16>
    %40 = vector.shape_cast %39 : vector<1x476x21xbf16> to vector<476x21xbf16>
    %cst_34 = arith.constant dense<0.000000e+00> : vector<8x21xf32>
    %41 = tpu.matmul %38, %40, %cst_34 {dimension_numbers = #tpu.dot_dimension_numbers<[1], [0], [0], [1], [0, 0, 1, 1], [], []>} : vector<8x476xbf16>, vector<476x21xbf16>, vector<8x21xf32> -> vector<8x21xf32>
    %42 = arith.addf %22, %41 : vector<8x21xf32>
    %c4 = arith.constant 4 : index
    %c0_35 = arith.constant 0 : index
    %c0_36 = arith.constant 0 : index
    %43 = vector.load %arg1[%c4, %c0_35, %c0_36] : memref<17x8x384xbf16, #tpu.memory_space<vmem>>, vector<1x8x384xbf16>
    %44 = vector.shape_cast %43 : vector<1x8x384xbf16> to vector<8x384xbf16>
    %cst_37 = arith.constant dense<0.000000e+00> : vector<8x476xf32>
    %45 = tpu.matmul %44, %0, %cst_37 {dimension_numbers = #tpu.dot_dimension_numbers<[1], [0], [0], [1], [0, 0, 1, 1], [], []>} : vector<8x384xbf16>, vector<384x476xbf16>, vector<8x476xf32> -> vector<8x476xf32>
    %cst_38 = arith.constant 0.000000e+00 : f32
    %46 = vector.broadcast %cst_38 : f32 to vector<8x476xf32>
    %47 = arith.maximumf %45, %46 : vector<8x476xf32>
    %48 = arith.truncf %47 : vector<8x476xf32> to vector<8x476xbf16>
    %c4_39 = arith.constant 4 : index
    %c0_40 = arith.constant 0 : index
    %c0_41 = arith.constant 0 : index
    %49 = vector.load %arg3[%c4_39, %c0_40, %c0_41] : memref<17x476x21xbf16, #tpu.memory_space<vmem>>, vector<1x476x21xbf16>
    %50 = vector.shape_cast %49 : vector<1x476x21xbf16> to vector<476x21xbf16>
    %cst_42 = arith.constant dense<0.000000e+00> : vector<8x21xf32>
    %51 = tpu.matmul %48, %50, %cst_42 {dimension_numbers = #tpu.dot_dimension_numbers<[1], [0], [0], [1], [0, 0, 1, 1], [], []>} : vector<8x476xbf16>, vector<476x21xbf16>, vector<8x21xf32> -> vector<8x21xf32>
    %52 = arith.addf %32, %51 : vector<8x21xf32>
    %c5 = arith.constant 5 : index
    %c0_43 = arith.constant 0 : index
    %c0_44 = arith.constant 0 : index
    %53 = vector.load %arg1[%c5, %c0_43, %c0_44] : memref<17x8x384xbf16, #tpu.memory_space<vmem>>, vector<1x8x384xbf16>
    %54 = vector.shape_cast %53 : vector<1x8x384xbf16> to vector<8x384xbf16>
    %cst_45 = arith.constant dense<0.000000e+00> : vector<8x476xf32>
    %55 = tpu.matmul %54, %0, %cst_45 {dimension_numbers = #tpu.dot_dimension_numbers<[1], [0], [0], [1], [0, 0, 1, 1], [], []>} : vector<8x384xbf16>, vector<384x476xbf16>, vector<8x476xf32> -> vector<8x476xf32>
    %cst_46 = arith.constant 0.000000e+00 : f32
    %56 = vector.broadcast %cst_46 : f32 to vector<8x476xf32>
    %57 = arith.maximumf %55, %56 : vector<8x476xf32>
    %58 = arith.truncf %57 : vector<8x476xf32> to vector<8x476xbf16>
    %c5_47 = arith.constant 5 : index
    %c0_48 = arith.constant 0 : index
    %c0_49 = arith.constant 0 : index
    %59 = vector.load %arg3[%c5_47, %c0_48, %c0_49] : memref<17x476x21xbf16, #tpu.memory_space<vmem>>, vector<1x476x21xbf16>
    %60 = vector.shape_cast %59 : vector<1x476x21xbf16> to vector<476x21xbf16>
    %cst_50 = arith.constant dense<0.000000e+00> : vector<8x21xf32>
    %61 = tpu.matmul %58, %60, %cst_50 {dimension_numbers = #tpu.dot_dimension_numbers<[1], [0], [0], [1], [0, 0, 1, 1], [], []>} : vector<8x476xbf16>, vector<476x21xbf16>, vector<8x21xf32> -> vector<8x21xf32>
    %62 = arith.addf %42, %61 : vector<8x21xf32>
    %c6 = arith.constant 6 : index
    %c0_51 = arith.constant 0 : index
    %c0_52 = arith.constant 0 : index
    %63 = vector.load %arg1[%c6, %c0_51, %c0_52] : memref<17x8x384xbf16, #tpu.memory_space<vmem>>, vector<1x8x384xbf16>
    %64 = vector.shape_cast %63 : vector<1x8x384xbf16> to vector<8x384xbf16>
    %cst_53 = arith.constant dense<0.000000e+00> : vector<8x476xf32>
    %65 = tpu.matmul %64, %0, %cst_53 {dimension_numbers = #tpu.dot_dimension_numbers<[1], [0], [0], [1], [0, 0, 1, 1], [], []>} : vector<8x384xbf16>, vector<384x476xbf16>, vector<8x476xf32> -> vector<8x476xf32>
    %cst_54 = arith.constant 0.000000e+00 : f32
    %66 = vector.broadcast %cst_54 : f32 to vector<8x476xf32>
    %67 = arith.maximumf %65, %66 : vector<8x476xf32>
    %68 = arith.truncf %67 : vector<8x476xf32> to vector<8x476xbf16>
    %c6_55 = arith.constant 6 : index
    %c0_56 = arith.constant 0 : index
    %c0_57 = arith.constant 0 : index
    %69 = vector.load %arg3[%c6_55, %c0_56, %c0_57] : memref<17x476x21xbf16, #tpu.memory_space<vmem>>, vector<1x476x21xbf16>
    %70 = vector.shape_cast %69 : vector<1x476x21xbf16> to vector<476x21xbf16>
    %cst_58 = arith.constant dense<0.000000e+00> : vector<8x21xf32>
    %71 = tpu.matmul %68, %70, %cst_58 {dimension_numbers = #tpu.dot_dimension_numbers<[1], [0], [0], [1], [0, 0, 1, 1], [], []>} : vector<8x476xbf16>, vector<476x21xbf16>, vector<8x21xf32> -> vector<8x21xf32>
    %72 = arith.addf %52, %71 : vector<8x21xf32>
    %c7 = arith.constant 7 : index
    %c0_59 = arith.constant 0 : index
    %c0_60 = arith.constant 0 : index
    %73 = vector.load %arg1[%c7, %c0_59, %c0_60] : memref<17x8x384xbf16, #tpu.memory_space<vmem>>, vector<1x8x384xbf16>
    %74 = vector.shape_cast %73 : vector<1x8x384xbf16> to vector<8x384xbf16>
    %cst_61 = arith.constant dense<0.000000e+00> : vector<8x476xf32>
    %75 = tpu.matmul %74, %0, %cst_61 {dimension_numbers = #tpu.dot_dimension_numbers<[1], [0], [0], [1], [0, 0, 1, 1], [], []>} : vector<8x384xbf16>, vector<384x476xbf16>, vector<8x476xf32> -> vector<8x476xf32>
    %cst_62 = arith.constant 0.000000e+00 : f32
    %76 = vector.broadcast %cst_62 : f32 to vector<8x476xf32>
    %77 = arith.maximumf %75, %76 : vector<8x476xf32>
    %78 = arith.truncf %77 : vector<8x476xf32> to vector<8x476xbf16>
    %c7_63 = arith.constant 7 : index
    %c0_64 = arith.constant 0 : index
    %c0_65 = arith.constant 0 : index
    %79 = vector.load %arg3[%c7_63, %c0_64, %c0_65] : memref<17x476x21xbf16, #tpu.memory_space<vmem>>, vector<1x476x21xbf16>
    %80 = vector.shape_cast %79 : vector<1x476x21xbf16> to vector<476x21xbf16>
    %cst_66 = arith.constant dense<0.000000e+00> : vector<8x21xf32>
    %81 = tpu.matmul %78, %80, %cst_66 {dimension_numbers = #tpu.dot_dimension_numbers<[1], [0], [0], [1], [0, 0, 1, 1], [], []>} : vector<8x476xbf16>, vector<476x21xbf16>, vector<8x21xf32> -> vector<8x21xf32>
    %82 = arith.addf %62, %81 : vector<8x21xf32>
    %c8 = arith.constant 8 : index
    %c0_67 = arith.constant 0 : index
    %c0_68 = arith.constant 0 : index
    %83 = vector.load %arg1[%c8, %c0_67, %c0_68] : memref<17x8x384xbf16, #tpu.memory_space<vmem>>, vector<1x8x384xbf16>
    %84 = vector.shape_cast %83 : vector<1x8x384xbf16> to vector<8x384xbf16>
    %cst_69 = arith.constant dense<0.000000e+00> : vector<8x476xf32>
    %85 = tpu.matmul %84, %0, %cst_69 {dimension_numbers = #tpu.dot_dimension_numbers<[1], [0], [0], [1], [0, 0, 1, 1], [], []>} : vector<8x384xbf16>, vector<384x476xbf16>, vector<8x476xf32> -> vector<8x476xf32>
    %cst_70 = arith.constant 0.000000e+00 : f32
    %86 = vector.broadcast %cst_70 : f32 to vector<8x476xf32>
    %87 = arith.maximumf %85, %86 : vector<8x476xf32>
    %88 = arith.truncf %87 : vector<8x476xf32> to vector<8x476xbf16>
    %c8_71 = arith.constant 8 : index
    %c0_72 = arith.constant 0 : index
    %c0_73 = arith.constant 0 : index
    %89 = vector.load %arg3[%c8_71, %c0_72, %c0_73] : memref<17x476x21xbf16, #tpu.memory_space<vmem>>, vector<1x476x21xbf16>
    %90 = vector.shape_cast %89 : vector<1x476x21xbf16> to vector<476x21xbf16>
    %cst_74 = arith.constant dense<0.000000e+00> : vector<8x21xf32>
    %91 = tpu.matmul %88, %90, %cst_74 {dimension_numbers = #tpu.dot_dimension_numbers<[1], [0], [0], [1], [0, 0, 1, 1], [], []>} : vector<8x476xbf16>, vector<476x21xbf16>, vector<8x21xf32> -> vector<8x21xf32>
    %92 = arith.addf %72, %91 : vector<8x21xf32>
    %c9 = arith.constant 9 : index
    %c0_75 = arith.constant 0 : index
    %c0_76 = arith.constant 0 : index
    %93 = vector.load %arg1[%c9, %c0_75, %c0_76] : memref<17x8x384xbf16, #tpu.memory_space<vmem>>, vector<1x8x384xbf16>
    %94 = vector.shape_cast %93 : vector<1x8x384xbf16> to vector<8x384xbf16>
    %cst_77 = arith.constant dense<0.000000e+00> : vector<8x476xf32>
    %95 = tpu.matmul %94, %0, %cst_77 {dimension_numbers = #tpu.dot_dimension_numbers<[1], [0], [0], [1], [0, 0, 1, 1], [], []>} : vector<8x384xbf16>, vector<384x476xbf16>, vector<8x476xf32> -> vector<8x476xf32>
    %cst_78 = arith.constant 0.000000e+00 : f32
    %96 = vector.broadcast %cst_78 : f32 to vector<8x476xf32>
    %97 = arith.maximumf %95, %96 : vector<8x476xf32>
    %98 = arith.truncf %97 : vector<8x476xf32> to vector<8x476xbf16>
    %c9_79 = arith.constant 9 : index
    %c0_80 = arith.constant 0 : index
    %c0_81 = arith.constant 0 : index
    %99 = vector.load %arg3[%c9_79, %c0_80, %c0_81] : memref<17x476x21xbf16, #tpu.memory_space<vmem>>, vector<1x476x21xbf16>
    %100 = vector.shape_cast %99 : vector<1x476x21xbf16> to vector<476x21xbf16>
    %cst_82 = arith.constant dense<0.000000e+00> : vector<8x21xf32>
    %101 = tpu.matmul %98, %100, %cst_82 {dimension_numbers = #tpu.dot_dimension_numbers<[1], [0], [0], [1], [0, 0, 1, 1], [], []>} : vector<8x476xbf16>, vector<476x21xbf16>, vector<8x21xf32> -> vector<8x21xf32>
    %102 = arith.addf %82, %101 : vector<8x21xf32>
    %c10 = arith.constant 10 : index
    %c0_83 = arith.constant 0 : index
    %c0_84 = arith.constant 0 : index
    %103 = vector.load %arg1[%c10, %c0_83, %c0_84] : memref<17x8x384xbf16, #tpu.memory_space<vmem>>, vector<1x8x384xbf16>
    %104 = vector.shape_cast %103 : vector<1x8x384xbf16> to vector<8x384xbf16>
    %cst_85 = arith.constant dense<0.000000e+00> : vector<8x476xf32>
    %105 = tpu.matmul %104, %0, %cst_85 {dimension_numbers = #tpu.dot_dimension_numbers<[1], [0], [0], [1], [0, 0, 1, 1], [], []>} : vector<8x384xbf16>, vector<384x476xbf16>, vector<8x476xf32> -> vector<8x476xf32>
    %cst_86 = arith.constant 0.000000e+00 : f32
    %106 = vector.broadcast %cst_86 : f32 to vector<8x476xf32>
    %107 = arith.maximumf %105, %106 : vector<8x476xf32>
    %108 = arith.truncf %107 : vector<8x476xf32> to vector<8x476xbf16>
    %c10_87 = arith.constant 10 : index
    %c0_88 = arith.constant 0 : index
    %c0_89 = arith.constant 0 : index
    %109 = vector.load %arg3[%c10_87, %c0_88, %c0_89] : memref<17x476x21xbf16, #tpu.memory_space<vmem>>, vector<1x476x21xbf16>
    %110 = vector.shape_cast %109 : vector<1x476x21xbf16> to vector<476x21xbf16>
    %cst_90 = arith.constant dense<0.000000e+00> : vector<8x21xf32>
    %111 = tpu.matmul %108, %110, %cst_90 {dimension_numbers = #tpu.dot_dimension_numbers<[1], [0], [0], [1], [0, 0, 1, 1], [], []>} : vector<8x476xbf16>, vector<476x21xbf16>, vector<8x21xf32> -> vector<8x21xf32>
    %112 = arith.addf %92, %111 : vector<8x21xf32>
    %c11 = arith.constant 11 : index
    %c0_91 = arith.constant 0 : index
    %c0_92 = arith.constant 0 : index
    %113 = vector.load %arg1[%c11, %c0_91, %c0_92] : memref<17x8x384xbf16, #tpu.memory_space<vmem>>, vector<1x8x384xbf16>
    %114 = vector.shape_cast %113 : vector<1x8x384xbf16> to vector<8x384xbf16>
    %cst_93 = arith.constant dense<0.000000e+00> : vector<8x476xf32>
    %115 = tpu.matmul %114, %0, %cst_93 {dimension_numbers = #tpu.dot_dimension_numbers<[1], [0], [0], [1], [0, 0, 1, 1], [], []>} : vector<8x384xbf16>, vector<384x476xbf16>, vector<8x476xf32> -> vector<8x476xf32>
    %cst_94 = arith.constant 0.000000e+00 : f32
    %116 = vector.broadcast %cst_94 : f32 to vector<8x476xf32>
    %117 = arith.maximumf %115, %116 : vector<8x476xf32>
    %118 = arith.truncf %117 : vector<8x476xf32> to vector<8x476xbf16>
    %c11_95 = arith.constant 11 : index
    %c0_96 = arith.constant 0 : index
    %c0_97 = arith.constant 0 : index
    %119 = vector.load %arg3[%c11_95, %c0_96, %c0_97] : memref<17x476x21xbf16, #tpu.memory_space<vmem>>, vector<1x476x21xbf16>
    %120 = vector.shape_cast %119 : vector<1x476x21xbf16> to vector<476x21xbf16>
    %cst_98 = arith.constant dense<0.000000e+00> : vector<8x21xf32>
    %121 = tpu.matmul %118, %120, %cst_98 {dimension_numbers = #tpu.dot_dimension_numbers<[1], [0], [0], [1], [0, 0, 1, 1], [], []>} : vector<8x476xbf16>, vector<476x21xbf16>, vector<8x21xf32> -> vector<8x21xf32>
    %122 = arith.addf %102, %121 : vector<8x21xf32>
    %c12 = arith.constant 12 : index
    %c0_99 = arith.constant 0 : index
    %c0_100 = arith.constant 0 : index
    %123 = vector.load %arg1[%c12, %c0_99, %c0_100] : memref<17x8x384xbf16, #tpu.memory_space<vmem>>, vector<1x8x384xbf16>
    %124 = vector.shape_cast %123 : vector<1x8x384xbf16> to vector<8x384xbf16>
    %cst_101 = arith.constant dense<0.000000e+00> : vector<8x476xf32>
    %125 = tpu.matmul %124, %0, %cst_101 {dimension_numbers = #tpu.dot_dimension_numbers<[1], [0], [0], [1], [0, 0, 1, 1], [], []>} : vector<8x384xbf16>, vector<384x476xbf16>, vector<8x476xf32> -> vector<8x476xf32>
    %cst_102 = arith.constant 0.000000e+00 : f32
    %126 = vector.broadcast %cst_102 : f32 to vector<8x476xf32>
    %127 = arith.maximumf %125, %126 : vector<8x476xf32>
    %128 = arith.truncf %127 : vector<8x476xf32> to vector<8x476xbf16>
    %c12_103 = arith.constant 12 : index
    %c0_104 = arith.constant 0 : index
    %c0_105 = arith.constant 0 : index
    %129 = vector.load %arg3[%c12_103, %c0_104, %c0_105] : memref<17x476x21xbf16, #tpu.memory_space<vmem>>, vector<1x476x21xbf16>
    %130 = vector.shape_cast %129 : vector<1x476x21xbf16> to vector<476x21xbf16>
    %cst_106 = arith.constant dense<0.000000e+00> : vector<8x21xf32>
    %131 = tpu.matmul %128, %130, %cst_106 {dimension_numbers = #tpu.dot_dimension_numbers<[1], [0], [0], [1], [0, 0, 1, 1], [], []>} : vector<8x476xbf16>, vector<476x21xbf16>, vector<8x21xf32> -> vector<8x21xf32>
    %132 = arith.addf %112, %131 : vector<8x21xf32>
    %c13 = arith.constant 13 : index
    %c0_107 = arith.constant 0 : index
    %c0_108 = arith.constant 0 : index
    %133 = vector.load %arg1[%c13, %c0_107, %c0_108] : memref<17x8x384xbf16, #tpu.memory_space<vmem>>, vector<1x8x384xbf16>
    %134 = vector.shape_cast %133 : vector<1x8x384xbf16> to vector<8x384xbf16>
    %cst_109 = arith.constant dense<0.000000e+00> : vector<8x476xf32>
    %135 = tpu.matmul %134, %0, %cst_109 {dimension_numbers = #tpu.dot_dimension_numbers<[1], [0], [0], [1], [0, 0, 1, 1], [], []>} : vector<8x384xbf16>, vector<384x476xbf16>, vector<8x476xf32> -> vector<8x476xf32>
    %cst_110 = arith.constant 0.000000e+00 : f32
    %136 = vector.broadcast %cst_110 : f32 to vector<8x476xf32>
    %137 = arith.maximumf %135, %136 : vector<8x476xf32>
    %138 = arith.truncf %137 : vector<8x476xf32> to vector<8x476xbf16>
    %c13_111 = arith.constant 13 : index
    %c0_112 = arith.constant 0 : index
    %c0_113 = arith.constant 0 : index
    %139 = vector.load %arg3[%c13_111, %c0_112, %c0_113] : memref<17x476x21xbf16, #tpu.memory_space<vmem>>, vector<1x476x21xbf16>
    %140 = vector.shape_cast %139 : vector<1x476x21xbf16> to vector<476x21xbf16>
    %cst_114 = arith.constant dense<0.000000e+00> : vector<8x21xf32>
    %141 = tpu.matmul %138, %140, %cst_114 {dimension_numbers = #tpu.dot_dimension_numbers<[1], [0], [0], [1], [0, 0, 1, 1], [], []>} : vector<8x476xbf16>, vector<476x21xbf16>, vector<8x21xf32> -> vector<8x21xf32>
    %142 = arith.addf %122, %141 : vector<8x21xf32>
    %c14 = arith.constant 14 : index
    %c0_115 = arith.constant 0 : index
    %c0_116 = arith.constant 0 : index
    %143 = vector.load %arg1[%c14, %c0_115, %c0_116] : memref<17x8x384xbf16, #tpu.memory_space<vmem>>, vector<1x8x384xbf16>
    %144 = vector.shape_cast %143 : vector<1x8x384xbf16> to vector<8x384xbf16>
    %cst_117 = arith.constant dense<0.000000e+00> : vector<8x476xf32>
    %145 = tpu.matmul %144, %0, %cst_117 {dimension_numbers = #tpu.dot_dimension_numbers<[1], [0], [0], [1], [0, 0, 1, 1], [], []>} : vector<8x384xbf16>, vector<384x476xbf16>, vector<8x476xf32> -> vector<8x476xf32>
    %cst_118 = arith.constant 0.000000e+00 : f32
    %146 = vector.broadcast %cst_118 : f32 to vector<8x476xf32>
    %147 = arith.maximumf %145, %146 : vector<8x476xf32>
    %148 = arith.truncf %147 : vector<8x476xf32> to vector<8x476xbf16>
    %c14_119 = arith.constant 14 : index
    %c0_120 = arith.constant 0 : index
    %c0_121 = arith.constant 0 : index
    %149 = vector.load %arg3[%c14_119, %c0_120, %c0_121] : memref<17x476x21xbf16, #tpu.memory_space<vmem>>, vector<1x476x21xbf16>
    %150 = vector.shape_cast %149 : vector<1x476x21xbf16> to vector<476x21xbf16>
    %cst_122 = arith.constant dense<0.000000e+00> : vector<8x21xf32>
    %151 = tpu.matmul %148, %150, %cst_122 {dimension_numbers = #tpu.dot_dimension_numbers<[1], [0], [0], [1], [0, 0, 1, 1], [], []>} : vector<8x476xbf16>, vector<476x21xbf16>, vector<8x21xf32> -> vector<8x21xf32>
    %152 = arith.addf %132, %151 : vector<8x21xf32>
    %c15 = arith.constant 15 : index
    %c0_123 = arith.constant 0 : index
    %c0_124 = arith.constant 0 : index
    %153 = vector.load %arg1[%c15, %c0_123, %c0_124] : memref<17x8x384xbf16, #tpu.memory_space<vmem>>, vector<1x8x384xbf16>
    %154 = vector.shape_cast %153 : vector<1x8x384xbf16> to vector<8x384xbf16>
    %cst_125 = arith.constant dense<0.000000e+00> : vector<8x476xf32>
    %155 = tpu.matmul %154, %0, %cst_125 {dimension_numbers = #tpu.dot_dimension_numbers<[1], [0], [0], [1], [0, 0, 1, 1], [], []>} : vector<8x384xbf16>, vector<384x476xbf16>, vector<8x476xf32> -> vector<8x476xf32>
    %cst_126 = arith.constant 0.000000e+00 : f32
    %156 = vector.broadcast %cst_126 : f32 to vector<8x476xf32>
    %157 = arith.maximumf %155, %156 : vector<8x476xf32>
    %158 = arith.truncf %157 : vector<8x476xf32> to vector<8x476xbf16>
    %c15_127 = arith.constant 15 : index
    %c0_128 = arith.constant 0 : index
    %c0_129 = arith.constant 0 : index
    %159 = vector.load %arg3[%c15_127, %c0_128, %c0_129] : memref<17x476x21xbf16, #tpu.memory_space<vmem>>, vector<1x476x21xbf16>
    %160 = vector.shape_cast %159 : vector<1x476x21xbf16> to vector<476x21xbf16>
    %cst_130 = arith.constant dense<0.000000e+00> : vector<8x21xf32>
    %161 = tpu.matmul %158, %160, %cst_130 {dimension_numbers = #tpu.dot_dimension_numbers<[1], [0], [0], [1], [0, 0, 1, 1], [], []>} : vector<8x476xbf16>, vector<476x21xbf16>, vector<8x21xf32> -> vector<8x21xf32>
    %162 = arith.addf %142, %161 : vector<8x21xf32>
    %c16 = arith.constant 16 : index
    %c0_131 = arith.constant 0 : index
    %c0_132 = arith.constant 0 : index
    %163 = vector.load %arg1[%c16, %c0_131, %c0_132] : memref<17x8x384xbf16, #tpu.memory_space<vmem>>, vector<1x8x384xbf16>
    %164 = vector.shape_cast %163 : vector<1x8x384xbf16> to vector<8x384xbf16>
    %cst_133 = arith.constant dense<0.000000e+00> : vector<8x476xf32>
    %165 = tpu.matmul %164, %0, %cst_133 {dimension_numbers = #tpu.dot_dimension_numbers<[1], [0], [0], [1], [0, 0, 1, 1], [], []>} : vector<8x384xbf16>, vector<384x476xbf16>, vector<8x476xf32> -> vector<8x476xf32>
    %cst_134 = arith.constant 0.000000e+00 : f32
    %166 = vector.broadcast %cst_134 : f32 to vector<8x476xf32>
    %167 = arith.maximumf %165, %166 : vector<8x476xf32>
    %168 = arith.truncf %167 : vector<8x476xf32> to vector<8x476xbf16>
    %c16_135 = arith.constant 16 : index
    %c0_136 = arith.constant 0 : index
    %c0_137 = arith.constant 0 : index
    %169 = vector.load %arg3[%c16_135, %c0_136, %c0_137] : memref<17x476x21xbf16, #tpu.memory_space<vmem>>, vector<1x476x21xbf16>
    %170 = vector.shape_cast %169 : vector<1x476x21xbf16> to vector<476x21xbf16>
    %cst_138 = arith.constant dense<0.000000e+00> : vector<8x21xf32>
    %171 = tpu.matmul %168, %170, %cst_138 {dimension_numbers = #tpu.dot_dimension_numbers<[1], [0], [0], [1], [0, 0, 1, 1], [], []>} : vector<8x476xbf16>, vector<476x21xbf16>, vector<8x21xf32> -> vector<8x21xf32>
    %172 = arith.addf %152, %171 : vector<8x21xf32>
    %173 = arith.addf %172, %162 : vector<8x21xf32>
    %c0_139 = arith.constant 0 : index
    %c0_140 = arith.constant 0 : index
    %174 = vector.load %arg4[%c0_139, %c0_140] : memref<1x21xf32, #tpu.memory_space<vmem>>, vector<1x21xf32>
    %175 = vector.broadcast %174 : vector<1x21xf32> to vector<8x21xf32>
    %176 = arith.addf %173, %175 : vector<8x21xf32>
    %cst_141 = arith.constant 0.000000e+00 : f32
    %177 = vector.broadcast %cst_141 : f32 to vector<8x21xf32>
    %178 = arith.maximumf %176, %177 : vector<8x21xf32>
    %c0_142 = arith.constant 0 : index
    %c0_143 = arith.constant 0 : index
    %179 = vector.load %arg5[%c0_142, %c0_143] : memref<21x10xf32, #tpu.memory_space<vmem>>, vector<21x10xf32>
    %cst_144 = arith.constant dense<0.000000e+00> : vector<8x10xf32>
    %180 = tpu.matmul %178, %179, %cst_144 {dimension_numbers = #tpu.dot_dimension_numbers<[1], [0], [0], [1], [0, 0, 1, 1], [], []>} : vector<8x21xf32>, vector<21x10xf32>, vector<8x10xf32> -> vector<8x10xf32>
    %cst_145 = arith.constant dense<0xFF800000> : vector<8xf32>
    %181 = vector.multi_reduction <maximumf>, %180, %cst_145 [1] : vector<8x10xf32> to vector<8xf32>
    %182 = vector.shape_cast %181 : vector<8xf32> to vector<8x1xf32>
    %183 = vector.broadcast %182 : vector<8x1xf32> to vector<8x10xf32>
    %184 = arith.subf %180, %183 : vector<8x10xf32>
    %185 = math.exp %184 : vector<8x10xf32>
    %cst_146 = arith.constant dense<0.000000e+00> : vector<8xf32>
    %186 = vector.multi_reduction <add>, %185, %cst_146 [1] : vector<8x10xf32> to vector<8xf32>
    %187 = vector.shape_cast %186 : vector<8xf32> to vector<8x1xf32>
    %188 = math.log %187 : vector<8x1xf32>
    %189 = vector.broadcast %188 : vector<8x1xf32> to vector<8x10xf32>
    %190 = arith.subf %184, %189 : vector<8x10xf32>
    %c0_147 = arith.constant 0 : index
    %c0_148 = arith.constant 0 : index
    %191 = vector.load %arg6[%c0_147, %c0_148] : memref<8x10xf32, #tpu.memory_space<vmem>>, vector<8x10xf32>
    tpu.vector_store %arg6[%c0_147, %c0_148], %190 {strides = array<i32>} : memref<8x10xf32, #tpu.memory_space<vmem>>, vector<8x10xf32>,
    return
  }
  func.func @transform_0(%arg0: i32) -> (i32, i32, i32) {
    %c0_i32 = arith.constant 0 : i32
    %c0_i32_0 = arith.constant 0 : i32
    %c0_i32_1 = arith.constant 0 : i32
    return %c0_i32, %arg0, %c0_i32_0 : i32, i32, i32
  }
  func.func @transform_1(%arg0: i32) -> (i32, i32) {
    %c0_i32 = arith.constant 0 : i32
    %c0_i32_0 = arith.constant 0 : i32
    %c0_i32_1 = arith.constant 0 : i32
    return %c0_i32, %c0_i32_0 : i32, i32
  }
  func.func @transform_2(%arg0: i32) -> (i32, i32, i32) {
    %c0_i32 = arith.constant 0 : i32
    %c0_i32_0 = arith.constant 0 : i32
    %c0_i32_1 = arith.constant 0 : i32
    %c0_i32_2 = arith.constant 0 : i32
    return %c0_i32, %c0_i32_0, %c0_i32_1 : i32, i32, i32
  }
  func.func @transform_3(%arg0: i32) -> (i32, i32) {
    %c0_i32 = arith.constant 0 : i32
    %c0_i32_0 = arith.constant 0 : i32
    %c0_i32_1 = arith.constant 0 : i32
    return %c0_i32, %c0_i32_0 : i32, i32
  }
  func.func @transform_4(%arg0: i32) -> (i32, i32) {
    %c0_i32 = arith.constant 0 : i32
    %c0_i32_0 = arith.constant 0 : i32
    %c0_i32_1 = arith.constant 0 : i32
    return %c0_i32, %c0_i32_0 : i32, i32
  }
  func.func @transform_5(%arg0: i32) -> (i32, i32) {
    %c0_i32 = arith.constant 0 : i32
    %c0_i32_0 = arith.constant 0 : i32
    return %arg0, %c0_i32 : i32, i32
  }
}

</mosaic_0001>

<llo_original>
// kernel: tpu_custom_call.1
$region0: #{tpu_custom_call.1}
  #allocation0 [shape = 'u32[]', space=smem, size = 0x4, offset = 0x4, fixed_abs, tag = 'smem constant byte address 0x4 - core index']
  #allocation1 [shape = 'u32[72,128]{1,0:T(1,128)}', space=vmem, size = 0x9000, scoped, tag = 'internal scratch']
  %s0 = inlined_call_operand.vmem [shape: bf16[17,8,384], index: 0, kind: input, shape index: {}]
  %s1 = inlined_call_operand.vmem [shape: bf16[384,476], index: 1, kind: input, shape index: {}]
  %s2 = inlined_call_operand.vmem [shape: bf16[17,476,21], index: 2, kind: input, shape index: {}]
  %s3 = inlined_call_operand.vmem [shape: f32[1,21], index: 3, kind: input, shape index: {}]
  %s4 = inlined_call_operand.vmem [shape: f32[21,10], index: 4, kind: input, shape index: {}]
  %s5 = inlined_call_operand.hbm [shape: f32[8,10], index: 5, kind: output, shape index: {}]
  %s6 = sld [smem:[#allocation0]]
  $region30: #{tpu_custom_call.1} parent=0
    _
  %s8 = ssub.s32 1, %s6
  %s9 = scalar_select 0, %s8, %s6
  $region1: #{tpu_custom_call.1} parent=0
    #allocation2 [shape = 'u8[4096]{0}', space=vmem, size = 0x1000, scoped, tag = 'output window, operand 0, single buffered']
    #allocation3 [shape = 's32[1]{0}', space=sflag, size = 0x4, scoped, tag = 'scoped memory for tpu_custom_call.1']
    %10 = vsyncpa [#allocation3], 0
    // Predicated region
    $region2: #{tpu_custom_call.1} parent=1 // pred_check
      _
    $region3: #{tpu_custom_call.1} parent=1 // pred_check_branch
      %12 = sbr.rel (0) target = $region5
    $region4: #{tpu_custom_call.1} parent=1 // pred_region
      _
    $region5: #{tpu_custom_call.1} parent=1 // pred_fallthru
      _
    // Predicated region
    $region6: #{tpu_custom_call.1} parent=1 // pred_check
      _
    $region7: #{tpu_custom_call.1} parent=1 // pred_check_branch
      %14 = sbr.rel (0) target = $region9
    $region8: #{tpu_custom_call.1} parent=1 // pred_region
      _
    $region9: #{tpu_custom_call.1} parent=1 // pred_fallthru
      _
    // Predicated region
    $region10: #{tpu_custom_call.1} parent=1 // pred_check
      _
    $region11: #{tpu_custom_call.1} parent=1 // pred_check_branch
      %16 = sbr.rel (0) target = $region13
    $region12: #{tpu_custom_call.1} parent=1 // pred_region
      _
    $region13: #{tpu_custom_call.1} parent=1 // pred_fallthru
      _
    // Predicated region
    $region14: #{tpu_custom_call.1} parent=1 // pred_check
      _
    $region15: #{tpu_custom_call.1} parent=1 // pred_check_branch
      %18 = sbr.rel (0) target = $region17
    $region16: #{tpu_custom_call.1} parent=1 // pred_region
      _
    $region17: #{tpu_custom_call.1} parent=1 // pred_fallthru
      _
    // Predicated region
    $region18: #{tpu_custom_call.1} parent=1 // pred_check
      _
    $region19: #{tpu_custom_call.1} parent=1 // pred_check_branch
      %20 = sbr.rel (0) target = $region21
    $region20: #{tpu_custom_call.1} parent=1 // pred_region
      _
    $region21: #{tpu_custom_call.1} parent=1 // pred_fallthru
      _
    %v22 = vld [vmem:[%s1] sm:$0xff]
    %v23 = vld [vmem:[%s1 + $0x8] sm:$0xff]
    %v24 = vld [vmem:[%s1 + $0x10] sm:$0xff]
    %v25 = vld [vmem:[%s1 + $0x18] sm:$0xff]
    %v26 = vld [vmem:[%s1 + $0x20] sm:$0xff]
    %v27 = vld [vmem:[%s1 + $0x28] sm:$0xff]
    %v28 = vld [vmem:[%s1 + $0x30] sm:$0xff]
    %v29 = vld [vmem:[%s1 + $0x38] sm:$0xff]
    %v30 = vld [vmem:[%s1 + $0x40] sm:$0xff]
    %v31 = vld [vmem:[%s1 + $0x48] sm:$0xff]
    %v32 = vld [vmem:[%s1 + $0x50] sm:$0xff]
    %v33 = vld [vmem:[%s1 + $0x58] sm:$0xff]
    %v34 = vld [vmem:[%s1 + $0x60] sm:$0xff]
    %v35 = vld [vmem:[%s1 + $0x68] sm:$0xff]
    %v36 = vld [vmem:[%s1 + $0x70] sm:$0xff]
    %v37 = vld [vmem:[%s1 + $0x78] sm:$0xff]
    %v38 = vld [vmem:[%s1 + $0x80] sm:$0xff]
    %v39 = vld [vmem:[%s1 + $0x88] sm:$0xff]
    %v40 = vld [vmem:[%s1 + $0x90] sm:$0xff]
    %v41 = vld [vmem:[%s1 + $0x98] sm:$0xff]
    %v42 = vld [vmem:[%s1 + $0xa0] sm:$0xff]
    %v43 = vld [vmem:[%s1 + $0xa8] sm:$0xff]
    %v44 = vld [vmem:[%s1 + $0xb0] sm:$0xff]
    %v45 = vld [vmem:[%s1 + $0xb8] sm:$0xff]
    %v46 = vld [vmem:[%s1 + $0xc0] sm:$0xff]
    %v47 = vld [vmem:[%s1 + $0xc8] sm:$0xff]
    %v48 = vld [vmem:[%s1 + $0xd0] sm:$0xff]
    %v49 = vld [vmem:[%s1 + $0xd8] sm:$0xff]
    %v50 = vld [vmem:[%s1 + $0xe0] sm:$0xff]
    %v51 = vld [vmem:[%s1 + $0xe8] sm:$0xff]
    %v52 = vld [vmem:[%s1 + $0xf0] sm:$0xff]
    %v53 = vld [vmem:[%s1 + $0xf8] sm:$0xff]
    %v54 = vld [vmem:[%s1 + $0x100] sm:$0xff]
    %v55 = vld [vmem:[%s1 + $0x108] sm:$0xff]
    %v56 = vld [vmem:[%s1 + $0x110] sm:$0xff]
    %v57 = vld [vmem:[%s1 + $0x118] sm:$0xff]
    %v58 = vld [vmem:[%s1 + $0x120] sm:$0xff]
    %v59 = vld [vmem:[%s1 + $0x128] sm:$0xff]
    %v60 = vld [vmem:[%s1 + $0x130] sm:$0xff]
    %v61 = vld [vmem:[%s1 + $0x138] sm:$0xff]
    %v62 = vld [vmem:[%s1 + $0x140] sm:$0xff]
    %v63 = vld [vmem:[%s1 + $0x148] sm:$0xff]
    %v64 = vld [vmem:[%s1 + $0x150] sm:$0xff]
    %v65 = vld [vmem:[%s1 + $0x158] sm:$0xff]
    %v66 = vld [vmem:[%s1 + $0x160] sm:$0xff]
    %v67 = vld [vmem:[%s1 + $0x168] sm:$0xff]
    %v68 = vld [vmem:[%s1 + $0x170] sm:$0xff]
    %v69 = vld [vmem:[%s1 + $0x178] sm:$0xff]
    %v70 = vld [vmem:[%s1 + $0x180] sm:$0xff]
    %v71 = vld [vmem:[%s1 + $0x188] sm:$0xff]
    %v72 = vld [vmem:[%s1 + $0x190] sm:$0xff]
    %v73 = vld [vmem:[%s1 + $0x198] sm:$0xff]
    %v74 = vld [vmem:[%s1 + $0x1a0] sm:$0xff]
    %v75 = vld [vmem:[%s1 + $0x1a8] sm:$0xff]
    %v76 = vld [vmem:[%s1 + $0x1b0] sm:$0xff]
    %v77 = vld [vmem:[%s1 + $0x1b8] sm:$0xff]
    %v78 = vld [vmem:[%s1 + $0x1c0] sm:$0xff]
    %v79 = vld [vmem:[%s1 + $0x1c8] sm:$0xff]
    %v80 = vld [vmem:[%s1 + $0x1d0] sm:$0xff]
    %v81 = vld [vmem:[%s1 + $0x1d8] sm:$0xff]
    %v82 = vld [vmem:[%s1 + $0x1e0] sm:$0xff]
    %v83 = vld [vmem:[%s1 + $0x1e8] sm:$0xff]
    %v84 = vld [vmem:[%s1 + $0x1f0] sm:$0xff]
    %v85 = vld [vmem:[%s1 + $0x1f8] sm:$0xff]
    %v86 = vld [vmem:[%s1 + $0x200] sm:$0xff]
    %v87 = vld [vmem:[%s1 + $0x208] sm:$0xff]
    %v88 = vld [vmem:[%s1 + $0x210] sm:$0xff]
    %v89 = vld [vmem:[%s1 + $0x218] sm:$0xff]
    %v90 = vld [vmem:[%s1 + $0x220] sm:$0xff]
    %v91 = vld [vmem:[%s1 + $0x228] sm:$0xff]
    %v92 = vld [vmem:[%s1 + $0x230] sm:$0xff]
    %v93 = vld [vmem:[%s1 + $0x238] sm:$0xff]
    %v94 = vld [vmem:[%s1 + $0x240] sm:$0xff]
    %v95 = vld [vmem:[%s1 + $0x248] sm:$0xff]
    %v96 = vld [vmem:[%s1 + $0x250] sm:$0xff]
    %v97 = vld [vmem:[%s1 + $0x258] sm:$0xff]
    %v98 = vld [vmem:[%s1 + $0x260] sm:$0xff]
    %v99 = vld [vmem:[%s1 + $0x268] sm:$0xff]
    %v100 = vld [vmem:[%s1 + $0x270] sm:$0xff]
    %v101 = vld [vmem:[%s1 + $0x278] sm:$0xff]
    %v102 = vld [vmem:[%s1 + $0x280] sm:$0xff]
    %v103 = vld [vmem:[%s1 + $0x288] sm:$0xff]
    %v104 = vld [vmem:[%s1 + $0x290] sm:$0xff]
    %v105 = vld [vmem:[%s1 + $0x298] sm:$0xff]
    %v106 = vld [vmem:[%s1 + $0x2a0] sm:$0xff]
    %v107 = vld [vmem:[%s1 + $0x2a8] sm:$0xff]
    %v108 = vld [vmem:[%s1 + $0x2b0] sm:$0xff]
    %v109 = vld [vmem:[%s1 + $0x2b8] sm:$0xff]
    %v110 = vld [vmem:[%s1 + $0x2c0] sm:$0xff]
    %v111 = vld [vmem:[%s1 + $0x2c8] sm:$0xff]
    %v112 = vld [vmem:[%s1 + $0x2d0] sm:$0xff]
    %v113 = vld [vmem:[%s1 + $0x2d8] sm:$0xff]
    %v114 = vld [vmem:[%s1 + $0x2e0] sm:$0xff]
    %v115 = vld [vmem:[%s1 + $0x2e8] sm:$0xff]
    %v116 = vld [vmem:[%s1 + $0x2f0] sm:$0xff]
    %v117 = vld [vmem:[%s1 + $0x2f8] sm:$0xff]
    %v118 = vld [vmem:[%s0] sm:$0xff]
    %v119 = vld [vmem:[%s0 + $0x8] sm:$0xf]
    %v122 = vunpack.c.l.b16 %v118
    %v123 = vunpack.c.h.b16 %v118
    %v124 = vunpack.c.l.b16 %v119
    %v125 = vpack.c.b16 %v122, %v122
    %v126 = vpack.c.b16 %v123, %v123
    %v127 = vpack.c.b16 %v124, %v124
    %v227 = vunpack.c.l.b16 %v22
    %v228 = vunpack.c.h.b16 %v22
    %v229 = vunpack.c.l.b16 %v23
    %v230 = vunpack.c.h.b16 %v23
    %v231 = vunpack.c.l.b16 %v24
    %v232 = vunpack.c.h.b16 %v24
    %v233 = vunpack.c.l.b16 %v25
    %v234 = vunpack.c.h.b16 %v25
    %v235 = vunpack.c.l.b16 %v26
    %v236 = vunpack.c.h.b16 %v26
    %v237 = vunpack.c.l.b16 %v27
    %v238 = vunpack.c.h.b16 %v27
    %v239 = vunpack.c.l.b16 %v28
    %v240 = vunpack.c.h.b16 %v28
    %v241 = vunpack.c.l.b16 %v29
    %v242 = vunpack.c.h.b16 %v29
    %v243 = vunpack.c.l.b16 %v30
    %v244 = vunpack.c.h.b16 %v30
    %v245 = vunpack.c.l.b16 %v31
    %v246 = vunpack.c.h.b16 %v31
    %v247 = vunpack.c.l.b16 %v32
    %v248 = vunpack.c.h.b16 %v32
    %v249 = vunpack.c.l.b16 %v33
    %v250 = vunpack.c.h.b16 %v33
    %v251 = vunpack.c.l.b16 %v34
    %v252 = vunpack.c.h.b16 %v34
    %v253 = vunpack.c.l.b16 %v35
    %v254 = vunpack.c.h.b16 %v35
    %v255 = vunpack.c.l.b16 %v36
    %v256 = vunpack.c.h.b16 %v36
    %v257 = vunpack.c.l.b16 %v37
    %v258 = vunpack.c.h.b16 %v37
    %v259 = vunpack.c.l.b16 %v38
    %v260 = vunpack.c.h.b16 %v38
    %v261 = vunpack.c.l.b16 %v39
    %v262 = vunpack.c.h.b16 %v39
    %v263 = vunpack.c.l.b16 %v40
    %v264 = vunpack.c.h.b16 %v40
    %v265 = vunpack.c.l.b16 %v41
    %v266 = vunpack.c.h.b16 %v41
    %v267 = vunpack.c.l.b16 %v42
    %v268 = vunpack.c.h.b16 %v42
    %v269 = vunpack.c.l.b16 %v43
    %v270 = vunpack.c.h.b16 %v43
    %v271 = vunpack.c.l.b16 %v44
    %v272 = vunpack.c.h.b16 %v44
    %v273 = vunpack.c.l.b16 %v45
    %v274 = vunpack.c.h.b16 %v45
    %v275 = vunpack.c.l.b16 %v46
    %v276 = vunpack.c.h.b16 %v46
    %v277 = vunpack.c.l.b16 %v47
    %v278 = vunpack.c.h.b16 %v47
    %v279 = vunpack.c.l.b16 %v48
    %v280 = vunpack.c.h.b16 %v48
    %v281 = vunpack.c.l.b16 %v49
    %v282 = vunpack.c.h.b16 %v49
    %v283 = vunpack.c.l.b16 %v50
    %v284 = vunpack.c.h.b16 %v50
    %v285 = vunpack.c.l.b16 %v51
    %v286 = vunpack.c.h.b16 %v51
    %v287 = vunpack.c.l.b16 %v52
    %v288 = vunpack.c.h.b16 %v52
    %v289 = vunpack.c.l.b16 %v53
    %v290 = vunpack.c.h.b16 %v53
    %v291 = vunpack.c.l.b16 %v54
    %v292 = vunpack.c.h.b16 %v54
    %v293 = vunpack.c.l.b16 %v55
    %v294 = vunpack.c.h.b16 %v55
    %v295 = vunpack.c.l.b16 %v56
    %v296 = vunpack.c.h.b16 %v56
    %v297 = vunpack.c.l.b16 %v57
    %v298 = vunpack.c.h.b16 %v57
    %v299 = vunpack.c.l.b16 %v58
    %v300 = vunpack.c.h.b16 %v58
    %v301 = vunpack.c.l.b16 %v59
    %v302 = vunpack.c.h.b16 %v59
    %v303 = vunpack.c.l.b16 %v60
    %v304 = vunpack.c.h.b16 %v60
    %v305 = vunpack.c.l.b16 %v61
    %v306 = vunpack.c.h.b16 %v61
    %v307 = vunpack.c.l.b16 %v62
    %v308 = vunpack.c.h.b16 %v62
    %v309 = vunpack.c.l.b16 %v63
    %v310 = vunpack.c.h.b16 %v63
    %v311 = vunpack.c.l.b16 %v64
    %v312 = vunpack.c.h.b16 %v64
    %v313 = vunpack.c.l.b16 %v65
    %v314 = vunpack.c.h.b16 %v65
    %v315 = vunpack.c.l.b16 %v66
    %v316 = vunpack.c.h.b16 %v66
    %v317 = vunpack.c.l.b16 %v67
    %v318 = vunpack.c.h.b16 %v67
    %v319 = vunpack.c.l.b16 %v68
    %v320 = vunpack.c.h.b16 %v68
    %v321 = vunpack.c.l.b16 %v69
    %v322 = vunpack.c.h.b16 %v69
    %v323 = vunpack.c.l.b16 %v70
    %v324 = vunpack.c.h.b16 %v70
    %v325 = vunpack.c.l.b16 %v71
    %v326 = vunpack.c.h.b16 %v71
    %v327 = vunpack.c.l.b16 %v72
    %v328 = vunpack.c.h.b16 %v72
    %v329 = vunpack.c.l.b16 %v73
    %v330 = vunpack.c.h.b16 %v73
    %v331 = vunpack.c.l.b16 %v74
    %v332 = vunpack.c.h.b16 %v74
    %v333 = vunpack.c.l.b16 %v75
    %v334 = vunpack.c.h.b16 %v75
    %v335 = vunpack.c.l.b16 %v76
    %v336 = vunpack.c.h.b16 %v76
    %v337 = vunpack.c.l.b16 %v77
    %v338 = vunpack.c.h.b16 %v77
    %v339 = vunpack.c.l.b16 %v78
    %v340 = vunpack.c.h.b16 %v78
    %v341 = vunpack.c.l.b16 %v79
    %v342 = vunpack.c.h.b16 %v79
    %v343 = vunpack.c.l.b16 %v80
    %v344 = vunpack.c.h.b16 %v80
    %v345 = vunpack.c.l.b16 %v81
    %v346 = vunpack.c.h.b16 %v81
    %v347 = vunpack.c.l.b16 %v82
    %v348 = vunpack.c.h.b16 %v82
    %v349 = vunpack.c.l.b16 %v83
    %v350 = vunpack.c.h.b16 %v83
    %v351 = vunpack.c.l.b16 %v84
    %v352 = vunpack.c.h.b16 %v84
    %v353 = vunpack.c.l.b16 %v85
    %v354 = vunpack.c.h.b16 %v85
    %v355 = vunpack.c.l.b16 %v86
    %v356 = vunpack.c.h.b16 %v86
    %v357 = vunpack.c.l.b16 %v87
    %v358 = vunpack.c.h.b16 %v87
    %v359 = vunpack.c.l.b16 %v88
    %v360 = vunpack.c.h.b16 %v88
    %v361 = vunpack.c.l.b16 %v89
    %v362 = vunpack.c.h.b16 %v89
    %v363 = vunpack.c.l.b16 %v90
    %v364 = vunpack.c.h.b16 %v90
    %v365 = vunpack.c.l.b16 %v91
    %v366 = vunpack.c.h.b16 %v91
    %v367 = vunpack.c.l.b16 %v92
    %v368 = vunpack.c.h.b16 %v92
    %v369 = vunpack.c.l.b16 %v93
    %v370 = vunpack.c.h.b16 %v93
    %v371 = vunpack.c.l.b16 %v94
    %v372 = vunpack.c.h.b16 %v94
    %v373 = vunpack.c.l.b16 %v95
    %v374 = vunpack.c.h.b16 %v95
    %v375 = vunpack.c.l.b16 %v96
    %v376 = vunpack.c.h.b16 %v96
    %v377 = vunpack.c.l.b16 %v97
    %v378 = vunpack.c.h.b16 %v97
    %v379 = vunpack.c.l.b16 %v98
    %v380 = vunpack.c.h.b16 %v98
    %v381 = vunpack.c.l.b16 %v99
    %v382 = vunpack.c.h.b16 %v99
    %v383 = vunpack.c.l.b16 %v100
    %v384 = vunpack.c.h.b16 %v100
    %v385 = vunpack.c.l.b16 %v101
    %v386 = vunpack.c.h.b16 %v101
    %v387 = vunpack.c.l.b16 %v102
    %v388 = vunpack.c.h.b16 %v102
    %v389 = vunpack.c.l.b16 %v103
    %v390 = vunpack.c.h.b16 %v103
    %v391 = vunpack.c.l.b16 %v104
    %v392 = vunpack.c.h.b16 %v104
    %v393 = vunpack.c.l.b16 %v105
    %v394 = vunpack.c.h.b16 %v105
    %v395 = vunpack.c.l.b16 %v106
    %v396 = vunpack.c.h.b16 %v106
    %v397 = vunpack.c.l.b16 %v107
    %v398 = vunpack.c.h.b16 %v107
    %v399 = vunpack.c.l.b16 %v108
    %v400 = vunpack.c.h.b16 %v108
    %v401 = vunpack.c.l.b16 %v109
    %v402 = vunpack.c.h.b16 %v109
    %v403 = vunpack.c.l.b16 %v110
    %v404 = vunpack.c.h.b16 %v110
    %v405 = vunpack.c.l.b16 %v111
    %v406 = vunpack.c.h.b16 %v111
    %v407 = vunpack.c.l.b16 %v112
    %v408 = vunpack.c.h.b16 %v112
    %v409 = vunpack.c.l.b16 %v113
    %v410 = vunpack.c.h.b16 %v113
    %v411 = vunpack.c.l.b16 %v114
    %v412 = vunpack.c.h.b16 %v114
    %v413 = vunpack.c.l.b16 %v115
    %v414 = vunpack.c.h.b16 %v115
    %v415 = vunpack.c.l.b16 %v116
    %v416 = vunpack.c.h.b16 %v116
    %v417 = vunpack.c.l.b16 %v117
    %v418 = vunpack.c.h.b16 %v117
    %v419 = vpack.c.b16 %v231, %v227
    %v420 = vpack.c.b16 %v232, %v228
    %v421 = vpack.c.b16 %v233, %v229
    %v422 = vpack.c.b16 %v234, %v230
    %v423 = vpack.c.b16 %v239, %v235
    %v424 = vpack.c.b16 %v240, %v236
    %v425 = vpack.c.b16 %v241, %v237
    %v426 = vpack.c.b16 %v242, %v238
    %v427 = vpack.c.b16 %v247, %v243
    %v428 = vpack.c.b16 %v248, %v244
    %v429 = vpack.c.b16 %v249, %v245
    %v430 = vpack.c.b16 %v250, %v246
    %v431 = vpack.c.b16 %v255, %v251
    %v432 = vpack.c.b16 %v256, %v252
    %v433 = vpack.c.b16 %v257, %v253
    %v434 = vpack.c.b16 %v258, %v254
    %v435 = vpack.c.b16 %v263, %v259
    %v436 = vpack.c.b16 %v264, %v260
    %v437 = vpack.c.b16 %v265, %v261
    %v438 = vpack.c.b16 %v266, %v262
    %v439 = vpack.c.b16 %v271, %v267
    %v440 = vpack.c.b16 %v272, %v268
    %v441 = vpack.c.b16 %v273, %v269
    %v442 = vpack.c.b16 %v274, %v270
    %v443 = vpack.c.b16 %v279, %v275
    %v444 = vpack.c.b16 %v280, %v276
    %v445 = vpack.c.b16 %v281, %v277
    %v446 = vpack.c.b16 %v282, %v278
    %v447 = vpack.c.b16 %v287, %v283
    %v448 = vpack.c.b16 %v288, %v284
    %v449 = vpack.c.b16 %v289, %v285
    %v450 = vpack.c.b16 %v290, %v286
    %v451 = vpack.c.b16 %v295, %v291
    %v452 = vpack.c.b16 %v296, %v292
    %v453 = vpack.c.b16 %v297, %v293
    %v454 = vpack.c.b16 %v298, %v294
    %v455 = vpack.c.b16 %v303, %v299
    %v456 = vpack.c.b16 %v304, %v300
    %v457 = vpack.c.b16 %v305, %v301
    %v458 = vpack.c.b16 %v306, %v302
    %v459 = vpack.c.b16 %v311, %v307
    %v460 = vpack.c.b16 %v312, %v308
    %v461 = vpack.c.b16 %v313, %v309
    %v462 = vpack.c.b16 %v314, %v310
    %v463 = vpack.c.b16 %v319, %v315
    %v464 = vpack.c.b16 %v320, %v316
    %v465 = vpack.c.b16 %v321, %v317
    %v466 = vpack.c.b16 %v322, %v318
    %v467 = vpack.c.b16 %v327, %v323
    %v468 = vpack.c.b16 %v328, %v324
    %v469 = vpack.c.b16 %v329, %v325
    %v470 = vpack.c.b16 %v330, %v326
    %v471 = vpack.c.b16 %v335, %v331
    %v472 = vpack.c.b16 %v336, %v332
    %v473 = vpack.c.b16 %v337, %v333
    %v474 = vpack.c.b16 %v338, %v334
    %v475 = vpack.c.b16 %v343, %v339
    %v476 = vpack.c.b16 %v344, %v340
    %v477 = vpack.c.b16 %v345, %v341
    %v478 = vpack.c.b16 %v346, %v342
    %v479 = vpack.c.b16 %v351, %v347
    %v480 = vpack.c.b16 %v352, %v348
    %v481 = vpack.c.b16 %v353, %v349
    %v482 = vpack.c.b16 %v354, %v350
    %v483 = vpack.c.b16 %v359, %v355
    %v484 = vpack.c.b16 %v360, %v356
    %v485 = vpack.c.b16 %v361, %v357
    %v486 = vpack.c.b16 %v362, %v358
    %v487 = vpack.c.b16 %v367, %v363
    %v488 = vpack.c.b16 %v368, %v364
    %v489 = vpack.c.b16 %v369, %v365
    %v490 = vpack.c.b16 %v370, %v366
    %v491 = vpack.c.b16 %v375, %v371
    %v492 = vpack.c.b16 %v376, %v372
    %v493 = vpack.c.b16 %v377, %v373
    %v494 = vpack.c.b16 %v378, %v374
    %v495 = vpack.c.b16 %v383, %v379
    %v496 = vpack.c.b16 %v384, %v380
    %v497 = vpack.c.b16 %v385, %v381
    %v498 = vpack.c.b16 %v386, %v382
    %v499 = vpack.c.b16 %v391, %v387
    %v500 = vpack.c.b16 %v392, %v388
    %v501 = vpack.c.b16 %v393, %v389
    %v502 = vpack.c.b16 %v394, %v390
    %v503 = vpack.c.b16 %v399, %v395
    %v504 = vpack.c.b16 %v400, %v396
    %v505 = vpack.c.b16 %v401, %v397
    %v506 = vpack.c.b16 %v402, %v398
    %v507 = vpack.c.b16 %v407, %v403
    %v508 = vpack.c.b16 %v408, %v404
    %v509 = vpack.c.b16 %v409, %v405
    %v510 = vpack.c.b16 %v410, %v406
    %v511 = vpack.c.b16 %v415, %v411
    %v512 = vpack.c.b16 %v416, %v412
    %v513 = vpack.c.b16 %v417, %v413
    %v514 = vpack.c.b16 %v418, %v414
    %611 = vmatpush.bf16.msra.mxu0 %v447
    %612 = vmatpush.bf16.msra.mxu0 %v443
    %613 = vmatpush.bf16.msra.mxu0 %v439
    %614 = vmatpush.bf16.msra.mxu0 %v435
    %615 = vmatpush.bf16.msra.mxu0 %v431
    %616 = vmatpush.bf16.msra.mxu0 %v427
    %617 = vmatpush.bf16.msra.mxu0 %v423
    %618 = vmatpush.bf16.msra.mxu0 %v419
    %619 = vmatmul.bf16.gmra.mxu0 %v125
    %v620 = vpop.f32.mrf.mxu0
    %v621 = vadd.f32 0.0, %v620
    %v622 = vpop.f32.mrf.mxu0
    %623 = vdwg.mxu0
    %624 = vmatpush.bf16.msra.mxu0 %v479
    %625 = vmatpush.bf16.msra.mxu0 %v475
    %626 = vmatpush.bf16.msra.mxu0 %v471
    %627 = vmatpush.bf16.msra.mxu0 %v467
    %628 = vmatpush.bf16.msra.mxu0 %v463
    %629 = vmatpush.bf16.msra.mxu0 %v459
    %630 = vmatpush.bf16.msra.mxu0 %v455
    %631 = vmatpush.bf16.msra.mxu0 %v451
    %632 = vmatmul.bf16.gmra.mxu0 %v126
    %v633 = vpop.f32.mrf.mxu0
    %v634 = vadd.f32 %v621, %v633
    %v635 = vpop.f32.mrf.mxu0
    %636 = vdwg.mxu0
    %637 = vmatpush.bf16.msra.mxu0 %v511
    %638 = vmatpush.bf16.msra.mxu0 %v507
    %639 = vmatpush.bf16.msra.mxu0 %v503
    %640 = vmatpush.bf16.msra.mxu0 %v499
    %641 = vmatpush.bf16.msra.mxu0 %v495
    %642 = vmatpush.bf16.msra.mxu0 %v491
    %643 = vmatpush.bf16.msra.mxu0 %v487
    %644 = vmatpush.bf16.msra.mxu0 %v483
    %645 = vmatmul.bf16.gmra.mxu0 %v127
    %v646 = vpop.f32.mrf.mxu0
    %v647 = vadd.f32 %v634, %v646
    %v648 = vpop.f32.mrf.mxu0
    %649 = vdwg.mxu0
    %650 = vmatpush.bf16.msra.mxu0 %v448
    %651 = vmatpush.bf16.msra.mxu0 %v444
    %652 = vmatpush.bf16.msra.mxu0 %v440
    %653 = vmatpush.bf16.msra.mxu0 %v436
    %654 = vmatpush.bf16.msra.mxu0 %v432
    %655 = vmatpush.bf16.msra.mxu0 %v428
    %656 = vmatpush.bf16.msra.mxu0 %v424
    %657 = vmatpush.bf16.msra.mxu0 %v420
    %658 = vmatmul.bf16.gmra.mxu0 %v125
    %v659 = vpop.f32.mrf.mxu0
    %v660 = vadd.f32 0.0, %v659
    %v661 = vpop.f32.mrf.mxu0
    %662 = vdwg.mxu0
    %663 = vmatpush.bf16.msra.mxu0 %v480
    %664 = vmatpush.bf16.msra.mxu0 %v476
    %665 = vmatpush.bf16.msra.mxu0 %v472
    %666 = vmatpush.bf16.msra.mxu0 %v468
    %667 = vmatpush.bf16.msra.mxu0 %v464
    %668 = vmatpush.bf16.msra.mxu0 %v460
    %669 = vmatpush.bf16.msra.mxu0 %v456
    %670 = vmatpush.bf16.msra.mxu0 %v452
    %671 = vmatmul.bf16.gmra.mxu0 %v126
    %v672 = vpop.f32.mrf.mxu0
    %v673 = vadd.f32 %v660, %v672
    %v674 = vpop.f32.mrf.mxu0
    %675 = vdwg.mxu0
    %676 = vmatpush.bf16.msra.mxu0 %v512
    %677 = vmatpush.bf16.msra.mxu0 %v508
    %678 = vmatpush.bf16.msra.mxu0 %v504
    %679 = vmatpush.bf16.msra.mxu0 %v500
    %680 = vmatpush.bf16.msra.mxu0 %v496
    %681 = vmatpush.bf16.msra.mxu0 %v492
    %682 = vmatpush.bf16.msra.mxu0 %v488
    %683 = vmatpush.bf16.msra.mxu0 %v484
    %684 = vmatmul.bf16.gmra.mxu0 %v127
    %v685 = vpop.f32.mrf.mxu0
    %v686 = vadd.f32 %v673, %v685
    %v687 = vpop.f32.mrf.mxu0
    %688 = vdwg.mxu0
    %689 = vmatpush.bf16.msra.mxu0 %v449
    %690 = vmatpush.bf16.msra.mxu0 %v445
    %691 = vmatpush.bf16.msra.mxu0 %v441
    %692 = vmatpush.bf16.msra.mxu0 %v437
    %693 = vmatpush.bf16.msra.mxu0 %v433
    %694 = vmatpush.bf16.msra.mxu0 %v429
    %695 = vmatpush.bf16.msra.mxu0 %v425
    %696 = vmatpush.bf16.msra.mxu0 %v421
    %697 = vmatmul.bf16.gmra.mxu0 %v125
    %v698 = vpop.f32.mrf.mxu0
    %v699 = vadd.f32 0.0, %v698
    %v700 = vpop.f32.mrf.mxu0
    %701 = vdwg.mxu0
    %702 = vmatpush.bf16.msra.mxu0 %v481
    %703 = vmatpush.bf16.msra.mxu0 %v477
    %704 = vmatpush.bf16.msra.mxu0 %v473
    %705 = vmatpush.bf16.msra.mxu0 %v469
    %706 = vmatpush.bf16.msra.mxu0 %v465
    %707 = vmatpush.bf16.msra.mxu0 %v461
    %708 = vmatpush.bf16.msra.mxu0 %v457
    %709 = vmatpush.bf16.msra.mxu0 %v453
    %710 = vmatmul.bf16.gmra.mxu0 %v126
    %v711 = vpop.f32.mrf.mxu0
    %v712 = vadd.f32 %v699, %v711
    %v713 = vpop.f32.mrf.mxu0
    %714 = vdwg.mxu0
    %715 = vmatpush.bf16.msra.mxu0 %v513
    %716 = vmatpush.bf16.msra.mxu0 %v509
    %717 = vmatpush.bf16.msra.mxu0 %v505
    %718 = vmatpush.bf16.msra.mxu0 %v501
    %719 = vmatpush.bf16.msra.mxu0 %v497
    %720 = vmatpush.bf16.msra.mxu0 %v493
    %721 = vmatpush.bf16.msra.mxu0 %v489
    %722 = vmatpush.bf16.msra.mxu0 %v485
    %723 = vmatmul.bf16.gmra.mxu0 %v127
    %v724 = vpop.f32.mrf.mxu0
    %v725 = vadd.f32 %v712, %v724
    %v726 = vpop.f32.mrf.mxu0
    %727 = vdwg.mxu0
    %728 = vmatpush.bf16.msra.mxu0 %v450
    %729 = vmatpush.bf16.msra.mxu0 %v446
    %730 = vmatpush.bf16.msra.mxu0 %v442
    %731 = vmatpush.bf16.msra.mxu0 %v438
    %732 = vmatpush.bf16.msra.mxu0 %v434
    %733 = vmatpush.bf16.msra.mxu0 %v430
    %734 = vmatpush.bf16.msra.mxu0 %v426
    %735 = vmatpush.bf16.msra.mxu0 %v422
    %736 = vmatmul.bf16.gmra.mxu0 %v125
    %v737 = vpop.f32.mrf.mxu0
    %v738 = vadd.f32 0.0, %v737
    %v739 = vpop.f32.mrf.mxu0
    %740 = vdwg.mxu0
    %741 = vmatpush.bf16.msra.mxu0 %v482
    %742 = vmatpush.bf16.msra.mxu0 %v478
    %743 = vmatpush.bf16.msra.mxu0 %v474
    %744 = vmatpush.bf16.msra.mxu0 %v470
    %745 = vmatpush.bf16.msra.mxu0 %v466
    %746 = vmatpush.bf16.msra.mxu0 %v462
    %747 = vmatpush.bf16.msra.mxu0 %v458
    %748 = vmatpush.bf16.msra.mxu0 %v454
    %749 = vmatmul.bf16.gmra.mxu0 %v126
    %v750 = vpop.f32.mrf.mxu0
    %v751 = vadd.f32 %v738, %v750
    %v752 = vpop.f32.mrf.mxu0
    %753 = vdwg.mxu0
    %754 = vmatpush.bf16.msra.mxu0 %v514
    %755 = vmatpush.bf16.msra.mxu0 %v510
    %756 = vmatpush.bf16.msra.mxu0 %v506
    %757 = vmatpush.bf16.msra.mxu0 %v502
    %758 = vmatpush.bf16.msra.mxu0 %v498
    %759 = vmatpush.bf16.msra.mxu0 %v494
    %760 = vmatpush.bf16.msra.mxu0 %v490
    %761 = vmatpush.bf16.msra.mxu0 %v486
    %762 = vmatmul.bf16.gmra.mxu0 %v127
    %v763 = vpop.f32.mrf.mxu0
    %v764 = vadd.f32 %v751, %v763
    %v765 = vpop.f32.mrf.mxu0
    %766 = vdwg.mxu0
    %v767 = vmax.f32 %v647, 0.0
    %v768 = vmax.f32 %v686, 0.0
    %v769 = vmax.f32 %v725, 0.0
    %v770 = vmax.f32 %v764, 0.0
    %v771 = vpack.c.bf16 %v767, %v767
    %v772 = vpack.c.bf16 %v768, %v768
    %v773 = vpack.c.bf16 %v769, %v769
    %v774 = vpack.c.bf16 %v770, %v770
    %v775 = vld [vmem:[%s2] sm:$0xf]
    %v776 = vld [vmem:[%s2 + $0x4] sm:$0xf]
    %v777 = vld [vmem:[%s2 + $0x8] sm:$0xf]
    %v778 = vld [vmem:[%s2 + $0xc] sm:$0xf]
    %v779 = vld [vmem:[%s2 + $0x10] sm:$0xf]
    %v780 = vld [vmem:[%s2 + $0x14] sm:$0xf]
    %v781 = vld [vmem:[%s2 + $0x18] sm:$0xf]
    %v782 = vld [vmem:[%s2 + $0x1c] sm:$0xf]
    %v783 = vld [vmem:[%s2 + $0x20] sm:$0xf]
    %v784 = vld [vmem:[%s2 + $0x24] sm:$0xf]
    %v785 = vld [vmem:[%s2 + $0x28] sm:$0xf]
    %v786 = vld [vmem:[%s2 + $0x2c] sm:$0xf]
    %v787 = vld [vmem:[%s2 + $0x30] sm:$0xf]
    %v788 = vld [vmem:[%s2 + $0x34] sm:$0xf]
    %v789 = vld [vmem:[%s2 + $0x38] sm:$0xf]
    %v790 = vld [vmem:[%s2 + $0x3c] sm:$0xf]
    %v791 = vld [vmem:[%s2 + $0x40] sm:$0xf]
    %v792 = vld [vmem:[%s2 + $0x44] sm:$0xf]
    %v793 = vld [vmem:[%s2 + $0x48] sm:$0xf]
    %v794 = vld [vmem:[%s2 + $0x4c] sm:$0xf]
    %v795 = vld [vmem:[%s2 + $0x50] sm:$0xf]
    %v796 = vld [vmem:[%s2 + $0x54] sm:$0xf]
    %v797 = vld [vmem:[%s2 + $0x58] sm:$0xf]
    %v798 = vld [vmem:[%s2 + $0x5c] sm:$0xf]
    %v799 = vld [vmem:[%s2 + $0x60] sm:$0xf]
    %v800 = vld [vmem:[%s2 + $0x64] sm:$0xf]
    %v801 = vld [vmem:[%s2 + $0x68] sm:$0xf]
    %v802 = vld [vmem:[%s2 + $0x6c] sm:$0xf]
    %v803 = vld [vmem:[%s2 + $0x70] sm:$0xf]
    %v804 = vld [vmem:[%s2 + $0x74] sm:$0xf]
    %v805 = vld [vmem:[%s2 + $0x78] sm:$0xf]
    %v806 = vld [vmem:[%s2 + $0x7c] sm:$0xf]
    %v807 = vld [vmem:[%s2 + $0x80] sm:$0xf]
    %v808 = vld [vmem:[%s2 + $0x84] sm:$0xf]
    %v809 = vld [vmem:[%s2 + $0x88] sm:$0xf]
    %v810 = vld [vmem:[%s2 + $0x8c] sm:$0xf]
    %v811 = vld [vmem:[%s2 + $0x90] sm:$0xf]
    %v812 = vld [vmem:[%s2 + $0x94] sm:$0xf]
    %v813 = vld [vmem:[%s2 + $0x98] sm:$0xf]
    %v814 = vld [vmem:[%s2 + $0x9c] sm:$0xf]
    %v815 = vld [vmem:[%s2 + $0xa0] sm:$0xf]
    %v816 = vld [vmem:[%s2 + $0xa4] sm:$0xf]
    %v817 = vld [vmem:[%s2 + $0xa8] sm:$0xf]
    %v818 = vld [vmem:[%s2 + $0xac] sm:$0xf]
    %v819 = vld [vmem:[%s2 + $0xb0] sm:$0xf]
    %v820 = vld [vmem:[%s2 + $0xb4] sm:$0xf]
    %v821 = vld [vmem:[%s2 + $0xb8] sm:$0xf]
    %v822 = vld [vmem:[%s2 + $0xbc] sm:$0xf]
    %v823 = vld [vmem:[%s2 + $0xc0] sm:$0xf]
    %v824 = vld [vmem:[%s2 + $0xc4] sm:$0xf]
    %v825 = vld [vmem:[%s2 + $0xc8] sm:$0xf]
    %v826 = vld [vmem:[%s2 + $0xcc] sm:$0xf]
    %v827 = vld [vmem:[%s2 + $0xd0] sm:$0xf]
    %v828 = vld [vmem:[%s2 + $0xd4] sm:$0xf]
    %v829 = vld [vmem:[%s2 + $0xd8] sm:$0xf]
    %v830 = vld [vmem:[%s2 + $0xdc] sm:$0xf]
    %v831 = vld [vmem:[%s2 + $0xe0] sm:$0xf]
    %v832 = vld [vmem:[%s2 + $0xe4] sm:$0xf]
    %v833 = vld [vmem:[%s2 + $0xe8] sm:$0xf]
    %v834 = vld [vmem:[%s2 + $0xec] sm:$0x3]
    %s835 = scalar_lea.vmem %s0, 12
    %v836 = vld [vmem:[%s835] sm:$0xff]
    %v837 = vld [vmem:[%s835 + $0x8] sm:$0xf]
    %v840 = vunpack.c.l.b16 %v836
    %v841 = vunpack.c.h.b16 %v836
    %v842 = vunpack.c.l.b16 %v837
    %v843 = vpack.c.b16 %v840, %v840
    %v844 = vpack.c.b16 %v841, %v841
    %v845 = vpack.c.b16 %v842, %v842
    %849 = vmatpush.bf16.msra.mxu0 %v447
    %850 = vmatpush.bf16.msra.mxu0 %v443
    %851 = vmatpush.bf16.msra.mxu0 %v439
    %852 = vmatpush.bf16.msra.mxu0 %v435
    %853 = vmatpush.bf16.msra.mxu0 %v431
    %854 = vmatpush.bf16.msra.mxu0 %v427
    %855 = vmatpush.bf16.msra.mxu0 %v423
    %856 = vmatpush.bf16.msra.mxu0 %v419
    %857 = vmatmul.bf16.gmra.mxu0 %v843
    %v858 = vpop.f32.mrf.mxu0
    %v859 = vadd.f32 0.0, %v858
    %v860 = vpop.f32.mrf.mxu0
    %861 = vdwg.mxu0
    %862 = vmatpush.bf16.msra.mxu0 %v479
    %863 = vmatpush.bf16.msra.mxu0 %v475
    %864 = vmatpush.bf16.msra.mxu0 %v471
    %865 = vmatpush.bf16.msra.mxu0 %v467
    %866 = vmatpush.bf16.msra.mxu0 %v463
    %867 = vmatpush.bf16.msra.mxu0 %v459
    %868 = vmatpush.bf16.msra.mxu0 %v455
    %869 = vmatpush.bf16.msra.mxu0 %v451
    %870 = vmatmul.bf16.gmra.mxu0 %v844
    %v871 = vpop.f32.mrf.mxu0
    %v872 = vadd.f32 %v859, %v871
    %v873 = vpop.f32.mrf.mxu0
    %874 = vdwg.mxu0
    %875 = vmatpush.bf16.msra.mxu0 %v511
    %876 = vmatpush.bf16.msra.mxu0 %v507
    %877 = vmatpush.bf16.msra.mxu0 %v503
    %878 = vmatpush.bf16.msra.mxu0 %v499
    %879 = vmatpush.bf16.msra.mxu0 %v495
    %880 = vmatpush.bf16.msra.mxu0 %v491
    %881 = vmatpush.bf16.msra.mxu0 %v487
    %882 = vmatpush.bf16.msra.mxu0 %v483
    %883 = vmatmul.bf16.gmra.mxu0 %v845
    %v884 = vpop.f32.mrf.mxu0
    %v885 = vadd.f32 %v872, %v884
    %v886 = vpop.f32.mrf.mxu0
    %887 = vdwg.mxu0
    %888 = vmatpush.bf16.msra.mxu0 %v448
    %889 = vmatpush.bf16.msra.mxu0 %v444
    %890 = vmatpush.bf16.msra.mxu0 %v440
    %891 = vmatpush.bf16.msra.mxu0 %v436
    %892 = vmatpush.bf16.msra.mxu0 %v432
    %893 = vmatpush.bf16.msra.mxu0 %v428
    %894 = vmatpush.bf16.msra.mxu0 %v424
    %895 = vmatpush.bf16.msra.mxu0 %v420
    %896 = vmatmul.bf16.gmra.mxu0 %v843
    %v897 = vpop.f32.mrf.mxu0
    %v898 = vadd.f32 0.0, %v897
    %v899 = vpop.f32.mrf.mxu0
    %900 = vdwg.mxu0
    %901 = vmatpush.bf16.msra.mxu0 %v480
    %902 = vmatpush.bf16.msra.mxu0 %v476
    %903 = vmatpush.bf16.msra.mxu0 %v472
    %904 = vmatpush.bf16.msra.mxu0 %v468
    %905 = vmatpush.bf16.msra.mxu0 %v464
    %906 = vmatpush.bf16.msra.mxu0 %v460
    %907 = vmatpush.bf16.msra.mxu0 %v456
    %908 = vmatpush.bf16.msra.mxu0 %v452
    %909 = vmatmul.bf16.gmra.mxu0 %v844
    %v910 = vpop.f32.mrf.mxu0
    %v911 = vadd.f32 %v898, %v910
    %v912 = vpop.f32.mrf.mxu0
    %913 = vdwg.mxu0
    %914 = vmatpush.bf16.msra.mxu0 %v512
    %915 = vmatpush.bf16.msra.mxu0 %v508
    %916 = vmatpush.bf16.msra.mxu0 %v504
    %917 = vmatpush.bf16.msra.mxu0 %v500
    %918 = vmatpush.bf16.msra.mxu0 %v496
    %919 = vmatpush.bf16.msra.mxu0 %v492
    %920 = vmatpush.bf16.msra.mxu0 %v488
    %921 = vmatpush.bf16.msra.mxu0 %v484
    %922 = vmatmul.bf16.gmra.mxu0 %v845
    %v923 = vpop.f32.mrf.mxu0
    %v924 = vadd.f32 %v911, %v923
    %v925 = vpop.f32.mrf.mxu0
    %926 = vdwg.mxu0
    %927 = vmatpush.bf16.msra.mxu0 %v449
    %928 = vmatpush.bf16.msra.mxu0 %v445
    %929 = vmatpush.bf16.msra.mxu0 %v441
    %930 = vmatpush.bf16.msra.mxu0 %v437
    %931 = vmatpush.bf16.msra.mxu0 %v433
    %932 = vmatpush.bf16.msra.mxu0 %v429
    %933 = vmatpush.bf16.msra.mxu0 %v425
    %934 = vmatpush.bf16.msra.mxu0 %v421
    %935 = vmatmul.bf16.gmra.mxu0 %v843
    %v936 = vpop.f32.mrf.mxu0
    %v937 = vadd.f32 0.0, %v936
    %v938 = vpop.f32.mrf.mxu0
    %939 = vdwg.mxu0
    %940 = vmatpush.bf16.msra.mxu0 %v481
    %941 = vmatpush.bf16.msra.mxu0 %v477
    %942 = vmatpush.bf16.msra.mxu0 %v473
    %943 = vmatpush.bf16.msra.mxu0 %v469
    %944 = vmatpush.bf16.msra.mxu0 %v465
    %945 = vmatpush.bf16.msra.mxu0 %v461
    %946 = vmatpush.bf16.msra.mxu0 %v457
    %947 = vmatpush.bf16.msra.mxu0 %v453
    %948 = vmatmul.bf16.gmra.mxu0 %v844
    %v949 = vpop.f32.mrf.mxu0
    %v950 = vadd.f32 %v937, %v949
    %v951 = vpop.f32.mrf.mxu0
    %952 = vdwg.mxu0
    %953 = vmatpush.bf16.msra.mxu0 %v513
    %954 = vmatpush.bf16.msra.mxu0 %v509
    %955 = vmatpush.bf16.msra.mxu0 %v505
    %956 = vmatpush.bf16.msra.mxu0 %v501
    %957 = vmatpush.bf16.msra.mxu0 %v497
    %958 = vmatpush.bf16.msra.mxu0 %v493
    %959 = vmatpush.bf16.msra.mxu0 %v489
    %960 = vmatpush.bf16.msra.mxu0 %v485
    %961 = vmatmul.bf16.gmra.mxu0 %v845
    %v962 = vpop.f32.mrf.mxu0
    %v963 = vadd.f32 %v950, %v962
    %v964 = vpop.f32.mrf.mxu0
    %965 = vdwg.mxu0
    %966 = vmatpush.bf16.msra.mxu0 %v450
    %967 = vmatpush.bf16.msra.mxu0 %v446
    %968 = vmatpush.bf16.msra.mxu0 %v442
    %969 = vmatpush.bf16.msra.mxu0 %v438
    %970 = vmatpush.bf16.msra.mxu0 %v434
    %971 = vmatpush.bf16.msra.mxu0 %v430
    %972 = vmatpush.bf16.msra.mxu0 %v426
    %973 = vmatpush.bf16.msra.mxu0 %v422
    %974 = vmatmul.bf16.gmra.mxu0 %v843
    %v975 = vpop.f32.mrf.mxu0
    %v976 = vadd.f32 0.0, %v975
    %v977 = vpop.f32.mrf.mxu0
    %978 = vdwg.mxu0
    %979 = vmatpush.bf16.msra.mxu0 %v482
    %980 = vmatpush.bf16.msra.mxu0 %v478
    %981 = vmatpush.bf16.msra.mxu0 %v474
    %982 = vmatpush.bf16.msra.mxu0 %v470
    %983 = vmatpush.bf16.msra.mxu0 %v466
    %984 = vmatpush.bf16.msra.mxu0 %v462
    %985 = vmatpush.bf16.msra.mxu0 %v458
    %986 = vmatpush.bf16.msra.mxu0 %v454
    %987 = vmatmul.bf16.gmra.mxu0 %v844
    %v988 = vpop.f32.mrf.mxu0
    %v989 = vadd.f32 %v976, %v988
    %v990 = vpop.f32.mrf.mxu0
    %991 = vdwg.mxu0
    %992 = vmatpush.bf16.msra.mxu0 %v514
    %993 = vmatpush.bf16.msra.mxu0 %v510
    %994 = vmatpush.bf16.msra.mxu0 %v506
    %995 = vmatpush.bf16.msra.mxu0 %v502
    %996 = vmatpush.bf16.msra.mxu0 %v498
    %997 = vmatpush.bf16.msra.mxu0 %v494
    %998 = vmatpush.bf16.msra.mxu0 %v490
    %999 = vmatpush.bf16.msra.mxu0 %v486
    %1000 = vmatmul.bf16.gmra.mxu0 %v845
    %v1001 = vpop.f32.mrf.mxu0
    %v1002 = vadd.f32 %v989, %v1001
    %v1003 = vpop.f32.mrf.mxu0
    %1004 = vdwg.mxu0
    %v1005 = vmax.f32 %v885, 0.0
    %v1006 = vmax.f32 %v924, 0.0
    %v1007 = vmax.f32 %v963, 0.0
    %v1008 = vmax.f32 %v1002, 0.0
    %v1009 = vpack.c.bf16 %v1005, %v1005
    %v1010 = vpack.c.bf16 %v1006, %v1006
    %v1011 = vpack.c.bf16 %v1007, %v1007
    %v1012 = vpack.c.bf16 %v1008, %v1008
    %s1013 = scalar_lea.vmem %s2, 240
    %v1014 = vld [vmem:[%s1013] sm:$0xf]
    %v1015 = vld [vmem:[%s1013 + $0x4] sm:$0xf]
    %v1016 = vld [vmem:[%s1013 + $0x8] sm:$0xf]
    %v1017 = vld [vmem:[%s1013 + $0xc] sm:$0xf]
    %v1018 = vld [vmem:[%s1013 + $0x10] sm:$0xf]
    %v1019 = vld [vmem:[%s1013 + $0x14] sm:$0xf]
    %v1020 = vld [vmem:[%s1013 + $0x18] sm:$0xf]
    %v1021 = vld [vmem:[%s1013 + $0x1c] sm:$0xf]
    %v1022 = vld [vmem:[%s1013 + $0x20] sm:$0xf]
    %v1023 = vld [vmem:[%s1013 + $0x24] sm:$0xf]
    %v1024 = vld [vmem:[%s1013 + $0x28] sm:$0xf]
    %v1025 = vld [vmem:[%s1013 + $0x2c] sm:$0xf]
    %v1026 = vld [vmem:[%s1013 + $0x30] sm:$0xf]
    %v1027 = vld [vmem:[%s1013 + $0x34] sm:$0xf]
    %v1028 = vld [vmem:[%s1013 + $0x38] sm:$0xf]
    %v1029 = vld [vmem:[%s1013 + $0x3c] sm:$0xf]
    %v1030 = vld [vmem:[%s1013 + $0x40] sm:$0xf]
    %v1031 = vld [vmem:[%s1013 + $0x44] sm:$0xf]
    %v1032 = vld [vmem:[%s1013 + $0x48] sm:$0xf]
    %v1033 = vld [vmem:[%s1013 + $0x4c] sm:$0xf]
    %v1034 = vld [vmem:[%s1013 + $0x50] sm:$0xf]
    %v1035 = vld [vmem:[%s1013 + $0x54] sm:$0xf]
    %v1036 = vld [vmem:[%s1013 + $0x58] sm:$0xf]
    %v1037 = vld [vmem:[%s1013 + $0x5c] sm:$0xf]
    %v1038 = vld [vmem:[%s1013 + $0x60] sm:$0xf]
    %v1039 = vld [vmem:[%s1013 + $0x64] sm:$0xf]
    %v1040 = vld [vmem:[%s1013 + $0x68] sm:$0xf]
    %v1041 = vld [vmem:[%s1013 + $0x6c] sm:$0xf]
    %v1042 = vld [vmem:[%s1013 + $0x70] sm:$0xf]
    %v1043 = vld [vmem:[%s1013 + $0x74] sm:$0xf]
    %v1044 = vld [vmem:[%s1013 + $0x78] sm:$0xf]
    %v1045 = vld [vmem:[%s1013 + $0x7c] sm:$0xf]
    %v1046 = vld [vmem:[%s1013 + $0x80] sm:$0xf]
    %v1047 = vld [vmem:[%s1013 + $0x84] sm:$0xf]
    %v1048 = vld [vmem:[%s1013 + $0x88] sm:$0xf]
    %v1049 = vld [vmem:[%s1013 + $0x8c] sm:$0xf]
    %v1050 = vld [vmem:[%s1013 + $0x90] sm:$0xf]
    %v1051 = vld [vmem:[%s1013 + $0x94] sm:$0xf]
    %v1052 = vld [vmem:[%s1013 + $0x98] sm:$0xf]
    %v1053 = vld [vmem:[%s1013 + $0x9c] sm:$0xf]
    %v1054 = vld [vmem:[%s1013 + $0xa0] sm:$0xf]
    %v1055 = vld [vmem:[%s1013 + $0xa4] sm:$0xf]
    %v1056 = vld [vmem:[%s1013 + $0xa8] sm:$0xf]
    %v1057 = vld [vmem:[%s1013 + $0xac] sm:$0xf]
    %v1058 = vld [vmem:[%s1013 + $0xb0] sm:$0xf]
    %v1059 = vld [vmem:[%s1013 + $0xb4] sm:$0xf]
    %v1060 = vld [vmem:[%s1013 + $0xb8] sm:$0xf]
    %v1061 = vld [vmem:[%s1013 + $0xbc] sm:$0xf]
    %v1062 = vld [vmem:[%s1013 + $0xc0] sm:$0xf]
    %v1063 = vld [vmem:[%s1013 + $0xc4] sm:$0xf]
    %v1064 = vld [vmem:[%s1013 + $0xc8] sm:$0xf]
    %v1065 = vld [vmem:[%s1013 + $0xcc] sm:$0xf]
    %v1066 = vld [vmem:[%s1013 + $0xd0] sm:$0xf]
    %v1067 = vld [vmem:[%s1013 + $0xd4] sm:$0xf]
    %v1068 = vld [vmem:[%s1013 + $0xd8] sm:$0xf]
    %v1069 = vld [vmem:[%s1013 + $0xdc] sm:$0xf]
    %v1070 = vld [vmem:[%s1013 + $0xe0] sm:$0xf]
    %v1071 = vld [vmem:[%s1013 + $0xe4] sm:$0xf]
    %v1072 = vld [vmem:[%s1013 + $0xe8] sm:$0xf]
    %v1073 = vld [vmem:[%s1013 + $0xec] sm:$0x3]
    %s1074 = scalar_lea.vmem %s0, 24
    %v1075 = vld [vmem:[%s1074] sm:$0xff]
    %v1076 = vld [vmem:[%s1074 + $0x8] sm:$0xf]
    %v1079 = vunpack.c.l.b16 %v1075
    %v1080 = vunpack.c.h.b16 %v1075
    %v1081 = vunpack.c.l.b16 %v1076
    %v1082 = vpack.c.b16 %v1079, %v1079
    %v1083 = vpack.c.b16 %v1080, %v1080
    %v1084 = vpack.c.b16 %v1081, %v1081
    %1088 = vmatpush.bf16.msra.mxu0 %v447
    %1089 = vmatpush.bf16.msra.mxu0 %v443
    %1090 = vmatpush.bf16.msra.mxu0 %v439
    %1091 = vmatpush.bf16.msra.mxu0 %v435
    %1092 = vmatpush.bf16.msra.mxu0 %v431
    %1093 = vmatpush.bf16.msra.mxu0 %v427
    %1094 = vmatpush.bf16.msra.mxu0 %v423
    %1095 = vmatpush.bf16.msra.mxu0 %v419
    %1096 = vmatmul.bf16.gmra.mxu0 %v1082
    %v1097 = vpop.f32.mrf.mxu0
    %v1098 = vadd.f32 0.0, %v1097
    %v1099 = vpop.f32.mrf.mxu0
    %1100 = vdwg.mxu0
    %1101 = vmatpush.bf16.msra.mxu0 %v479
    %1102 = vmatpush.bf16.msra.mxu0 %v475
    %1103 = vmatpush.bf16.msra.mxu0 %v471
    %1104 = vmatpush.bf16.msra.mxu0 %v467
    %1105 = vmatpush.bf16.msra.mxu0 %v463
    %1106 = vmatpush.bf16.msra.mxu0 %v459
    %1107 = vmatpush.bf16.msra.mxu0 %v455
    %1108 = vmatpush.bf16.msra.mxu0 %v451
    %1109 = vmatmul.bf16.gmra.mxu0 %v1083
    %v1110 = vpop.f32.mrf.mxu0
    %v1111 = vadd.f32 %v1098, %v1110
    %v1112 = vpop.f32.mrf.mxu0
    %1113 = vdwg.mxu0
    %1114 = vmatpush.bf16.msra.mxu0 %v511
    %1115 = vmatpush.bf16.msra.mxu0 %v507
    %1116 = vmatpush.bf16.msra.mxu0 %v503
    %1117 = vmatpush.bf16.msra.mxu0 %v499
    %1118 = vmatpush.bf16.msra.mxu0 %v495
    %1119 = vmatpush.bf16.msra.mxu0 %v491
    %1120 = vmatpush.bf16.msra.mxu0 %v487
    %1121 = vmatpush.bf16.msra.mxu0 %v483
    %1122 = vmatmul.bf16.gmra.mxu0 %v1084
    %v1123 = vpop.f32.mrf.mxu0
    %v1124 = vadd.f32 %v1111, %v1123
    %v1125 = vpop.f32.mrf.mxu0
    %1126 = vdwg.mxu0
    %1127 = vmatpush.bf16.msra.mxu0 %v448
    %1128 = vmatpush.bf16.msra.mxu0 %v444
    %1129 = vmatpush.bf16.msra.mxu0 %v440
    %1130 = vmatpush.bf16.msra.mxu0 %v436
    %1131 = vmatpush.bf16.msra.mxu0 %v432
    %1132 = vmatpush.bf16.msra.mxu0 %v428
    %1133 = vmatpush.bf16.msra.mxu0 %v424
    %1134 = vmatpush.bf16.msra.mxu0 %v420
    %1135 = vmatmul.bf16.gmra.mxu0 %v1082
    %v1136 = vpop.f32.mrf.mxu0
    %v1137 = vadd.f32 0.0, %v1136
    %v1138 = vpop.f32.mrf.mxu0
    %1139 = vdwg.mxu0
    %1140 = vmatpush.bf16.msra.mxu0 %v480
    %1141 = vmatpush.bf16.msra.mxu0 %v476
    %1142 = vmatpush.bf16.msra.mxu0 %v472
    %1143 = vmatpush.bf16.msra.mxu0 %v468
    %1144 = vmatpush.bf16.msra.mxu0 %v464
    %1145 = vmatpush.bf16.msra.mxu0 %v460
    %1146 = vmatpush.bf16.msra.mxu0 %v456
    %1147 = vmatpush.bf16.msra.mxu0 %v452
    %1148 = vmatmul.bf16.gmra.mxu0 %v1083
    %v1149 = vpop.f32.mrf.mxu0
    %v1150 = vadd.f32 %v1137, %v1149
    %v1151 = vpop.f32.mrf.mxu0
    %1152 = vdwg.mxu0
    %1153 = vmatpush.bf16.msra.mxu0 %v512
    %1154 = vmatpush.bf16.msra.mxu0 %v508
    %1155 = vmatpush.bf16.msra.mxu0 %v504
    %1156 = vmatpush.bf16.msra.mxu0 %v500
    %1157 = vmatpush.bf16.msra.mxu0 %v496
    %1158 = vmatpush.bf16.msra.mxu0 %v492
    %1159 = vmatpush.bf16.msra.mxu0 %v488
    %1160 = vmatpush.bf16.msra.mxu0 %v484
    %1161 = vmatmul.bf16.gmra.mxu0 %v1084
    %v1162 = vpop.f32.mrf.mxu0
    %v1163 = vadd.f32 %v1150, %v1162
    %v1164 = vpop.f32.mrf.mxu0
    %1165 = vdwg.mxu0
    %1166 = vmatpush.bf16.msra.mxu0 %v449
    %1167 = vmatpush.bf16.msra.mxu0 %v445
    %1168 = vmatpush.bf16.msra.mxu0 %v441
    %1169 = vmatpush.bf16.msra.mxu0 %v437
    %1170 = vmatpush.bf16.msra.mxu0 %v433
    %1171 = vmatpush.bf16.msra.mxu0 %v429
    %1172 = vmatpush.bf16.msra.mxu0 %v425
    %1173 = vmatpush.bf16.msra.mxu0 %v421
    %1174 = vmatmul.bf16.gmra.mxu0 %v1082
    %v1175 = vpop.f32.mrf.mxu0
    %v1176 = vadd.f32 0.0, %v1175
    %v1177 = vpop.f32.mrf.mxu0
    %1178 = vdwg.mxu0
    %1179 = vmatpush.bf16.msra.mxu0 %v481
    %1180 = vmatpush.bf16.msra.mxu0 %v477
    %1181 = vmatpush.bf16.msra.mxu0 %v473
    %1182 = vmatpush.bf16.msra.mxu0 %v469
    %1183 = vmatpush.bf16.msra.mxu0 %v465
    %1184 = vmatpush.bf16.msra.mxu0 %v461
    %1185 = vmatpush.bf16.msra.mxu0 %v457
    %1186 = vmatpush.bf16.msra.mxu0 %v453
    %1187 = vmatmul.bf16.gmra.mxu0 %v1083
    %v1188 = vpop.f32.mrf.mxu0
    %v1189 = vadd.f32 %v1176, %v1188
    %v1190 = vpop.f32.mrf.mxu0
    %1191 = vdwg.mxu0
    %1192 = vmatpush.bf16.msra.mxu0 %v513
    %1193 = vmatpush.bf16.msra.mxu0 %v509
    %1194 = vmatpush.bf16.msra.mxu0 %v505
    %1195 = vmatpush.bf16.msra.mxu0 %v501
    %1196 = vmatpush.bf16.msra.mxu0 %v497
    %1197 = vmatpush.bf16.msra.mxu0 %v493
    %1198 = vmatpush.bf16.msra.mxu0 %v489
    %1199 = vmatpush.bf16.msra.mxu0 %v485
    %1200 = vmatmul.bf16.gmra.mxu0 %v1084
    %v1201 = vpop.f32.mrf.mxu0
    %v1202 = vadd.f32 %v1189, %v1201
    %v1203 = vpop.f32.mrf.mxu0
    %1204 = vdwg.mxu0
    %1205 = vmatpush.bf16.msra.mxu0 %v450
    %1206 = vmatpush.bf16.msra.mxu0 %v446
    %1207 = vmatpush.bf16.msra.mxu0 %v442
    %1208 = vmatpush.bf16.msra.mxu0 %v438
    %1209 = vmatpush.bf16.msra.mxu0 %v434
    %1210 = vmatpush.bf16.msra.mxu0 %v430
    %1211 = vmatpush.bf16.msra.mxu0 %v426
    %1212 = vmatpush.bf16.msra.mxu0 %v422
    %1213 = vmatmul.bf16.gmra.mxu0 %v1082
    %v1214 = vpop.f32.mrf.mxu0
    %v1215 = vadd.f32 0.0, %v1214
    %v1216 = vpop.f32.mrf.mxu0
    %1217 = vdwg.mxu0
    %1218 = vmatpush.bf16.msra.mxu0 %v482
    %1219 = vmatpush.bf16.msra.mxu0 %v478
    %1220 = vmatpush.bf16.msra.mxu0 %v474
    %1221 = vmatpush.bf16.msra.mxu0 %v470
    %1222 = vmatpush.bf16.msra.mxu0 %v466
    %1223 = vmatpush.bf16.msra.mxu0 %v462
    %1224 = vmatpush.bf16.msra.mxu0 %v458
    %1225 = vmatpush.bf16.msra.mxu0 %v454
    %1226 = vmatmul.bf16.gmra.mxu0 %v1083
    %v1227 = vpop.f32.mrf.mxu0
    %v1228 = vadd.f32 %v1215, %v1227
    %v1229 = vpop.f32.mrf.mxu0
    %1230 = vdwg.mxu0
    %1231 = vmatpush.bf16.msra.mxu0 %v514
    %1232 = vmatpush.bf16.msra.mxu0 %v510
    %1233 = vmatpush.bf16.msra.mxu0 %v506
    %1234 = vmatpush.bf16.msra.mxu0 %v502
    %1235 = vmatpush.bf16.msra.mxu0 %v498
    %1236 = vmatpush.bf16.msra.mxu0 %v494
    %1237 = vmatpush.bf16.msra.mxu0 %v490
    %1238 = vmatpush.bf16.msra.mxu0 %v486
    %1239 = vmatmul.bf16.gmra.mxu0 %v1084
    %v1240 = vpop.f32.mrf.mxu0
    %v1241 = vadd.f32 %v1228, %v1240
    %v1242 = vpop.f32.mrf.mxu0
    %1243 = vdwg.mxu0
    %v1244 = vmax.f32 %v1124, 0.0
    %v1245 = vmax.f32 %v1163, 0.0
    %v1246 = vmax.f32 %v1202, 0.0
    %v1247 = vmax.f32 %v1241, 0.0
    %v1248 = vpack.c.bf16 %v1244, %v1244
    %v1249 = vpack.c.bf16 %v1245, %v1245
    %v1250 = vpack.c.bf16 %v1246, %v1246
    %v1251 = vpack.c.bf16 %v1247, %v1247
    %s1252 = scalar_lea.vmem %s2, 480
    %v1253 = vld [vmem:[%s1252] sm:$0xf]
    %v1254 = vld [vmem:[%s1252 + $0x4] sm:$0xf]
    %v1255 = vld [vmem:[%s1252 + $0x8] sm:$0xf]
    %v1256 = vld [vmem:[%s1252 + $0xc] sm:$0xf]
    %v1257 = vld [vmem:[%s1252 + $0x10] sm:$0xf]
    %v1258 = vld [vmem:[%s1252 + $0x14] sm:$0xf]
    %v1259 = vld [vmem:[%s1252 + $0x18] sm:$0xf]
    %v1260 = vld [vmem:[%s1252 + $0x1c] sm:$0xf]
    %v1261 = vld [vmem:[%s1252 + $0x20] sm:$0xf]
    %v1262 = vld [vmem:[%s1252 + $0x24] sm:$0xf]
    %v1263 = vld [vmem:[%s1252 + $0x28] sm:$0xf]
    %v1264 = vld [vmem:[%s1252 + $0x2c] sm:$0xf]
    %v1265 = vld [vmem:[%s1252 + $0x30] sm:$0xf]
    %v1266 = vld [vmem:[%s1252 + $0x34] sm:$0xf]
    %v1267 = vld [vmem:[%s1252 + $0x38] sm:$0xf]
    %v1268 = vld [vmem:[%s1252 + $0x3c] sm:$0xf]
    %v1269 = vld [vmem:[%s1252 + $0x40] sm:$0xf]
    %v1270 = vld [vmem:[%s1252 + $0x44] sm:$0xf]
    %v1271 = vld [vmem:[%s1252 + $0x48] sm:$0xf]
    %v1272 = vld [vmem:[%s1252 + $0x4c] sm:$0xf]
    %v1273 = vld [vmem:[%s1252 + $0x50] sm:$0xf]
    %v1274 = vld [vmem:[%s1252 + $0x54] sm:$0xf]
    %v1275 = vld [vmem:[%s1252 + $0x58] sm:$0xf]
    %v1276 = vld [vmem:[%s1252 + $0x5c] sm:$0xf]
    %v1277 = vld [vmem:[%s1252 + $0x60] sm:$0xf]
    %v1278 = vld [vmem:[%s1252 + $0x64] sm:$0xf]
    %v1279 = vld [vmem:[%s1252 + $0x68] sm:$0xf]
    %v1280 = vld [vmem:[%s1252 + $0x6c] sm:$0xf]
    %v1281 = vld [vmem:[%s1252 + $0x70] sm:$0xf]
    %v1282 = vld [vmem:[%s1252 + $0x74] sm:$0xf]
    %v1283 = vld [vmem:[%s1252 + $0x78] sm:$0xf]
    %v1284 = vld [vmem:[%s1252 + $0x7c] sm:$0xf]
    %v1285 = vld [vmem:[%s1252 + $0x80] sm:$0xf]
    %v1286 = vld [vmem:[%s1252 + $0x84] sm:$0xf]
    %v1287 = vld [vmem:[%s1252 + $0x88] sm:$0xf]
    %v1288 = vld [vmem:[%s1252 + $0x8c] sm:$0xf]
    %v1289 = vld [vmem:[%s1252 + $0x90] sm:$0xf]
    %v1290 = vld [vmem:[%s1252 + $0x94] sm:$0xf]
    %v1291 = vld [vmem:[%s1252 + $0x98] sm:$0xf]
    %v1292 = vld [vmem:[%s1252 + $0x9c] sm:$0xf]
    %v1293 = vld [vmem:[%s1252 + $0xa0] sm:$0xf]
    %v1294 = vld [vmem:[%s1252 + $0xa4] sm:$0xf]
    %v1295 = vld [vmem:[%s1252 + $0xa8] sm:$0xf]
    %v1296 = vld [vmem:[%s1252 + $0xac] sm:$0xf]
    %v1297 = vld [vmem:[%s1252 + $0xb0] sm:$0xf]
    %v1298 = vld [vmem:[%s1252 + $0xb4] sm:$0xf]
    %v1299 = vld [vmem:[%s1252 + $0xb8] sm:$0xf]
    %v1300 = vld [vmem:[%s1252 + $0xbc] sm:$0xf]
    %v1301 = vld [vmem:[%s1252 + $0xc0] sm:$0xf]
    %v1302 = vld [vmem:[%s1252 + $0xc4] sm:$0xf]
    %v1303 = vld [vmem:[%s1252 + $0xc8] sm:$0xf]
    %v1304 = vld [vmem:[%s1252 + $0xcc] sm:$0xf]
    %v1305 = vld [vmem:[%s1252 + $0xd0] sm:$0xf]
    %v1306 = vld [vmem:[%s1252 + $0xd4] sm:$0xf]
    %v1307 = vld [vmem:[%s1252 + $0xd8] sm:$0xf]
    %v1308 = vld [vmem:[%s1252 + $0xdc] sm:$0xf]
    %v1309 = vld [vmem:[%s1252 + $0xe0] sm:$0xf]
    %v1310 = vld [vmem:[%s1252 + $0xe4] sm:$0xf]
    %v1311 = vld [vmem:[%s1252 + $0xe8] sm:$0xf]
    %v1312 = vld [vmem:[%s1252 + $0xec] sm:$0x3]
    %v1373 = vunpack.c.l.b16 %v1253
    %v1374 = vunpack.c.l.b16 %v1254
    %v1375 = vunpack.c.l.b16 %v1255
    %v1376 = vunpack.c.l.b16 %v1256
    %v1377 = vunpack.c.l.b16 %v1257
    %v1378 = vunpack.c.l.b16 %v1258
    %v1379 = vunpack.c.l.b16 %v1259
    %v1380 = vunpack.c.l.b16 %v1260
    %v1381 = vunpack.c.l.b16 %v1261
    %v1382 = vunpack.c.l.b16 %v1262
    %v1383 = vunpack.c.l.b16 %v1263
    %v1384 = vunpack.c.l.b16 %v1264
    %v1385 = vunpack.c.l.b16 %v1265
    %v1386 = vunpack.c.l.b16 %v1266
    %v1387 = vunpack.c.l.b16 %v1267
    %v1388 = vunpack.c.l.b16 %v1268
    %v1389 = vunpack.c.l.b16 %v1269
    %v1390 = vunpack.c.l.b16 %v1270
    %v1391 = vunpack.c.l.b16 %v1271
    %v1392 = vunpack.c.l.b16 %v1272
    %v1393 = vunpack.c.l.b16 %v1273
    %v1394 = vunpack.c.l.b16 %v1274
    %v1395 = vunpack.c.l.b16 %v1275
    %v1396 = vunpack.c.l.b16 %v1276
    %v1397 = vunpack.c.l.b16 %v1277
    %v1398 = vunpack.c.l.b16 %v1278
    %v1399 = vunpack.c.l.b16 %v1279
    %v1400 = vunpack.c.l.b16 %v1280
    %v1401 = vunpack.c.l.b16 %v1281
    %v1402 = vunpack.c.l.b16 %v1282
    %v1403 = vunpack.c.l.b16 %v1283
    %v1404 = vunpack.c.l.b16 %v1284
    %v1405 = vunpack.c.l.b16 %v1285
    %v1406 = vunpack.c.l.b16 %v1286
    %v1407 = vunpack.c.l.b16 %v1287
    %v1408 = vunpack.c.l.b16 %v1288
    %v1409 = vunpack.c.l.b16 %v1289
    %v1410 = vunpack.c.l.b16 %v1290
    %v1411 = vunpack.c.l.b16 %v1291
    %v1412 = vunpack.c.l.b16 %v1292
    %v1413 = vunpack.c.l.b16 %v1293
    %v1414 = vunpack.c.l.b16 %v1294
    %v1415 = vunpack.c.l.b16 %v1295
    %v1416 = vunpack.c.l.b16 %v1296
    %v1417 = vunpack.c.l.b16 %v1297
    %v1418 = vunpack.c.l.b16 %v1298
    %v1419 = vunpack.c.l.b16 %v1299
    %v1420 = vunpack.c.l.b16 %v1300
    %v1421 = vunpack.c.l.b16 %v1301
    %v1422 = vunpack.c.l.b16 %v1302
    %v1423 = vunpack.c.l.b16 %v1303
    %v1424 = vunpack.c.l.b16 %v1304
    %v1425 = vunpack.c.l.b16 %v1305
    %v1426 = vunpack.c.l.b16 %v1306
    %v1427 = vunpack.c.l.b16 %v1307
    %v1428 = vunpack.c.l.b16 %v1308
    %v1429 = vunpack.c.l.b16 %v1309
    %v1430 = vunpack.c.l.b16 %v1310
    %v1431 = vunpack.c.l.b16 %v1311
    %v1432 = vunpack.c.l.b16 %v1312
    %v1433 = vpack.c.b16 %v1374, %v1373
    %v1434 = vpack.c.b16 %v1376, %v1375
    %v1435 = vpack.c.b16 %v1378, %v1377
    %v1436 = vpack.c.b16 %v1380, %v1379
    %v1437 = vpack.c.b16 %v1382, %v1381
    %v1438 = vpack.c.b16 %v1384, %v1383
    %v1439 = vpack.c.b16 %v1386, %v1385
    %v1440 = vpack.c.b16 %v1388, %v1387
    %v1441 = vpack.c.b16 %v1390, %v1389
    %v1442 = vpack.c.b16 %v1392, %v1391
    %v1443 = vpack.c.b16 %v1394, %v1393
    %v1444 = vpack.c.b16 %v1396, %v1395
    %v1445 = vpack.c.b16 %v1398, %v1397
    %v1446 = vpack.c.b16 %v1400, %v1399
    %v1447 = vpack.c.b16 %v1402, %v1401
    %v1448 = vpack.c.b16 %v1404, %v1403
    %v1449 = vpack.c.b16 %v1406, %v1405
    %v1450 = vpack.c.b16 %v1408, %v1407
    %v1451 = vpack.c.b16 %v1410, %v1409
    %v1452 = vpack.c.b16 %v1412, %v1411
    %v1453 = vpack.c.b16 %v1414, %v1413
    %v1454 = vpack.c.b16 %v1416, %v1415
    %v1455 = vpack.c.b16 %v1418, %v1417
    %v1456 = vpack.c.b16 %v1420, %v1419
    %v1457 = vpack.c.b16 %v1422, %v1421
    %v1458 = vpack.c.b16 %v1424, %v1423
    %v1459 = vpack.c.b16 %v1426, %v1425
    %v1460 = vpack.c.b16 %v1428, %v1427
    %v1461 = vpack.c.b16 %v1430, %v1429
    %v1462 = vpack.c.b16 %v1432, %v1431
    %vm1492 = vcmask 752640
    %v1494 = vsel %vm1492, %v1251, 0
    %vm1496 = vcmask 1045504
    %v1498 = vsel %vm1496, %v1462, 0
    %1500 = vmatpush.bf16.msra.mxu0 %v1440
    %1501 = vmatpush.bf16.msra.mxu0 %v1439
    %1502 = vmatpush.bf16.msra.mxu0 %v1438
    %1503 = vmatpush.bf16.msra.mxu0 %v1437
    %1504 = vmatpush.bf16.msra.mxu0 %v1436
    %1505 = vmatpush.bf16.msra.mxu0 %v1435
    %1506 = vmatpush.bf16.msra.mxu0 %v1434
    %1507 = vmatpush.bf16.msra.mxu0 %v1433
    %1508 = vmatmul.bf16.gmra.mxu0 %v1248
    %v1509 = vpop.f32.mrf.mxu0
    %v1510 = vadd.f32 0.0, %v1509
    %v1511 = vpop.f32.mrf.mxu0
    %1512 = vdwg.mxu0
    %1513 = vmatpush.bf16.msra.mxu0 %v1448
    %1514 = vmatpush.bf16.msra.mxu0 %v1447
    %1515 = vmatpush.bf16.msra.mxu0 %v1446
    %1516 = vmatpush.bf16.msra.mxu0 %v1445
    %1517 = vmatpush.bf16.msra.mxu0 %v1444
    %1518 = vmatpush.bf16.msra.mxu0 %v1443
    %1519 = vmatpush.bf16.msra.mxu0 %v1442
    %1520 = vmatpush.bf16.msra.mxu0 %v1441
    %1521 = vmatmul.bf16.gmra.mxu0 %v1249
    %v1522 = vpop.f32.mrf.mxu0
    %v1523 = vadd.f32 %v1510, %v1522
    %v1524 = vpop.f32.mrf.mxu0
    %1525 = vdwg.mxu0
    %1526 = vmatpush.bf16.msra.mxu0 %v1456
    %1527 = vmatpush.bf16.msra.mxu0 %v1455
    %1528 = vmatpush.bf16.msra.mxu0 %v1454
    %1529 = vmatpush.bf16.msra.mxu0 %v1453
    %1530 = vmatpush.bf16.msra.mxu0 %v1452
    %1531 = vmatpush.bf16.msra.mxu0 %v1451
    %1532 = vmatpush.bf16.msra.mxu0 %v1450
    %1533 = vmatpush.bf16.msra.mxu0 %v1449
    %1534 = vmatmul.bf16.gmra.mxu0 %v1250
    %v1535 = vpop.f32.mrf.mxu0
    %v1536 = vadd.f32 %v1523, %v1535
    %v1537 = vpop.f32.mrf.mxu0
    %1538 = vdwg.mxu0
    %1539 = vmatpush.bf16.msra.mxu0 0
    %1540 = vmatpush.bf16.msra.mxu0 0
    %1541 = vmatpush.bf16.msra.mxu0 %v1498
    %1542 = vmatpush.bf16.msra.mxu0 %v1461
    %1543 = vmatpush.bf16.msra.mxu0 %v1460
    %1544 = vmatpush.bf16.msra.mxu0 %v1459
    %1545 = vmatpush.bf16.msra.mxu0 %v1458
    %1546 = vmatpush.bf16.msra.mxu0 %v1457
    %1547 = vmatmul.bf16.gmra.mxu0 %v1494
    %v1548 = vpop.f32.mrf.mxu0
    %v1549 = vadd.f32 %v1536, %v1548
    %v1550 = vpop.f32.mrf.mxu0
    %1551 = vdwg.mxu0
    %v1612 = vunpack.c.l.b16 %v775
    %v1613 = vunpack.c.l.b16 %v776
    %v1614 = vunpack.c.l.b16 %v777
    %v1615 = vunpack.c.l.b16 %v778
    %v1616 = vunpack.c.l.b16 %v779
    %v1617 = vunpack.c.l.b16 %v780
    %v1618 = vunpack.c.l.b16 %v781
    %v1619 = vunpack.c.l.b16 %v782
    %v1620 = vunpack.c.l.b16 %v783
    %v1621 = vunpack.c.l.b16 %v784
    %v1622 = vunpack.c.l.b16 %v785
    %v1623 = vunpack.c.l.b16 %v786
    %v1624 = vunpack.c.l.b16 %v787
    %v1625 = vunpack.c.l.b16 %v788
    %v1626 = vunpack.c.l.b16 %v789
    %v1627 = vunpack.c.l.b16 %v790
    %v1628 = vunpack.c.l.b16 %v791
    %v1629 = vunpack.c.l.b16 %v792
    %v1630 = vunpack.c.l.b16 %v793
    %v1631 = vunpack.c.l.b16 %v794
    %v1632 = vunpack.c.l.b16 %v795
    %v1633 = vunpack.c.l.b16 %v796
    %v1634 = vunpack.c.l.b16 %v797
    %v1635 = vunpack.c.l.b16 %v798
    %v1636 = vunpack.c.l.b16 %v799
    %v1637 = vunpack.c.l.b16 %v800
    %v1638 = vunpack.c.l.b16 %v801
    %v1639 = vunpack.c.l.b16 %v802
    %v1640 = vunpack.c.l.b16 %v803
    %v1641 = vunpack.c.l.b16 %v804
    %v1642 = vunpack.c.l.b16 %v805
    %v1643 = vunpack.c.l.b16 %v806
    %v1644 = vunpack.c.l.b16 %v807
    %v1645 = vunpack.c.l.b16 %v808
    %v1646 = vunpack.c.l.b16 %v809
    %v1647 = vunpack.c.l.b16 %v810
    %v1648 = vunpack.c.l.b16 %v811
    %v1649 = vunpack.c.l.b16 %v812
    %v1650 = vunpack.c.l.b16 %v813
    %v1651 = vunpack.c.l.b16 %v814
    %v1652 = vunpack.c.l.b16 %v815
    %v1653 = vunpack.c.l.b16 %v816
    %v1654 = vunpack.c.l.b16 %v817
    %v1655 = vunpack.c.l.b16 %v818
    %v1656 = vunpack.c.l.b16 %v819
    %v1657 = vunpack.c.l.b16 %v820
    %v1658 = vunpack.c.l.b16 %v821
    %v1659 = vunpack.c.l.b16 %v822
    %v1660 = vunpack.c.l.b16 %v823
    %v1661 = vunpack.c.l.b16 %v824
    %v1662 = vunpack.c.l.b16 %v825
    %v1663 = vunpack.c.l.b16 %v826
    %v1664 = vunpack.c.l.b16 %v827
    %v1665 = vunpack.c.l.b16 %v828
    %v1666 = vunpack.c.l.b16 %v829
    %v1667 = vunpack.c.l.b16 %v830
    %v1668 = vunpack.c.l.b16 %v831
    %v1669 = vunpack.c.l.b16 %v832
    %v1670 = vunpack.c.l.b16 %v833
    %v1671 = vunpack.c.l.b16 %v834
    %v1672 = vpack.c.b16 %v1613, %v1612
    %v1673 = vpack.c.b16 %v1615, %v1614
    %v1674 = vpack.c.b16 %v1617, %v1616
    %v1675 = vpack.c.b16 %v1619, %v1618
    %v1676 = vpack.c.b16 %v1621, %v1620
    %v1677 = vpack.c.b16 %v1623, %v1622
    %v1678 = vpack.c.b16 %v1625, %v1624
    %v1679 = vpack.c.b16 %v1627, %v1626
    %v1680 = vpack.c.b16 %v1629, %v1628
    %v1681 = vpack.c.b16 %v1631, %v1630
    %v1682 = vpack.c.b16 %v1633, %v1632
    %v1683 = vpack.c.b16 %v1635, %v1634
    %v1684 = vpack.c.b16 %v1637, %v1636
    %v1685 = vpack.c.b16 %v1639, %v1638
    %v1686 = vpack.c.b16 %v1641, %v1640
    %v1687 = vpack.c.b16 %v1643, %v1642
    %v1688 = vpack.c.b16 %v1645, %v1644
    %v1689 = vpack.c.b16 %v1647, %v1646
    %v1690 = vpack.c.b16 %v1649, %v1648
    %v1691 = vpack.c.b16 %v1651, %v1650
    %v1692 = vpack.c.b16 %v1653, %v1652
    %v1693 = vpack.c.b16 %v1655, %v1654
    %v1694 = vpack.c.b16 %v1657, %v1656
    %v1695 = vpack.c.b16 %v1659, %v1658
    %v1696 = vpack.c.b16 %v1661, %v1660
    %v1697 = vpack.c.b16 %v1663, %v1662
    %v1698 = vpack.c.b16 %v1665, %v1664
    %v1699 = vpack.c.b16 %v1667, %v1666
    %v1700 = vpack.c.b16 %v1669, %v1668
    %v1701 = vpack.c.b16 %v1671, %v1670
    %v1732 = vsel %vm1492, %v774, 0
    %v1735 = vsel %vm1496, %v1701, 0
    %1737 = vmatpush.bf16.msra.mxu0 %v1679
    %1738 = vmatpush.bf16.msra.mxu0 %v1678
    %1739 = vmatpush.bf16.msra.mxu0 %v1677
    %1740 = vmatpush.bf16.msra.mxu0 %v1676
    %1741 = vmatpush.bf16.msra.mxu0 %v1675
    %1742 = vmatpush.bf16.msra.mxu0 %v1674
    %1743 = vmatpush.bf16.msra.mxu0 %v1673
    %1744 = vmatpush.bf16.msra.mxu0 %v1672
    %1745 = vmatmul.bf16.gmra.mxu0 %v771
    %v1746 = vpop.f32.mrf.mxu0
    %v1747 = vadd.f32 %v1549, %v1746
    %v1748 = vpop.f32.mrf.mxu0
    %1749 = vdwg.mxu0
    %1750 = vmatpush.bf16.msra.mxu0 %v1687
    %1751 = vmatpush.bf16.msra.mxu0 %v1686
    %1752 = vmatpush.bf16.msra.mxu0 %v1685
    %1753 = vmatpush.bf16.msra.mxu0 %v1684
    %1754 = vmatpush.bf16.msra.mxu0 %v1683
    %1755 = vmatpush.bf16.msra.mxu0 %v1682
    %1756 = vmatpush.bf16.msra.mxu0 %v1681
    %1757 = vmatpush.bf16.msra.mxu0 %v1680
    %1758 = vmatmul.bf16.gmra.mxu0 %v772
    %v1759 = vpop.f32.mrf.mxu0
    %v1760 = vadd.f32 %v1747, %v1759
    %v1761 = vpop.f32.mrf.mxu0
    %1762 = vdwg.mxu0
    %1763 = vmatpush.bf16.msra.mxu0 %v1695
    %1764 = vmatpush.bf16.msra.mxu0 %v1694
    %1765 = vmatpush.bf16.msra.mxu0 %v1693
    %1766 = vmatpush.bf16.msra.mxu0 %v1692
    %1767 = vmatpush.bf16.msra.mxu0 %v1691
    %1768 = vmatpush.bf16.msra.mxu0 %v1690
    %1769 = vmatpush.bf16.msra.mxu0 %v1689
    %1770 = vmatpush.bf16.msra.mxu0 %v1688
    %1771 = vmatmul.bf16.gmra.mxu0 %v773
    %v1772 = vpop.f32.mrf.mxu0
    %v1773 = vadd.f32 %v1760, %v1772
    %v1774 = vpop.f32.mrf.mxu0
    %1775 = vdwg.mxu0
    %1776 = vmatpush.bf16.msra.mxu0 0
    %1777 = vmatpush.bf16.msra.mxu0 0
    %1778 = vmatpush.bf16.msra.mxu0 %v1735
    %1779 = vmatpush.bf16.msra.mxu0 %v1700
    %1780 = vmatpush.bf16.msra.mxu0 %v1699
    %1781 = vmatpush.bf16.msra.mxu0 %v1698
    %1782 = vmatpush.bf16.msra.mxu0 %v1697
    %1783 = vmatpush.bf16.msra.mxu0 %v1696
    %1784 = vmatmul.bf16.gmra.mxu0 %v1732
    %v1785 = vpop.f32.mrf.mxu0
    %v1786 = vadd.f32 %v1773, %v1785
    %v1787 = vpop.f32.mrf.mxu0
    %1788 = vdwg.mxu0
    %s1789 = scalar_lea.vmem %s0, 36
    %v1790 = vld [vmem:[%s1789] sm:$0xff]
    %v1791 = vld [vmem:[%s1789 + $0x8] sm:$0xf]
    %v1794 = vunpack.c.l.b16 %v1790
    %v1795 = vunpack.c.h.b16 %v1790
    %v1796 = vunpack.c.l.b16 %v1791
    %v1797 = vpack.c.b16 %v1794, %v1794
    %v1798 = vpack.c.b16 %v1795, %v1795
    %v1799 = vpack.c.b16 %v1796, %v1796
    %1803 = vmatpush.bf16.msra.mxu0 %v447
    %1804 = vmatpush.bf16.msra.mxu0 %v443
    %1805 = vmatpush.bf16.msra.mxu0 %v439
    %1806 = vmatpush.bf16.msra.mxu0 %v435
    %1807 = vmatpush.bf16.msra.mxu0 %v431
    %1808 = vmatpush.bf16.msra.mxu0 %v427
    %1809 = vmatpush.bf16.msra.mxu0 %v423
    %1810 = vmatpush.bf16.msra.mxu0 %v419
    %1811 = vmatmul.bf16.gmra.mxu0 %v1797
    %v1812 = vpop.f32.mrf.mxu0
    %v1813 = vadd.f32 0.0, %v1812
    %v1814 = vpop.f32.mrf.mxu0
    %1815 = vdwg.mxu0
    %1816 = vmatpush.bf16.msra.mxu0 %v479
    %1817 = vmatpush.bf16.msra.mxu0 %v475
    %1818 = vmatpush.bf16.msra.mxu0 %v471
    %1819 = vmatpush.bf16.msra.mxu0 %v467
    %1820 = vmatpush.bf16.msra.mxu0 %v463
    %1821 = vmatpush.bf16.msra.mxu0 %v459
    %1822 = vmatpush.bf16.msra.mxu0 %v455
    %1823 = vmatpush.bf16.msra.mxu0 %v451
    %1824 = vmatmul.bf16.gmra.mxu0 %v1798
    %v1825 = vpop.f32.mrf.mxu0
    %v1826 = vadd.f32 %v1813, %v1825
    %v1827 = vpop.f32.mrf.mxu0
    %1828 = vdwg.mxu0
    %1829 = vmatpush.bf16.msra.mxu0 %v511
    %1830 = vmatpush.bf16.msra.mxu0 %v507
    %1831 = vmatpush.bf16.msra.mxu0 %v503
    %1832 = vmatpush.bf16.msra.mxu0 %v499
    %1833 = vmatpush.bf16.msra.mxu0 %v495
    %1834 = vmatpush.bf16.msra.mxu0 %v491
    %1835 = vmatpush.bf16.msra.mxu0 %v487
    %1836 = vmatpush.bf16.msra.mxu0 %v483
    %1837 = vmatmul.bf16.gmra.mxu0 %v1799
    %v1838 = vpop.f32.mrf.mxu0
    %v1839 = vadd.f32 %v1826, %v1838
    %v1840 = vpop.f32.mrf.mxu0
    %1841 = vdwg.mxu0
    %1842 = vmatpush.bf16.msra.mxu0 %v448
    %1843 = vmatpush.bf16.msra.mxu0 %v444
    %1844 = vmatpush.bf16.msra.mxu0 %v440
    %1845 = vmatpush.bf16.msra.mxu0 %v436
    %1846 = vmatpush.bf16.msra.mxu0 %v432
    %1847 = vmatpush.bf16.msra.mxu0 %v428
    %1848 = vmatpush.bf16.msra.mxu0 %v424
    %1849 = vmatpush.bf16.msra.mxu0 %v420
    %1850 = vmatmul.bf16.gmra.mxu0 %v1797
    %v1851 = vpop.f32.mrf.mxu0
    %v1852 = vadd.f32 0.0, %v1851
    %v1853 = vpop.f32.mrf.mxu0
    %1854 = vdwg.mxu0
    %1855 = vmatpush.bf16.msra.mxu0 %v480
    %1856 = vmatpush.bf16.msra.mxu0 %v476
    %1857 = vmatpush.bf16.msra.mxu0 %v472
    %1858 = vmatpush.bf16.msra.mxu0 %v468
    %1859 = vmatpush.bf16.msra.mxu0 %v464
    %1860 = vmatpush.bf16.msra.mxu0 %v460
    %1861 = vmatpush.bf16.msra.mxu0 %v456
    %1862 = vmatpush.bf16.msra.mxu0 %v452
    %1863 = vmatmul.bf16.gmra.mxu0 %v1798
    %v1864 = vpop.f32.mrf.mxu0
    %v1865 = vadd.f32 %v1852, %v1864
    %v1866 = vpop.f32.mrf.mxu0
    %1867 = vdwg.mxu0
    %1868 = vmatpush.bf16.msra.mxu0 %v512
    %1869 = vmatpush.bf16.msra.mxu0 %v508
    %1870 = vmatpush.bf16.msra.mxu0 %v504
    %1871 = vmatpush.bf16.msra.mxu0 %v500
    %1872 = vmatpush.bf16.msra.mxu0 %v496
    %1873 = vmatpush.bf16.msra.mxu0 %v492
    %1874 = vmatpush.bf16.msra.mxu0 %v488
    %1875 = vmatpush.bf16.msra.mxu0 %v484
    %1876 = vmatmul.bf16.gmra.mxu0 %v1799
    %v1877 = vpop.f32.mrf.mxu0
    %v1878 = vadd.f32 %v1865, %v1877
    %v1879 = vpop.f32.mrf.mxu0
    %1880 = vdwg.mxu0
    %1881 = vmatpush.bf16.msra.mxu0 %v449
    %1882 = vmatpush.bf16.msra.mxu0 %v445
    %1883 = vmatpush.bf16.msra.mxu0 %v441
    %1884 = vmatpush.bf16.msra.mxu0 %v437
    %1885 = vmatpush.bf16.msra.mxu0 %v433
    %1886 = vmatpush.bf16.msra.mxu0 %v429
    %1887 = vmatpush.bf16.msra.mxu0 %v425
    %1888 = vmatpush.bf16.msra.mxu0 %v421
    %1889 = vmatmul.bf16.gmra.mxu0 %v1797
    %v1890 = vpop.f32.mrf.mxu0
    %v1891 = vadd.f32 0.0, %v1890
    %v1892 = vpop.f32.mrf.mxu0
    %1893 = vdwg.mxu0
    %1894 = vmatpush.bf16.msra.mxu0 %v481
    %1895 = vmatpush.bf16.msra.mxu0 %v477
    %1896 = vmatpush.bf16.msra.mxu0 %v473
    %1897 = vmatpush.bf16.msra.mxu0 %v469
    %1898 = vmatpush.bf16.msra.mxu0 %v465
    %1899 = vmatpush.bf16.msra.mxu0 %v461
    %1900 = vmatpush.bf16.msra.mxu0 %v457
    %1901 = vmatpush.bf16.msra.mxu0 %v453
    %1902 = vmatmul.bf16.gmra.mxu0 %v1798
    %v1903 = vpop.f32.mrf.mxu0
    %v1904 = vadd.f32 %v1891, %v1903
    %v1905 = vpop.f32.mrf.mxu0
    %1906 = vdwg.mxu0
    %1907 = vmatpush.bf16.msra.mxu0 %v513
    %1908 = vmatpush.bf16.msra.mxu0 %v509
    %1909 = vmatpush.bf16.msra.mxu0 %v505
    %1910 = vmatpush.bf16.msra.mxu0 %v501
    %1911 = vmatpush.bf16.msra.mxu0 %v497
    %1912 = vmatpush.bf16.msra.mxu0 %v493
    %1913 = vmatpush.bf16.msra.mxu0 %v489
    %1914 = vmatpush.bf16.msra.mxu0 %v485
    %1915 = vmatmul.bf16.gmra.mxu0 %v1799
    %v1916 = vpop.f32.mrf.mxu0
    %v1917 = vadd.f32 %v1904, %v1916
    %v1918 = vpop.f32.mrf.mxu0
    %1919 = vdwg.mxu0
    %1920 = vmatpush.bf16.msra.mxu0 %v450
    %1921 = vmatpush.bf16.msra.mxu0 %v446
    %1922 = vmatpush.bf16.msra.mxu0 %v442
    %1923 = vmatpush.bf16.msra.mxu0 %v438
    %1924 = vmatpush.bf16.msra.mxu0 %v434
    %1925 = vmatpush.bf16.msra.mxu0 %v430
    %1926 = vmatpush.bf16.msra.mxu0 %v426
    %1927 = vmatpush.bf16.msra.mxu0 %v422
    %1928 = vmatmul.bf16.gmra.mxu0 %v1797
    %v1929 = vpop.f32.mrf.mxu0
    %v1930 = vadd.f32 0.0, %v1929
    %v1931 = vpop.f32.mrf.mxu0
    %1932 = vdwg.mxu0
    %1933 = vmatpush.bf16.msra.mxu0 %v482
    %1934 = vmatpush.bf16.msra.mxu0 %v478
    %1935 = vmatpush.bf16.msra.mxu0 %v474
    %1936 = vmatpush.bf16.msra.mxu0 %v470
    %1937 = vmatpush.bf16.msra.mxu0 %v466
    %1938 = vmatpush.bf16.msra.mxu0 %v462
    %1939 = vmatpush.bf16.msra.mxu0 %v458
    %1940 = vmatpush.bf16.msra.mxu0 %v454
    %1941 = vmatmul.bf16.gmra.mxu0 %v1798
    %v1942 = vpop.f32.mrf.mxu0
    %v1943 = vadd.f32 %v1930, %v1942
    %v1944 = vpop.f32.mrf.mxu0
    %1945 = vdwg.mxu0
    %1946 = vmatpush.bf16.msra.mxu0 %v514
    %1947 = vmatpush.bf16.msra.mxu0 %v510
    %1948 = vmatpush.bf16.msra.mxu0 %v506
    %1949 = vmatpush.bf16.msra.mxu0 %v502
    %1950 = vmatpush.bf16.msra.mxu0 %v498
    %1951 = vmatpush.bf16.msra.mxu0 %v494
    %1952 = vmatpush.bf16.msra.mxu0 %v490
    %1953 = vmatpush.bf16.msra.mxu0 %v486
    %1954 = vmatmul.bf16.gmra.mxu0 %v1799
    %v1955 = vpop.f32.mrf.mxu0
    %v1956 = vadd.f32 %v1943, %v1955
    %v1957 = vpop.f32.mrf.mxu0
    %1958 = vdwg.mxu0
    %v1959 = vmax.f32 %v1839, 0.0
    %v1960 = vmax.f32 %v1878, 0.0
    %v1961 = vmax.f32 %v1917, 0.0
    %v1962 = vmax.f32 %v1956, 0.0
    %v1963 = vpack.c.bf16 %v1959, %v1959
    %v1964 = vpack.c.bf16 %v1960, %v1960
    %v1965 = vpack.c.bf16 %v1961, %v1961
    %v1966 = vpack.c.bf16 %v1962, %v1962
    %s1967 = scalar_lea.vmem %s2, 720
    %v1968 = vld [vmem:[%s1967] sm:$0xf]
    %v1969 = vld [vmem:[%s1967 + $0x4] sm:$0xf]
    %v1970 = vld [vmem:[%s1967 + $0x8] sm:$0xf]
    %v1971 = vld [vmem:[%s1967 + $0xc] sm:$0xf]
    %v1972 = vld [vmem:[%s1967 + $0x10] sm:$0xf]
    %v1973 = vld [vmem:[%s1967 + $0x14] sm:$0xf]
    %v1974 = vld [vmem:[%s1967 + $0x18] sm:$0xf]
    %v1975 = vld [vmem:[%s1967 + $0x1c] sm:$0xf]
    %v1976 = vld [vmem:[%s1967 + $0x20] sm:$0xf]
    %v1977 = vld [vmem:[%s1967 + $0x24] sm:$0xf]
    %v1978 = vld [vmem:[%s1967 + $0x28] sm:$0xf]
    %v1979 = vld [vmem:[%s1967 + $0x2c] sm:$0xf]
    %v1980 = vld [vmem:[%s1967 + $0x30] sm:$0xf]
    %v1981 = vld [vmem:[%s1967 + $0x34] sm:$0xf]
    %v1982 = vld [vmem:[%s1967 + $0x38] sm:$0xf]
    %v1983 = vld [vmem:[%s1967 + $0x3c] sm:$0xf]
    %v1984 = vld [vmem:[%s1967 + $0x40] sm:$0xf]
    %v1985 = vld [vmem:[%s1967 + $0x44] sm:$0xf]
    %v1986 = vld [vmem:[%s1967 + $0x48] sm:$0xf]
    %v1987 = vld [vmem:[%s1967 + $0x4c] sm:$0xf]
    %v1988 = vld [vmem:[%s1967 + $0x50] sm:$0xf]
    %v1989 = vld [vmem:[%s1967 + $0x54] sm:$0xf]
    %v1990 = vld [vmem:[%s1967 + $0x58] sm:$0xf]
    %v1991 = vld [vmem:[%s1967 + $0x5c] sm:$0xf]
    %v1992 = vld [vmem:[%s1967 + $0x60] sm:$0xf]
    %v1993 = vld [vmem:[%s1967 + $0x64] sm:$0xf]
    %v1994 = vld [vmem:[%s1967 + $0x68] sm:$0xf]
    %v1995 = vld [vmem:[%s1967 + $0x6c] sm:$0xf]
    %v1996 = vld [vmem:[%s1967 + $0x70] sm:$0xf]
    %v1997 = vld [vmem:[%s1967 + $0x74] sm:$0xf]
    %v1998 = vld [vmem:[%s1967 + $0x78] sm:$0xf]
    %v1999 = vld [vmem:[%s1967 + $0x7c] sm:$0xf]
    %v2000 = vld [vmem:[%s1967 + $0x80] sm:$0xf]
    %v2001 = vld [vmem:[%s1967 + $0x84] sm:$0xf]
    %v2002 = vld [vmem:[%s1967 + $0x88] sm:$0xf]
    %v2003 = vld [vmem:[%s1967 + $0x8c] sm:$0xf]
    %v2004 = vld [vmem:[%s1967 + $0x90] sm:$0xf]
    %v2005 = vld [vmem:[%s1967 + $0x94] sm:$0xf]
    %v2006 = vld [vmem:[%s1967 + $0x98] sm:$0xf]
    %v2007 = vld [vmem:[%s1967 + $0x9c] sm:$0xf]
    %v2008 = vld [vmem:[%s1967 + $0xa0] sm:$0xf]
    %v2009 = vld [vmem:[%s1967 + $0xa4] sm:$0xf]
    %v2010 = vld [vmem:[%s1967 + $0xa8] sm:$0xf]
    %v2011 = vld [vmem:[%s1967 + $0xac] sm:$0xf]
    %v2012 = vld [vmem:[%s1967 + $0xb0] sm:$0xf]
    %v2013 = vld [vmem:[%s1967 + $0xb4] sm:$0xf]
    %v2014 = vld [vmem:[%s1967 + $0xb8] sm:$0xf]
    %v2015 = vld [vmem:[%s1967 + $0xbc] sm:$0xf]
    %v2016 = vld [vmem:[%s1967 + $0xc0] sm:$0xf]
    %v2017 = vld [vmem:[%s1967 + $0xc4] sm:$0xf]
    %v2018 = vld [vmem:[%s1967 + $0xc8] sm:$0xf]
    %v2019 = vld [vmem:[%s1967 + $0xcc] sm:$0xf]
    %v2020 = vld [vmem:[%s1967 + $0xd0] sm:$0xf]
    %v2021 = vld [vmem:[%s1967 + $0xd4] sm:$0xf]
    %v2022 = vld [vmem:[%s1967 + $0xd8] sm:$0xf]
    %v2023 = vld [vmem:[%s1967 + $0xdc] sm:$0xf]
    %v2024 = vld [vmem:[%s1967 + $0xe0] sm:$0xf]
    %v2025 = vld [vmem:[%s1967 + $0xe4] sm:$0xf]
    %v2026 = vld [vmem:[%s1967 + $0xe8] sm:$0xf]
    %v2027 = vld [vmem:[%s1967 + $0xec] sm:$0x3]
    %v2088 = vunpack.c.l.b16 %v1968
    %v2089 = vunpack.c.l.b16 %v1969
    %v2090 = vunpack.c.l.b16 %v1970
    %v2091 = vunpack.c.l.b16 %v1971
    %v2092 = vunpack.c.l.b16 %v1972
    %v2093 = vunpack.c.l.b16 %v1973
    %v2094 = vunpack.c.l.b16 %v1974
    %v2095 = vunpack.c.l.b16 %v1975
    %v2096 = vunpack.c.l.b16 %v1976
    %v2097 = vunpack.c.l.b16 %v1977
    %v2098 = vunpack.c.l.b16 %v1978
    %v2099 = vunpack.c.l.b16 %v1979
    %v2100 = vunpack.c.l.b16 %v1980
    %v2101 = vunpack.c.l.b16 %v1981
    %v2102 = vunpack.c.l.b16 %v1982
    %v2103 = vunpack.c.l.b16 %v1983
    %v2104 = vunpack.c.l.b16 %v1984
    %v2105 = vunpack.c.l.b16 %v1985
    %v2106 = vunpack.c.l.b16 %v1986
    %v2107 = vunpack.c.l.b16 %v1987
    %v2108 = vunpack.c.l.b16 %v1988
    %v2109 = vunpack.c.l.b16 %v1989
    %v2110 = vunpack.c.l.b16 %v1990
    %v2111 = vunpack.c.l.b16 %v1991
    %v2112 = vunpack.c.l.b16 %v1992
    %v2113 = vunpack.c.l.b16 %v1993
    %v2114 = vunpack.c.l.b16 %v1994
    %v2115 = vunpack.c.l.b16 %v1995
    %v2116 = vunpack.c.l.b16 %v1996
    %v2117 = vunpack.c.l.b16 %v1997
    %v2118 = vunpack.c.l.b16 %v1998
    %v2119 = vunpack.c.l.b16 %v1999
    %v2120 = vunpack.c.l.b16 %v2000
    %v2121 = vunpack.c.l.b16 %v2001
    %v2122 = vunpack.c.l.b16 %v2002
    %v2123 = vunpack.c.l.b16 %v2003
    %v2124 = vunpack.c.l.b16 %v2004
    %v2125 = vunpack.c.l.b16 %v2005
    %v2126 = vunpack.c.l.b16 %v2006
    %v2127 = vunpack.c.l.b16 %v2007
    %v2128 = vunpack.c.l.b16 %v2008
    %v2129 = vunpack.c.l.b16 %v2009
    %v2130 = vunpack.c.l.b16 %v2010
    %v2131 = vunpack.c.l.b16 %v2011
    %v2132 = vunpack.c.l.b16 %v2012
    %v2133 = vunpack.c.l.b16 %v2013
    %v2134 = vunpack.c.l.b16 %v2014
    %v2135 = vunpack.c.l.b16 %v2015
    %v2136 = vunpack.c.l.b16 %v2016
    %v2137 = vunpack.c.l.b16 %v2017
    %v2138 = vunpack.c.l.b16 %v2018
    %v2139 = vunpack.c.l.b16 %v2019
    %v2140 = vunpack.c.l.b16 %v2020
    %v2141 = vunpack.c.l.b16 %v2021
    %v2142 = vunpack.c.l.b16 %v2022
    %v2143 = vunpack.c.l.b16 %v2023
    %v2144 = vunpack.c.l.b16 %v2024
    %v2145 = vunpack.c.l.b16 %v2025
    %v2146 = vunpack.c.l.b16 %v2026
    %v2147 = vunpack.c.l.b16 %v2027
    %v2148 = vpack.c.b16 %v2089, %v2088
    %v2149 = vpack.c.b16 %v2091, %v2090
    %v2150 = vpack.c.b16 %v2093, %v2092
    %v2151 = vpack.c.b16 %v2095, %v2094
    %v2152 = vpack.c.b16 %v2097, %v2096
    %v2153 = vpack.c.b16 %v2099, %v2098
    %v2154 = vpack.c.b16 %v2101, %v2100
    %v2155 = vpack.c.b16 %v2103, %v2102
    %v2156 = vpack.c.b16 %v2105, %v2104
    %v2157 = vpack.c.b16 %v2107, %v2106
    %v2158 = vpack.c.b16 %v2109, %v2108
    %v2159 = vpack.c.b16 %v2111, %v2110
    %v2160 = vpack.c.b16 %v2113, %v2112
    %v2161 = vpack.c.b16 %v2115, %v2114
    %v2162 = vpack.c.b16 %v2117, %v2116
    %v2163 = vpack.c.b16 %v2119, %v2118
    %v2164 = vpack.c.b16 %v2121, %v2120
    %v2165 = vpack.c.b16 %v2123, %v2122
    %v2166 = vpack.c.b16 %v2125, %v2124
    %v2167 = vpack.c.b16 %v2127, %v2126
    %v2168 = vpack.c.b16 %v2129, %v2128
    %v2169 = vpack.c.b16 %v2131, %v2130
    %v2170 = vpack.c.b16 %v2133, %v2132
    %v2171 = vpack.c.b16 %v2135, %v2134
    %v2172 = vpack.c.b16 %v2137, %v2136
    %v2173 = vpack.c.b16 %v2139, %v2138
    %v2174 = vpack.c.b16 %v2141, %v2140
    %v2175 = vpack.c.b16 %v2143, %v2142
    %v2176 = vpack.c.b16 %v2145, %v2144
    %v2177 = vpack.c.b16 %v2147, %v2146
    %v2208 = vsel %vm1492, %v1966, 0
    %v2211 = vsel %vm1496, %v2177, 0
    %2213 = vmatpush.bf16.msra.mxu0 %v2155
    %2214 = vmatpush.bf16.msra.mxu0 %v2154
    %2215 = vmatpush.bf16.msra.mxu0 %v2153
    %2216 = vmatpush.bf16.msra.mxu0 %v2152
    %2217 = vmatpush.bf16.msra.mxu0 %v2151
    %2218 = vmatpush.bf16.msra.mxu0 %v2150
    %2219 = vmatpush.bf16.msra.mxu0 %v2149
    %2220 = vmatpush.bf16.msra.mxu0 %v2148
    %2221 = vmatmul.bf16.gmra.mxu0 %v1963
    %v2222 = vpop.f32.mrf.mxu0
    %v2223 = vadd.f32 0.0, %v2222
    %v2224 = vpop.f32.mrf.mxu0
    %2225 = vdwg.mxu0
    %2226 = vmatpush.bf16.msra.mxu0 %v2163
    %2227 = vmatpush.bf16.msra.mxu0 %v2162
    %2228 = vmatpush.bf16.msra.mxu0 %v2161
    %2229 = vmatpush.bf16.msra.mxu0 %v2160
    %2230 = vmatpush.bf16.msra.mxu0 %v2159
    %2231 = vmatpush.bf16.msra.mxu0 %v2158
    %2232 = vmatpush.bf16.msra.mxu0 %v2157
    %2233 = vmatpush.bf16.msra.mxu0 %v2156
    %2234 = vmatmul.bf16.gmra.mxu0 %v1964
    %v2235 = vpop.f32.mrf.mxu0
    %v2236 = vadd.f32 %v2223, %v2235
    %v2237 = vpop.f32.mrf.mxu0
    %2238 = vdwg.mxu0
    %2239 = vmatpush.bf16.msra.mxu0 %v2171
    %2240 = vmatpush.bf16.msra.mxu0 %v2170
    %2241 = vmatpush.bf16.msra.mxu0 %v2169
    %2242 = vmatpush.bf16.msra.mxu0 %v2168
    %2243 = vmatpush.bf16.msra.mxu0 %v2167
    %2244 = vmatpush.bf16.msra.mxu0 %v2166
    %2245 = vmatpush.bf16.msra.mxu0 %v2165
    %2246 = vmatpush.bf16.msra.mxu0 %v2164
    %2247 = vmatmul.bf16.gmra.mxu0 %v1965
    %v2248 = vpop.f32.mrf.mxu0
    %v2249 = vadd.f32 %v2236, %v2248
    %v2250 = vpop.f32.mrf.mxu0
    %2251 = vdwg.mxu0
    %2252 = vmatpush.bf16.msra.mxu0 0
    %2253 = vmatpush.bf16.msra.mxu0 0
    %2254 = vmatpush.bf16.msra.mxu0 %v2211
    %2255 = vmatpush.bf16.msra.mxu0 %v2176
    %2256 = vmatpush.bf16.msra.mxu0 %v2175
    %2257 = vmatpush.bf16.msra.mxu0 %v2174
    %2258 = vmatpush.bf16.msra.mxu0 %v2173
    %2259 = vmatpush.bf16.msra.mxu0 %v2172
    %2260 = vmatmul.bf16.gmra.mxu0 %v2208
    %v2261 = vpop.f32.mrf.mxu0
    %v2262 = vadd.f32 %v2249, %v2261
    %v2263 = vpop.f32.mrf.mxu0
    %2264 = vdwg.mxu0
    %v2325 = vunpack.c.l.b16 %v1014
    %v2326 = vunpack.c.l.b16 %v1015
    %v2327 = vunpack.c.l.b16 %v1016
    %v2328 = vunpack.c.l.b16 %v1017
    %v2329 = vunpack.c.l.b16 %v1018
    %v2330 = vunpack.c.l.b16 %v1019
    %v2331 = vunpack.c.l.b16 %v1020
    %v2332 = vunpack.c.l.b16 %v1021
    %v2333 = vunpack.c.l.b16 %v1022
    %v2334 = vunpack.c.l.b16 %v1023
    %v2335 = vunpack.c.l.b16 %v1024
    %v2336 = vunpack.c.l.b16 %v1025
    %v2337 = vunpack.c.l.b16 %v1026
    %v2338 = vunpack.c.l.b16 %v1027
    %v2339 = vunpack.c.l.b16 %v1028
    %v2340 = vunpack.c.l.b16 %v1029
    %v2341 = vunpack.c.l.b16 %v1030
    %v2342 = vunpack.c.l.b16 %v1031
    %v2343 = vunpack.c.l.b16 %v1032
    %v2344 = vunpack.c.l.b16 %v1033
    %v2345 = vunpack.c.l.b16 %v1034
    %v2346 = vunpack.c.l.b16 %v1035
    %v2347 = vunpack.c.l.b16 %v1036
    %v2348 = vunpack.c.l.b16 %v1037
    %v2349 = vunpack.c.l.b16 %v1038
    %v2350 = vunpack.c.l.b16 %v1039
    %v2351 = vunpack.c.l.b16 %v1040
    %v2352 = vunpack.c.l.b16 %v1041
    %v2353 = vunpack.c.l.b16 %v1042
    %v2354 = vunpack.c.l.b16 %v1043
    %v2355 = vunpack.c.l.b16 %v1044
    %v2356 = vunpack.c.l.b16 %v1045
    %v2357 = vunpack.c.l.b16 %v1046
    %v2358 = vunpack.c.l.b16 %v1047
    %v2359 = vunpack.c.l.b16 %v1048
    %v2360 = vunpack.c.l.b16 %v1049
    %v2361 = vunpack.c.l.b16 %v1050
    %v2362 = vunpack.c.l.b16 %v1051
    %v2363 = vunpack.c.l.b16 %v1052
    %v2364 = vunpack.c.l.b16 %v1053
    %v2365 = vunpack.c.l.b16 %v1054
    %v2366 = vunpack.c.l.b16 %v1055
    %v2367 = vunpack.c.l.b16 %v1056
    %v2368 = vunpack.c.l.b16 %v1057
    %v2369 = vunpack.c.l.b16 %v1058
    %v2370 = vunpack.c.l.b16 %v1059
    %v2371 = vunpack.c.l.b16 %v1060
    %v2372 = vunpack.c.l.b16 %v1061
    %v2373 = vunpack.c.l.b16 %v1062
    %v2374 = vunpack.c.l.b16 %v1063
    %v2375 = vunpack.c.l.b16 %v1064
    %v2376 = vunpack.c.l.b16 %v1065
    %v2377 = vunpack.c.l.b16 %v1066
    %v2378 = vunpack.c.l.b16 %v1067
    %v2379 = vunpack.c.l.b16 %v1068
    %v2380 = vunpack.c.l.b16 %v1069
    %v2381 = vunpack.c.l.b16 %v1070
    %v2382 = vunpack.c.l.b16 %v1071
    %v2383 = vunpack.c.l.b16 %v1072
    %v2384 = vunpack.c.l.b16 %v1073
    %v2385 = vpack.c.b16 %v2326, %v2325
    %v2386 = vpack.c.b16 %v2328, %v2327
    %v2387 = vpack.c.b16 %v2330, %v2329
    %v2388 = vpack.c.b16 %v2332, %v2331
    %v2389 = vpack.c.b16 %v2334, %v2333
    %v2390 = vpack.c.b16 %v2336, %v2335
    %v2391 = vpack.c.b16 %v2338, %v2337
    %v2392 = vpack.c.b16 %v2340, %v2339
    %v2393 = vpack.c.b16 %v2342, %v2341
    %v2394 = vpack.c.b16 %v2344, %v2343
    %v2395 = vpack.c.b16 %v2346, %v2345
    %v2396 = vpack.c.b16 %v2348, %v2347
    %v2397 = vpack.c.b16 %v2350, %v2349
    %v2398 = vpack.c.b16 %v2352, %v2351
    %v2399 = vpack.c.b16 %v2354, %v2353
    %v2400 = vpack.c.b16 %v2356, %v2355
    %v2401 = vpack.c.b16 %v2358, %v2357
    %v2402 = vpack.c.b16 %v2360, %v2359
    %v2403 = vpack.c.b16 %v2362, %v2361
    %v2404 = vpack.c.b16 %v2364, %v2363
    %v2405 = vpack.c.b16 %v2366, %v2365
    %v2406 = vpack.c.b16 %v2368, %v2367
    %v2407 = vpack.c.b16 %v2370, %v2369
    %v2408 = vpack.c.b16 %v2372, %v2371
    %v2409 = vpack.c.b16 %v2374, %v2373
    %v2410 = vpack.c.b16 %v2376, %v2375
    %v2411 = vpack.c.b16 %v2378, %v2377
    %v2412 = vpack.c.b16 %v2380, %v2379
    %v2413 = vpack.c.b16 %v2382, %v2381
    %v2414 = vpack.c.b16 %v2384, %v2383
    %v2445 = vsel %vm1492, %v1012, 0
    %v2448 = vsel %vm1496, %v2414, 0
    %2450 = vmatpush.bf16.msra.mxu0 %v2392
    %2451 = vmatpush.bf16.msra.mxu0 %v2391
    %2452 = vmatpush.bf16.msra.mxu0 %v2390
    %2453 = vmatpush.bf16.msra.mxu0 %v2389
    %2454 = vmatpush.bf16.msra.mxu0 %v2388
    %2455 = vmatpush.bf16.msra.mxu0 %v2387
    %2456 = vmatpush.bf16.msra.mxu0 %v2386
    %2457 = vmatpush.bf16.msra.mxu0 %v2385
    %2458 = vmatmul.bf16.gmra.mxu0 %v1009
    %v2459 = vpop.f32.mrf.mxu0
    %v2460 = vadd.f32 %v2262, %v2459
    %v2461 = vpop.f32.mrf.mxu0
    %2462 = vdwg.mxu0
    %2463 = vmatpush.bf16.msra.mxu0 %v2400
    %2464 = vmatpush.bf16.msra.mxu0 %v2399
    %2465 = vmatpush.bf16.msra.mxu0 %v2398
    %2466 = vmatpush.bf16.msra.mxu0 %v2397
    %2467 = vmatpush.bf16.msra.mxu0 %v2396
    %2468 = vmatpush.bf16.msra.mxu0 %v2395
    %2469 = vmatpush.bf16.msra.mxu0 %v2394
    %2470 = vmatpush.bf16.msra.mxu0 %v2393
    %2471 = vmatmul.bf16.gmra.mxu0 %v1010
    %v2472 = vpop.f32.mrf.mxu0
    %v2473 = vadd.f32 %v2460, %v2472
    %v2474 = vpop.f32.mrf.mxu0
    %2475 = vdwg.mxu0
    %2476 = vmatpush.bf16.msra.mxu0 %v2408
    %2477 = vmatpush.bf16.msra.mxu0 %v2407
    %2478 = vmatpush.bf16.msra.mxu0 %v2406
    %2479 = vmatpush.bf16.msra.mxu0 %v2405
    %2480 = vmatpush.bf16.msra.mxu0 %v2404
    %2481 = vmatpush.bf16.msra.mxu0 %v2403
    %2482 = vmatpush.bf16.msra.mxu0 %v2402
    %2483 = vmatpush.bf16.msra.mxu0 %v2401
    %2484 = vmatmul.bf16.gmra.mxu0 %v1011
    %v2485 = vpop.f32.mrf.mxu0
    %v2486 = vadd.f32 %v2473, %v2485
    %v2487 = vpop.f32.mrf.mxu0
    %2488 = vdwg.mxu0
    %2489 = vmatpush.bf16.msra.mxu0 0
    %2490 = vmatpush.bf16.msra.mxu0 0
    %2491 = vmatpush.bf16.msra.mxu0 %v2448
    %2492 = vmatpush.bf16.msra.mxu0 %v2413
    %2493 = vmatpush.bf16.msra.mxu0 %v2412
    %2494 = vmatpush.bf16.msra.mxu0 %v2411
    %2495 = vmatpush.bf16.msra.mxu0 %v2410
    %2496 = vmatpush.bf16.msra.mxu0 %v2409
    %2497 = vmatmul.bf16.gmra.mxu0 %v2445
    %v2498 = vpop.f32.mrf.mxu0
    %v2499 = vadd.f32 %v2486, %v2498
    %v2500 = vpop.f32.mrf.mxu0
    %2501 = vdwg.mxu0
    %s2502 = scalar_lea.vmem %s0, 48
    %v2503 = vld [vmem:[%s2502] sm:$0xff]
    %v2504 = vld [vmem:[%s2502 + $0x8] sm:$0xf]
    %v2507 = vunpack.c.l.b16 %v2503
    %v2508 = vunpack.c.h.b16 %v2503
    %v2509 = vunpack.c.l.b16 %v2504
    %v2510 = vpack.c.b16 %v2507, %v2507
    %v2511 = vpack.c.b16 %v2508, %v2508
    %v2512 = vpack.c.b16 %v2509, %v2509
    %2516 = vmatpush.bf16.msra.mxu0 %v447
    %2517 = vmatpush.bf16.msra.mxu0 %v443
    %2518 = vmatpush.bf16.msra.mxu0 %v439
    %2519 = vmatpush.bf16.msra.mxu0 %v435
    %2520 = vmatpush.bf16.msra.mxu0 %v431
    %2521 = vmatpush.bf16.msra.mxu0 %v427
    %2522 = vmatpush.bf16.msra.mxu0 %v423
    %2523 = vmatpush.bf16.msra.mxu0 %v419
    %2524 = vmatmul.bf16.gmra.mxu0 %v2510
    %v2525 = vpop.f32.mrf.mxu0
    %v2526 = vadd.f32 0.0, %v2525
    %v2527 = vpop.f32.mrf.mxu0
    %2528 = vdwg.mxu0
    %2529 = vmatpush.bf16.msra.mxu0 %v479
    %2530 = vmatpush.bf16.msra.mxu0 %v475
    %2531 = vmatpush.bf16.msra.mxu0 %v471
    %2532 = vmatpush.bf16.msra.mxu0 %v467
    %2533 = vmatpush.bf16.msra.mxu0 %v463
    %2534 = vmatpush.bf16.msra.mxu0 %v459
    %2535 = vmatpush.bf16.msra.mxu0 %v455
    %2536 = vmatpush.bf16.msra.mxu0 %v451
    %2537 = vmatmul.bf16.gmra.mxu0 %v2511
    %v2538 = vpop.f32.mrf.mxu0
    %v2539 = vadd.f32 %v2526, %v2538
    %v2540 = vpop.f32.mrf.mxu0
    %2541 = vdwg.mxu0
    %2542 = vmatpush.bf16.msra.mxu0 %v511
    %2543 = vmatpush.bf16.msra.mxu0 %v507
    %2544 = vmatpush.bf16.msra.mxu0 %v503
    %2545 = vmatpush.bf16.msra.mxu0 %v499
    %2546 = vmatpush.bf16.msra.mxu0 %v495
    %2547 = vmatpush.bf16.msra.mxu0 %v491
    %2548 = vmatpush.bf16.msra.mxu0 %v487
    %2549 = vmatpush.bf16.msra.mxu0 %v483
    %2550 = vmatmul.bf16.gmra.mxu0 %v2512
    %v2551 = vpop.f32.mrf.mxu0
    %v2552 = vadd.f32 %v2539, %v2551
    %v2553 = vpop.f32.mrf.mxu0
    %2554 = vdwg.mxu0
    %2555 = vmatpush.bf16.msra.mxu0 %v448
    %2556 = vmatpush.bf16.msra.mxu0 %v444
    %2557 = vmatpush.bf16.msra.mxu0 %v440
    %2558 = vmatpush.bf16.msra.mxu0 %v436
    %2559 = vmatpush.bf16.msra.mxu0 %v432
    %2560 = vmatpush.bf16.msra.mxu0 %v428
    %2561 = vmatpush.bf16.msra.mxu0 %v424
    %2562 = vmatpush.bf16.msra.mxu0 %v420
    %2563 = vmatmul.bf16.gmra.mxu0 %v2510
    %v2564 = vpop.f32.mrf.mxu0
    %v2565 = vadd.f32 0.0, %v2564
    %v2566 = vpop.f32.mrf.mxu0
    %2567 = vdwg.mxu0
    %2568 = vmatpush.bf16.msra.mxu0 %v480
    %2569 = vmatpush.bf16.msra.mxu0 %v476
    %2570 = vmatpush.bf16.msra.mxu0 %v472
    %2571 = vmatpush.bf16.msra.mxu0 %v468
    %2572 = vmatpush.bf16.msra.mxu0 %v464
    %2573 = vmatpush.bf16.msra.mxu0 %v460
    %2574 = vmatpush.bf16.msra.mxu0 %v456
    %2575 = vmatpush.bf16.msra.mxu0 %v452
    %2576 = vmatmul.bf16.gmra.mxu0 %v2511
    %v2577 = vpop.f32.mrf.mxu0
    %v2578 = vadd.f32 %v2565, %v2577
    %v2579 = vpop.f32.mrf.mxu0
    %2580 = vdwg.mxu0
    %2581 = vmatpush.bf16.msra.mxu0 %v512
    %2582 = vmatpush.bf16.msra.mxu0 %v508
    %2583 = vmatpush.bf16.msra.mxu0 %v504
    %2584 = vmatpush.bf16.msra.mxu0 %v500
    %2585 = vmatpush.bf16.msra.mxu0 %v496
    %2586 = vmatpush.bf16.msra.mxu0 %v492
    %2587 = vmatpush.bf16.msra.mxu0 %v488
    %2588 = vmatpush.bf16.msra.mxu0 %v484
    %2589 = vmatmul.bf16.gmra.mxu0 %v2512
    %v2590 = vpop.f32.mrf.mxu0
    %v2591 = vadd.f32 %v2578, %v2590
    %v2592 = vpop.f32.mrf.mxu0
    %2593 = vdwg.mxu0
    %2594 = vmatpush.bf16.msra.mxu0 %v449
    %2595 = vmatpush.bf16.msra.mxu0 %v445
    %2596 = vmatpush.bf16.msra.mxu0 %v441
    %2597 = vmatpush.bf16.msra.mxu0 %v437
    %2598 = vmatpush.bf16.msra.mxu0 %v433
    %2599 = vmatpush.bf16.msra.mxu0 %v429
    %2600 = vmatpush.bf16.msra.mxu0 %v425
    %2601 = vmatpush.bf16.msra.mxu0 %v421
    %2602 = vmatmul.bf16.gmra.mxu0 %v2510
    %v2603 = vpop.f32.mrf.mxu0
    %v2604 = vadd.f32 0.0, %v2603
    %v2605 = vpop.f32.mrf.mxu0
    %2606 = vdwg.mxu0
    %2607 = vmatpush.bf16.msra.mxu0 %v481
    %2608 = vmatpush.bf16.msra.mxu0 %v477
    %2609 = vmatpush.bf16.msra.mxu0 %v473
    %2610 = vmatpush.bf16.msra.mxu0 %v469
    %2611 = vmatpush.bf16.msra.mxu0 %v465
    %2612 = vmatpush.bf16.msra.mxu0 %v461
    %2613 = vmatpush.bf16.msra.mxu0 %v457
    %2614 = vmatpush.bf16.msra.mxu0 %v453
    %2615 = vmatmul.bf16.gmra.mxu0 %v2511
    %v2616 = vpop.f32.mrf.mxu0
    %v2617 = vadd.f32 %v2604, %v2616
    %v2618 = vpop.f32.mrf.mxu0
    %2619 = vdwg.mxu0
    %2620 = vmatpush.bf16.msra.mxu0 %v513
    %2621 = vmatpush.bf16.msra.mxu0 %v509
    %2622 = vmatpush.bf16.msra.mxu0 %v505
    %2623 = vmatpush.bf16.msra.mxu0 %v501
    %2624 = vmatpush.bf16.msra.mxu0 %v497
    %2625 = vmatpush.bf16.msra.mxu0 %v493
    %2626 = vmatpush.bf16.msra.mxu0 %v489
    %2627 = vmatpush.bf16.msra.mxu0 %v485
    %2628 = vmatmul.bf16.gmra.mxu0 %v2512
    %v2629 = vpop.f32.mrf.mxu0
    %v2630 = vadd.f32 %v2617, %v2629
    %v2631 = vpop.f32.mrf.mxu0
    %2632 = vdwg.mxu0
    %2633 = vmatpush.bf16.msra.mxu0 %v450
    %2634 = vmatpush.bf16.msra.mxu0 %v446
    %2635 = vmatpush.bf16.msra.mxu0 %v442
    %2636 = vmatpush.bf16.msra.mxu0 %v438
    %2637 = vmatpush.bf16.msra.mxu0 %v434
    %2638 = vmatpush.bf16.msra.mxu0 %v430
    %2639 = vmatpush.bf16.msra.mxu0 %v426
    %2640 = vmatpush.bf16.msra.mxu0 %v422
    %2641 = vmatmul.bf16.gmra.mxu0 %v2510
    %v2642 = vpop.f32.mrf.mxu0
    %v2643 = vadd.f32 0.0, %v2642
    %v2644 = vpop.f32.mrf.mxu0
    %2645 = vdwg.mxu0
    %2646 = vmatpush.bf16.msra.mxu0 %v482
    %2647 = vmatpush.bf16.msra.mxu0 %v478
    %2648 = vmatpush.bf16.msra.mxu0 %v474
    %2649 = vmatpush.bf16.msra.mxu0 %v470
    %2650 = vmatpush.bf16.msra.mxu0 %v466
    %2651 = vmatpush.bf16.msra.mxu0 %v462
    %2652 = vmatpush.bf16.msra.mxu0 %v458
    %2653 = vmatpush.bf16.msra.mxu0 %v454
    %2654 = vmatmul.bf16.gmra.mxu0 %v2511
    %v2655 = vpop.f32.mrf.mxu0
    %v2656 = vadd.f32 %v2643, %v2655
    %v2657 = vpop.f32.mrf.mxu0
    %2658 = vdwg.mxu0
    %2659 = vmatpush.bf16.msra.mxu0 %v514
    %2660 = vmatpush.bf16.msra.mxu0 %v510
    %2661 = vmatpush.bf16.msra.mxu0 %v506
    %2662 = vmatpush.bf16.msra.mxu0 %v502
    %2663 = vmatpush.bf16.msra.mxu0 %v498
    %2664 = vmatpush.bf16.msra.mxu0 %v494
    %2665 = vmatpush.bf16.msra.mxu0 %v490
    %2666 = vmatpush.bf16.msra.mxu0 %v486
    %2667 = vmatmul.bf16.gmra.mxu0 %v2512
    %v2668 = vpop.f32.mrf.mxu0
    %v2669 = vadd.f32 %v2656, %v2668
    %v2670 = vpop.f32.mrf.mxu0
    %2671 = vdwg.mxu0
    %v2672 = vmax.f32 %v2552, 0.0
    %v2673 = vmax.f32 %v2591, 0.0
    %v2674 = vmax.f32 %v2630, 0.0
    %v2675 = vmax.f32 %v2669, 0.0
    %v2676 = vpack.c.bf16 %v2672, %v2672
    %v2677 = vpack.c.bf16 %v2673, %v2673
    %v2678 = vpack.c.bf16 %v2674, %v2674
    %v2679 = vpack.c.bf16 %v2675, %v2675
    %s2680 = scalar_lea.vmem %s2, 960
    %v2681 = vld [vmem:[%s2680] sm:$0xf]
    %v2682 = vld [vmem:[%s2680 + $0x4] sm:$0xf]
    %v2683 = vld [vmem:[%s2680 + $0x8] sm:$0xf]
    %v2684 = vld [vmem:[%s2680 + $0xc] sm:$0xf]
    %v2685 = vld [vmem:[%s2680 + $0x10] sm:$0xf]
    %v2686 = vld [vmem:[%s2680 + $0x14] sm:$0xf]
    %v2687 = vld [vmem:[%s2680 + $0x18] sm:$0xf]
    %v2688 = vld [vmem:[%s2680 + $0x1c] sm:$0xf]
    %v2689 = vld [vmem:[%s2680 + $0x20] sm:$0xf]
    %v2690 = vld [vmem:[%s2680 + $0x24] sm:$0xf]
    %v2691 = vld [vmem:[%s2680 + $0x28] sm:$0xf]
    %v2692 = vld [vmem:[%s2680 + $0x2c] sm:$0xf]
    %v2693 = vld [vmem:[%s2680 + $0x30] sm:$0xf]
    %v2694 = vld [vmem:[%s2680 + $0x34] sm:$0xf]
    %v2695 = vld [vmem:[%s2680 + $0x38] sm:$0xf]
    %v2696 = vld [vmem:[%s2680 + $0x3c] sm:$0xf]
    %v2697 = vld [vmem:[%s2680 + $0x40] sm:$0xf]
    %v2698 = vld [vmem:[%s2680 + $0x44] sm:$0xf]
    %v2699 = vld [vmem:[%s2680 + $0x48] sm:$0xf]
    %v2700 = vld [vmem:[%s2680 + $0x4c] sm:$0xf]
    %v2701 = vld [vmem:[%s2680 + $0x50] sm:$0xf]
    %v2702 = vld [vmem:[%s2680 + $0x54] sm:$0xf]
    %v2703 = vld [vmem:[%s2680 + $0x58] sm:$0xf]
    %v2704 = vld [vmem:[%s2680 + $0x5c] sm:$0xf]
    %v2705 = vld [vmem:[%s2680 + $0x60] sm:$0xf]
    %v2706 = vld [vmem:[%s2680 + $0x64] sm:$0xf]
    %v2707 = vld [vmem:[%s2680 + $0x68] sm:$0xf]
    %v2708 = vld [vmem:[%s2680 + $0x6c] sm:$0xf]
    %v2709 = vld [vmem:[%s2680 + $0x70] sm:$0xf]
    %v2710 = vld [vmem:[%s2680 + $0x74] sm:$0xf]
    %v2711 = vld [vmem:[%s2680 + $0x78] sm:$0xf]
    %v2712 = vld [vmem:[%s2680 + $0x7c] sm:$0xf]
    %v2713 = vld [vmem:[%s2680 + $0x80] sm:$0xf]
    %v2714 = vld [vmem:[%s2680 + $0x84] sm:$0xf]
    %v2715 = vld [vmem:[%s2680 + $0x88] sm:$0xf]
    %v2716 = vld [vmem:[%s2680 + $0x8c] sm:$0xf]
    %v2717 = vld [vmem:[%s2680 + $0x90] sm:$0xf]
    %v2718 = vld [vmem:[%s2680 + $0x94] sm:$0xf]
    %v2719 = vld [vmem:[%s2680 + $0x98] sm:$0xf]
    %v2720 = vld [vmem:[%s2680 + $0x9c] sm:$0xf]
    %v2721 = vld [vmem:[%s2680 + $0xa0] sm:$0xf]
    %v2722 = vld [vmem:[%s2680 + $0xa4] sm:$0xf]
    %v2723 = vld [vmem:[%s2680 + $0xa8] sm:$0xf]
    %v2724 = vld [vmem:[%s2680 + $0xac] sm:$0xf]
    %v2725 = vld [vmem:[%s2680 + $0xb0] sm:$0xf]
    %v2726 = vld [vmem:[%s2680 + $0xb4] sm:$0xf]
    %v2727 = vld [vmem:[%s2680 + $0xb8] sm:$0xf]
    %v2728 = vld [vmem:[%s2680 + $0xbc] sm:$0xf]
    %v2729 = vld [vmem:[%s2680 + $0xc0] sm:$0xf]
    %v2730 = vld [vmem:[%s2680 + $0xc4] sm:$0xf]
    %v2731 = vld [vmem:[%s2680 + $0xc8] sm:$0xf]
    %v2732 = vld [vmem:[%s2680 + $0xcc] sm:$0xf]
    %v2733 = vld [vmem:[%s2680 + $0xd0] sm:$0xf]
    %v2734 = vld [vmem:[%s2680 + $0xd4] sm:$0xf]
    %v2735 = vld [vmem:[%s2680 + $0xd8] sm:$0xf]
    %v2736 = vld [vmem:[%s2680 + $0xdc] sm:$0xf]
    %v2737 = vld [vmem:[%s2680 + $0xe0] sm:$0xf]
    %v2738 = vld [vmem:[%s2680 + $0xe4] sm:$0xf]
    %v2739 = vld [vmem:[%s2680 + $0xe8] sm:$0xf]
    %v2740 = vld [vmem:[%s2680 + $0xec] sm:$0x3]
    %v2801 = vunpack.c.l.b16 %v2681
    %v2802 = vunpack.c.l.b16 %v2682
    %v2803 = vunpack.c.l.b16 %v2683
    %v2804 = vunpack.c.l.b16 %v2684
    %v2805 = vunpack.c.l.b16 %v2685
    %v2806 = vunpack.c.l.b16 %v2686
    %v2807 = vunpack.c.l.b16 %v2687
    %v2808 = vunpack.c.l.b16 %v2688
    %v2809 = vunpack.c.l.b16 %v2689
    %v2810 = vunpack.c.l.b16 %v2690
    %v2811 = vunpack.c.l.b16 %v2691
    %v2812 = vunpack.c.l.b16 %v2692
    %v2813 = vunpack.c.l.b16 %v2693
    %v2814 = vunpack.c.l.b16 %v2694
    %v2815 = vunpack.c.l.b16 %v2695
    %v2816 = vunpack.c.l.b16 %v2696
    %v2817 = vunpack.c.l.b16 %v2697
    %v2818 = vunpack.c.l.b16 %v2698
    %v2819 = vunpack.c.l.b16 %v2699
    %v2820 = vunpack.c.l.b16 %v2700
    %v2821 = vunpack.c.l.b16 %v2701
    %v2822 = vunpack.c.l.b16 %v2702
    %v2823 = vunpack.c.l.b16 %v2703
    %v2824 = vunpack.c.l.b16 %v2704
    %v2825 = vunpack.c.l.b16 %v2705
    %v2826 = vunpack.c.l.b16 %v2706
    %v2827 = vunpack.c.l.b16 %v2707
    %v2828 = vunpack.c.l.b16 %v2708
    %v2829 = vunpack.c.l.b16 %v2709
    %v2830 = vunpack.c.l.b16 %v2710
    %v2831 = vunpack.c.l.b16 %v2711
    %v2832 = vunpack.c.l.b16 %v2712
    %v2833 = vunpack.c.l.b16 %v2713
    %v2834 = vunpack.c.l.b16 %v2714
    %v2835 = vunpack.c.l.b16 %v2715
    %v2836 = vunpack.c.l.b16 %v2716
    %v2837 = vunpack.c.l.b16 %v2717
    %v2838 = vunpack.c.l.b16 %v2718
    %v2839 = vunpack.c.l.b16 %v2719
    %v2840 = vunpack.c.l.b16 %v2720
    %v2841 = vunpack.c.l.b16 %v2721
    %v2842 = vunpack.c.l.b16 %v2722
    %v2843 = vunpack.c.l.b16 %v2723
    %v2844 = vunpack.c.l.b16 %v2724
    %v2845 = vunpack.c.l.b16 %v2725
    %v2846 = vunpack.c.l.b16 %v2726
    %v2847 = vunpack.c.l.b16 %v2727
    %v2848 = vunpack.c.l.b16 %v2728
    %v2849 = vunpack.c.l.b16 %v2729
    %v2850 = vunpack.c.l.b16 %v2730
    %v2851 = vunpack.c.l.b16 %v2731
    %v2852 = vunpack.c.l.b16 %v2732
    %v2853 = vunpack.c.l.b16 %v2733
    %v2854 = vunpack.c.l.b16 %v2734
    %v2855 = vunpack.c.l.b16 %v2735
    %v2856 = vunpack.c.l.b16 %v2736
    %v2857 = vunpack.c.l.b16 %v2737
    %v2858 = vunpack.c.l.b16 %v2738
    %v2859 = vunpack.c.l.b16 %v2739
    %v2860 = vunpack.c.l.b16 %v2740
    %v2861 = vpack.c.b16 %v2802, %v2801
    %v2862 = vpack.c.b16 %v2804, %v2803
    %v2863 = vpack.c.b16 %v2806, %v2805
    %v2864 = vpack.c.b16 %v2808, %v2807
    %v2865 = vpack.c.b16 %v2810, %v2809
    %v2866 = vpack.c.b16 %v2812, %v2811
    %v2867 = vpack.c.b16 %v2814, %v2813
    %v2868 = vpack.c.b16 %v2816, %v2815
    %v2869 = vpack.c.b16 %v2818, %v2817
    %v2870 = vpack.c.b16 %v2820, %v2819
    %v2871 = vpack.c.b16 %v2822, %v2821
    %v2872 = vpack.c.b16 %v2824, %v2823
    %v2873 = vpack.c.b16 %v2826, %v2825
    %v2874 = vpack.c.b16 %v2828, %v2827
    %v2875 = vpack.c.b16 %v2830, %v2829
    %v2876 = vpack.c.b16 %v2832, %v2831
    %v2877 = vpack.c.b16 %v2834, %v2833
    %v2878 = vpack.c.b16 %v2836, %v2835
    %v2879 = vpack.c.b16 %v2838, %v2837
    %v2880 = vpack.c.b16 %v2840, %v2839
    %v2881 = vpack.c.b16 %v2842, %v2841
    %v2882 = vpack.c.b16 %v2844, %v2843
    %v2883 = vpack.c.b16 %v2846, %v2845
    %v2884 = vpack.c.b16 %v2848, %v2847
    %v2885 = vpack.c.b16 %v2850, %v2849
    %v2886 = vpack.c.b16 %v2852, %v2851
    %v2887 = vpack.c.b16 %v2854, %v2853
    %v2888 = vpack.c.b16 %v2856, %v2855
    %v2889 = vpack.c.b16 %v2858, %v2857
    %v2890 = vpack.c.b16 %v2860, %v2859
    %v2921 = vsel %vm1492, %v2679, 0
    %v2924 = vsel %vm1496, %v2890, 0
    %2926 = vmatpush.bf16.msra.mxu0 %v2868
    %2927 = vmatpush.bf16.msra.mxu0 %v2867
    %2928 = vmatpush.bf16.msra.mxu0 %v2866
    %2929 = vmatpush.bf16.msra.mxu0 %v2865
    %2930 = vmatpush.bf16.msra.mxu0 %v2864
    %2931 = vmatpush.bf16.msra.mxu0 %v2863
    %2932 = vmatpush.bf16.msra.mxu0 %v2862
    %2933 = vmatpush.bf16.msra.mxu0 %v2861
    %2934 = vmatmul.bf16.gmra.mxu0 %v2676
    %v2935 = vpop.f32.mrf.mxu0
    %v2936 = vadd.f32 0.0, %v2935
    %v2937 = vpop.f32.mrf.mxu0
    %2938 = vdwg.mxu0
    %2939 = vmatpush.bf16.msra.mxu0 %v2876
    %2940 = vmatpush.bf16.msra.mxu0 %v2875
    %2941 = vmatpush.bf16.msra.mxu0 %v2874
    %2942 = vmatpush.bf16.msra.mxu0 %v2873
    %2943 = vmatpush.bf16.msra.mxu0 %v2872
    %2944 = vmatpush.bf16.msra.mxu0 %v2871
    %2945 = vmatpush.bf16.msra.mxu0 %v2870
    %2946 = vmatpush.bf16.msra.mxu0 %v2869
    %2947 = vmatmul.bf16.gmra.mxu0 %v2677
    %v2948 = vpop.f32.mrf.mxu0
    %v2949 = vadd.f32 %v2936, %v2948
    %v2950 = vpop.f32.mrf.mxu0
    %2951 = vdwg.mxu0
    %2952 = vmatpush.bf16.msra.mxu0 %v2884
    %2953 = vmatpush.bf16.msra.mxu0 %v2883
    %2954 = vmatpush.bf16.msra.mxu0 %v2882
    %2955 = vmatpush.bf16.msra.mxu0 %v2881
    %2956 = vmatpush.bf16.msra.mxu0 %v2880
    %2957 = vmatpush.bf16.msra.mxu0 %v2879
    %2958 = vmatpush.bf16.msra.mxu0 %v2878
    %2959 = vmatpush.bf16.msra.mxu0 %v2877
    %2960 = vmatmul.bf16.gmra.mxu0 %v2678
    %v2961 = vpop.f32.mrf.mxu0
    %v2962 = vadd.f32 %v2949, %v2961
    %v2963 = vpop.f32.mrf.mxu0
    %2964 = vdwg.mxu0
    %2965 = vmatpush.bf16.msra.mxu0 0
    %2966 = vmatpush.bf16.msra.mxu0 0
    %2967 = vmatpush.bf16.msra.mxu0 %v2924
    %2968 = vmatpush.bf16.msra.mxu0 %v2889
    %2969 = vmatpush.bf16.msra.mxu0 %v2888
    %2970 = vmatpush.bf16.msra.mxu0 %v2887
    %2971 = vmatpush.bf16.msra.mxu0 %v2886
    %2972 = vmatpush.bf16.msra.mxu0 %v2885
    %2973 = vmatmul.bf16.gmra.mxu0 %v2921
    %v2974 = vpop.f32.mrf.mxu0
    %v2975 = vadd.f32 %v2962, %v2974
    %v2976 = vpop.f32.mrf.mxu0
    %2977 = vdwg.mxu0
    %v2978 = vadd.f32 %v1786, %v2975
    %s2979 = scalar_lea.vmem %s0, 60
    %v2980 = vld [vmem:[%s2979] sm:$0xff]
    %v2981 = vld [vmem:[%s2979 + $0x8] sm:$0xf]
    %v2984 = vunpack.c.l.b16 %v2980
    %v2985 = vunpack.c.h.b16 %v2980
    %v2986 = vunpack.c.l.b16 %v2981
    %v2987 = vpack.c.b16 %v2984, %v2984
    %v2988 = vpack.c.b16 %v2985, %v2985
    %v2989 = vpack.c.b16 %v2986, %v2986
    %2993 = vmatpush.bf16.msra.mxu0 %v447
    %2994 = vmatpush.bf16.msra.mxu0 %v443
    %2995 = vmatpush.bf16.msra.mxu0 %v439
    %2996 = vmatpush.bf16.msra.mxu0 %v435
    %2997 = vmatpush.bf16.msra.mxu0 %v431
    %2998 = vmatpush.bf16.msra.mxu0 %v427
    %2999 = vmatpush.bf16.msra.mxu0 %v423
    %3000 = vmatpush.bf16.msra.mxu0 %v419
    %3001 = vmatmul.bf16.gmra.mxu0 %v2987
    %v3002 = vpop.f32.mrf.mxu0
    %v3003 = vadd.f32 0.0, %v3002
    %v3004 = vpop.f32.mrf.mxu0
    %3005 = vdwg.mxu0
    %3006 = vmatpush.bf16.msra.mxu0 %v479
    %3007 = vmatpush.bf16.msra.mxu0 %v475
    %3008 = vmatpush.bf16.msra.mxu0 %v471
    %3009 = vmatpush.bf16.msra.mxu0 %v467
    %3010 = vmatpush.bf16.msra.mxu0 %v463
    %3011 = vmatpush.bf16.msra.mxu0 %v459
    %3012 = vmatpush.bf16.msra.mxu0 %v455
    %3013 = vmatpush.bf16.msra.mxu0 %v451
    %3014 = vmatmul.bf16.gmra.mxu0 %v2988
    %v3015 = vpop.f32.mrf.mxu0
    %v3016 = vadd.f32 %v3003, %v3015
    %v3017 = vpop.f32.mrf.mxu0
    %3018 = vdwg.mxu0
    %3019 = vmatpush.bf16.msra.mxu0 %v511
    %3020 = vmatpush.bf16.msra.mxu0 %v507
    %3021 = vmatpush.bf16.msra.mxu0 %v503
    %3022 = vmatpush.bf16.msra.mxu0 %v499
    %3023 = vmatpush.bf16.msra.mxu0 %v495
    %3024 = vmatpush.bf16.msra.mxu0 %v491
    %3025 = vmatpush.bf16.msra.mxu0 %v487
    %3026 = vmatpush.bf16.msra.mxu0 %v483
    %3027 = vmatmul.bf16.gmra.mxu0 %v2989
    %v3028 = vpop.f32.mrf.mxu0
    %v3029 = vadd.f32 %v3016, %v3028
    %v3030 = vpop.f32.mrf.mxu0
    %3031 = vdwg.mxu0
    %3032 = vmatpush.bf16.msra.mxu0 %v448
    %3033 = vmatpush.bf16.msra.mxu0 %v444
    %3034 = vmatpush.bf16.msra.mxu0 %v440
    %3035 = vmatpush.bf16.msra.mxu0 %v436
    %3036 = vmatpush.bf16.msra.mxu0 %v432
    %3037 = vmatpush.bf16.msra.mxu0 %v428
    %3038 = vmatpush.bf16.msra.mxu0 %v424
    %3039 = vmatpush.bf16.msra.mxu0 %v420
    %3040 = vmatmul.bf16.gmra.mxu0 %v2987
    %v3041 = vpop.f32.mrf.mxu0
    %v3042 = vadd.f32 0.0, %v3041
    %v3043 = vpop.f32.mrf.mxu0
    %3044 = vdwg.mxu0
    %3045 = vmatpush.bf16.msra.mxu0 %v480
    %3046 = vmatpush.bf16.msra.mxu0 %v476
    %3047 = vmatpush.bf16.msra.mxu0 %v472
    %3048 = vmatpush.bf16.msra.mxu0 %v468
    %3049 = vmatpush.bf16.msra.mxu0 %v464
    %3050 = vmatpush.bf16.msra.mxu0 %v460
    %3051 = vmatpush.bf16.msra.mxu0 %v456
    %3052 = vmatpush.bf16.msra.mxu0 %v452
    %3053 = vmatmul.bf16.gmra.mxu0 %v2988
    %v3054 = vpop.f32.mrf.mxu0
    %v3055 = vadd.f32 %v3042, %v3054
    %v3056 = vpop.f32.mrf.mxu0
    %3057 = vdwg.mxu0
    %3058 = vmatpush.bf16.msra.mxu0 %v512
    %3059 = vmatpush.bf16.msra.mxu0 %v508
    %3060 = vmatpush.bf16.msra.mxu0 %v504
    %3061 = vmatpush.bf16.msra.mxu0 %v500
    %3062 = vmatpush.bf16.msra.mxu0 %v496
    %3063 = vmatpush.bf16.msra.mxu0 %v492
    %3064 = vmatpush.bf16.msra.mxu0 %v488
    %3065 = vmatpush.bf16.msra.mxu0 %v484
    %3066 = vmatmul.bf16.gmra.mxu0 %v2989
    %v3067 = vpop.f32.mrf.mxu0
    %v3068 = vadd.f32 %v3055, %v3067
    %v3069 = vpop.f32.mrf.mxu0
    %3070 = vdwg.mxu0
    %3071 = vmatpush.bf16.msra.mxu0 %v449
    %3072 = vmatpush.bf16.msra.mxu0 %v445
    %3073 = vmatpush.bf16.msra.mxu0 %v441
    %3074 = vmatpush.bf16.msra.mxu0 %v437
    %3075 = vmatpush.bf16.msra.mxu0 %v433
    %3076 = vmatpush.bf16.msra.mxu0 %v429
    %3077 = vmatpush.bf16.msra.mxu0 %v425
    %3078 = vmatpush.bf16.msra.mxu0 %v421
    %3079 = vmatmul.bf16.gmra.mxu0 %v2987
    %v3080 = vpop.f32.mrf.mxu0
    %v3081 = vadd.f32 0.0, %v3080
    %v3082 = vpop.f32.mrf.mxu0
    %3083 = vdwg.mxu0
    %3084 = vmatpush.bf16.msra.mxu0 %v481
    %3085 = vmatpush.bf16.msra.mxu0 %v477
    %3086 = vmatpush.bf16.msra.mxu0 %v473
    %3087 = vmatpush.bf16.msra.mxu0 %v469
    %3088 = vmatpush.bf16.msra.mxu0 %v465
    %3089 = vmatpush.bf16.msra.mxu0 %v461
    %3090 = vmatpush.bf16.msra.mxu0 %v457
    %3091 = vmatpush.bf16.msra.mxu0 %v453
    %3092 = vmatmul.bf16.gmra.mxu0 %v2988
    %v3093 = vpop.f32.mrf.mxu0
    %v3094 = vadd.f32 %v3081, %v3093
    %v3095 = vpop.f32.mrf.mxu0
    %3096 = vdwg.mxu0
    %3097 = vmatpush.bf16.msra.mxu0 %v513
    %3098 = vmatpush.bf16.msra.mxu0 %v509
    %3099 = vmatpush.bf16.msra.mxu0 %v505
    %3100 = vmatpush.bf16.msra.mxu0 %v501
    %3101 = vmatpush.bf16.msra.mxu0 %v497
    %3102 = vmatpush.bf16.msra.mxu0 %v493
    %3103 = vmatpush.bf16.msra.mxu0 %v489
    %3104 = vmatpush.bf16.msra.mxu0 %v485
    %3105 = vmatmul.bf16.gmra.mxu0 %v2989
    %v3106 = vpop.f32.mrf.mxu0
    %v3107 = vadd.f32 %v3094, %v3106
    %v3108 = vpop.f32.mrf.mxu0
    %3109 = vdwg.mxu0
    %3110 = vmatpush.bf16.msra.mxu0 %v450
    %3111 = vmatpush.bf16.msra.mxu0 %v446
    %3112 = vmatpush.bf16.msra.mxu0 %v442
    %3113 = vmatpush.bf16.msra.mxu0 %v438
    %3114 = vmatpush.bf16.msra.mxu0 %v434
    %3115 = vmatpush.bf16.msra.mxu0 %v430
    %3116 = vmatpush.bf16.msra.mxu0 %v426
    %3117 = vmatpush.bf16.msra.mxu0 %v422
    %3118 = vmatmul.bf16.gmra.mxu0 %v2987
    %v3119 = vpop.f32.mrf.mxu0
    %v3120 = vadd.f32 0.0, %v3119
    %v3121 = vpop.f32.mrf.mxu0
    %3122 = vdwg.mxu0
    %3123 = vmatpush.bf16.msra.mxu0 %v482
    %3124 = vmatpush.bf16.msra.mxu0 %v478
    %3125 = vmatpush.bf16.msra.mxu0 %v474
    %3126 = vmatpush.bf16.msra.mxu0 %v470
    %3127 = vmatpush.bf16.msra.mxu0 %v466
    %3128 = vmatpush.bf16.msra.mxu0 %v462
    %3129 = vmatpush.bf16.msra.mxu0 %v458
    %3130 = vmatpush.bf16.msra.mxu0 %v454
    %3131 = vmatmul.bf16.gmra.mxu0 %v2988
    %v3132 = vpop.f32.mrf.mxu0
    %v3133 = vadd.f32 %v3120, %v3132
    %v3134 = vpop.f32.mrf.mxu0
    %3135 = vdwg.mxu0
    %3136 = vmatpush.bf16.msra.mxu0 %v514
    %3137 = vmatpush.bf16.msra.mxu0 %v510
    %3138 = vmatpush.bf16.msra.mxu0 %v506
    %3139 = vmatpush.bf16.msra.mxu0 %v502
    %3140 = vmatpush.bf16.msra.mxu0 %v498
    %3141 = vmatpush.bf16.msra.mxu0 %v494
    %3142 = vmatpush.bf16.msra.mxu0 %v490
    %3143 = vmatpush.bf16.msra.mxu0 %v486
    %3144 = vmatmul.bf16.gmra.mxu0 %v2989
    %v3145 = vpop.f32.mrf.mxu0
    %v3146 = vadd.f32 %v3133, %v3145
    %v3147 = vpop.f32.mrf.mxu0
    %3148 = vdwg.mxu0
    %v3149 = vmax.f32 %v3029, 0.0
    %v3150 = vmax.f32 %v3068, 0.0
    %v3151 = vmax.f32 %v3107, 0.0
    %v3152 = vmax.f32 %v3146, 0.0
    %v3153 = vpack.c.bf16 %v3149, %v3149
    %v3154 = vpack.c.bf16 %v3150, %v3150
    %v3155 = vpack.c.bf16 %v3151, %v3151
    %v3156 = vpack.c.bf16 %v3152, %v3152
    %s3157 = scalar_lea.vmem %s2, 1200
    %v3158 = vld [vmem:[%s3157] sm:$0xf]
    %v3159 = vld [vmem:[%s3157 + $0x4] sm:$0xf]
    %v3160 = vld [vmem:[%s3157 + $0x8] sm:$0xf]
    %v3161 = vld [vmem:[%s3157 + $0xc] sm:$0xf]
    %v3162 = vld [vmem:[%s3157 + $0x10] sm:$0xf]
    %v3163 = vld [vmem:[%s3157 + $0x14] sm:$0xf]
    %v3164 = vld [vmem:[%s3157 + $0x18] sm:$0xf]
    %v3165 = vld [vmem:[%s3157 + $0x1c] sm:$0xf]
    %v3166 = vld [vmem:[%s3157 + $0x20] sm:$0xf]
    %v3167 = vld [vmem:[%s3157 + $0x24] sm:$0xf]
    %v3168 = vld [vmem:[%s3157 + $0x28] sm:$0xf]
    %v3169 = vld [vmem:[%s3157 + $0x2c] sm:$0xf]
    %v3170 = vld [vmem:[%s3157 + $0x30] sm:$0xf]
    %v3171 = vld [vmem:[%s3157 + $0x34] sm:$0xf]
    %v3172 = vld [vmem:[%s3157 + $0x38] sm:$0xf]
    %v3173 = vld [vmem:[%s3157 + $0x3c] sm:$0xf]
    %v3174 = vld [vmem:[%s3157 + $0x40] sm:$0xf]
    %v3175 = vld [vmem:[%s3157 + $0x44] sm:$0xf]
    %v3176 = vld [vmem:[%s3157 + $0x48] sm:$0xf]
    %v3177 = vld [vmem:[%s3157 + $0x4c] sm:$0xf]
    %v3178 = vld [vmem:[%s3157 + $0x50] sm:$0xf]
    %v3179 = vld [vmem:[%s3157 + $0x54] sm:$0xf]
    %v3180 = vld [vmem:[%s3157 + $0x58] sm:$0xf]
    %v3181 = vld [vmem:[%s3157 + $0x5c] sm:$0xf]
    %v3182 = vld [vmem:[%s3157 + $0x60] sm:$0xf]
    %v3183 = vld [vmem:[%s3157 + $0x64] sm:$0xf]
    %v3184 = vld [vmem:[%s3157 + $0x68] sm:$0xf]
    %v3185 = vld [vmem:[%s3157 + $0x6c] sm:$0xf]
    %v3186 = vld [vmem:[%s3157 + $0x70] sm:$0xf]
    %v3187 = vld [vmem:[%s3157 + $0x74] sm:$0xf]
    %v3188 = vld [vmem:[%s3157 + $0x78] sm:$0xf]
    %v3189 = vld [vmem:[%s3157 + $0x7c] sm:$0xf]
    %v3190 = vld [vmem:[%s3157 + $0x80] sm:$0xf]
    %v3191 = vld [vmem:[%s3157 + $0x84] sm:$0xf]
    %v3192 = vld [vmem:[%s3157 + $0x88] sm:$0xf]
    %v3193 = vld [vmem:[%s3157 + $0x8c] sm:$0xf]
    %v3194 = vld [vmem:[%s3157 + $0x90] sm:$0xf]
    %v3195 = vld [vmem:[%s3157 + $0x94] sm:$0xf]
    %v3196 = vld [vmem:[%s3157 + $0x98] sm:$0xf]
    %v3197 = vld [vmem:[%s3157 + $0x9c] sm:$0xf]
    %v3198 = vld [vmem:[%s3157 + $0xa0] sm:$0xf]
    %v3199 = vld [vmem:[%s3157 + $0xa4] sm:$0xf]
    %v3200 = vld [vmem:[%s3157 + $0xa8] sm:$0xf]
    %v3201 = vld [vmem:[%s3157 + $0xac] sm:$0xf]
    %v3202 = vld [vmem:[%s3157 + $0xb0] sm:$0xf]
    %v3203 = vld [vmem:[%s3157 + $0xb4] sm:$0xf]
    %v3204 = vld [vmem:[%s3157 + $0xb8] sm:$0xf]
    %v3205 = vld [vmem:[%s3157 + $0xbc] sm:$0xf]
    %v3206 = vld [vmem:[%s3157 + $0xc0] sm:$0xf]
    %v3207 = vld [vmem:[%s3157 + $0xc4] sm:$0xf]
    %v3208 = vld [vmem:[%s3157 + $0xc8] sm:$0xf]
    %v3209 = vld [vmem:[%s3157 + $0xcc] sm:$0xf]
    %v3210 = vld [vmem:[%s3157 + $0xd0] sm:$0xf]
    %v3211 = vld [vmem:[%s3157 + $0xd4] sm:$0xf]
    %v3212 = vld [vmem:[%s3157 + $0xd8] sm:$0xf]
    %v3213 = vld [vmem:[%s3157 + $0xdc] sm:$0xf]
    %v3214 = vld [vmem:[%s3157 + $0xe0] sm:$0xf]
    %v3215 = vld [vmem:[%s3157 + $0xe4] sm:$0xf]
    %v3216 = vld [vmem:[%s3157 + $0xe8] sm:$0xf]
    %v3217 = vld [vmem:[%s3157 + $0xec] sm:$0x3]
    %v3278 = vunpack.c.l.b16 %v3158
    %v3279 = vunpack.c.l.b16 %v3159
    %v3280 = vunpack.c.l.b16 %v3160
    %v3281 = vunpack.c.l.b16 %v3161
    %v3282 = vunpack.c.l.b16 %v3162
    %v3283 = vunpack.c.l.b16 %v3163
    %v3284 = vunpack.c.l.b16 %v3164
    %v3285 = vunpack.c.l.b16 %v3165
    %v3286 = vunpack.c.l.b16 %v3166
    %v3287 = vunpack.c.l.b16 %v3167
    %v3288 = vunpack.c.l.b16 %v3168
    %v3289 = vunpack.c.l.b16 %v3169
    %v3290 = vunpack.c.l.b16 %v3170
    %v3291 = vunpack.c.l.b16 %v3171
    %v3292 = vunpack.c.l.b16 %v3172
    %v3293 = vunpack.c.l.b16 %v3173
    %v3294 = vunpack.c.l.b16 %v3174
    %v3295 = vunpack.c.l.b16 %v3175
    %v3296 = vunpack.c.l.b16 %v3176
    %v3297 = vunpack.c.l.b16 %v3177
    %v3298 = vunpack.c.l.b16 %v3178
    %v3299 = vunpack.c.l.b16 %v3179
    %v3300 = vunpack.c.l.b16 %v3180
    %v3301 = vunpack.c.l.b16 %v3181
    %v3302 = vunpack.c.l.b16 %v3182
    %v3303 = vunpack.c.l.b16 %v3183
    %v3304 = vunpack.c.l.b16 %v3184
    %v3305 = vunpack.c.l.b16 %v3185
    %v3306 = vunpack.c.l.b16 %v3186
    %v3307 = vunpack.c.l.b16 %v3187
    %v3308 = vunpack.c.l.b16 %v3188
    %v3309 = vunpack.c.l.b16 %v3189
    %v3310 = vunpack.c.l.b16 %v3190
    %v3311 = vunpack.c.l.b16 %v3191
    %v3312 = vunpack.c.l.b16 %v3192
    %v3313 = vunpack.c.l.b16 %v3193
    %v3314 = vunpack.c.l.b16 %v3194
    %v3315 = vunpack.c.l.b16 %v3195
    %v3316 = vunpack.c.l.b16 %v3196
    %v3317 = vunpack.c.l.b16 %v3197
    %v3318 = vunpack.c.l.b16 %v3198
    %v3319 = vunpack.c.l.b16 %v3199
    %v3320 = vunpack.c.l.b16 %v3200
    %v3321 = vunpack.c.l.b16 %v3201
    %v3322 = vunpack.c.l.b16 %v3202
    %v3323 = vunpack.c.l.b16 %v3203
    %v3324 = vunpack.c.l.b16 %v3204
    %v3325 = vunpack.c.l.b16 %v3205
    %v3326 = vunpack.c.l.b16 %v3206
    %v3327 = vunpack.c.l.b16 %v3207
    %v3328 = vunpack.c.l.b16 %v3208
    %v3329 = vunpack.c.l.b16 %v3209
    %v3330 = vunpack.c.l.b16 %v3210
    %v3331 = vunpack.c.l.b16 %v3211
    %v3332 = vunpack.c.l.b16 %v3212
    %v3333 = vunpack.c.l.b16 %v3213
    %v3334 = vunpack.c.l.b16 %v3214
    %v3335 = vunpack.c.l.b16 %v3215
    %v3336 = vunpack.c.l.b16 %v3216
    %v3337 = vunpack.c.l.b16 %v3217
    %v3338 = vpack.c.b16 %v3279, %v3278
    %v3339 = vpack.c.b16 %v3281, %v3280
    %v3340 = vpack.c.b16 %v3283, %v3282
    %v3341 = vpack.c.b16 %v3285, %v3284
    %v3342 = vpack.c.b16 %v3287, %v3286
    %v3343 = vpack.c.b16 %v3289, %v3288
    %v3344 = vpack.c.b16 %v3291, %v3290
    %v3345 = vpack.c.b16 %v3293, %v3292
    %v3346 = vpack.c.b16 %v3295, %v3294
    %v3347 = vpack.c.b16 %v3297, %v3296
    %v3348 = vpack.c.b16 %v3299, %v3298
    %v3349 = vpack.c.b16 %v3301, %v3300
    %v3350 = vpack.c.b16 %v3303, %v3302
    %v3351 = vpack.c.b16 %v3305, %v3304
    %v3352 = vpack.c.b16 %v3307, %v3306
    %v3353 = vpack.c.b16 %v3309, %v3308
    %v3354 = vpack.c.b16 %v3311, %v3310
    %v3355 = vpack.c.b16 %v3313, %v3312
    %v3356 = vpack.c.b16 %v3315, %v3314
    %v3357 = vpack.c.b16 %v3317, %v3316
    %v3358 = vpack.c.b16 %v3319, %v3318
    %v3359 = vpack.c.b16 %v3321, %v3320
    %v3360 = vpack.c.b16 %v3323, %v3322
    %v3361 = vpack.c.b16 %v3325, %v3324
    %v3362 = vpack.c.b16 %v3327, %v3326
    %v3363 = vpack.c.b16 %v3329, %v3328
    %v3364 = vpack.c.b16 %v3331, %v3330
    %v3365 = vpack.c.b16 %v3333, %v3332
    %v3366 = vpack.c.b16 %v3335, %v3334
    %v3367 = vpack.c.b16 %v3337, %v3336
    %v3398 = vsel %vm1492, %v3156, 0
    %v3401 = vsel %vm1496, %v3367, 0
    %3403 = vmatpush.bf16.msra.mxu0 %v3345
    %3404 = vmatpush.bf16.msra.mxu0 %v3344
    %3405 = vmatpush.bf16.msra.mxu0 %v3343
    %3406 = vmatpush.bf16.msra.mxu0 %v3342
    %3407 = vmatpush.bf16.msra.mxu0 %v3341
    %3408 = vmatpush.bf16.msra.mxu0 %v3340
    %3409 = vmatpush.bf16.msra.mxu0 %v3339
    %3410 = vmatpush.bf16.msra.mxu0 %v3338
    %3411 = vmatmul.bf16.gmra.mxu0 %v3153
    %v3412 = vpop.f32.mrf.mxu0
    %v3413 = vadd.f32 0.0, %v3412
    %v3414 = vpop.f32.mrf.mxu0
    %3415 = vdwg.mxu0
    %3416 = vmatpush.bf16.msra.mxu0 %v3353
    %3417 = vmatpush.bf16.msra.mxu0 %v3352
    %3418 = vmatpush.bf16.msra.mxu0 %v3351
    %3419 = vmatpush.bf16.msra.mxu0 %v3350
    %3420 = vmatpush.bf16.msra.mxu0 %v3349
    %3421 = vmatpush.bf16.msra.mxu0 %v3348
    %3422 = vmatpush.bf16.msra.mxu0 %v3347
    %3423 = vmatpush.bf16.msra.mxu0 %v3346
    %3424 = vmatmul.bf16.gmra.mxu0 %v3154
    %v3425 = vpop.f32.mrf.mxu0
    %v3426 = vadd.f32 %v3413, %v3425
    %v3427 = vpop.f32.mrf.mxu0
    %3428 = vdwg.mxu0
    %3429 = vmatpush.bf16.msra.mxu0 %v3361
    %3430 = vmatpush.bf16.msra.mxu0 %v3360
    %3431 = vmatpush.bf16.msra.mxu0 %v3359
    %3432 = vmatpush.bf16.msra.mxu0 %v3358
    %3433 = vmatpush.bf16.msra.mxu0 %v3357
    %3434 = vmatpush.bf16.msra.mxu0 %v3356
    %3435 = vmatpush.bf16.msra.mxu0 %v3355
    %3436 = vmatpush.bf16.msra.mxu0 %v3354
    %3437 = vmatmul.bf16.gmra.mxu0 %v3155
    %v3438 = vpop.f32.mrf.mxu0
    %v3439 = vadd.f32 %v3426, %v3438
    %v3440 = vpop.f32.mrf.mxu0
    %3441 = vdwg.mxu0
    %3442 = vmatpush.bf16.msra.mxu0 0
    %3443 = vmatpush.bf16.msra.mxu0 0
    %3444 = vmatpush.bf16.msra.mxu0 %v3401
    %3445 = vmatpush.bf16.msra.mxu0 %v3366
    %3446 = vmatpush.bf16.msra.mxu0 %v3365
    %3447 = vmatpush.bf16.msra.mxu0 %v3364
    %3448 = vmatpush.bf16.msra.mxu0 %v3363
    %3449 = vmatpush.bf16.msra.mxu0 %v3362
    %3450 = vmatmul.bf16.gmra.mxu0 %v3398
    %v3451 = vpop.f32.mrf.mxu0
    %v3452 = vadd.f32 %v3439, %v3451
    %v3453 = vpop.f32.mrf.mxu0
    %3454 = vdwg.mxu0
    %v3455 = vadd.f32 %v2499, %v3452
    %s3456 = scalar_lea.vmem %s0, 72
    %v3457 = vld [vmem:[%s3456] sm:$0xff]
    %v3458 = vld [vmem:[%s3456 + $0x8] sm:$0xf]
    %v3461 = vunpack.c.l.b16 %v3457
    %v3462 = vunpack.c.h.b16 %v3457
    %v3463 = vunpack.c.l.b16 %v3458
    %v3464 = vpack.c.b16 %v3461, %v3461
    %v3465 = vpack.c.b16 %v3462, %v3462
    %v3466 = vpack.c.b16 %v3463, %v3463
    %3470 = vmatpush.bf16.msra.mxu0 %v447
    %3471 = vmatpush.bf16.msra.mxu0 %v443
    %3472 = vmatpush.bf16.msra.mxu0 %v439
    %3473 = vmatpush.bf16.msra.mxu0 %v435
    %3474 = vmatpush.bf16.msra.mxu0 %v431
    %3475 = vmatpush.bf16.msra.mxu0 %v427
    %3476 = vmatpush.bf16.msra.mxu0 %v423
    %3477 = vmatpush.bf16.msra.mxu0 %v419
    %3478 = vmatmul.bf16.gmra.mxu0 %v3464
    %v3479 = vpop.f32.mrf.mxu0
    %v3480 = vadd.f32 0.0, %v3479
    %v3481 = vpop.f32.mrf.mxu0
    %3482 = vdwg.mxu0
    %3483 = vmatpush.bf16.msra.mxu0 %v479
    %3484 = vmatpush.bf16.msra.mxu0 %v475
    %3485 = vmatpush.bf16.msra.mxu0 %v471
    %3486 = vmatpush.bf16.msra.mxu0 %v467
    %3487 = vmatpush.bf16.msra.mxu0 %v463
    %3488 = vmatpush.bf16.msra.mxu0 %v459
    %3489 = vmatpush.bf16.msra.mxu0 %v455
    %3490 = vmatpush.bf16.msra.mxu0 %v451
    %3491 = vmatmul.bf16.gmra.mxu0 %v3465
    %v3492 = vpop.f32.mrf.mxu0
    %v3493 = vadd.f32 %v3480, %v3492
    %v3494 = vpop.f32.mrf.mxu0
    %3495 = vdwg.mxu0
    %3496 = vmatpush.bf16.msra.mxu0 %v511
    %3497 = vmatpush.bf16.msra.mxu0 %v507
    %3498 = vmatpush.bf16.msra.mxu0 %v503
    %3499 = vmatpush.bf16.msra.mxu0 %v499
    %3500 = vmatpush.bf16.msra.mxu0 %v495
    %3501 = vmatpush.bf16.msra.mxu0 %v491
    %3502 = vmatpush.bf16.msra.mxu0 %v487
    %3503 = vmatpush.bf16.msra.mxu0 %v483
    %3504 = vmatmul.bf16.gmra.mxu0 %v3466
    %v3505 = vpop.f32.mrf.mxu0
    %v3506 = vadd.f32 %v3493, %v3505
    %v3507 = vpop.f32.mrf.mxu0
    %3508 = vdwg.mxu0
    %3509 = vmatpush.bf16.msra.mxu0 %v448
    %3510 = vmatpush.bf16.msra.mxu0 %v444
    %3511 = vmatpush.bf16.msra.mxu0 %v440
    %3512 = vmatpush.bf16.msra.mxu0 %v436
    %3513 = vmatpush.bf16.msra.mxu0 %v432
    %3514 = vmatpush.bf16.msra.mxu0 %v428
    %3515 = vmatpush.bf16.msra.mxu0 %v424
    %3516 = vmatpush.bf16.msra.mxu0 %v420
    %3517 = vmatmul.bf16.gmra.mxu0 %v3464
    %v3518 = vpop.f32.mrf.mxu0
    %v3519 = vadd.f32 0.0, %v3518
    %v3520 = vpop.f32.mrf.mxu0
    %3521 = vdwg.mxu0
    %3522 = vmatpush.bf16.msra.mxu0 %v480
    %3523 = vmatpush.bf16.msra.mxu0 %v476
    %3524 = vmatpush.bf16.msra.mxu0 %v472
    %3525 = vmatpush.bf16.msra.mxu0 %v468
    %3526 = vmatpush.bf16.msra.mxu0 %v464
    %3527 = vmatpush.bf16.msra.mxu0 %v460
    %3528 = vmatpush.bf16.msra.mxu0 %v456
    %3529 = vmatpush.bf16.msra.mxu0 %v452
    %3530 = vmatmul.bf16.gmra.mxu0 %v3465
    %v3531 = vpop.f32.mrf.mxu0
    %v3532 = vadd.f32 %v3519, %v3531
    %v3533 = vpop.f32.mrf.mxu0
    %3534 = vdwg.mxu0
    %3535 = vmatpush.bf16.msra.mxu0 %v512
    %3536 = vmatpush.bf16.msra.mxu0 %v508
    %3537 = vmatpush.bf16.msra.mxu0 %v504
    %3538 = vmatpush.bf16.msra.mxu0 %v500
    %3539 = vmatpush.bf16.msra.mxu0 %v496
    %3540 = vmatpush.bf16.msra.mxu0 %v492
    %3541 = vmatpush.bf16.msra.mxu0 %v488
    %3542 = vmatpush.bf16.msra.mxu0 %v484
    %3543 = vmatmul.bf16.gmra.mxu0 %v3466
    %v3544 = vpop.f32.mrf.mxu0
    %v3545 = vadd.f32 %v3532, %v3544
    %v3546 = vpop.f32.mrf.mxu0
    %3547 = vdwg.mxu0
    %3548 = vmatpush.bf16.msra.mxu0 %v449
    %3549 = vmatpush.bf16.msra.mxu0 %v445
    %3550 = vmatpush.bf16.msra.mxu0 %v441
    %3551 = vmatpush.bf16.msra.mxu0 %v437
    %3552 = vmatpush.bf16.msra.mxu0 %v433
    %3553 = vmatpush.bf16.msra.mxu0 %v429
    %3554 = vmatpush.bf16.msra.mxu0 %v425
    %3555 = vmatpush.bf16.msra.mxu0 %v421
    %3556 = vmatmul.bf16.gmra.mxu0 %v3464
    %v3557 = vpop.f32.mrf.mxu0
    %v3558 = vadd.f32 0.0, %v3557
    %v3559 = vpop.f32.mrf.mxu0
    %3560 = vdwg.mxu0
    %3561 = vmatpush.bf16.msra.mxu0 %v481
    %3562 = vmatpush.bf16.msra.mxu0 %v477
    %3563 = vmatpush.bf16.msra.mxu0 %v473
    %3564 = vmatpush.bf16.msra.mxu0 %v469
    %3565 = vmatpush.bf16.msra.mxu0 %v465
    %3566 = vmatpush.bf16.msra.mxu0 %v461
    %3567 = vmatpush.bf16.msra.mxu0 %v457
    %3568 = vmatpush.bf16.msra.mxu0 %v453
    %3569 = vmatmul.bf16.gmra.mxu0 %v3465
    %v3570 = vpop.f32.mrf.mxu0
    %v3571 = vadd.f32 %v3558, %v3570
    %v3572 = vpop.f32.mrf.mxu0
    %3573 = vdwg.mxu0
    %3574 = vmatpush.bf16.msra.mxu0 %v513
    %3575 = vmatpush.bf16.msra.mxu0 %v509
    %3576 = vmatpush.bf16.msra.mxu0 %v505
    %3577 = vmatpush.bf16.msra.mxu0 %v501
    %3578 = vmatpush.bf16.msra.mxu0 %v497
    %3579 = vmatpush.bf16.msra.mxu0 %v493
    %3580 = vmatpush.bf16.msra.mxu0 %v489
    %3581 = vmatpush.bf16.msra.mxu0 %v485
    %3582 = vmatmul.bf16.gmra.mxu0 %v3466
    %v3583 = vpop.f32.mrf.mxu0
    %v3584 = vadd.f32 %v3571, %v3583
    %v3585 = vpop.f32.mrf.mxu0
    %3586 = vdwg.mxu0
    %3587 = vmatpush.bf16.msra.mxu0 %v450
    %3588 = vmatpush.bf16.msra.mxu0 %v446
    %3589 = vmatpush.bf16.msra.mxu0 %v442
    %3590 = vmatpush.bf16.msra.mxu0 %v438
    %3591 = vmatpush.bf16.msra.mxu0 %v434
    %3592 = vmatpush.bf16.msra.mxu0 %v430
    %3593 = vmatpush.bf16.msra.mxu0 %v426
    %3594 = vmatpush.bf16.msra.mxu0 %v422
    %3595 = vmatmul.bf16.gmra.mxu0 %v3464
    %v3596 = vpop.f32.mrf.mxu0
    %v3597 = vadd.f32 0.0, %v3596
    %v3598 = vpop.f32.mrf.mxu0
    %3599 = vdwg.mxu0
    %3600 = vmatpush.bf16.msra.mxu0 %v482
    %3601 = vmatpush.bf16.msra.mxu0 %v478
    %3602 = vmatpush.bf16.msra.mxu0 %v474
    %3603 = vmatpush.bf16.msra.mxu0 %v470
    %3604 = vmatpush.bf16.msra.mxu0 %v466
    %3605 = vmatpush.bf16.msra.mxu0 %v462
    %3606 = vmatpush.bf16.msra.mxu0 %v458
    %3607 = vmatpush.bf16.msra.mxu0 %v454
    %3608 = vmatmul.bf16.gmra.mxu0 %v3465
    %v3609 = vpop.f32.mrf.mxu0
    %v3610 = vadd.f32 %v3597, %v3609
    %v3611 = vpop.f32.mrf.mxu0
    %3612 = vdwg.mxu0
    %3613 = vmatpush.bf16.msra.mxu0 %v514
    %3614 = vmatpush.bf16.msra.mxu0 %v510
    %3615 = vmatpush.bf16.msra.mxu0 %v506
    %3616 = vmatpush.bf16.msra.mxu0 %v502
    %3617 = vmatpush.bf16.msra.mxu0 %v498
    %3618 = vmatpush.bf16.msra.mxu0 %v494
    %3619 = vmatpush.bf16.msra.mxu0 %v490
    %3620 = vmatpush.bf16.msra.mxu0 %v486
    %3621 = vmatmul.bf16.gmra.mxu0 %v3466
    %v3622 = vpop.f32.mrf.mxu0
    %v3623 = vadd.f32 %v3610, %v3622
    %v3624 = vpop.f32.mrf.mxu0
    %3625 = vdwg.mxu0
    %v3626 = vmax.f32 %v3506, 0.0
    %v3627 = vmax.f32 %v3545, 0.0
    %v3628 = vmax.f32 %v3584, 0.0
    %v3629 = vmax.f32 %v3623, 0.0
    %v3630 = vpack.c.bf16 %v3626, %v3626
    %v3631 = vpack.c.bf16 %v3627, %v3627
    %v3632 = vpack.c.bf16 %v3628, %v3628
    %v3633 = vpack.c.bf16 %v3629, %v3629
    %s3634 = scalar_lea.vmem %s2, 1440
    %v3635 = vld [vmem:[%s3634] sm:$0xf]
    %v3636 = vld [vmem:[%s3634 + $0x4] sm:$0xf]
    %v3637 = vld [vmem:[%s3634 + $0x8] sm:$0xf]
    %v3638 = vld [vmem:[%s3634 + $0xc] sm:$0xf]
    %v3639 = vld [vmem:[%s3634 + $0x10] sm:$0xf]
    %v3640 = vld [vmem:[%s3634 + $0x14] sm:$0xf]
    %v3641 = vld [vmem:[%s3634 + $0x18] sm:$0xf]
    %v3642 = vld [vmem:[%s3634 + $0x1c] sm:$0xf]
    %v3643 = vld [vmem:[%s3634 + $0x20] sm:$0xf]
    %v3644 = vld [vmem:[%s3634 + $0x24] sm:$0xf]
    %v3645 = vld [vmem:[%s3634 + $0x28] sm:$0xf]
    %v3646 = vld [vmem:[%s3634 + $0x2c] sm:$0xf]
    %v3647 = vld [vmem:[%s3634 + $0x30] sm:$0xf]
    %v3648 = vld [vmem:[%s3634 + $0x34] sm:$0xf]
    %v3649 = vld [vmem:[%s3634 + $0x38] sm:$0xf]
    %v3650 = vld [vmem:[%s3634 + $0x3c] sm:$0xf]
    %v3651 = vld [vmem:[%s3634 + $0x40] sm:$0xf]
    %v3652 = vld [vmem:[%s3634 + $0x44] sm:$0xf]
    %v3653 = vld [vmem:[%s3634 + $0x48] sm:$0xf]
    %v3654 = vld [vmem:[%s3634 + $0x4c] sm:$0xf]
    %v3655 = vld [vmem:[%s3634 + $0x50] sm:$0xf]
    %v3656 = vld [vmem:[%s3634 + $0x54] sm:$0xf]
    %v3657 = vld [vmem:[%s3634 + $0x58] sm:$0xf]
    %v3658 = vld [vmem:[%s3634 + $0x5c] sm:$0xf]
    %v3659 = vld [vmem:[%s3634 + $0x60] sm:$0xf]
    %v3660 = vld [vmem:[%s3634 + $0x64] sm:$0xf]
    %v3661 = vld [vmem:[%s3634 + $0x68] sm:$0xf]
    %v3662 = vld [vmem:[%s3634 + $0x6c] sm:$0xf]
    %v3663 = vld [vmem:[%s3634 + $0x70] sm:$0xf]
    %v3664 = vld [vmem:[%s3634 + $0x74] sm:$0xf]
    %v3665 = vld [vmem:[%s3634 + $0x78] sm:$0xf]
    %v3666 = vld [vmem:[%s3634 + $0x7c] sm:$0xf]
    %v3667 = vld [vmem:[%s3634 + $0x80] sm:$0xf]
    %v3668 = vld [vmem:[%s3634 + $0x84] sm:$0xf]
    %v3669 = vld [vmem:[%s3634 + $0x88] sm:$0xf]
    %v3670 = vld [vmem:[%s3634 + $0x8c] sm:$0xf]
    %v3671 = vld [vmem:[%s3634 + $0x90] sm:$0xf]
    %v3672 = vld [vmem:[%s3634 + $0x94] sm:$0xf]
    %v3673 = vld [vmem:[%s3634 + $0x98] sm:$0xf]
    %v3674 = vld [vmem:[%s3634 + $0x9c] sm:$0xf]
    %v3675 = vld [vmem:[%s3634 + $0xa0] sm:$0xf]
    %v3676 = vld [vmem:[%s3634 + $0xa4] sm:$0xf]
    %v3677 = vld [vmem:[%s3634 + $0xa8] sm:$0xf]
    %v3678 = vld [vmem:[%s3634 + $0xac] sm:$0xf]
    %v3679 = vld [vmem:[%s3634 + $0xb0] sm:$0xf]
    %v3680 = vld [vmem:[%s3634 + $0xb4] sm:$0xf]
    %v3681 = vld [vmem:[%s3634 + $0xb8] sm:$0xf]
    %v3682 = vld [vmem:[%s3634 + $0xbc] sm:$0xf]
    %v3683 = vld [vmem:[%s3634 + $0xc0] sm:$0xf]
    %v3684 = vld [vmem:[%s3634 + $0xc4] sm:$0xf]
    %v3685 = vld [vmem:[%s3634 + $0xc8] sm:$0xf]
    %v3686 = vld [vmem:[%s3634 + $0xcc] sm:$0xf]
    %v3687 = vld [vmem:[%s3634 + $0xd0] sm:$0xf]
    %v3688 = vld [vmem:[%s3634 + $0xd4] sm:$0xf]
    %v3689 = vld [vmem:[%s3634 + $0xd8] sm:$0xf]
    %v3690 = vld [vmem:[%s3634 + $0xdc] sm:$0xf]
    %v3691 = vld [vmem:[%s3634 + $0xe0] sm:$0xf]
    %v3692 = vld [vmem:[%s3634 + $0xe4] sm:$0xf]
    %v3693 = vld [vmem:[%s3634 + $0xe8] sm:$0xf]
    %v3694 = vld [vmem:[%s3634 + $0xec] sm:$0x3]
    %v3755 = vunpack.c.l.b16 %v3635
    %v3756 = vunpack.c.l.b16 %v3636
    %v3757 = vunpack.c.l.b16 %v3637
    %v3758 = vunpack.c.l.b16 %v3638
    %v3759 = vunpack.c.l.b16 %v3639
    %v3760 = vunpack.c.l.b16 %v3640
    %v3761 = vunpack.c.l.b16 %v3641
    %v3762 = vunpack.c.l.b16 %v3642
    %v3763 = vunpack.c.l.b16 %v3643
    %v3764 = vunpack.c.l.b16 %v3644
    %v3765 = vunpack.c.l.b16 %v3645
    %v3766 = vunpack.c.l.b16 %v3646
    %v3767 = vunpack.c.l.b16 %v3647
    %v3768 = vunpack.c.l.b16 %v3648
    %v3769 = vunpack.c.l.b16 %v3649
    %v3770 = vunpack.c.l.b16 %v3650
    %v3771 = vunpack.c.l.b16 %v3651
    %v3772 = vunpack.c.l.b16 %v3652
    %v3773 = vunpack.c.l.b16 %v3653
    %v3774 = vunpack.c.l.b16 %v3654
    %v3775 = vunpack.c.l.b16 %v3655
    %v3776 = vunpack.c.l.b16 %v3656
    %v3777 = vunpack.c.l.b16 %v3657
    %v3778 = vunpack.c.l.b16 %v3658
    %v3779 = vunpack.c.l.b16 %v3659
    %v3780 = vunpack.c.l.b16 %v3660
    %v3781 = vunpack.c.l.b16 %v3661
    %v3782 = vunpack.c.l.b16 %v3662
    %v3783 = vunpack.c.l.b16 %v3663
    %v3784 = vunpack.c.l.b16 %v3664
    %v3785 = vunpack.c.l.b16 %v3665
    %v3786 = vunpack.c.l.b16 %v3666
    %v3787 = vunpack.c.l.b16 %v3667
    %v3788 = vunpack.c.l.b16 %v3668
    %v3789 = vunpack.c.l.b16 %v3669
    %v3790 = vunpack.c.l.b16 %v3670
    %v3791 = vunpack.c.l.b16 %v3671
    %v3792 = vunpack.c.l.b16 %v3672
    %v3793 = vunpack.c.l.b16 %v3673
    %v3794 = vunpack.c.l.b16 %v3674
    %v3795 = vunpack.c.l.b16 %v3675
    %v3796 = vunpack.c.l.b16 %v3676
    %v3797 = vunpack.c.l.b16 %v3677
    %v3798 = vunpack.c.l.b16 %v3678
    %v3799 = vunpack.c.l.b16 %v3679
    %v3800 = vunpack.c.l.b16 %v3680
    %v3801 = vunpack.c.l.b16 %v3681
    %v3802 = vunpack.c.l.b16 %v3682
    %v3803 = vunpack.c.l.b16 %v3683
    %v3804 = vunpack.c.l.b16 %v3684
    %v3805 = vunpack.c.l.b16 %v3685
    %v3806 = vunpack.c.l.b16 %v3686
    %v3807 = vunpack.c.l.b16 %v3687
    %v3808 = vunpack.c.l.b16 %v3688
    %v3809 = vunpack.c.l.b16 %v3689
    %v3810 = vunpack.c.l.b16 %v3690
    %v3811 = vunpack.c.l.b16 %v3691
    %v3812 = vunpack.c.l.b16 %v3692
    %v3813 = vunpack.c.l.b16 %v3693
    %v3814 = vunpack.c.l.b16 %v3694
    %v3815 = vpack.c.b16 %v3756, %v3755
    %v3816 = vpack.c.b16 %v3758, %v3757
    %v3817 = vpack.c.b16 %v3760, %v3759
    %v3818 = vpack.c.b16 %v3762, %v3761
    %v3819 = vpack.c.b16 %v3764, %v3763
    %v3820 = vpack.c.b16 %v3766, %v3765
    %v3821 = vpack.c.b16 %v3768, %v3767
    %v3822 = vpack.c.b16 %v3770, %v3769
    %v3823 = vpack.c.b16 %v3772, %v3771
    %v3824 = vpack.c.b16 %v3774, %v3773
    %v3825 = vpack.c.b16 %v3776, %v3775
    %v3826 = vpack.c.b16 %v3778, %v3777
    %v3827 = vpack.c.b16 %v3780, %v3779
    %v3828 = vpack.c.b16 %v3782, %v3781
    %v3829 = vpack.c.b16 %v3784, %v3783
    %v3830 = vpack.c.b16 %v3786, %v3785
    %v3831 = vpack.c.b16 %v3788, %v3787
    %v3832 = vpack.c.b16 %v3790, %v3789
    %v3833 = vpack.c.b16 %v3792, %v3791
    %v3834 = vpack.c.b16 %v3794, %v3793
    %v3835 = vpack.c.b16 %v3796, %v3795
    %v3836 = vpack.c.b16 %v3798, %v3797
    %v3837 = vpack.c.b16 %v3800, %v3799
    %v3838 = vpack.c.b16 %v3802, %v3801
    %v3839 = vpack.c.b16 %v3804, %v3803
    %v3840 = vpack.c.b16 %v3806, %v3805
    %v3841 = vpack.c.b16 %v3808, %v3807
    %v3842 = vpack.c.b16 %v3810, %v3809
    %v3843 = vpack.c.b16 %v3812, %v3811
    %v3844 = vpack.c.b16 %v3814, %v3813
    %v3875 = vsel %vm1492, %v3633, 0
    %v3878 = vsel %vm1496, %v3844, 0
    %3880 = vmatpush.bf16.msra.mxu0 %v3822
    %3881 = vmatpush.bf16.msra.mxu0 %v3821
    %3882 = vmatpush.bf16.msra.mxu0 %v3820
    %3883 = vmatpush.bf16.msra.mxu0 %v3819
    %3884 = vmatpush.bf16.msra.mxu0 %v3818
    %3885 = vmatpush.bf16.msra.mxu0 %v3817
    %3886 = vmatpush.bf16.msra.mxu0 %v3816
    %3887 = vmatpush.bf16.msra.mxu0 %v3815
    %3888 = vmatmul.bf16.gmra.mxu0 %v3630
    %v3889 = vpop.f32.mrf.mxu0
    %v3890 = vadd.f32 0.0, %v3889
    %v3891 = vpop.f32.mrf.mxu0
    %3892 = vdwg.mxu0
    %3893 = vmatpush.bf16.msra.mxu0 %v3830
    %3894 = vmatpush.bf16.msra.mxu0 %v3829
    %3895 = vmatpush.bf16.msra.mxu0 %v3828
    %3896 = vmatpush.bf16.msra.mxu0 %v3827
    %3897 = vmatpush.bf16.msra.mxu0 %v3826
    %3898 = vmatpush.bf16.msra.mxu0 %v3825
    %3899 = vmatpush.bf16.msra.mxu0 %v3824
    %3900 = vmatpush.bf16.msra.mxu0 %v3823
    %3901 = vmatmul.bf16.gmra.mxu0 %v3631
    %v3902 = vpop.f32.mrf.mxu0
    %v3903 = vadd.f32 %v3890, %v3902
    %v3904 = vpop.f32.mrf.mxu0
    %3905 = vdwg.mxu0
    %3906 = vmatpush.bf16.msra.mxu0 %v3838
    %3907 = vmatpush.bf16.msra.mxu0 %v3837
    %3908 = vmatpush.bf16.msra.mxu0 %v3836
    %3909 = vmatpush.bf16.msra.mxu0 %v3835
    %3910 = vmatpush.bf16.msra.mxu0 %v3834
    %3911 = vmatpush.bf16.msra.mxu0 %v3833
    %3912 = vmatpush.bf16.msra.mxu0 %v3832
    %3913 = vmatpush.bf16.msra.mxu0 %v3831
    %3914 = vmatmul.bf16.gmra.mxu0 %v3632
    %v3915 = vpop.f32.mrf.mxu0
    %v3916 = vadd.f32 %v3903, %v3915
    %v3917 = vpop.f32.mrf.mxu0
    %3918 = vdwg.mxu0
    %3919 = vmatpush.bf16.msra.mxu0 0
    %3920 = vmatpush.bf16.msra.mxu0 0
    %3921 = vmatpush.bf16.msra.mxu0 %v3878
    %3922 = vmatpush.bf16.msra.mxu0 %v3843
    %3923 = vmatpush.bf16.msra.mxu0 %v3842
    %3924 = vmatpush.bf16.msra.mxu0 %v3841
    %3925 = vmatpush.bf16.msra.mxu0 %v3840
    %3926 = vmatpush.bf16.msra.mxu0 %v3839
    %3927 = vmatmul.bf16.gmra.mxu0 %v3875
    %v3928 = vpop.f32.mrf.mxu0
    %v3929 = vadd.f32 %v3916, %v3928
    %v3930 = vpop.f32.mrf.mxu0
    %3931 = vdwg.mxu0
    %v3932 = vadd.f32 %v2978, %v3929
    %s3933 = scalar_lea.vmem %s0, 84
    %v3934 = vld [vmem:[%s3933] sm:$0xff]
    %v3935 = vld [vmem:[%s3933 + $0x8] sm:$0xf]
    %v3938 = vunpack.c.l.b16 %v3934
    %v3939 = vunpack.c.h.b16 %v3934
    %v3940 = vunpack.c.l.b16 %v3935
    %v3941 = vpack.c.b16 %v3938, %v3938
    %v3942 = vpack.c.b16 %v3939, %v3939
    %v3943 = vpack.c.b16 %v3940, %v3940
    %3947 = vmatpush.bf16.msra.mxu0 %v447
    %3948 = vmatpush.bf16.msra.mxu0 %v443
    %3949 = vmatpush.bf16.msra.mxu0 %v439
    %3950 = vmatpush.bf16.msra.mxu0 %v435
    %3951 = vmatpush.bf16.msra.mxu0 %v431
    %3952 = vmatpush.bf16.msra.mxu0 %v427
    %3953 = vmatpush.bf16.msra.mxu0 %v423
    %3954 = vmatpush.bf16.msra.mxu0 %v419
    %3955 = vmatmul.bf16.gmra.mxu0 %v3941
    %v3956 = vpop.f32.mrf.mxu0
    %v3957 = vadd.f32 0.0, %v3956
    %v3958 = vpop.f32.mrf.mxu0
    %3959 = vdwg.mxu0
    %3960 = vmatpush.bf16.msra.mxu0 %v479
    %3961 = vmatpush.bf16.msra.mxu0 %v475
    %3962 = vmatpush.bf16.msra.mxu0 %v471
    %3963 = vmatpush.bf16.msra.mxu0 %v467
    %3964 = vmatpush.bf16.msra.mxu0 %v463
    %3965 = vmatpush.bf16.msra.mxu0 %v459
    %3966 = vmatpush.bf16.msra.mxu0 %v455
    %3967 = vmatpush.bf16.msra.mxu0 %v451
    %3968 = vmatmul.bf16.gmra.mxu0 %v3942
    %v3969 = vpop.f32.mrf.mxu0
    %v3970 = vadd.f32 %v3957, %v3969
    %v3971 = vpop.f32.mrf.mxu0
    %3972 = vdwg.mxu0
    %3973 = vmatpush.bf16.msra.mxu0 %v511
    %3974 = vmatpush.bf16.msra.mxu0 %v507
    %3975 = vmatpush.bf16.msra.mxu0 %v503
    %3976 = vmatpush.bf16.msra.mxu0 %v499
    %3977 = vmatpush.bf16.msra.mxu0 %v495
    %3978 = vmatpush.bf16.msra.mxu0 %v491
    %3979 = vmatpush.bf16.msra.mxu0 %v487
    %3980 = vmatpush.bf16.msra.mxu0 %v483
    %3981 = vmatmul.bf16.gmra.mxu0 %v3943
    %v3982 = vpop.f32.mrf.mxu0
    %v3983 = vadd.f32 %v3970, %v3982
    %v3984 = vpop.f32.mrf.mxu0
    %3985 = vdwg.mxu0
    %3986 = vmatpush.bf16.msra.mxu0 %v448
    %3987 = vmatpush.bf16.msra.mxu0 %v444
    %3988 = vmatpush.bf16.msra.mxu0 %v440
    %3989 = vmatpush.bf16.msra.mxu0 %v436
    %3990 = vmatpush.bf16.msra.mxu0 %v432
    %3991 = vmatpush.bf16.msra.mxu0 %v428
    %3992 = vmatpush.bf16.msra.mxu0 %v424
    %3993 = vmatpush.bf16.msra.mxu0 %v420
    %3994 = vmatmul.bf16.gmra.mxu0 %v3941
    %v3995 = vpop.f32.mrf.mxu0
    %v3996 = vadd.f32 0.0, %v3995
    %v3997 = vpop.f32.mrf.mxu0
    %3998 = vdwg.mxu0
    %3999 = vmatpush.bf16.msra.mxu0 %v480
    %4000 = vmatpush.bf16.msra.mxu0 %v476
    %4001 = vmatpush.bf16.msra.mxu0 %v472
    %4002 = vmatpush.bf16.msra.mxu0 %v468
    %4003 = vmatpush.bf16.msra.mxu0 %v464
    %4004 = vmatpush.bf16.msra.mxu0 %v460
    %4005 = vmatpush.bf16.msra.mxu0 %v456
    %4006 = vmatpush.bf16.msra.mxu0 %v452
    %4007 = vmatmul.bf16.gmra.mxu0 %v3942
    %v4008 = vpop.f32.mrf.mxu0
    %v4009 = vadd.f32 %v3996, %v4008
    %v4010 = vpop.f32.mrf.mxu0
    %4011 = vdwg.mxu0
    %4012 = vmatpush.bf16.msra.mxu0 %v512
    %4013 = vmatpush.bf16.msra.mxu0 %v508
    %4014 = vmatpush.bf16.msra.mxu0 %v504
    %4015 = vmatpush.bf16.msra.mxu0 %v500
    %4016 = vmatpush.bf16.msra.mxu0 %v496
    %4017 = vmatpush.bf16.msra.mxu0 %v492
    %4018 = vmatpush.bf16.msra.mxu0 %v488
    %4019 = vmatpush.bf16.msra.mxu0 %v484
    %4020 = vmatmul.bf16.gmra.mxu0 %v3943
    %v4021 = vpop.f32.mrf.mxu0
    %v4022 = vadd.f32 %v4009, %v4021
    %v4023 = vpop.f32.mrf.mxu0
    %4024 = vdwg.mxu0
    %4025 = vmatpush.bf16.msra.mxu0 %v449
    %4026 = vmatpush.bf16.msra.mxu0 %v445
    %4027 = vmatpush.bf16.msra.mxu0 %v441
    %4028 = vmatpush.bf16.msra.mxu0 %v437
    %4029 = vmatpush.bf16.msra.mxu0 %v433
    %4030 = vmatpush.bf16.msra.mxu0 %v429
    %4031 = vmatpush.bf16.msra.mxu0 %v425
    %4032 = vmatpush.bf16.msra.mxu0 %v421
    %4033 = vmatmul.bf16.gmra.mxu0 %v3941
    %v4034 = vpop.f32.mrf.mxu0
    %v4035 = vadd.f32 0.0, %v4034
    %v4036 = vpop.f32.mrf.mxu0
    %4037 = vdwg.mxu0
    %4038 = vmatpush.bf16.msra.mxu0 %v481
    %4039 = vmatpush.bf16.msra.mxu0 %v477
    %4040 = vmatpush.bf16.msra.mxu0 %v473
    %4041 = vmatpush.bf16.msra.mxu0 %v469
    %4042 = vmatpush.bf16.msra.mxu0 %v465
    %4043 = vmatpush.bf16.msra.mxu0 %v461
    %4044 = vmatpush.bf16.msra.mxu0 %v457
    %4045 = vmatpush.bf16.msra.mxu0 %v453
    %4046 = vmatmul.bf16.gmra.mxu0 %v3942
    %v4047 = vpop.f32.mrf.mxu0
    %v4048 = vadd.f32 %v4035, %v4047
    %v4049 = vpop.f32.mrf.mxu0
    %4050 = vdwg.mxu0
    %4051 = vmatpush.bf16.msra.mxu0 %v513
    %4052 = vmatpush.bf16.msra.mxu0 %v509
    %4053 = vmatpush.bf16.msra.mxu0 %v505
    %4054 = vmatpush.bf16.msra.mxu0 %v501
    %4055 = vmatpush.bf16.msra.mxu0 %v497
    %4056 = vmatpush.bf16.msra.mxu0 %v493
    %4057 = vmatpush.bf16.msra.mxu0 %v489
    %4058 = vmatpush.bf16.msra.mxu0 %v485
    %4059 = vmatmul.bf16.gmra.mxu0 %v3943
    %v4060 = vpop.f32.mrf.mxu0
    %v4061 = vadd.f32 %v4048, %v4060
    %v4062 = vpop.f32.mrf.mxu0
    %4063 = vdwg.mxu0
    %4064 = vmatpush.bf16.msra.mxu0 %v450
    %4065 = vmatpush.bf16.msra.mxu0 %v446
    %4066 = vmatpush.bf16.msra.mxu0 %v442
    %4067 = vmatpush.bf16.msra.mxu0 %v438
    %4068 = vmatpush.bf16.msra.mxu0 %v434
    %4069 = vmatpush.bf16.msra.mxu0 %v430
    %4070 = vmatpush.bf16.msra.mxu0 %v426
    %4071 = vmatpush.bf16.msra.mxu0 %v422
    %4072 = vmatmul.bf16.gmra.mxu0 %v3941
    %v4073 = vpop.f32.mrf.mxu0
    %v4074 = vadd.f32 0.0, %v4073
    %v4075 = vpop.f32.mrf.mxu0
    %4076 = vdwg.mxu0
    %4077 = vmatpush.bf16.msra.mxu0 %v482
    %4078 = vmatpush.bf16.msra.mxu0 %v478
    %4079 = vmatpush.bf16.msra.mxu0 %v474
    %4080 = vmatpush.bf16.msra.mxu0 %v470
    %4081 = vmatpush.bf16.msra.mxu0 %v466
    %4082 = vmatpush.bf16.msra.mxu0 %v462
    %4083 = vmatpush.bf16.msra.mxu0 %v458
    %4084 = vmatpush.bf16.msra.mxu0 %v454
    %4085 = vmatmul.bf16.gmra.mxu0 %v3942
    %v4086 = vpop.f32.mrf.mxu0
    %v4087 = vadd.f32 %v4074, %v4086
    %v4088 = vpop.f32.mrf.mxu0
    %4089 = vdwg.mxu0
    %4090 = vmatpush.bf16.msra.mxu0 %v514
    %4091 = vmatpush.bf16.msra.mxu0 %v510
    %4092 = vmatpush.bf16.msra.mxu0 %v506
    %4093 = vmatpush.bf16.msra.mxu0 %v502
    %4094 = vmatpush.bf16.msra.mxu0 %v498
    %4095 = vmatpush.bf16.msra.mxu0 %v494
    %4096 = vmatpush.bf16.msra.mxu0 %v490
    %4097 = vmatpush.bf16.msra.mxu0 %v486
    %4098 = vmatmul.bf16.gmra.mxu0 %v3943
    %v4099 = vpop.f32.mrf.mxu0
    %v4100 = vadd.f32 %v4087, %v4099
    %v4101 = vpop.f32.mrf.mxu0
    %4102 = vdwg.mxu0
    %v4103 = vmax.f32 %v3983, 0.0
    %v4104 = vmax.f32 %v4022, 0.0
    %v4105 = vmax.f32 %v4061, 0.0
    %v4106 = vmax.f32 %v4100, 0.0
    %v4107 = vpack.c.bf16 %v4103, %v4103
    %v4108 = vpack.c.bf16 %v4104, %v4104
    %v4109 = vpack.c.bf16 %v4105, %v4105
    %v4110 = vpack.c.bf16 %v4106, %v4106
    %s4111 = scalar_lea.vmem %s2, 1680
    %v4112 = vld [vmem:[%s4111] sm:$0xf]
    %v4113 = vld [vmem:[%s4111 + $0x4] sm:$0xf]
    %v4114 = vld [vmem:[%s4111 + $0x8] sm:$0xf]
    %v4115 = vld [vmem:[%s4111 + $0xc] sm:$0xf]
    %v4116 = vld [vmem:[%s4111 + $0x10] sm:$0xf]
    %v4117 = vld [vmem:[%s4111 + $0x14] sm:$0xf]
    %v4118 = vld [vmem:[%s4111 + $0x18] sm:$0xf]
    %v4119 = vld [vmem:[%s4111 + $0x1c] sm:$0xf]
    %v4120 = vld [vmem:[%s4111 + $0x20] sm:$0xf]
    %v4121 = vld [vmem:[%s4111 + $0x24] sm:$0xf]
    %v4122 = vld [vmem:[%s4111 + $0x28] sm:$0xf]
    %v4123 = vld [vmem:[%s4111 + $0x2c] sm:$0xf]
    %v4124 = vld [vmem:[%s4111 + $0x30] sm:$0xf]
    %v4125 = vld [vmem:[%s4111 + $0x34] sm:$0xf]
    %v4126 = vld [vmem:[%s4111 + $0x38] sm:$0xf]
    %v4127 = vld [vmem:[%s4111 + $0x3c] sm:$0xf]
    %v4128 = vld [vmem:[%s4111 + $0x40] sm:$0xf]
    %v4129 = vld [vmem:[%s4111 + $0x44] sm:$0xf]
    %v4130 = vld [vmem:[%s4111 + $0x48] sm:$0xf]
    %v4131 = vld [vmem:[%s4111 + $0x4c] sm:$0xf]
    %v4132 = vld [vmem:[%s4111 + $0x50] sm:$0xf]
    %v4133 = vld [vmem:[%s4111 + $0x54] sm:$0xf]
    %v4134 = vld [vmem:[%s4111 + $0x58] sm:$0xf]
    %v4135 = vld [vmem:[%s4111 + $0x5c] sm:$0xf]
    %v4136 = vld [vmem:[%s4111 + $0x60] sm:$0xf]
    %v4137 = vld [vmem:[%s4111 + $0x64] sm:$0xf]
    %v4138 = vld [vmem:[%s4111 + $0x68] sm:$0xf]
    %v4139 = vld [vmem:[%s4111 + $0x6c] sm:$0xf]
    %v4140 = vld [vmem:[%s4111 + $0x70] sm:$0xf]
    %v4141 = vld [vmem:[%s4111 + $0x74] sm:$0xf]
    %v4142 = vld [vmem:[%s4111 + $0x78] sm:$0xf]
    %v4143 = vld [vmem:[%s4111 + $0x7c] sm:$0xf]
    %v4144 = vld [vmem:[%s4111 + $0x80] sm:$0xf]
    %v4145 = vld [vmem:[%s4111 + $0x84] sm:$0xf]
    %v4146 = vld [vmem:[%s4111 + $0x88] sm:$0xf]
    %v4147 = vld [vmem:[%s4111 + $0x8c] sm:$0xf]
    %v4148 = vld [vmem:[%s4111 + $0x90] sm:$0xf]
    %v4149 = vld [vmem:[%s4111 + $0x94] sm:$0xf]
    %v4150 = vld [vmem:[%s4111 + $0x98] sm:$0xf]
    %v4151 = vld [vmem:[%s4111 + $0x9c] sm:$0xf]
    %v4152 = vld [vmem:[%s4111 + $0xa0] sm:$0xf]
    %v4153 = vld [vmem:[%s4111 + $0xa4] sm:$0xf]
    %v4154 = vld [vmem:[%s4111 + $0xa8] sm:$0xf]
    %v4155 = vld [vmem:[%s4111 + $0xac] sm:$0xf]
    %v4156 = vld [vmem:[%s4111 + $0xb0] sm:$0xf]
    %v4157 = vld [vmem:[%s4111 + $0xb4] sm:$0xf]
    %v4158 = vld [vmem:[%s4111 + $0xb8] sm:$0xf]
    %v4159 = vld [vmem:[%s4111 + $0xbc] sm:$0xf]
    %v4160 = vld [vmem:[%s4111 + $0xc0] sm:$0xf]
    %v4161 = vld [vmem:[%s4111 + $0xc4] sm:$0xf]
    %v4162 = vld [vmem:[%s4111 + $0xc8] sm:$0xf]
    %v4163 = vld [vmem:[%s4111 + $0xcc] sm:$0xf]
    %v4164 = vld [vmem:[%s4111 + $0xd0] sm:$0xf]
    %v4165 = vld [vmem:[%s4111 + $0xd4] sm:$0xf]
    %v4166 = vld [vmem:[%s4111 + $0xd8] sm:$0xf]
    %v4167 = vld [vmem:[%s4111 + $0xdc] sm:$0xf]
    %v4168 = vld [vmem:[%s4111 + $0xe0] sm:$0xf]
    %v4169 = vld [vmem:[%s4111 + $0xe4] sm:$0xf]
    %v4170 = vld [vmem:[%s4111 + $0xe8] sm:$0xf]
    %v4171 = vld [vmem:[%s4111 + $0xec] sm:$0x3]
    %v4232 = vunpack.c.l.b16 %v4112
    %v4233 = vunpack.c.l.b16 %v4113
    %v4234 = vunpack.c.l.b16 %v4114
    %v4235 = vunpack.c.l.b16 %v4115
    %v4236 = vunpack.c.l.b16 %v4116
    %v4237 = vunpack.c.l.b16 %v4117
    %v4238 = vunpack.c.l.b16 %v4118
    %v4239 = vunpack.c.l.b16 %v4119
    %v4240 = vunpack.c.l.b16 %v4120
    %v4241 = vunpack.c.l.b16 %v4121
    %v4242 = vunpack.c.l.b16 %v4122
    %v4243 = vunpack.c.l.b16 %v4123
    %v4244 = vunpack.c.l.b16 %v4124
    %v4245 = vunpack.c.l.b16 %v4125
    %v4246 = vunpack.c.l.b16 %v4126
    %v4247 = vunpack.c.l.b16 %v4127
    %v4248 = vunpack.c.l.b16 %v4128
    %v4249 = vunpack.c.l.b16 %v4129
    %v4250 = vunpack.c.l.b16 %v4130
    %v4251 = vunpack.c.l.b16 %v4131
    %v4252 = vunpack.c.l.b16 %v4132
    %v4253 = vunpack.c.l.b16 %v4133
    %v4254 = vunpack.c.l.b16 %v4134
    %v4255 = vunpack.c.l.b16 %v4135
    %v4256 = vunpack.c.l.b16 %v4136
    %v4257 = vunpack.c.l.b16 %v4137
    %v4258 = vunpack.c.l.b16 %v4138
    %v4259 = vunpack.c.l.b16 %v4139
    %v4260 = vunpack.c.l.b16 %v4140
    %v4261 = vunpack.c.l.b16 %v4141
    %v4262 = vunpack.c.l.b16 %v4142
    %v4263 = vunpack.c.l.b16 %v4143
    %v4264 = vunpack.c.l.b16 %v4144
    %v4265 = vunpack.c.l.b16 %v4145
    %v4266 = vunpack.c.l.b16 %v4146
    %v4267 = vunpack.c.l.b16 %v4147
    %v4268 = vunpack.c.l.b16 %v4148
    %v4269 = vunpack.c.l.b16 %v4149
    %v4270 = vunpack.c.l.b16 %v4150
    %v4271 = vunpack.c.l.b16 %v4151
    %v4272 = vunpack.c.l.b16 %v4152
    %v4273 = vunpack.c.l.b16 %v4153
    %v4274 = vunpack.c.l.b16 %v4154
    %v4275 = vunpack.c.l.b16 %v4155
    %v4276 = vunpack.c.l.b16 %v4156
    %v4277 = vunpack.c.l.b16 %v4157
    %v4278 = vunpack.c.l.b16 %v4158
    %v4279 = vunpack.c.l.b16 %v4159
    %v4280 = vunpack.c.l.b16 %v4160
    %v4281 = vunpack.c.l.b16 %v4161
    %v4282 = vunpack.c.l.b16 %v4162
    %v4283 = vunpack.c.l.b16 %v4163
    %v4284 = vunpack.c.l.b16 %v4164
    %v4285 = vunpack.c.l.b16 %v4165
    %v4286 = vunpack.c.l.b16 %v4166
    %v4287 = vunpack.c.l.b16 %v4167
    %v4288 = vunpack.c.l.b16 %v4168
    %v4289 = vunpack.c.l.b16 %v4169
    %v4290 = vunpack.c.l.b16 %v4170
    %v4291 = vunpack.c.l.b16 %v4171
    %v4292 = vpack.c.b16 %v4233, %v4232
    %v4293 = vpack.c.b16 %v4235, %v4234
    %v4294 = vpack.c.b16 %v4237, %v4236
    %v4295 = vpack.c.b16 %v4239, %v4238
    %v4296 = vpack.c.b16 %v4241, %v4240
    %v4297 = vpack.c.b16 %v4243, %v4242
    %v4298 = vpack.c.b16 %v4245, %v4244
    %v4299 = vpack.c.b16 %v4247, %v4246
    %v4300 = vpack.c.b16 %v4249, %v4248
    %v4301 = vpack.c.b16 %v4251, %v4250
    %v4302 = vpack.c.b16 %v4253, %v4252
    %v4303 = vpack.c.b16 %v4255, %v4254
    %v4304 = vpack.c.b16 %v4257, %v4256
    %v4305 = vpack.c.b16 %v4259, %v4258
    %v4306 = vpack.c.b16 %v4261, %v4260
    %v4307 = vpack.c.b16 %v4263, %v4262
    %v4308 = vpack.c.b16 %v4265, %v4264
    %v4309 = vpack.c.b16 %v4267, %v4266
    %v4310 = vpack.c.b16 %v4269, %v4268
    %v4311 = vpack.c.b16 %v4271, %v4270
    %v4312 = vpack.c.b16 %v4273, %v4272
    %v4313 = vpack.c.b16 %v4275, %v4274
    %v4314 = vpack.c.b16 %v4277, %v4276
    %v4315 = vpack.c.b16 %v4279, %v4278
    %v4316 = vpack.c.b16 %v4281, %v4280
    %v4317 = vpack.c.b16 %v4283, %v4282
    %v4318 = vpack.c.b16 %v4285, %v4284
    %v4319 = vpack.c.b16 %v4287, %v4286
    %v4320 = vpack.c.b16 %v4289, %v4288
    %v4321 = vpack.c.b16 %v4291, %v4290
    %v4352 = vsel %vm1492, %v4110, 0
    %v4355 = vsel %vm1496, %v4321, 0
    %4357 = vmatpush.bf16.msra.mxu0 %v4299
    %4358 = vmatpush.bf16.msra.mxu0 %v4298
    %4359 = vmatpush.bf16.msra.mxu0 %v4297
    %4360 = vmatpush.bf16.msra.mxu0 %v4296
    %4361 = vmatpush.bf16.msra.mxu0 %v4295
    %4362 = vmatpush.bf16.msra.mxu0 %v4294
    %4363 = vmatpush.bf16.msra.mxu0 %v4293
    %4364 = vmatpush.bf16.msra.mxu0 %v4292
    %4365 = vmatmul.bf16.gmra.mxu0 %v4107
    %v4366 = vpop.f32.mrf.mxu0
    %v4367 = vadd.f32 0.0, %v4366
    %v4368 = vpop.f32.mrf.mxu0
    %4369 = vdwg.mxu0
    %4370 = vmatpush.bf16.msra.mxu0 %v4307
    %4371 = vmatpush.bf16.msra.mxu0 %v4306
    %4372 = vmatpush.bf16.msra.mxu0 %v4305
    %4373 = vmatpush.bf16.msra.mxu0 %v4304
    %4374 = vmatpush.bf16.msra.mxu0 %v4303
    %4375 = vmatpush.bf16.msra.mxu0 %v4302
    %4376 = vmatpush.bf16.msra.mxu0 %v4301
    %4377 = vmatpush.bf16.msra.mxu0 %v4300
    %4378 = vmatmul.bf16.gmra.mxu0 %v4108
    %v4379 = vpop.f32.mrf.mxu0
    %v4380 = vadd.f32 %v4367, %v4379
    %v4381 = vpop.f32.mrf.mxu0
    %4382 = vdwg.mxu0
    %4383 = vmatpush.bf16.msra.mxu0 %v4315
    %4384 = vmatpush.bf16.msra.mxu0 %v4314
    %4385 = vmatpush.bf16.msra.mxu0 %v4313
    %4386 = vmatpush.bf16.msra.mxu0 %v4312
    %4387 = vmatpush.bf16.msra.mxu0 %v4311
    %4388 = vmatpush.bf16.msra.mxu0 %v4310
    %4389 = vmatpush.bf16.msra.mxu0 %v4309
    %4390 = vmatpush.bf16.msra.mxu0 %v4308
    %4391 = vmatmul.bf16.gmra.mxu0 %v4109
    %v4392 = vpop.f32.mrf.mxu0
    %v4393 = vadd.f32 %v4380, %v4392
    %v4394 = vpop.f32.mrf.mxu0
    %4395 = vdwg.mxu0
    %4396 = vmatpush.bf16.msra.mxu0 0
    %4397 = vmatpush.bf16.msra.mxu0 0
    %4398 = vmatpush.bf16.msra.mxu0 %v4355
    %4399 = vmatpush.bf16.msra.mxu0 %v4320
    %4400 = vmatpush.bf16.msra.mxu0 %v4319
    %4401 = vmatpush.bf16.msra.mxu0 %v4318
    %4402 = vmatpush.bf16.msra.mxu0 %v4317
    %4403 = vmatpush.bf16.msra.mxu0 %v4316
    %4404 = vmatmul.bf16.gmra.mxu0 %v4352
    %v4405 = vpop.f32.mrf.mxu0
    %v4406 = vadd.f32 %v4393, %v4405
    %v4407 = vpop.f32.mrf.mxu0
    %4408 = vdwg.mxu0
    %v4409 = vadd.f32 %v3455, %v4406
    %s4410 = scalar_lea.vmem %s0, 96
    %v4411 = vld [vmem:[%s4410] sm:$0xff]
    %v4412 = vld [vmem:[%s4410 + $0x8] sm:$0xf]
    %v4415 = vunpack.c.l.b16 %v4411
    %v4416 = vunpack.c.h.b16 %v4411
    %v4417 = vunpack.c.l.b16 %v4412
    %v4418 = vpack.c.b16 %v4415, %v4415
    %v4419 = vpack.c.b16 %v4416, %v4416
    %v4420 = vpack.c.b16 %v4417, %v4417
    %4424 = vmatpush.bf16.msra.mxu0 %v447
    %4425 = vmatpush.bf16.msra.mxu0 %v443
    %4426 = vmatpush.bf16.msra.mxu0 %v439
    %4427 = vmatpush.bf16.msra.mxu0 %v435
    %4428 = vmatpush.bf16.msra.mxu0 %v431
    %4429 = vmatpush.bf16.msra.mxu0 %v427
    %4430 = vmatpush.bf16.msra.mxu0 %v423
    %4431 = vmatpush.bf16.msra.mxu0 %v419
    %4432 = vmatmul.bf16.gmra.mxu0 %v4418
    %v4433 = vpop.f32.mrf.mxu0
    %v4434 = vadd.f32 0.0, %v4433
    %v4435 = vpop.f32.mrf.mxu0
    %4436 = vdwg.mxu0
    %4437 = vmatpush.bf16.msra.mxu0 %v479
    %4438 = vmatpush.bf16.msra.mxu0 %v475
    %4439 = vmatpush.bf16.msra.mxu0 %v471
    %4440 = vmatpush.bf16.msra.mxu0 %v467
    %4441 = vmatpush.bf16.msra.mxu0 %v463
    %4442 = vmatpush.bf16.msra.mxu0 %v459
    %4443 = vmatpush.bf16.msra.mxu0 %v455
    %4444 = vmatpush.bf16.msra.mxu0 %v451
    %4445 = vmatmul.bf16.gmra.mxu0 %v4419
    %v4446 = vpop.f32.mrf.mxu0
    %v4447 = vadd.f32 %v4434, %v4446
    %v4448 = vpop.f32.mrf.mxu0
    %4449 = vdwg.mxu0
    %4450 = vmatpush.bf16.msra.mxu0 %v511
    %4451 = vmatpush.bf16.msra.mxu0 %v507
    %4452 = vmatpush.bf16.msra.mxu0 %v503
    %4453 = vmatpush.bf16.msra.mxu0 %v499
    %4454 = vmatpush.bf16.msra.mxu0 %v495
    %4455 = vmatpush.bf16.msra.mxu0 %v491
    %4456 = vmatpush.bf16.msra.mxu0 %v487
    %4457 = vmatpush.bf16.msra.mxu0 %v483
    %4458 = vmatmul.bf16.gmra.mxu0 %v4420
    %v4459 = vpop.f32.mrf.mxu0
    %v4460 = vadd.f32 %v4447, %v4459
    %v4461 = vpop.f32.mrf.mxu0
    %4462 = vdwg.mxu0
    %4463 = vmatpush.bf16.msra.mxu0 %v448
    %4464 = vmatpush.bf16.msra.mxu0 %v444
    %4465 = vmatpush.bf16.msra.mxu0 %v440
    %4466 = vmatpush.bf16.msra.mxu0 %v436
    %4467 = vmatpush.bf16.msra.mxu0 %v432
    %4468 = vmatpush.bf16.msra.mxu0 %v428
    %4469 = vmatpush.bf16.msra.mxu0 %v424
    %4470 = vmatpush.bf16.msra.mxu0 %v420
    %4471 = vmatmul.bf16.gmra.mxu0 %v4418
    %v4472 = vpop.f32.mrf.mxu0
    %v4473 = vadd.f32 0.0, %v4472
    %v4474 = vpop.f32.mrf.mxu0
    %4475 = vdwg.mxu0
    %4476 = vmatpush.bf16.msra.mxu0 %v480
    %4477 = vmatpush.bf16.msra.mxu0 %v476
    %4478 = vmatpush.bf16.msra.mxu0 %v472
    %4479 = vmatpush.bf16.msra.mxu0 %v468
    %4480 = vmatpush.bf16.msra.mxu0 %v464
    %4481 = vmatpush.bf16.msra.mxu0 %v460
    %4482 = vmatpush.bf16.msra.mxu0 %v456
    %4483 = vmatpush.bf16.msra.mxu0 %v452
    %4484 = vmatmul.bf16.gmra.mxu0 %v4419
    %v4485 = vpop.f32.mrf.mxu0
    %v4486 = vadd.f32 %v4473, %v4485
    %v4487 = vpop.f32.mrf.mxu0
    %4488 = vdwg.mxu0
    %4489 = vmatpush.bf16.msra.mxu0 %v512
    %4490 = vmatpush.bf16.msra.mxu0 %v508
    %4491 = vmatpush.bf16.msra.mxu0 %v504
    %4492 = vmatpush.bf16.msra.mxu0 %v500
    %4493 = vmatpush.bf16.msra.mxu0 %v496
    %4494 = vmatpush.bf16.msra.mxu0 %v492
    %4495 = vmatpush.bf16.msra.mxu0 %v488
    %4496 = vmatpush.bf16.msra.mxu0 %v484
    %4497 = vmatmul.bf16.gmra.mxu0 %v4420
    %v4498 = vpop.f32.mrf.mxu0
    %v4499 = vadd.f32 %v4486, %v4498
    %v4500 = vpop.f32.mrf.mxu0
    %4501 = vdwg.mxu0
    %4502 = vmatpush.bf16.msra.mxu0 %v449
    %4503 = vmatpush.bf16.msra.mxu0 %v445
    %4504 = vmatpush.bf16.msra.mxu0 %v441
    %4505 = vmatpush.bf16.msra.mxu0 %v437
    %4506 = vmatpush.bf16.msra.mxu0 %v433
    %4507 = vmatpush.bf16.msra.mxu0 %v429
    %4508 = vmatpush.bf16.msra.mxu0 %v425
    %4509 = vmatpush.bf16.msra.mxu0 %v421
    %4510 = vmatmul.bf16.gmra.mxu0 %v4418
    %v4511 = vpop.f32.mrf.mxu0
    %v4512 = vadd.f32 0.0, %v4511
    %v4513 = vpop.f32.mrf.mxu0
    %4514 = vdwg.mxu0
    %4515 = vmatpush.bf16.msra.mxu0 %v481
    %4516 = vmatpush.bf16.msra.mxu0 %v477
    %4517 = vmatpush.bf16.msra.mxu0 %v473
    %4518 = vmatpush.bf16.msra.mxu0 %v469
    %4519 = vmatpush.bf16.msra.mxu0 %v465
    %4520 = vmatpush.bf16.msra.mxu0 %v461
    %4521 = vmatpush.bf16.msra.mxu0 %v457
    %4522 = vmatpush.bf16.msra.mxu0 %v453
    %4523 = vmatmul.bf16.gmra.mxu0 %v4419
    %v4524 = vpop.f32.mrf.mxu0
    %v4525 = vadd.f32 %v4512, %v4524
    %v4526 = vpop.f32.mrf.mxu0
    %4527 = vdwg.mxu0
    %4528 = vmatpush.bf16.msra.mxu0 %v513
    %4529 = vmatpush.bf16.msra.mxu0 %v509
    %4530 = vmatpush.bf16.msra.mxu0 %v505
    %4531 = vmatpush.bf16.msra.mxu0 %v501
    %4532 = vmatpush.bf16.msra.mxu0 %v497
    %4533 = vmatpush.bf16.msra.mxu0 %v493
    %4534 = vmatpush.bf16.msra.mxu0 %v489
    %4535 = vmatpush.bf16.msra.mxu0 %v485
    %4536 = vmatmul.bf16.gmra.mxu0 %v4420
    %v4537 = vpop.f32.mrf.mxu0
    %v4538 = vadd.f32 %v4525, %v4537
    %v4539 = vpop.f32.mrf.mxu0
    %4540 = vdwg.mxu0
    %4541 = vmatpush.bf16.msra.mxu0 %v450
    %4542 = vmatpush.bf16.msra.mxu0 %v446
    %4543 = vmatpush.bf16.msra.mxu0 %v442
    %4544 = vmatpush.bf16.msra.mxu0 %v438
    %4545 = vmatpush.bf16.msra.mxu0 %v434
    %4546 = vmatpush.bf16.msra.mxu0 %v430
    %4547 = vmatpush.bf16.msra.mxu0 %v426
    %4548 = vmatpush.bf16.msra.mxu0 %v422
    %4549 = vmatmul.bf16.gmra.mxu0 %v4418
    %v4550 = vpop.f32.mrf.mxu0
    %v4551 = vadd.f32 0.0, %v4550
    %v4552 = vpop.f32.mrf.mxu0
    %4553 = vdwg.mxu0
    %4554 = vmatpush.bf16.msra.mxu0 %v482
    %4555 = vmatpush.bf16.msra.mxu0 %v478
    %4556 = vmatpush.bf16.msra.mxu0 %v474
    %4557 = vmatpush.bf16.msra.mxu0 %v470
    %4558 = vmatpush.bf16.msra.mxu0 %v466
    %4559 = vmatpush.bf16.msra.mxu0 %v462
    %4560 = vmatpush.bf16.msra.mxu0 %v458
    %4561 = vmatpush.bf16.msra.mxu0 %v454
    %4562 = vmatmul.bf16.gmra.mxu0 %v4419
    %v4563 = vpop.f32.mrf.mxu0
    %v4564 = vadd.f32 %v4551, %v4563
    %v4565 = vpop.f32.mrf.mxu0
    %4566 = vdwg.mxu0
    %4567 = vmatpush.bf16.msra.mxu0 %v514
    %4568 = vmatpush.bf16.msra.mxu0 %v510
    %4569 = vmatpush.bf16.msra.mxu0 %v506
    %4570 = vmatpush.bf16.msra.mxu0 %v502
    %4571 = vmatpush.bf16.msra.mxu0 %v498
    %4572 = vmatpush.bf16.msra.mxu0 %v494
    %4573 = vmatpush.bf16.msra.mxu0 %v490
    %4574 = vmatpush.bf16.msra.mxu0 %v486
    %4575 = vmatmul.bf16.gmra.mxu0 %v4420
    %v4576 = vpop.f32.mrf.mxu0
    %v4577 = vadd.f32 %v4564, %v4576
    %v4578 = vpop.f32.mrf.mxu0
    %4579 = vdwg.mxu0
    %v4580 = vmax.f32 %v4460, 0.0
    %v4581 = vmax.f32 %v4499, 0.0
    %v4582 = vmax.f32 %v4538, 0.0
    %v4583 = vmax.f32 %v4577, 0.0
    %v4584 = vpack.c.bf16 %v4580, %v4580
    %v4585 = vpack.c.bf16 %v4581, %v4581
    %v4586 = vpack.c.bf16 %v4582, %v4582
    %v4587 = vpack.c.bf16 %v4583, %v4583
    %s4588 = scalar_lea.vmem %s2, 1920
    %v4589 = vld [vmem:[%s4588] sm:$0xf]
    %v4590 = vld [vmem:[%s4588 + $0x4] sm:$0xf]
    %v4591 = vld [vmem:[%s4588 + $0x8] sm:$0xf]
    %v4592 = vld [vmem:[%s4588 + $0xc] sm:$0xf]
    %v4593 = vld [vmem:[%s4588 + $0x10] sm:$0xf]
    %v4594 = vld [vmem:[%s4588 + $0x14] sm:$0xf]
    %v4595 = vld [vmem:[%s4588 + $0x18] sm:$0xf]
    %v4596 = vld [vmem:[%s4588 + $0x1c] sm:$0xf]
    %v4597 = vld [vmem:[%s4588 + $0x20] sm:$0xf]
    %v4598 = vld [vmem:[%s4588 + $0x24] sm:$0xf]
    %v4599 = vld [vmem:[%s4588 + $0x28] sm:$0xf]
    %v4600 = vld [vmem:[%s4588 + $0x2c] sm:$0xf]
    %v4601 = vld [vmem:[%s4588 + $0x30] sm:$0xf]
    %v4602 = vld [vmem:[%s4588 + $0x34] sm:$0xf]
    %v4603 = vld [vmem:[%s4588 + $0x38] sm:$0xf]
    %v4604 = vld [vmem:[%s4588 + $0x3c] sm:$0xf]
    %v4605 = vld [vmem:[%s4588 + $0x40] sm:$0xf]
    %v4606 = vld [vmem:[%s4588 + $0x44] sm:$0xf]
    %v4607 = vld [vmem:[%s4588 + $0x48] sm:$0xf]
    %v4608 = vld [vmem:[%s4588 + $0x4c] sm:$0xf]
    %v4609 = vld [vmem:[%s4588 + $0x50] sm:$0xf]
    %v4610 = vld [vmem:[%s4588 + $0x54] sm:$0xf]
    %v4611 = vld [vmem:[%s4588 + $0x58] sm:$0xf]
    %v4612 = vld [vmem:[%s4588 + $0x5c] sm:$0xf]
    %v4613 = vld [vmem:[%s4588 + $0x60] sm:$0xf]
    %v4614 = vld [vmem:[%s4588 + $0x64] sm:$0xf]
    %v4615 = vld [vmem:[%s4588 + $0x68] sm:$0xf]
    %v4616 = vld [vmem:[%s4588 + $0x6c] sm:$0xf]
    %v4617 = vld [vmem:[%s4588 + $0x70] sm:$0xf]
    %v4618 = vld [vmem:[%s4588 + $0x74] sm:$0xf]
    %v4619 = vld [vmem:[%s4588 + $0x78] sm:$0xf]
    %v4620 = vld [vmem:[%s4588 + $0x7c] sm:$0xf]
    %v4621 = vld [vmem:[%s4588 + $0x80] sm:$0xf]
    %v4622 = vld [vmem:[%s4588 + $0x84] sm:$0xf]
    %v4623 = vld [vmem:[%s4588 + $0x88] sm:$0xf]
    %v4624 = vld [vmem:[%s4588 + $0x8c] sm:$0xf]
    %v4625 = vld [vmem:[%s4588 + $0x90] sm:$0xf]
    %v4626 = vld [vmem:[%s4588 + $0x94] sm:$0xf]
    %v4627 = vld [vmem:[%s4588 + $0x98] sm:$0xf]
    %v4628 = vld [vmem:[%s4588 + $0x9c] sm:$0xf]
    %v4629 = vld [vmem:[%s4588 + $0xa0] sm:$0xf]
    %v4630 = vld [vmem:[%s4588 + $0xa4] sm:$0xf]
    %v4631 = vld [vmem:[%s4588 + $0xa8] sm:$0xf]
    %v4632 = vld [vmem:[%s4588 + $0xac] sm:$0xf]
    %v4633 = vld [vmem:[%s4588 + $0xb0] sm:$0xf]
    %v4634 = vld [vmem:[%s4588 + $0xb4] sm:$0xf]
    %v4635 = vld [vmem:[%s4588 + $0xb8] sm:$0xf]
    %v4636 = vld [vmem:[%s4588 + $0xbc] sm:$0xf]
    %v4637 = vld [vmem:[%s4588 + $0xc0] sm:$0xf]
    %v4638 = vld [vmem:[%s4588 + $0xc4] sm:$0xf]
    %v4639 = vld [vmem:[%s4588 + $0xc8] sm:$0xf]
    %v4640 = vld [vmem:[%s4588 + $0xcc] sm:$0xf]
    %v4641 = vld [vmem:[%s4588 + $0xd0] sm:$0xf]
    %v4642 = vld [vmem:[%s4588 + $0xd4] sm:$0xf]
    %v4643 = vld [vmem:[%s4588 + $0xd8] sm:$0xf]
    %v4644 = vld [vmem:[%s4588 + $0xdc] sm:$0xf]
    %v4645 = vld [vmem:[%s4588 + $0xe0] sm:$0xf]
    %v4646 = vld [vmem:[%s4588 + $0xe4] sm:$0xf]
    %v4647 = vld [vmem:[%s4588 + $0xe8] sm:$0xf]
    %v4648 = vld [vmem:[%s4588 + $0xec] sm:$0x3]
    %v4709 = vunpack.c.l.b16 %v4589
    %v4710 = vunpack.c.l.b16 %v4590
    %v4711 = vunpack.c.l.b16 %v4591
    %v4712 = vunpack.c.l.b16 %v4592
    %v4713 = vunpack.c.l.b16 %v4593
    %v4714 = vunpack.c.l.b16 %v4594
    %v4715 = vunpack.c.l.b16 %v4595
    %v4716 = vunpack.c.l.b16 %v4596
    %v4717 = vunpack.c.l.b16 %v4597
    %v4718 = vunpack.c.l.b16 %v4598
    %v4719 = vunpack.c.l.b16 %v4599
    %v4720 = vunpack.c.l.b16 %v4600
    %v4721 = vunpack.c.l.b16 %v4601
    %v4722 = vunpack.c.l.b16 %v4602
    %v4723 = vunpack.c.l.b16 %v4603
    %v4724 = vunpack.c.l.b16 %v4604
    %v4725 = vunpack.c.l.b16 %v4605
    %v4726 = vunpack.c.l.b16 %v4606
    %v4727 = vunpack.c.l.b16 %v4607
    %v4728 = vunpack.c.l.b16 %v4608
    %v4729 = vunpack.c.l.b16 %v4609
    %v4730 = vunpack.c.l.b16 %v4610
    %v4731 = vunpack.c.l.b16 %v4611
    %v4732 = vunpack.c.l.b16 %v4612
    %v4733 = vunpack.c.l.b16 %v4613
    %v4734 = vunpack.c.l.b16 %v4614
    %v4735 = vunpack.c.l.b16 %v4615
    %v4736 = vunpack.c.l.b16 %v4616
    %v4737 = vunpack.c.l.b16 %v4617
    %v4738 = vunpack.c.l.b16 %v4618
    %v4739 = vunpack.c.l.b16 %v4619
    %v4740 = vunpack.c.l.b16 %v4620
    %v4741 = vunpack.c.l.b16 %v4621
    %v4742 = vunpack.c.l.b16 %v4622
    %v4743 = vunpack.c.l.b16 %v4623
    %v4744 = vunpack.c.l.b16 %v4624
    %v4745 = vunpack.c.l.b16 %v4625
    %v4746 = vunpack.c.l.b16 %v4626
    %v4747 = vunpack.c.l.b16 %v4627
    %v4748 = vunpack.c.l.b16 %v4628
    %v4749 = vunpack.c.l.b16 %v4629
    %v4750 = vunpack.c.l.b16 %v4630
    %v4751 = vunpack.c.l.b16 %v4631
    %v4752 = vunpack.c.l.b16 %v4632
    %v4753 = vunpack.c.l.b16 %v4633
    %v4754 = vunpack.c.l.b16 %v4634
    %v4755 = vunpack.c.l.b16 %v4635
    %v4756 = vunpack.c.l.b16 %v4636
    %v4757 = vunpack.c.l.b16 %v4637
    %v4758 = vunpack.c.l.b16 %v4638
    %v4759 = vunpack.c.l.b16 %v4639
    %v4760 = vunpack.c.l.b16 %v4640
    %v4761 = vunpack.c.l.b16 %v4641
    %v4762 = vunpack.c.l.b16 %v4642
    %v4763 = vunpack.c.l.b16 %v4643
    %v4764 = vunpack.c.l.b16 %v4644
    %v4765 = vunpack.c.l.b16 %v4645
    %v4766 = vunpack.c.l.b16 %v4646
    %v4767 = vunpack.c.l.b16 %v4647
    %v4768 = vunpack.c.l.b16 %v4648
    %v4769 = vpack.c.b16 %v4710, %v4709
    %v4770 = vpack.c.b16 %v4712, %v4711
    %v4771 = vpack.c.b16 %v4714, %v4713
    %v4772 = vpack.c.b16 %v4716, %v4715
    %v4773 = vpack.c.b16 %v4718, %v4717
    %v4774 = vpack.c.b16 %v4720, %v4719
    %v4775 = vpack.c.b16 %v4722, %v4721
    %v4776 = vpack.c.b16 %v4724, %v4723
    %v4777 = vpack.c.b16 %v4726, %v4725
    %v4778 = vpack.c.b16 %v4728, %v4727
    %v4779 = vpack.c.b16 %v4730, %v4729
    %v4780 = vpack.c.b16 %v4732, %v4731
    %v4781 = vpack.c.b16 %v4734, %v4733
    %v4782 = vpack.c.b16 %v4736, %v4735
    %v4783 = vpack.c.b16 %v4738, %v4737
    %v4784 = vpack.c.b16 %v4740, %v4739
    %v4785 = vpack.c.b16 %v4742, %v4741
    %v4786 = vpack.c.b16 %v4744, %v4743
    %v4787 = vpack.c.b16 %v4746, %v4745
    %v4788 = vpack.c.b16 %v4748, %v4747
    %v4789 = vpack.c.b16 %v4750, %v4749
    %v4790 = vpack.c.b16 %v4752, %v4751
    %v4791 = vpack.c.b16 %v4754, %v4753
    %v4792 = vpack.c.b16 %v4756, %v4755
    %v4793 = vpack.c.b16 %v4758, %v4757
    %v4794 = vpack.c.b16 %v4760, %v4759
    %v4795 = vpack.c.b16 %v4762, %v4761
    %v4796 = vpack.c.b16 %v4764, %v4763
    %v4797 = vpack.c.b16 %v4766, %v4765
    %v4798 = vpack.c.b16 %v4768, %v4767
    %v4829 = vsel %vm1492, %v4587, 0
    %v4832 = vsel %vm1496, %v4798, 0
    %4834 = vmatpush.bf16.msra.mxu0 %v4776
    %4835 = vmatpush.bf16.msra.mxu0 %v4775
    %4836 = vmatpush.bf16.msra.mxu0 %v4774
    %4837 = vmatpush.bf16.msra.mxu0 %v4773
    %4838 = vmatpush.bf16.msra.mxu0 %v4772
    %4839 = vmatpush.bf16.msra.mxu0 %v4771
    %4840 = vmatpush.bf16.msra.mxu0 %v4770
    %4841 = vmatpush.bf16.msra.mxu0 %v4769
    %4842 = vmatmul.bf16.gmra.mxu0 %v4584
    %v4843 = vpop.f32.mrf.mxu0
    %v4844 = vadd.f32 0.0, %v4843
    %v4845 = vpop.f32.mrf.mxu0
    %4846 = vdwg.mxu0
    %4847 = vmatpush.bf16.msra.mxu0 %v4784
    %4848 = vmatpush.bf16.msra.mxu0 %v4783
    %4849 = vmatpush.bf16.msra.mxu0 %v4782
    %4850 = vmatpush.bf16.msra.mxu0 %v4781
    %4851 = vmatpush.bf16.msra.mxu0 %v4780
    %4852 = vmatpush.bf16.msra.mxu0 %v4779
    %4853 = vmatpush.bf16.msra.mxu0 %v4778
    %4854 = vmatpush.bf16.msra.mxu0 %v4777
    %4855 = vmatmul.bf16.gmra.mxu0 %v4585
    %v4856 = vpop.f32.mrf.mxu0
    %v4857 = vadd.f32 %v4844, %v4856
    %v4858 = vpop.f32.mrf.mxu0
    %4859 = vdwg.mxu0
    %4860 = vmatpush.bf16.msra.mxu0 %v4792
    %4861 = vmatpush.bf16.msra.mxu0 %v4791
    %4862 = vmatpush.bf16.msra.mxu0 %v4790
    %4863 = vmatpush.bf16.msra.mxu0 %v4789
    %4864 = vmatpush.bf16.msra.mxu0 %v4788
    %4865 = vmatpush.bf16.msra.mxu0 %v4787
    %4866 = vmatpush.bf16.msra.mxu0 %v4786
    %4867 = vmatpush.bf16.msra.mxu0 %v4785
    %4868 = vmatmul.bf16.gmra.mxu0 %v4586
    %v4869 = vpop.f32.mrf.mxu0
    %v4870 = vadd.f32 %v4857, %v4869
    %v4871 = vpop.f32.mrf.mxu0
    %4872 = vdwg.mxu0
    %4873 = vmatpush.bf16.msra.mxu0 0
    %4874 = vmatpush.bf16.msra.mxu0 0
    %4875 = vmatpush.bf16.msra.mxu0 %v4832
    %4876 = vmatpush.bf16.msra.mxu0 %v4797
    %4877 = vmatpush.bf16.msra.mxu0 %v4796
    %4878 = vmatpush.bf16.msra.mxu0 %v4795
    %4879 = vmatpush.bf16.msra.mxu0 %v4794
    %4880 = vmatpush.bf16.msra.mxu0 %v4793
    %4881 = vmatmul.bf16.gmra.mxu0 %v4829
    %v4882 = vpop.f32.mrf.mxu0
    %v4883 = vadd.f32 %v4870, %v4882
    %v4884 = vpop.f32.mrf.mxu0
    %4885 = vdwg.mxu0
    %v4886 = vadd.f32 %v3932, %v4883
    %s4887 = scalar_lea.vmem %s0, 108
    %v4888 = vld [vmem:[%s4887] sm:$0xff]
    %v4889 = vld [vmem:[%s4887 + $0x8] sm:$0xf]
    %v4892 = vunpack.c.l.b16 %v4888
    %v4893 = vunpack.c.h.b16 %v4888
    %v4894 = vunpack.c.l.b16 %v4889
    %v4895 = vpack.c.b16 %v4892, %v4892
    %v4896 = vpack.c.b16 %v4893, %v4893
    %v4897 = vpack.c.b16 %v4894, %v4894
    %4901 = vmatpush.bf16.msra.mxu0 %v447
    %4902 = vmatpush.bf16.msra.mxu0 %v443
    %4903 = vmatpush.bf16.msra.mxu0 %v439
    %4904 = vmatpush.bf16.msra.mxu0 %v435
    %4905 = vmatpush.bf16.msra.mxu0 %v431
    %4906 = vmatpush.bf16.msra.mxu0 %v427
    %4907 = vmatpush.bf16.msra.mxu0 %v423
    %4908 = vmatpush.bf16.msra.mxu0 %v419
    %4909 = vmatmul.bf16.gmra.mxu0 %v4895
    %v4910 = vpop.f32.mrf.mxu0
    %v4911 = vadd.f32 0.0, %v4910
    %v4912 = vpop.f32.mrf.mxu0
    %4913 = vdwg.mxu0
    %4914 = vmatpush.bf16.msra.mxu0 %v479
    %4915 = vmatpush.bf16.msra.mxu0 %v475
    %4916 = vmatpush.bf16.msra.mxu0 %v471
    %4917 = vmatpush.bf16.msra.mxu0 %v467
    %4918 = vmatpush.bf16.msra.mxu0 %v463
    %4919 = vmatpush.bf16.msra.mxu0 %v459
    %4920 = vmatpush.bf16.msra.mxu0 %v455
    %4921 = vmatpush.bf16.msra.mxu0 %v451
    %4922 = vmatmul.bf16.gmra.mxu0 %v4896
    %v4923 = vpop.f32.mrf.mxu0
    %v4924 = vadd.f32 %v4911, %v4923
    %v4925 = vpop.f32.mrf.mxu0
    %4926 = vdwg.mxu0
    %4927 = vmatpush.bf16.msra.mxu0 %v511
    %4928 = vmatpush.bf16.msra.mxu0 %v507
    %4929 = vmatpush.bf16.msra.mxu0 %v503
    %4930 = vmatpush.bf16.msra.mxu0 %v499
    %4931 = vmatpush.bf16.msra.mxu0 %v495
    %4932 = vmatpush.bf16.msra.mxu0 %v491
    %4933 = vmatpush.bf16.msra.mxu0 %v487
    %4934 = vmatpush.bf16.msra.mxu0 %v483
    %4935 = vmatmul.bf16.gmra.mxu0 %v4897
    %v4936 = vpop.f32.mrf.mxu0
    %v4937 = vadd.f32 %v4924, %v4936
    %v4938 = vpop.f32.mrf.mxu0
    %4939 = vdwg.mxu0
    %4940 = vmatpush.bf16.msra.mxu0 %v448
    %4941 = vmatpush.bf16.msra.mxu0 %v444
    %4942 = vmatpush.bf16.msra.mxu0 %v440
    %4943 = vmatpush.bf16.msra.mxu0 %v436
    %4944 = vmatpush.bf16.msra.mxu0 %v432
    %4945 = vmatpush.bf16.msra.mxu0 %v428
    %4946 = vmatpush.bf16.msra.mxu0 %v424
    %4947 = vmatpush.bf16.msra.mxu0 %v420
    %4948 = vmatmul.bf16.gmra.mxu0 %v4895
    %v4949 = vpop.f32.mrf.mxu0
    %v4950 = vadd.f32 0.0, %v4949
    %v4951 = vpop.f32.mrf.mxu0
    %4952 = vdwg.mxu0
    %4953 = vmatpush.bf16.msra.mxu0 %v480
    %4954 = vmatpush.bf16.msra.mxu0 %v476
    %4955 = vmatpush.bf16.msra.mxu0 %v472
    %4956 = vmatpush.bf16.msra.mxu0 %v468
    %4957 = vmatpush.bf16.msra.mxu0 %v464
    %4958 = vmatpush.bf16.msra.mxu0 %v460
    %4959 = vmatpush.bf16.msra.mxu0 %v456
    %4960 = vmatpush.bf16.msra.mxu0 %v452
    %4961 = vmatmul.bf16.gmra.mxu0 %v4896
    %v4962 = vpop.f32.mrf.mxu0
    %v4963 = vadd.f32 %v4950, %v4962
    %v4964 = vpop.f32.mrf.mxu0
    %4965 = vdwg.mxu0
    %4966 = vmatpush.bf16.msra.mxu0 %v512
    %4967 = vmatpush.bf16.msra.mxu0 %v508
    %4968 = vmatpush.bf16.msra.mxu0 %v504
    %4969 = vmatpush.bf16.msra.mxu0 %v500
    %4970 = vmatpush.bf16.msra.mxu0 %v496
    %4971 = vmatpush.bf16.msra.mxu0 %v492
    %4972 = vmatpush.bf16.msra.mxu0 %v488
    %4973 = vmatpush.bf16.msra.mxu0 %v484
    %4974 = vmatmul.bf16.gmra.mxu0 %v4897
    %v4975 = vpop.f32.mrf.mxu0
    %v4976 = vadd.f32 %v4963, %v4975
    %v4977 = vpop.f32.mrf.mxu0
    %4978 = vdwg.mxu0
    %4979 = vmatpush.bf16.msra.mxu0 %v449
    %4980 = vmatpush.bf16.msra.mxu0 %v445
    %4981 = vmatpush.bf16.msra.mxu0 %v441
    %4982 = vmatpush.bf16.msra.mxu0 %v437
    %4983 = vmatpush.bf16.msra.mxu0 %v433
    %4984 = vmatpush.bf16.msra.mxu0 %v429
    %4985 = vmatpush.bf16.msra.mxu0 %v425
    %4986 = vmatpush.bf16.msra.mxu0 %v421
    %4987 = vmatmul.bf16.gmra.mxu0 %v4895
    %v4988 = vpop.f32.mrf.mxu0
    %v4989 = vadd.f32 0.0, %v4988
    %v4990 = vpop.f32.mrf.mxu0
    %4991 = vdwg.mxu0
    %4992 = vmatpush.bf16.msra.mxu0 %v481
    %4993 = vmatpush.bf16.msra.mxu0 %v477
    %4994 = vmatpush.bf16.msra.mxu0 %v473
    %4995 = vmatpush.bf16.msra.mxu0 %v469
    %4996 = vmatpush.bf16.msra.mxu0 %v465
    %4997 = vmatpush.bf16.msra.mxu0 %v461
    %4998 = vmatpush.bf16.msra.mxu0 %v457
    %4999 = vmatpush.bf16.msra.mxu0 %v453
    %5000 = vmatmul.bf16.gmra.mxu0 %v4896
    %v5001 = vpop.f32.mrf.mxu0
    %v5002 = vadd.f32 %v4989, %v5001
    %v5003 = vpop.f32.mrf.mxu0
    %5004 = vdwg.mxu0
    %5005 = vmatpush.bf16.msra.mxu0 %v513
    %5006 = vmatpush.bf16.msra.mxu0 %v509
    %5007 = vmatpush.bf16.msra.mxu0 %v505
    %5008 = vmatpush.bf16.msra.mxu0 %v501
    %5009 = vmatpush.bf16.msra.mxu0 %v497
    %5010 = vmatpush.bf16.msra.mxu0 %v493
    %5011 = vmatpush.bf16.msra.mxu0 %v489
    %5012 = vmatpush.bf16.msra.mxu0 %v485
    %5013 = vmatmul.bf16.gmra.mxu0 %v4897
    %v5014 = vpop.f32.mrf.mxu0
    %v5015 = vadd.f32 %v5002, %v5014
    %v5016 = vpop.f32.mrf.mxu0
    %5017 = vdwg.mxu0
    %5018 = vmatpush.bf16.msra.mxu0 %v450
    %5019 = vmatpush.bf16.msra.mxu0 %v446
    %5020 = vmatpush.bf16.msra.mxu0 %v442
    %5021 = vmatpush.bf16.msra.mxu0 %v438
    %5022 = vmatpush.bf16.msra.mxu0 %v434
    %5023 = vmatpush.bf16.msra.mxu0 %v430
    %5024 = vmatpush.bf16.msra.mxu0 %v426
    %5025 = vmatpush.bf16.msra.mxu0 %v422
    %5026 = vmatmul.bf16.gmra.mxu0 %v4895
    %v5027 = vpop.f32.mrf.mxu0
    %v5028 = vadd.f32 0.0, %v5027
    %v5029 = vpop.f32.mrf.mxu0
    %5030 = vdwg.mxu0
    %5031 = vmatpush.bf16.msra.mxu0 %v482
    %5032 = vmatpush.bf16.msra.mxu0 %v478
    %5033 = vmatpush.bf16.msra.mxu0 %v474
    %5034 = vmatpush.bf16.msra.mxu0 %v470
    %5035 = vmatpush.bf16.msra.mxu0 %v466
    %5036 = vmatpush.bf16.msra.mxu0 %v462
    %5037 = vmatpush.bf16.msra.mxu0 %v458
    %5038 = vmatpush.bf16.msra.mxu0 %v454
    %5039 = vmatmul.bf16.gmra.mxu0 %v4896
    %v5040 = vpop.f32.mrf.mxu0
    %v5041 = vadd.f32 %v5028, %v5040
    %v5042 = vpop.f32.mrf.mxu0
    %5043 = vdwg.mxu0
    %5044 = vmatpush.bf16.msra.mxu0 %v514
    %5045 = vmatpush.bf16.msra.mxu0 %v510
    %5046 = vmatpush.bf16.msra.mxu0 %v506
    %5047 = vmatpush.bf16.msra.mxu0 %v502
    %5048 = vmatpush.bf16.msra.mxu0 %v498
    %5049 = vmatpush.bf16.msra.mxu0 %v494
    %5050 = vmatpush.bf16.msra.mxu0 %v490
    %5051 = vmatpush.bf16.msra.mxu0 %v486
    %5052 = vmatmul.bf16.gmra.mxu0 %v4897
    %v5053 = vpop.f32.mrf.mxu0
    %v5054 = vadd.f32 %v5041, %v5053
    %v5055 = vpop.f32.mrf.mxu0
    %5056 = vdwg.mxu0
    %v5057 = vmax.f32 %v4937, 0.0
    %v5058 = vmax.f32 %v4976, 0.0
    %v5059 = vmax.f32 %v5015, 0.0
    %v5060 = vmax.f32 %v5054, 0.0
    %v5061 = vpack.c.bf16 %v5057, %v5057
    %v5062 = vpack.c.bf16 %v5058, %v5058
    %v5063 = vpack.c.bf16 %v5059, %v5059
    %v5064 = vpack.c.bf16 %v5060, %v5060
    %s5065 = scalar_lea.vmem %s2, 2160
    %v5066 = vld [vmem:[%s5065] sm:$0xf]
    %v5067 = vld [vmem:[%s5065 + $0x4] sm:$0xf]
    %v5068 = vld [vmem:[%s5065 + $0x8] sm:$0xf]
    %v5069 = vld [vmem:[%s5065 + $0xc] sm:$0xf]
    %v5070 = vld [vmem:[%s5065 + $0x10] sm:$0xf]
    %v5071 = vld [vmem:[%s5065 + $0x14] sm:$0xf]
    %v5072 = vld [vmem:[%s5065 + $0x18] sm:$0xf]
    %v5073 = vld [vmem:[%s5065 + $0x1c] sm:$0xf]
    %v5074 = vld [vmem:[%s5065 + $0x20] sm:$0xf]
    %v5075 = vld [vmem:[%s5065 + $0x24] sm:$0xf]
    %v5076 = vld [vmem:[%s5065 + $0x28] sm:$0xf]
    %v5077 = vld [vmem:[%s5065 + $0x2c] sm:$0xf]
    %v5078 = vld [vmem:[%s5065 + $0x30] sm:$0xf]
    %v5079 = vld [vmem:[%s5065 + $0x34] sm:$0xf]
    %v5080 = vld [vmem:[%s5065 + $0x38] sm:$0xf]
    %v5081 = vld [vmem:[%s5065 + $0x3c] sm:$0xf]
    %v5082 = vld [vmem:[%s5065 + $0x40] sm:$0xf]
    %v5083 = vld [vmem:[%s5065 + $0x44] sm:$0xf]
    %v5084 = vld [vmem:[%s5065 + $0x48] sm:$0xf]
    %v5085 = vld [vmem:[%s5065 + $0x4c] sm:$0xf]
    %v5086 = vld [vmem:[%s5065 + $0x50] sm:$0xf]
    %v5087 = vld [vmem:[%s5065 + $0x54] sm:$0xf]
    %v5088 = vld [vmem:[%s5065 + $0x58] sm:$0xf]
    %v5089 = vld [vmem:[%s5065 + $0x5c] sm:$0xf]
    %v5090 = vld [vmem:[%s5065 + $0x60] sm:$0xf]
    %v5091 = vld [vmem:[%s5065 + $0x64] sm:$0xf]
    %v5092 = vld [vmem:[%s5065 + $0x68] sm:$0xf]
    %v5093 = vld [vmem:[%s5065 + $0x6c] sm:$0xf]
    %v5094 = vld [vmem:[%s5065 + $0x70] sm:$0xf]
    %v5095 = vld [vmem:[%s5065 + $0x74] sm:$0xf]
    %v5096 = vld [vmem:[%s5065 + $0x78] sm:$0xf]
    %v5097 = vld [vmem:[%s5065 + $0x7c] sm:$0xf]
    %v5098 = vld [vmem:[%s5065 + $0x80] sm:$0xf]
    %v5099 = vld [vmem:[%s5065 + $0x84] sm:$0xf]
    %v5100 = vld [vmem:[%s5065 + $0x88] sm:$0xf]
    %v5101 = vld [vmem:[%s5065 + $0x8c] sm:$0xf]
    %v5102 = vld [vmem:[%s5065 + $0x90] sm:$0xf]
    %v5103 = vld [vmem:[%s5065 + $0x94] sm:$0xf]
    %v5104 = vld [vmem:[%s5065 + $0x98] sm:$0xf]
    %v5105 = vld [vmem:[%s5065 + $0x9c] sm:$0xf]
    %v5106 = vld [vmem:[%s5065 + $0xa0] sm:$0xf]
    %v5107 = vld [vmem:[%s5065 + $0xa4] sm:$0xf]
    %v5108 = vld [vmem:[%s5065 + $0xa8] sm:$0xf]
    %v5109 = vld [vmem:[%s5065 + $0xac] sm:$0xf]
    %v5110 = vld [vmem:[%s5065 + $0xb0] sm:$0xf]
    %v5111 = vld [vmem:[%s5065 + $0xb4] sm:$0xf]
    %v5112 = vld [vmem:[%s5065 + $0xb8] sm:$0xf]
    %v5113 = vld [vmem:[%s5065 + $0xbc] sm:$0xf]
    %v5114 = vld [vmem:[%s5065 + $0xc0] sm:$0xf]
    %v5115 = vld [vmem:[%s5065 + $0xc4] sm:$0xf]
    %v5116 = vld [vmem:[%s5065 + $0xc8] sm:$0xf]
    %v5117 = vld [vmem:[%s5065 + $0xcc] sm:$0xf]
    %v5118 = vld [vmem:[%s5065 + $0xd0] sm:$0xf]
    %v5119 = vld [vmem:[%s5065 + $0xd4] sm:$0xf]
    %v5120 = vld [vmem:[%s5065 + $0xd8] sm:$0xf]
    %v5121 = vld [vmem:[%s5065 + $0xdc] sm:$0xf]
    %v5122 = vld [vmem:[%s5065 + $0xe0] sm:$0xf]
    %v5123 = vld [vmem:[%s5065 + $0xe4] sm:$0xf]
    %v5124 = vld [vmem:[%s5065 + $0xe8] sm:$0xf]
    %v5125 = vld [vmem:[%s5065 + $0xec] sm:$0x3]
    %v5186 = vunpack.c.l.b16 %v5066
    %v5187 = vunpack.c.l.b16 %v5067
    %v5188 = vunpack.c.l.b16 %v5068
    %v5189 = vunpack.c.l.b16 %v5069
    %v5190 = vunpack.c.l.b16 %v5070
    %v5191 = vunpack.c.l.b16 %v5071
    %v5192 = vunpack.c.l.b16 %v5072
    %v5193 = vunpack.c.l.b16 %v5073
    %v5194 = vunpack.c.l.b16 %v5074
    %v5195 = vunpack.c.l.b16 %v5075
    %v5196 = vunpack.c.l.b16 %v5076
    %v5197 = vunpack.c.l.b16 %v5077
    %v5198 = vunpack.c.l.b16 %v5078
    %v5199 = vunpack.c.l.b16 %v5079
    %v5200 = vunpack.c.l.b16 %v5080
    %v5201 = vunpack.c.l.b16 %v5081
    %v5202 = vunpack.c.l.b16 %v5082
    %v5203 = vunpack.c.l.b16 %v5083
    %v5204 = vunpack.c.l.b16 %v5084
    %v5205 = vunpack.c.l.b16 %v5085
    %v5206 = vunpack.c.l.b16 %v5086
    %v5207 = vunpack.c.l.b16 %v5087
    %v5208 = vunpack.c.l.b16 %v5088
    %v5209 = vunpack.c.l.b16 %v5089
    %v5210 = vunpack.c.l.b16 %v5090
    %v5211 = vunpack.c.l.b16 %v5091
    %v5212 = vunpack.c.l.b16 %v5092
    %v5213 = vunpack.c.l.b16 %v5093
    %v5214 = vunpack.c.l.b16 %v5094
    %v5215 = vunpack.c.l.b16 %v5095
    %v5216 = vunpack.c.l.b16 %v5096
    %v5217 = vunpack.c.l.b16 %v5097
    %v5218 = vunpack.c.l.b16 %v5098
    %v5219 = vunpack.c.l.b16 %v5099
    %v5220 = vunpack.c.l.b16 %v5100
    %v5221 = vunpack.c.l.b16 %v5101
    %v5222 = vunpack.c.l.b16 %v5102
    %v5223 = vunpack.c.l.b16 %v5103
    %v5224 = vunpack.c.l.b16 %v5104
    %v5225 = vunpack.c.l.b16 %v5105
    %v5226 = vunpack.c.l.b16 %v5106
    %v5227 = vunpack.c.l.b16 %v5107
    %v5228 = vunpack.c.l.b16 %v5108
    %v5229 = vunpack.c.l.b16 %v5109
    %v5230 = vunpack.c.l.b16 %v5110
    %v5231 = vunpack.c.l.b16 %v5111
    %v5232 = vunpack.c.l.b16 %v5112
    %v5233 = vunpack.c.l.b16 %v5113
    %v5234 = vunpack.c.l.b16 %v5114
    %v5235 = vunpack.c.l.b16 %v5115
    %v5236 = vunpack.c.l.b16 %v5116
    %v5237 = vunpack.c.l.b16 %v5117
    %v5238 = vunpack.c.l.b16 %v5118
    %v5239 = vunpack.c.l.b16 %v5119
    %v5240 = vunpack.c.l.b16 %v5120
    %v5241 = vunpack.c.l.b16 %v5121
    %v5242 = vunpack.c.l.b16 %v5122
    %v5243 = vunpack.c.l.b16 %v5123
    %v5244 = vunpack.c.l.b16 %v5124
    %v5245 = vunpack.c.l.b16 %v5125
    %v5246 = vpack.c.b16 %v5187, %v5186
    %v5247 = vpack.c.b16 %v5189, %v5188
    %v5248 = vpack.c.b16 %v5191, %v5190
    %v5249 = vpack.c.b16 %v5193, %v5192
    %v5250 = vpack.c.b16 %v5195, %v5194
    %v5251 = vpack.c.b16 %v5197, %v5196
    %v5252 = vpack.c.b16 %v5199, %v5198
    %v5253 = vpack.c.b16 %v5201, %v5200
    %v5254 = vpack.c.b16 %v5203, %v5202
    %v5255 = vpack.c.b16 %v5205, %v5204
    %v5256 = vpack.c.b16 %v5207, %v5206
    %v5257 = vpack.c.b16 %v5209, %v5208
    %v5258 = vpack.c.b16 %v5211, %v5210
    %v5259 = vpack.c.b16 %v5213, %v5212
    %v5260 = vpack.c.b16 %v5215, %v5214
    %v5261 = vpack.c.b16 %v5217, %v5216
    %v5262 = vpack.c.b16 %v5219, %v5218
    %v5263 = vpack.c.b16 %v5221, %v5220
    %v5264 = vpack.c.b16 %v5223, %v5222
    %v5265 = vpack.c.b16 %v5225, %v5224
    %v5266 = vpack.c.b16 %v5227, %v5226
    %v5267 = vpack.c.b16 %v5229, %v5228
    %v5268 = vpack.c.b16 %v5231, %v5230
    %v5269 = vpack.c.b16 %v5233, %v5232
    %v5270 = vpack.c.b16 %v5235, %v5234
    %v5271 = vpack.c.b16 %v5237, %v5236
    %v5272 = vpack.c.b16 %v5239, %v5238
    %v5273 = vpack.c.b16 %v5241, %v5240
    %v5274 = vpack.c.b16 %v5243, %v5242
    %v5275 = vpack.c.b16 %v5245, %v5244
    %v5306 = vsel %vm1492, %v5064, 0
    %v5309 = vsel %vm1496, %v5275, 0
    %5311 = vmatpush.bf16.msra.mxu0 %v5253
    %5312 = vmatpush.bf16.msra.mxu0 %v5252
    %5313 = vmatpush.bf16.msra.mxu0 %v5251
    %5314 = vmatpush.bf16.msra.mxu0 %v5250
    %5315 = vmatpush.bf16.msra.mxu0 %v5249
    %5316 = vmatpush.bf16.msra.mxu0 %v5248
    %5317 = vmatpush.bf16.msra.mxu0 %v5247
    %5318 = vmatpush.bf16.msra.mxu0 %v5246
    %5319 = vmatmul.bf16.gmra.mxu0 %v5061
    %v5320 = vpop.f32.mrf.mxu0
    %v5321 = vadd.f32 0.0, %v5320
    %v5322 = vpop.f32.mrf.mxu0
    %5323 = vdwg.mxu0
    %5324 = vmatpush.bf16.msra.mxu0 %v5261
    %5325 = vmatpush.bf16.msra.mxu0 %v5260
    %5326 = vmatpush.bf16.msra.mxu0 %v5259
    %5327 = vmatpush.bf16.msra.mxu0 %v5258
    %5328 = vmatpush.bf16.msra.mxu0 %v5257
    %5329 = vmatpush.bf16.msra.mxu0 %v5256
    %5330 = vmatpush.bf16.msra.mxu0 %v5255
    %5331 = vmatpush.bf16.msra.mxu0 %v5254
    %5332 = vmatmul.bf16.gmra.mxu0 %v5062
    %v5333 = vpop.f32.mrf.mxu0
    %v5334 = vadd.f32 %v5321, %v5333
    %v5335 = vpop.f32.mrf.mxu0
    %5336 = vdwg.mxu0
    %5337 = vmatpush.bf16.msra.mxu0 %v5269
    %5338 = vmatpush.bf16.msra.mxu0 %v5268
    %5339 = vmatpush.bf16.msra.mxu0 %v5267
    %5340 = vmatpush.bf16.msra.mxu0 %v5266
    %5341 = vmatpush.bf16.msra.mxu0 %v5265
    %5342 = vmatpush.bf16.msra.mxu0 %v5264
    %5343 = vmatpush.bf16.msra.mxu0 %v5263
    %5344 = vmatpush.bf16.msra.mxu0 %v5262
    %5345 = vmatmul.bf16.gmra.mxu0 %v5063
    %v5346 = vpop.f32.mrf.mxu0
    %v5347 = vadd.f32 %v5334, %v5346
    %v5348 = vpop.f32.mrf.mxu0
    %5349 = vdwg.mxu0
    %5350 = vmatpush.bf16.msra.mxu0 0
    %5351 = vmatpush.bf16.msra.mxu0 0
    %5352 = vmatpush.bf16.msra.mxu0 %v5309
    %5353 = vmatpush.bf16.msra.mxu0 %v5274
    %5354 = vmatpush.bf16.msra.mxu0 %v5273
    %5355 = vmatpush.bf16.msra.mxu0 %v5272
    %5356 = vmatpush.bf16.msra.mxu0 %v5271
    %5357 = vmatpush.bf16.msra.mxu0 %v5270
    %5358 = vmatmul.bf16.gmra.mxu0 %v5306
    %v5359 = vpop.f32.mrf.mxu0
    %v5360 = vadd.f32 %v5347, %v5359
    %v5361 = vpop.f32.mrf.mxu0
    %5362 = vdwg.mxu0
    %v5363 = vadd.f32 %v4409, %v5360
    %s5364 = scalar_lea.vmem %s0, 120
    %v5365 = vld [vmem:[%s5364] sm:$0xff]
    %v5366 = vld [vmem:[%s5364 + $0x8] sm:$0xf]
    %v5369 = vunpack.c.l.b16 %v5365
    %v5370 = vunpack.c.h.b16 %v5365
    %v5371 = vunpack.c.l.b16 %v5366
    %v5372 = vpack.c.b16 %v5369, %v5369
    %v5373 = vpack.c.b16 %v5370, %v5370
    %v5374 = vpack.c.b16 %v5371, %v5371
    %5378 = vmatpush.bf16.msra.mxu0 %v447
    %5379 = vmatpush.bf16.msra.mxu0 %v443
    %5380 = vmatpush.bf16.msra.mxu0 %v439
    %5381 = vmatpush.bf16.msra.mxu0 %v435
    %5382 = vmatpush.bf16.msra.mxu0 %v431
    %5383 = vmatpush.bf16.msra.mxu0 %v427
    %5384 = vmatpush.bf16.msra.mxu0 %v423
    %5385 = vmatpush.bf16.msra.mxu0 %v419
    %5386 = vmatmul.bf16.gmra.mxu0 %v5372
    %v5387 = vpop.f32.mrf.mxu0
    %v5388 = vadd.f32 0.0, %v5387
    %v5389 = vpop.f32.mrf.mxu0
    %5390 = vdwg.mxu0
    %5391 = vmatpush.bf16.msra.mxu0 %v479
    %5392 = vmatpush.bf16.msra.mxu0 %v475
    %5393 = vmatpush.bf16.msra.mxu0 %v471
    %5394 = vmatpush.bf16.msra.mxu0 %v467
    %5395 = vmatpush.bf16.msra.mxu0 %v463
    %5396 = vmatpush.bf16.msra.mxu0 %v459
    %5397 = vmatpush.bf16.msra.mxu0 %v455
    %5398 = vmatpush.bf16.msra.mxu0 %v451
    %5399 = vmatmul.bf16.gmra.mxu0 %v5373
    %v5400 = vpop.f32.mrf.mxu0
    %v5401 = vadd.f32 %v5388, %v5400
    %v5402 = vpop.f32.mrf.mxu0
    %5403 = vdwg.mxu0
    %5404 = vmatpush.bf16.msra.mxu0 %v511
    %5405 = vmatpush.bf16.msra.mxu0 %v507
    %5406 = vmatpush.bf16.msra.mxu0 %v503
    %5407 = vmatpush.bf16.msra.mxu0 %v499
    %5408 = vmatpush.bf16.msra.mxu0 %v495
    %5409 = vmatpush.bf16.msra.mxu0 %v491
    %5410 = vmatpush.bf16.msra.mxu0 %v487
    %5411 = vmatpush.bf16.msra.mxu0 %v483
    %5412 = vmatmul.bf16.gmra.mxu0 %v5374
    %v5413 = vpop.f32.mrf.mxu0
    %v5414 = vadd.f32 %v5401, %v5413
    %v5415 = vpop.f32.mrf.mxu0
    %5416 = vdwg.mxu0
    %5417 = vmatpush.bf16.msra.mxu0 %v448
    %5418 = vmatpush.bf16.msra.mxu0 %v444
    %5419 = vmatpush.bf16.msra.mxu0 %v440
    %5420 = vmatpush.bf16.msra.mxu0 %v436
    %5421 = vmatpush.bf16.msra.mxu0 %v432
    %5422 = vmatpush.bf16.msra.mxu0 %v428
    %5423 = vmatpush.bf16.msra.mxu0 %v424
    %5424 = vmatpush.bf16.msra.mxu0 %v420
    %5425 = vmatmul.bf16.gmra.mxu0 %v5372
    %v5426 = vpop.f32.mrf.mxu0
    %v5427 = vadd.f32 0.0, %v5426
    %v5428 = vpop.f32.mrf.mxu0
    %5429 = vdwg.mxu0
    %5430 = vmatpush.bf16.msra.mxu0 %v480
    %5431 = vmatpush.bf16.msra.mxu0 %v476
    %5432 = vmatpush.bf16.msra.mxu0 %v472
    %5433 = vmatpush.bf16.msra.mxu0 %v468
    %5434 = vmatpush.bf16.msra.mxu0 %v464
    %5435 = vmatpush.bf16.msra.mxu0 %v460
    %5436 = vmatpush.bf16.msra.mxu0 %v456
    %5437 = vmatpush.bf16.msra.mxu0 %v452
    %5438 = vmatmul.bf16.gmra.mxu0 %v5373
    %v5439 = vpop.f32.mrf.mxu0
    %v5440 = vadd.f32 %v5427, %v5439
    %v5441 = vpop.f32.mrf.mxu0
    %5442 = vdwg.mxu0
    %5443 = vmatpush.bf16.msra.mxu0 %v512
    %5444 = vmatpush.bf16.msra.mxu0 %v508
    %5445 = vmatpush.bf16.msra.mxu0 %v504
    %5446 = vmatpush.bf16.msra.mxu0 %v500
    %5447 = vmatpush.bf16.msra.mxu0 %v496
    %5448 = vmatpush.bf16.msra.mxu0 %v492
    %5449 = vmatpush.bf16.msra.mxu0 %v488
    %5450 = vmatpush.bf16.msra.mxu0 %v484
    %5451 = vmatmul.bf16.gmra.mxu0 %v5374
    %v5452 = vpop.f32.mrf.mxu0
    %v5453 = vadd.f32 %v5440, %v5452
    %v5454 = vpop.f32.mrf.mxu0
    %5455 = vdwg.mxu0
    %5456 = vmatpush.bf16.msra.mxu0 %v449
    %5457 = vmatpush.bf16.msra.mxu0 %v445
    %5458 = vmatpush.bf16.msra.mxu0 %v441
    %5459 = vmatpush.bf16.msra.mxu0 %v437
    %5460 = vmatpush.bf16.msra.mxu0 %v433
    %5461 = vmatpush.bf16.msra.mxu0 %v429
    %5462 = vmatpush.bf16.msra.mxu0 %v425
    %5463 = vmatpush.bf16.msra.mxu0 %v421
    %5464 = vmatmul.bf16.gmra.mxu0 %v5372
    %v5465 = vpop.f32.mrf.mxu0
    %v5466 = vadd.f32 0.0, %v5465
    %v5467 = vpop.f32.mrf.mxu0
    %5468 = vdwg.mxu0
    %5469 = vmatpush.bf16.msra.mxu0 %v481
    %5470 = vmatpush.bf16.msra.mxu0 %v477
    %5471 = vmatpush.bf16.msra.mxu0 %v473
    %5472 = vmatpush.bf16.msra.mxu0 %v469
    %5473 = vmatpush.bf16.msra.mxu0 %v465
    %5474 = vmatpush.bf16.msra.mxu0 %v461
    %5475 = vmatpush.bf16.msra.mxu0 %v457
    %5476 = vmatpush.bf16.msra.mxu0 %v453
    %5477 = vmatmul.bf16.gmra.mxu0 %v5373
    %v5478 = vpop.f32.mrf.mxu0
    %v5479 = vadd.f32 %v5466, %v5478
    %v5480 = vpop.f32.mrf.mxu0
    %5481 = vdwg.mxu0
    %5482 = vmatpush.bf16.msra.mxu0 %v513
    %5483 = vmatpush.bf16.msra.mxu0 %v509
    %5484 = vmatpush.bf16.msra.mxu0 %v505
    %5485 = vmatpush.bf16.msra.mxu0 %v501
    %5486 = vmatpush.bf16.msra.mxu0 %v497
    %5487 = vmatpush.bf16.msra.mxu0 %v493
    %5488 = vmatpush.bf16.msra.mxu0 %v489
    %5489 = vmatpush.bf16.msra.mxu0 %v485
    %5490 = vmatmul.bf16.gmra.mxu0 %v5374
    %v5491 = vpop.f32.mrf.mxu0
    %v5492 = vadd.f32 %v5479, %v5491
    %v5493 = vpop.f32.mrf.mxu0
    %5494 = vdwg.mxu0
    %5495 = vmatpush.bf16.msra.mxu0 %v450
    %5496 = vmatpush.bf16.msra.mxu0 %v446
    %5497 = vmatpush.bf16.msra.mxu0 %v442
    %5498 = vmatpush.bf16.msra.mxu0 %v438
    %5499 = vmatpush.bf16.msra.mxu0 %v434
    %5500 = vmatpush.bf16.msra.mxu0 %v430
    %5501 = vmatpush.bf16.msra.mxu0 %v426
    %5502 = vmatpush.bf16.msra.mxu0 %v422
    %5503 = vmatmul.bf16.gmra.mxu0 %v5372
    %v5504 = vpop.f32.mrf.mxu0
    %v5505 = vadd.f32 0.0, %v5504
    %v5506 = vpop.f32.mrf.mxu0
    %5507 = vdwg.mxu0
    %5508 = vmatpush.bf16.msra.mxu0 %v482
    %5509 = vmatpush.bf16.msra.mxu0 %v478
    %5510 = vmatpush.bf16.msra.mxu0 %v474
    %5511 = vmatpush.bf16.msra.mxu0 %v470
    %5512 = vmatpush.bf16.msra.mxu0 %v466
    %5513 = vmatpush.bf16.msra.mxu0 %v462
    %5514 = vmatpush.bf16.msra.mxu0 %v458
    %5515 = vmatpush.bf16.msra.mxu0 %v454
    %5516 = vmatmul.bf16.gmra.mxu0 %v5373
    %v5517 = vpop.f32.mrf.mxu0
    %v5518 = vadd.f32 %v5505, %v5517
    %v5519 = vpop.f32.mrf.mxu0
    %5520 = vdwg.mxu0
    %5521 = vmatpush.bf16.msra.mxu0 %v514
    %5522 = vmatpush.bf16.msra.mxu0 %v510
    %5523 = vmatpush.bf16.msra.mxu0 %v506
    %5524 = vmatpush.bf16.msra.mxu0 %v502
    %5525 = vmatpush.bf16.msra.mxu0 %v498
    %5526 = vmatpush.bf16.msra.mxu0 %v494
    %5527 = vmatpush.bf16.msra.mxu0 %v490
    %5528 = vmatpush.bf16.msra.mxu0 %v486
    %5529 = vmatmul.bf16.gmra.mxu0 %v5374
    %v5530 = vpop.f32.mrf.mxu0
    %v5531 = vadd.f32 %v5518, %v5530
    %v5532 = vpop.f32.mrf.mxu0
    %5533 = vdwg.mxu0
    %v5534 = vmax.f32 %v5414, 0.0
    %v5535 = vmax.f32 %v5453, 0.0
    %v5536 = vmax.f32 %v5492, 0.0
    %v5537 = vmax.f32 %v5531, 0.0
    %v5538 = vpack.c.bf16 %v5534, %v5534
    %v5539 = vpack.c.bf16 %v5535, %v5535
    %v5540 = vpack.c.bf16 %v5536, %v5536
    %v5541 = vpack.c.bf16 %v5537, %v5537
    %s5542 = scalar_lea.vmem %s2, 2400
    %v5543 = vld [vmem:[%s5542] sm:$0xf]
    %v5544 = vld [vmem:[%s5542 + $0x4] sm:$0xf]
    %v5545 = vld [vmem:[%s5542 + $0x8] sm:$0xf]
    %v5546 = vld [vmem:[%s5542 + $0xc] sm:$0xf]
    %v5547 = vld [vmem:[%s5542 + $0x10] sm:$0xf]
    %v5548 = vld [vmem:[%s5542 + $0x14] sm:$0xf]
    %v5549 = vld [vmem:[%s5542 + $0x18] sm:$0xf]
    %v5550 = vld [vmem:[%s5542 + $0x1c] sm:$0xf]
    %v5551 = vld [vmem:[%s5542 + $0x20] sm:$0xf]
    %v5552 = vld [vmem:[%s5542 + $0x24] sm:$0xf]
    %v5553 = vld [vmem:[%s5542 + $0x28] sm:$0xf]
    %v5554 = vld [vmem:[%s5542 + $0x2c] sm:$0xf]
    %v5555 = vld [vmem:[%s5542 + $0x30] sm:$0xf]
    %v5556 = vld [vmem:[%s5542 + $0x34] sm:$0xf]
    %v5557 = vld [vmem:[%s5542 + $0x38] sm:$0xf]
    %v5558 = vld [vmem:[%s5542 + $0x3c] sm:$0xf]
    %v5559 = vld [vmem:[%s5542 + $0x40] sm:$0xf]
    %v5560 = vld [vmem:[%s5542 + $0x44] sm:$0xf]
    %v5561 = vld [vmem:[%s5542 + $0x48] sm:$0xf]
    %v5562 = vld [vmem:[%s5542 + $0x4c] sm:$0xf]
    %v5563 = vld [vmem:[%s5542 + $0x50] sm:$0xf]
    %v5564 = vld [vmem:[%s5542 + $0x54] sm:$0xf]
    %v5565 = vld [vmem:[%s5542 + $0x58] sm:$0xf]
    %v5566 = vld [vmem:[%s5542 + $0x5c] sm:$0xf]
    %v5567 = vld [vmem:[%s5542 + $0x60] sm:$0xf]
    %v5568 = vld [vmem:[%s5542 + $0x64] sm:$0xf]
    %v5569 = vld [vmem:[%s5542 + $0x68] sm:$0xf]
    %v5570 = vld [vmem:[%s5542 + $0x6c] sm:$0xf]
    %v5571 = vld [vmem:[%s5542 + $0x70] sm:$0xf]
    %v5572 = vld [vmem:[%s5542 + $0x74] sm:$0xf]
    %v5573 = vld [vmem:[%s5542 + $0x78] sm:$0xf]
    %v5574 = vld [vmem:[%s5542 + $0x7c] sm:$0xf]
    %v5575 = vld [vmem:[%s5542 + $0x80] sm:$0xf]
    %v5576 = vld [vmem:[%s5542 + $0x84] sm:$0xf]
    %v5577 = vld [vmem:[%s5542 + $0x88] sm:$0xf]
    %v5578 = vld [vmem:[%s5542 + $0x8c] sm:$0xf]
    %v5579 = vld [vmem:[%s5542 + $0x90] sm:$0xf]
    %v5580 = vld [vmem:[%s5542 + $0x94] sm:$0xf]
    %v5581 = vld [vmem:[%s5542 + $0x98] sm:$0xf]
    %v5582 = vld [vmem:[%s5542 + $0x9c] sm:$0xf]
    %v5583 = vld [vmem:[%s5542 + $0xa0] sm:$0xf]
    %v5584 = vld [vmem:[%s5542 + $0xa4] sm:$0xf]
    %v5585 = vld [vmem:[%s5542 + $0xa8] sm:$0xf]
    %v5586 = vld [vmem:[%s5542 + $0xac] sm:$0xf]
    %v5587 = vld [vmem:[%s5542 + $0xb0] sm:$0xf]
    %v5588 = vld [vmem:[%s5542 + $0xb4] sm:$0xf]
    %v5589 = vld [vmem:[%s5542 + $0xb8] sm:$0xf]
    %v5590 = vld [vmem:[%s5542 + $0xbc] sm:$0xf]
    %v5591 = vld [vmem:[%s5542 + $0xc0] sm:$0xf]
    %v5592 = vld [vmem:[%s5542 + $0xc4] sm:$0xf]
    %v5593 = vld [vmem:[%s5542 + $0xc8] sm:$0xf]
    %v5594 = vld [vmem:[%s5542 + $0xcc] sm:$0xf]
    %v5595 = vld [vmem:[%s5542 + $0xd0] sm:$0xf]
    %v5596 = vld [vmem:[%s5542 + $0xd4] sm:$0xf]
    %v5597 = vld [vmem:[%s5542 + $0xd8] sm:$0xf]
    %v5598 = vld [vmem:[%s5542 + $0xdc] sm:$0xf]
    %v5599 = vld [vmem:[%s5542 + $0xe0] sm:$0xf]
    %v5600 = vld [vmem:[%s5542 + $0xe4] sm:$0xf]
    %v5601 = vld [vmem:[%s5542 + $0xe8] sm:$0xf]
    %v5602 = vld [vmem:[%s5542 + $0xec] sm:$0x3]
    %v5663 = vunpack.c.l.b16 %v5543
    %v5664 = vunpack.c.l.b16 %v5544
    %v5665 = vunpack.c.l.b16 %v5545
    %v5666 = vunpack.c.l.b16 %v5546
    %v5667 = vunpack.c.l.b16 %v5547
    %v5668 = vunpack.c.l.b16 %v5548
    %v5669 = vunpack.c.l.b16 %v5549
    %v5670 = vunpack.c.l.b16 %v5550
    %v5671 = vunpack.c.l.b16 %v5551
    %v5672 = vunpack.c.l.b16 %v5552
    %v5673 = vunpack.c.l.b16 %v5553
    %v5674 = vunpack.c.l.b16 %v5554
    %v5675 = vunpack.c.l.b16 %v5555
    %v5676 = vunpack.c.l.b16 %v5556
    %v5677 = vunpack.c.l.b16 %v5557
    %v5678 = vunpack.c.l.b16 %v5558
    %v5679 = vunpack.c.l.b16 %v5559
    %v5680 = vunpack.c.l.b16 %v5560
    %v5681 = vunpack.c.l.b16 %v5561
    %v5682 = vunpack.c.l.b16 %v5562
    %v5683 = vunpack.c.l.b16 %v5563
    %v5684 = vunpack.c.l.b16 %v5564
    %v5685 = vunpack.c.l.b16 %v5565
    %v5686 = vunpack.c.l.b16 %v5566
    %v5687 = vunpack.c.l.b16 %v5567
    %v5688 = vunpack.c.l.b16 %v5568
    %v5689 = vunpack.c.l.b16 %v5569
    %v5690 = vunpack.c.l.b16 %v5570
    %v5691 = vunpack.c.l.b16 %v5571
    %v5692 = vunpack.c.l.b16 %v5572
    %v5693 = vunpack.c.l.b16 %v5573
    %v5694 = vunpack.c.l.b16 %v5574
    %v5695 = vunpack.c.l.b16 %v5575
    %v5696 = vunpack.c.l.b16 %v5576
    %v5697 = vunpack.c.l.b16 %v5577
    %v5698 = vunpack.c.l.b16 %v5578
    %v5699 = vunpack.c.l.b16 %v5579
    %v5700 = vunpack.c.l.b16 %v5580
    %v5701 = vunpack.c.l.b16 %v5581
    %v5702 = vunpack.c.l.b16 %v5582
    %v5703 = vunpack.c.l.b16 %v5583
    %v5704 = vunpack.c.l.b16 %v5584
    %v5705 = vunpack.c.l.b16 %v5585
    %v5706 = vunpack.c.l.b16 %v5586
    %v5707 = vunpack.c.l.b16 %v5587
    %v5708 = vunpack.c.l.b16 %v5588
    %v5709 = vunpack.c.l.b16 %v5589
    %v5710 = vunpack.c.l.b16 %v5590
    %v5711 = vunpack.c.l.b16 %v5591
    %v5712 = vunpack.c.l.b16 %v5592
    %v5713 = vunpack.c.l.b16 %v5593
    %v5714 = vunpack.c.l.b16 %v5594
    %v5715 = vunpack.c.l.b16 %v5595
    %v5716 = vunpack.c.l.b16 %v5596
    %v5717 = vunpack.c.l.b16 %v5597
    %v5718 = vunpack.c.l.b16 %v5598
    %v5719 = vunpack.c.l.b16 %v5599
    %v5720 = vunpack.c.l.b16 %v5600
    %v5721 = vunpack.c.l.b16 %v5601
    %v5722 = vunpack.c.l.b16 %v5602
    %v5723 = vpack.c.b16 %v5664, %v5663
    %v5724 = vpack.c.b16 %v5666, %v5665
    %v5725 = vpack.c.b16 %v5668, %v5667
    %v5726 = vpack.c.b16 %v5670, %v5669
    %v5727 = vpack.c.b16 %v5672, %v5671
    %v5728 = vpack.c.b16 %v5674, %v5673
    %v5729 = vpack.c.b16 %v5676, %v5675
    %v5730 = vpack.c.b16 %v5678, %v5677
    %v5731 = vpack.c.b16 %v5680, %v5679
    %v5732 = vpack.c.b16 %v5682, %v5681
    %v5733 = vpack.c.b16 %v5684, %v5683
    %v5734 = vpack.c.b16 %v5686, %v5685
    %v5735 = vpack.c.b16 %v5688, %v5687
    %v5736 = vpack.c.b16 %v5690, %v5689
    %v5737 = vpack.c.b16 %v5692, %v5691
    %v5738 = vpack.c.b16 %v5694, %v5693
    %v5739 = vpack.c.b16 %v5696, %v5695
    %v5740 = vpack.c.b16 %v5698, %v5697
    %v5741 = vpack.c.b16 %v5700, %v5699
    %v5742 = vpack.c.b16 %v5702, %v5701
    %v5743 = vpack.c.b16 %v5704, %v5703
    %v5744 = vpack.c.b16 %v5706, %v5705
    %v5745 = vpack.c.b16 %v5708, %v5707
    %v5746 = vpack.c.b16 %v5710, %v5709
    %v5747 = vpack.c.b16 %v5712, %v5711
    %v5748 = vpack.c.b16 %v5714, %v5713
    %v5749 = vpack.c.b16 %v5716, %v5715
    %v5750 = vpack.c.b16 %v5718, %v5717
    %v5751 = vpack.c.b16 %v5720, %v5719
    %v5752 = vpack.c.b16 %v5722, %v5721
    %v5783 = vsel %vm1492, %v5541, 0
    %v5786 = vsel %vm1496, %v5752, 0
    %5788 = vmatpush.bf16.msra.mxu0 %v5730
    %5789 = vmatpush.bf16.msra.mxu0 %v5729
    %5790 = vmatpush.bf16.msra.mxu0 %v5728
    %5791 = vmatpush.bf16.msra.mxu0 %v5727
    %5792 = vmatpush.bf16.msra.mxu0 %v5726
    %5793 = vmatpush.bf16.msra.mxu0 %v5725
    %5794 = vmatpush.bf16.msra.mxu0 %v5724
    %5795 = vmatpush.bf16.msra.mxu0 %v5723
    %5796 = vmatmul.bf16.gmra.mxu0 %v5538
    %v5797 = vpop.f32.mrf.mxu0
    %v5798 = vadd.f32 0.0, %v5797
    %v5799 = vpop.f32.mrf.mxu0
    %5800 = vdwg.mxu0
    %5801 = vmatpush.bf16.msra.mxu0 %v5738
    %5802 = vmatpush.bf16.msra.mxu0 %v5737
    %5803 = vmatpush.bf16.msra.mxu0 %v5736
    %5804 = vmatpush.bf16.msra.mxu0 %v5735
    %5805 = vmatpush.bf16.msra.mxu0 %v5734
    %5806 = vmatpush.bf16.msra.mxu0 %v5733
    %5807 = vmatpush.bf16.msra.mxu0 %v5732
    %5808 = vmatpush.bf16.msra.mxu0 %v5731
    %5809 = vmatmul.bf16.gmra.mxu0 %v5539
    %v5810 = vpop.f32.mrf.mxu0
    %v5811 = vadd.f32 %v5798, %v5810
    %v5812 = vpop.f32.mrf.mxu0
    %5813 = vdwg.mxu0
    %5814 = vmatpush.bf16.msra.mxu0 %v5746
    %5815 = vmatpush.bf16.msra.mxu0 %v5745
    %5816 = vmatpush.bf16.msra.mxu0 %v5744
    %5817 = vmatpush.bf16.msra.mxu0 %v5743
    %5818 = vmatpush.bf16.msra.mxu0 %v5742
    %5819 = vmatpush.bf16.msra.mxu0 %v5741
    %5820 = vmatpush.bf16.msra.mxu0 %v5740
    %5821 = vmatpush.bf16.msra.mxu0 %v5739
    %5822 = vmatmul.bf16.gmra.mxu0 %v5540
    %v5823 = vpop.f32.mrf.mxu0
    %v5824 = vadd.f32 %v5811, %v5823
    %v5825 = vpop.f32.mrf.mxu0
    %5826 = vdwg.mxu0
    %5827 = vmatpush.bf16.msra.mxu0 0
    %5828 = vmatpush.bf16.msra.mxu0 0
    %5829 = vmatpush.bf16.msra.mxu0 %v5786
    %5830 = vmatpush.bf16.msra.mxu0 %v5751
    %5831 = vmatpush.bf16.msra.mxu0 %v5750
    %5832 = vmatpush.bf16.msra.mxu0 %v5749
    %5833 = vmatpush.bf16.msra.mxu0 %v5748
    %5834 = vmatpush.bf16.msra.mxu0 %v5747
    %5835 = vmatmul.bf16.gmra.mxu0 %v5783
    %v5836 = vpop.f32.mrf.mxu0
    %v5837 = vadd.f32 %v5824, %v5836
    %v5838 = vpop.f32.mrf.mxu0
    %5839 = vdwg.mxu0
    %v5840 = vadd.f32 %v4886, %v5837
    %s5841 = scalar_lea.vmem %s0, 132
    %v5842 = vld [vmem:[%s5841] sm:$0xff]
    %v5843 = vld [vmem:[%s5841 + $0x8] sm:$0xf]
    %v5846 = vunpack.c.l.b16 %v5842
    %v5847 = vunpack.c.h.b16 %v5842
    %v5848 = vunpack.c.l.b16 %v5843
    %v5849 = vpack.c.b16 %v5846, %v5846
    %v5850 = vpack.c.b16 %v5847, %v5847
    %v5851 = vpack.c.b16 %v5848, %v5848
    %5855 = vmatpush.bf16.msra.mxu0 %v447
    %5856 = vmatpush.bf16.msra.mxu0 %v443
    %5857 = vmatpush.bf16.msra.mxu0 %v439
    %5858 = vmatpush.bf16.msra.mxu0 %v435
    %5859 = vmatpush.bf16.msra.mxu0 %v431
    %5860 = vmatpush.bf16.msra.mxu0 %v427
    %5861 = vmatpush.bf16.msra.mxu0 %v423
    %5862 = vmatpush.bf16.msra.mxu0 %v419
    %5863 = vmatmul.bf16.gmra.mxu0 %v5849
    %v5864 = vpop.f32.mrf.mxu0
    %v5865 = vadd.f32 0.0, %v5864
    %v5866 = vpop.f32.mrf.mxu0
    %5867 = vdwg.mxu0
    %5868 = vmatpush.bf16.msra.mxu0 %v479
    %5869 = vmatpush.bf16.msra.mxu0 %v475
    %5870 = vmatpush.bf16.msra.mxu0 %v471
    %5871 = vmatpush.bf16.msra.mxu0 %v467
    %5872 = vmatpush.bf16.msra.mxu0 %v463
    %5873 = vmatpush.bf16.msra.mxu0 %v459
    %5874 = vmatpush.bf16.msra.mxu0 %v455
    %5875 = vmatpush.bf16.msra.mxu0 %v451
    %5876 = vmatmul.bf16.gmra.mxu0 %v5850
    %v5877 = vpop.f32.mrf.mxu0
    %v5878 = vadd.f32 %v5865, %v5877
    %v5879 = vpop.f32.mrf.mxu0
    %5880 = vdwg.mxu0
    %5881 = vmatpush.bf16.msra.mxu0 %v511
    %5882 = vmatpush.bf16.msra.mxu0 %v507
    %5883 = vmatpush.bf16.msra.mxu0 %v503
    %5884 = vmatpush.bf16.msra.mxu0 %v499
    %5885 = vmatpush.bf16.msra.mxu0 %v495
    %5886 = vmatpush.bf16.msra.mxu0 %v491
    %5887 = vmatpush.bf16.msra.mxu0 %v487
    %5888 = vmatpush.bf16.msra.mxu0 %v483
    %5889 = vmatmul.bf16.gmra.mxu0 %v5851
    %v5890 = vpop.f32.mrf.mxu0
    %v5891 = vadd.f32 %v5878, %v5890
    %v5892 = vpop.f32.mrf.mxu0
    %5893 = vdwg.mxu0
    %5894 = vmatpush.bf16.msra.mxu0 %v448
    %5895 = vmatpush.bf16.msra.mxu0 %v444
    %5896 = vmatpush.bf16.msra.mxu0 %v440
    %5897 = vmatpush.bf16.msra.mxu0 %v436
    %5898 = vmatpush.bf16.msra.mxu0 %v432
    %5899 = vmatpush.bf16.msra.mxu0 %v428
    %5900 = vmatpush.bf16.msra.mxu0 %v424
    %5901 = vmatpush.bf16.msra.mxu0 %v420
    %5902 = vmatmul.bf16.gmra.mxu0 %v5849
    %v5903 = vpop.f32.mrf.mxu0
    %v5904 = vadd.f32 0.0, %v5903
    %v5905 = vpop.f32.mrf.mxu0
    %5906 = vdwg.mxu0
    %5907 = vmatpush.bf16.msra.mxu0 %v480
    %5908 = vmatpush.bf16.msra.mxu0 %v476
    %5909 = vmatpush.bf16.msra.mxu0 %v472
    %5910 = vmatpush.bf16.msra.mxu0 %v468
    %5911 = vmatpush.bf16.msra.mxu0 %v464
    %5912 = vmatpush.bf16.msra.mxu0 %v460
    %5913 = vmatpush.bf16.msra.mxu0 %v456
    %5914 = vmatpush.bf16.msra.mxu0 %v452
    %5915 = vmatmul.bf16.gmra.mxu0 %v5850
    %v5916 = vpop.f32.mrf.mxu0
    %v5917 = vadd.f32 %v5904, %v5916
    %v5918 = vpop.f32.mrf.mxu0
    %5919 = vdwg.mxu0
    %5920 = vmatpush.bf16.msra.mxu0 %v512
    %5921 = vmatpush.bf16.msra.mxu0 %v508
    %5922 = vmatpush.bf16.msra.mxu0 %v504
    %5923 = vmatpush.bf16.msra.mxu0 %v500
    %5924 = vmatpush.bf16.msra.mxu0 %v496
    %5925 = vmatpush.bf16.msra.mxu0 %v492
    %5926 = vmatpush.bf16.msra.mxu0 %v488
    %5927 = vmatpush.bf16.msra.mxu0 %v484
    %5928 = vmatmul.bf16.gmra.mxu0 %v5851
    %v5929 = vpop.f32.mrf.mxu0
    %v5930 = vadd.f32 %v5917, %v5929
    %v5931 = vpop.f32.mrf.mxu0
    %5932 = vdwg.mxu0
    %5933 = vmatpush.bf16.msra.mxu0 %v449
    %5934 = vmatpush.bf16.msra.mxu0 %v445
    %5935 = vmatpush.bf16.msra.mxu0 %v441
    %5936 = vmatpush.bf16.msra.mxu0 %v437
    %5937 = vmatpush.bf16.msra.mxu0 %v433
    %5938 = vmatpush.bf16.msra.mxu0 %v429
    %5939 = vmatpush.bf16.msra.mxu0 %v425
    %5940 = vmatpush.bf16.msra.mxu0 %v421
    %5941 = vmatmul.bf16.gmra.mxu0 %v5849
    %v5942 = vpop.f32.mrf.mxu0
    %v5943 = vadd.f32 0.0, %v5942
    %v5944 = vpop.f32.mrf.mxu0
    %5945 = vdwg.mxu0
    %5946 = vmatpush.bf16.msra.mxu0 %v481
    %5947 = vmatpush.bf16.msra.mxu0 %v477
    %5948 = vmatpush.bf16.msra.mxu0 %v473
    %5949 = vmatpush.bf16.msra.mxu0 %v469
    %5950 = vmatpush.bf16.msra.mxu0 %v465
    %5951 = vmatpush.bf16.msra.mxu0 %v461
    %5952 = vmatpush.bf16.msra.mxu0 %v457
    %5953 = vmatpush.bf16.msra.mxu0 %v453
    %5954 = vmatmul.bf16.gmra.mxu0 %v5850
    %v5955 = vpop.f32.mrf.mxu0
    %v5956 = vadd.f32 %v5943, %v5955
    %v5957 = vpop.f32.mrf.mxu0
    %5958 = vdwg.mxu0
    %5959 = vmatpush.bf16.msra.mxu0 %v513
    %5960 = vmatpush.bf16.msra.mxu0 %v509
    %5961 = vmatpush.bf16.msra.mxu0 %v505
    %5962 = vmatpush.bf16.msra.mxu0 %v501
    %5963 = vmatpush.bf16.msra.mxu0 %v497
    %5964 = vmatpush.bf16.msra.mxu0 %v493
    %5965 = vmatpush.bf16.msra.mxu0 %v489
    %5966 = vmatpush.bf16.msra.mxu0 %v485
    %5967 = vmatmul.bf16.gmra.mxu0 %v5851
    %v5968 = vpop.f32.mrf.mxu0
    %v5969 = vadd.f32 %v5956, %v5968
    %v5970 = vpop.f32.mrf.mxu0
    %5971 = vdwg.mxu0
    %5972 = vmatpush.bf16.msra.mxu0 %v450
    %5973 = vmatpush.bf16.msra.mxu0 %v446
    %5974 = vmatpush.bf16.msra.mxu0 %v442
    %5975 = vmatpush.bf16.msra.mxu0 %v438
    %5976 = vmatpush.bf16.msra.mxu0 %v434
    %5977 = vmatpush.bf16.msra.mxu0 %v430
    %5978 = vmatpush.bf16.msra.mxu0 %v426
    %5979 = vmatpush.bf16.msra.mxu0 %v422
    %5980 = vmatmul.bf16.gmra.mxu0 %v5849
    %v5981 = vpop.f32.mrf.mxu0
    %v5982 = vadd.f32 0.0, %v5981
    %v5983 = vpop.f32.mrf.mxu0
    %5984 = vdwg.mxu0
    %5985 = vmatpush.bf16.msra.mxu0 %v482
    %5986 = vmatpush.bf16.msra.mxu0 %v478
    %5987 = vmatpush.bf16.msra.mxu0 %v474
    %5988 = vmatpush.bf16.msra.mxu0 %v470
    %5989 = vmatpush.bf16.msra.mxu0 %v466
    %5990 = vmatpush.bf16.msra.mxu0 %v462
    %5991 = vmatpush.bf16.msra.mxu0 %v458
    %5992 = vmatpush.bf16.msra.mxu0 %v454
    %5993 = vmatmul.bf16.gmra.mxu0 %v5850
    %v5994 = vpop.f32.mrf.mxu0
    %v5995 = vadd.f32 %v5982, %v5994
    %v5996 = vpop.f32.mrf.mxu0
    %5997 = vdwg.mxu0
    %5998 = vmatpush.bf16.msra.mxu0 %v514
    %5999 = vmatpush.bf16.msra.mxu0 %v510
    %6000 = vmatpush.bf16.msra.mxu0 %v506
    %6001 = vmatpush.bf16.msra.mxu0 %v502
    %6002 = vmatpush.bf16.msra.mxu0 %v498
    %6003 = vmatpush.bf16.msra.mxu0 %v494
    %6004 = vmatpush.bf16.msra.mxu0 %v490
    %6005 = vmatpush.bf16.msra.mxu0 %v486
    %6006 = vmatmul.bf16.gmra.mxu0 %v5851
    %v6007 = vpop.f32.mrf.mxu0
    %v6008 = vadd.f32 %v5995, %v6007
    %v6009 = vpop.f32.mrf.mxu0
    %6010 = vdwg.mxu0
    %v6011 = vmax.f32 %v5891, 0.0
    %v6012 = vmax.f32 %v5930, 0.0
    %v6013 = vmax.f32 %v5969, 0.0
    %v6014 = vmax.f32 %v6008, 0.0
    %v6015 = vpack.c.bf16 %v6011, %v6011
    %v6016 = vpack.c.bf16 %v6012, %v6012
    %v6017 = vpack.c.bf16 %v6013, %v6013
    %v6018 = vpack.c.bf16 %v6014, %v6014
    %s6019 = scalar_lea.vmem %s2, 2640
    %v6020 = vld [vmem:[%s6019] sm:$0xf]
    %v6021 = vld [vmem:[%s6019 + $0x4] sm:$0xf]
    %v6022 = vld [vmem:[%s6019 + $0x8] sm:$0xf]
    %v6023 = vld [vmem:[%s6019 + $0xc] sm:$0xf]
    %v6024 = vld [vmem:[%s6019 + $0x10] sm:$0xf]
    %v6025 = vld [vmem:[%s6019 + $0x14] sm:$0xf]
    %v6026 = vld [vmem:[%s6019 + $0x18] sm:$0xf]
    %v6027 = vld [vmem:[%s6019 + $0x1c] sm:$0xf]
    %v6028 = vld [vmem:[%s6019 + $0x20] sm:$0xf]
    %v6029 = vld [vmem:[%s6019 + $0x24] sm:$0xf]
    %v6030 = vld [vmem:[%s6019 + $0x28] sm:$0xf]
    %v6031 = vld [vmem:[%s6019 + $0x2c] sm:$0xf]
    %v6032 = vld [vmem:[%s6019 + $0x30] sm:$0xf]
    %v6033 = vld [vmem:[%s6019 + $0x34] sm:$0xf]
    %v6034 = vld [vmem:[%s6019 + $0x38] sm:$0xf]
    %v6035 = vld [vmem:[%s6019 + $0x3c] sm:$0xf]
    %v6036 = vld [vmem:[%s6019 + $0x40] sm:$0xf]
    %v6037 = vld [vmem:[%s6019 + $0x44] sm:$0xf]
    %v6038 = vld [vmem:[%s6019 + $0x48] sm:$0xf]
    %v6039 = vld [vmem:[%s6019 + $0x4c] sm:$0xf]
    %v6040 = vld [vmem:[%s6019 + $0x50] sm:$0xf]
    %v6041 = vld [vmem:[%s6019 + $0x54] sm:$0xf]
    %v6042 = vld [vmem:[%s6019 + $0x58] sm:$0xf]
    %v6043 = vld [vmem:[%s6019 + $0x5c] sm:$0xf]
    %v6044 = vld [vmem:[%s6019 + $0x60] sm:$0xf]
    %v6045 = vld [vmem:[%s6019 + $0x64] sm:$0xf]
    %v6046 = vld [vmem:[%s6019 + $0x68] sm:$0xf]
    %v6047 = vld [vmem:[%s6019 + $0x6c] sm:$0xf]
    %v6048 = vld [vmem:[%s6019 + $0x70] sm:$0xf]
    %v6049 = vld [vmem:[%s6019 + $0x74] sm:$0xf]
    %v6050 = vld [vmem:[%s6019 + $0x78] sm:$0xf]
    %v6051 = vld [vmem:[%s6019 + $0x7c] sm:$0xf]
    %v6052 = vld [vmem:[%s6019 + $0x80] sm:$0xf]
    %v6053 = vld [vmem:[%s6019 + $0x84] sm:$0xf]
    %v6054 = vld [vmem:[%s6019 + $0x88] sm:$0xf]
    %v6055 = vld [vmem:[%s6019 + $0x8c] sm:$0xf]
    %v6056 = vld [vmem:[%s6019 + $0x90] sm:$0xf]
    %v6057 = vld [vmem:[%s6019 + $0x94] sm:$0xf]
    %v6058 = vld [vmem:[%s6019 + $0x98] sm:$0xf]
    %v6059 = vld [vmem:[%s6019 + $0x9c] sm:$0xf]
    %v6060 = vld [vmem:[%s6019 + $0xa0] sm:$0xf]
    %v6061 = vld [vmem:[%s6019 + $0xa4] sm:$0xf]
    %v6062 = vld [vmem:[%s6019 + $0xa8] sm:$0xf]
    %v6063 = vld [vmem:[%s6019 + $0xac] sm:$0xf]
    %v6064 = vld [vmem:[%s6019 + $0xb0] sm:$0xf]
    %v6065 = vld [vmem:[%s6019 + $0xb4] sm:$0xf]
    %v6066 = vld [vmem:[%s6019 + $0xb8] sm:$0xf]
    %v6067 = vld [vmem:[%s6019 + $0xbc] sm:$0xf]
    %v6068 = vld [vmem:[%s6019 + $0xc0] sm:$0xf]
    %v6069 = vld [vmem:[%s6019 + $0xc4] sm:$0xf]
    %v6070 = vld [vmem:[%s6019 + $0xc8] sm:$0xf]
    %v6071 = vld [vmem:[%s6019 + $0xcc] sm:$0xf]
    %v6072 = vld [vmem:[%s6019 + $0xd0] sm:$0xf]
    %v6073 = vld [vmem:[%s6019 + $0xd4] sm:$0xf]
    %v6074 = vld [vmem:[%s6019 + $0xd8] sm:$0xf]
    %v6075 = vld [vmem:[%s6019 + $0xdc] sm:$0xf]
    %v6076 = vld [vmem:[%s6019 + $0xe0] sm:$0xf]
    %v6077 = vld [vmem:[%s6019 + $0xe4] sm:$0xf]
    %v6078 = vld [vmem:[%s6019 + $0xe8] sm:$0xf]
    %v6079 = vld [vmem:[%s6019 + $0xec] sm:$0x3]
    %v6140 = vunpack.c.l.b16 %v6020
    %v6141 = vunpack.c.l.b16 %v6021
    %v6142 = vunpack.c.l.b16 %v6022
    %v6143 = vunpack.c.l.b16 %v6023
    %v6144 = vunpack.c.l.b16 %v6024
    %v6145 = vunpack.c.l.b16 %v6025
    %v6146 = vunpack.c.l.b16 %v6026
    %v6147 = vunpack.c.l.b16 %v6027
    %v6148 = vunpack.c.l.b16 %v6028
    %v6149 = vunpack.c.l.b16 %v6029
    %v6150 = vunpack.c.l.b16 %v6030
    %v6151 = vunpack.c.l.b16 %v6031
    %v6152 = vunpack.c.l.b16 %v6032
    %v6153 = vunpack.c.l.b16 %v6033
    %v6154 = vunpack.c.l.b16 %v6034
    %v6155 = vunpack.c.l.b16 %v6035
    %v6156 = vunpack.c.l.b16 %v6036
    %v6157 = vunpack.c.l.b16 %v6037
    %v6158 = vunpack.c.l.b16 %v6038
    %v6159 = vunpack.c.l.b16 %v6039
    %v6160 = vunpack.c.l.b16 %v6040
    %v6161 = vunpack.c.l.b16 %v6041
    %v6162 = vunpack.c.l.b16 %v6042
    %v6163 = vunpack.c.l.b16 %v6043
    %v6164 = vunpack.c.l.b16 %v6044
    %v6165 = vunpack.c.l.b16 %v6045
    %v6166 = vunpack.c.l.b16 %v6046
    %v6167 = vunpack.c.l.b16 %v6047
    %v6168 = vunpack.c.l.b16 %v6048
    %v6169 = vunpack.c.l.b16 %v6049
    %v6170 = vunpack.c.l.b16 %v6050
    %v6171 = vunpack.c.l.b16 %v6051
    %v6172 = vunpack.c.l.b16 %v6052
    %v6173 = vunpack.c.l.b16 %v6053
    %v6174 = vunpack.c.l.b16 %v6054
    %v6175 = vunpack.c.l.b16 %v6055
    %v6176 = vunpack.c.l.b16 %v6056
    %v6177 = vunpack.c.l.b16 %v6057
    %v6178 = vunpack.c.l.b16 %v6058
    %v6179 = vunpack.c.l.b16 %v6059
    %v6180 = vunpack.c.l.b16 %v6060
    %v6181 = vunpack.c.l.b16 %v6061
    %v6182 = vunpack.c.l.b16 %v6062
    %v6183 = vunpack.c.l.b16 %v6063
    %v6184 = vunpack.c.l.b16 %v6064
    %v6185 = vunpack.c.l.b16 %v6065
    %v6186 = vunpack.c.l.b16 %v6066
    %v6187 = vunpack.c.l.b16 %v6067
    %v6188 = vunpack.c.l.b16 %v6068
    %v6189 = vunpack.c.l.b16 %v6069
    %v6190 = vunpack.c.l.b16 %v6070
    %v6191 = vunpack.c.l.b16 %v6071
    %v6192 = vunpack.c.l.b16 %v6072
    %v6193 = vunpack.c.l.b16 %v6073
    %v6194 = vunpack.c.l.b16 %v6074
    %v6195 = vunpack.c.l.b16 %v6075
    %v6196 = vunpack.c.l.b16 %v6076
    %v6197 = vunpack.c.l.b16 %v6077
    %v6198 = vunpack.c.l.b16 %v6078
    %v6199 = vunpack.c.l.b16 %v6079
    %v6200 = vpack.c.b16 %v6141, %v6140
    %v6201 = vpack.c.b16 %v6143, %v6142
    %v6202 = vpack.c.b16 %v6145, %v6144
    %v6203 = vpack.c.b16 %v6147, %v6146
    %v6204 = vpack.c.b16 %v6149, %v6148
    %v6205 = vpack.c.b16 %v6151, %v6150
    %v6206 = vpack.c.b16 %v6153, %v6152
    %v6207 = vpack.c.b16 %v6155, %v6154
    %v6208 = vpack.c.b16 %v6157, %v6156
    %v6209 = vpack.c.b16 %v6159, %v6158
    %v6210 = vpack.c.b16 %v6161, %v6160
    %v6211 = vpack.c.b16 %v6163, %v6162
    %v6212 = vpack.c.b16 %v6165, %v6164
    %v6213 = vpack.c.b16 %v6167, %v6166
    %v6214 = vpack.c.b16 %v6169, %v6168
    %v6215 = vpack.c.b16 %v6171, %v6170
    %v6216 = vpack.c.b16 %v6173, %v6172
    %v6217 = vpack.c.b16 %v6175, %v6174
    %v6218 = vpack.c.b16 %v6177, %v6176
    %v6219 = vpack.c.b16 %v6179, %v6178
    %v6220 = vpack.c.b16 %v6181, %v6180
    %v6221 = vpack.c.b16 %v6183, %v6182
    %v6222 = vpack.c.b16 %v6185, %v6184
    %v6223 = vpack.c.b16 %v6187, %v6186
    %v6224 = vpack.c.b16 %v6189, %v6188
    %v6225 = vpack.c.b16 %v6191, %v6190
    %v6226 = vpack.c.b16 %v6193, %v6192
    %v6227 = vpack.c.b16 %v6195, %v6194
    %v6228 = vpack.c.b16 %v6197, %v6196
    %v6229 = vpack.c.b16 %v6199, %v6198
    %v6260 = vsel %vm1492, %v6018, 0
    %v6263 = vsel %vm1496, %v6229, 0
    %6265 = vmatpush.bf16.msra.mxu0 %v6207
    %6266 = vmatpush.bf16.msra.mxu0 %v6206
    %6267 = vmatpush.bf16.msra.mxu0 %v6205
    %6268 = vmatpush.bf16.msra.mxu0 %v6204
    %6269 = vmatpush.bf16.msra.mxu0 %v6203
    %6270 = vmatpush.bf16.msra.mxu0 %v6202
    %6271 = vmatpush.bf16.msra.mxu0 %v6201
    %6272 = vmatpush.bf16.msra.mxu0 %v6200
    %6273 = vmatmul.bf16.gmra.mxu0 %v6015
    %v6274 = vpop.f32.mrf.mxu0
    %v6275 = vadd.f32 0.0, %v6274
    %v6276 = vpop.f32.mrf.mxu0
    %6277 = vdwg.mxu0
    %6278 = vmatpush.bf16.msra.mxu0 %v6215
    %6279 = vmatpush.bf16.msra.mxu0 %v6214
    %6280 = vmatpush.bf16.msra.mxu0 %v6213
    %6281 = vmatpush.bf16.msra.mxu0 %v6212
    %6282 = vmatpush.bf16.msra.mxu0 %v6211
    %6283 = vmatpush.bf16.msra.mxu0 %v6210
    %6284 = vmatpush.bf16.msra.mxu0 %v6209
    %6285 = vmatpush.bf16.msra.mxu0 %v6208
    %6286 = vmatmul.bf16.gmra.mxu0 %v6016
    %v6287 = vpop.f32.mrf.mxu0
    %v6288 = vadd.f32 %v6275, %v6287
    %v6289 = vpop.f32.mrf.mxu0
    %6290 = vdwg.mxu0
    %6291 = vmatpush.bf16.msra.mxu0 %v6223
    %6292 = vmatpush.bf16.msra.mxu0 %v6222
    %6293 = vmatpush.bf16.msra.mxu0 %v6221
    %6294 = vmatpush.bf16.msra.mxu0 %v6220
    %6295 = vmatpush.bf16.msra.mxu0 %v6219
    %6296 = vmatpush.bf16.msra.mxu0 %v6218
    %6297 = vmatpush.bf16.msra.mxu0 %v6217
    %6298 = vmatpush.bf16.msra.mxu0 %v6216
    %6299 = vmatmul.bf16.gmra.mxu0 %v6017
    %v6300 = vpop.f32.mrf.mxu0
    %v6301 = vadd.f32 %v6288, %v6300
    %v6302 = vpop.f32.mrf.mxu0
    %6303 = vdwg.mxu0
    %6304 = vmatpush.bf16.msra.mxu0 0
    %6305 = vmatpush.bf16.msra.mxu0 0
    %6306 = vmatpush.bf16.msra.mxu0 %v6263
    %6307 = vmatpush.bf16.msra.mxu0 %v6228
    %6308 = vmatpush.bf16.msra.mxu0 %v6227
    %6309 = vmatpush.bf16.msra.mxu0 %v6226
    %6310 = vmatpush.bf16.msra.mxu0 %v6225
    %6311 = vmatpush.bf16.msra.mxu0 %v6224
    %6312 = vmatmul.bf16.gmra.mxu0 %v6260
    %v6313 = vpop.f32.mrf.mxu0
    %v6314 = vadd.f32 %v6301, %v6313
    %v6315 = vpop.f32.mrf.mxu0
    %6316 = vdwg.mxu0
    %v6317 = vadd.f32 %v5363, %v6314
    %s6318 = scalar_lea.vmem %s0, 144
    %v6319 = vld [vmem:[%s6318] sm:$0xff]
    %v6320 = vld [vmem:[%s6318 + $0x8] sm:$0xf]
    %v6323 = vunpack.c.l.b16 %v6319
    %v6324 = vunpack.c.h.b16 %v6319
    %v6325 = vunpack.c.l.b16 %v6320
    %v6326 = vpack.c.b16 %v6323, %v6323
    %v6327 = vpack.c.b16 %v6324, %v6324
    %v6328 = vpack.c.b16 %v6325, %v6325
    %6332 = vmatpush.bf16.msra.mxu0 %v447
    %6333 = vmatpush.bf16.msra.mxu0 %v443
    %6334 = vmatpush.bf16.msra.mxu0 %v439
    %6335 = vmatpush.bf16.msra.mxu0 %v435
    %6336 = vmatpush.bf16.msra.mxu0 %v431
    %6337 = vmatpush.bf16.msra.mxu0 %v427
    %6338 = vmatpush.bf16.msra.mxu0 %v423
    %6339 = vmatpush.bf16.msra.mxu0 %v419
    %6340 = vmatmul.bf16.gmra.mxu0 %v6326
    %v6341 = vpop.f32.mrf.mxu0
    %v6342 = vadd.f32 0.0, %v6341
    %v6343 = vpop.f32.mrf.mxu0
    %6344 = vdwg.mxu0
    %6345 = vmatpush.bf16.msra.mxu0 %v479
    %6346 = vmatpush.bf16.msra.mxu0 %v475
    %6347 = vmatpush.bf16.msra.mxu0 %v471
    %6348 = vmatpush.bf16.msra.mxu0 %v467
    %6349 = vmatpush.bf16.msra.mxu0 %v463
    %6350 = vmatpush.bf16.msra.mxu0 %v459
    %6351 = vmatpush.bf16.msra.mxu0 %v455
    %6352 = vmatpush.bf16.msra.mxu0 %v451
    %6353 = vmatmul.bf16.gmra.mxu0 %v6327
    %v6354 = vpop.f32.mrf.mxu0
    %v6355 = vadd.f32 %v6342, %v6354
    %v6356 = vpop.f32.mrf.mxu0
    %6357 = vdwg.mxu0
    %6358 = vmatpush.bf16.msra.mxu0 %v511
    %6359 = vmatpush.bf16.msra.mxu0 %v507
    %6360 = vmatpush.bf16.msra.mxu0 %v503
    %6361 = vmatpush.bf16.msra.mxu0 %v499
    %6362 = vmatpush.bf16.msra.mxu0 %v495
    %6363 = vmatpush.bf16.msra.mxu0 %v491
    %6364 = vmatpush.bf16.msra.mxu0 %v487
    %6365 = vmatpush.bf16.msra.mxu0 %v483
    %6366 = vmatmul.bf16.gmra.mxu0 %v6328
    %v6367 = vpop.f32.mrf.mxu0
    %v6368 = vadd.f32 %v6355, %v6367
    %v6369 = vpop.f32.mrf.mxu0
    %6370 = vdwg.mxu0
    %6371 = vmatpush.bf16.msra.mxu0 %v448
    %6372 = vmatpush.bf16.msra.mxu0 %v444
    %6373 = vmatpush.bf16.msra.mxu0 %v440
    %6374 = vmatpush.bf16.msra.mxu0 %v436
    %6375 = vmatpush.bf16.msra.mxu0 %v432
    %6376 = vmatpush.bf16.msra.mxu0 %v428
    %6377 = vmatpush.bf16.msra.mxu0 %v424
    %6378 = vmatpush.bf16.msra.mxu0 %v420
    %6379 = vmatmul.bf16.gmra.mxu0 %v6326
    %v6380 = vpop.f32.mrf.mxu0
    %v6381 = vadd.f32 0.0, %v6380
    %v6382 = vpop.f32.mrf.mxu0
    %6383 = vdwg.mxu0
    %6384 = vmatpush.bf16.msra.mxu0 %v480
    %6385 = vmatpush.bf16.msra.mxu0 %v476
    %6386 = vmatpush.bf16.msra.mxu0 %v472
    %6387 = vmatpush.bf16.msra.mxu0 %v468
    %6388 = vmatpush.bf16.msra.mxu0 %v464
    %6389 = vmatpush.bf16.msra.mxu0 %v460
    %6390 = vmatpush.bf16.msra.mxu0 %v456
    %6391 = vmatpush.bf16.msra.mxu0 %v452
    %6392 = vmatmul.bf16.gmra.mxu0 %v6327
    %v6393 = vpop.f32.mrf.mxu0
    %v6394 = vadd.f32 %v6381, %v6393
    %v6395 = vpop.f32.mrf.mxu0
    %6396 = vdwg.mxu0
    %6397 = vmatpush.bf16.msra.mxu0 %v512
    %6398 = vmatpush.bf16.msra.mxu0 %v508
    %6399 = vmatpush.bf16.msra.mxu0 %v504
    %6400 = vmatpush.bf16.msra.mxu0 %v500
    %6401 = vmatpush.bf16.msra.mxu0 %v496
    %6402 = vmatpush.bf16.msra.mxu0 %v492
    %6403 = vmatpush.bf16.msra.mxu0 %v488
    %6404 = vmatpush.bf16.msra.mxu0 %v484
    %6405 = vmatmul.bf16.gmra.mxu0 %v6328
    %v6406 = vpop.f32.mrf.mxu0
    %v6407 = vadd.f32 %v6394, %v6406
    %v6408 = vpop.f32.mrf.mxu0
    %6409 = vdwg.mxu0
    %6410 = vmatpush.bf16.msra.mxu0 %v449
    %6411 = vmatpush.bf16.msra.mxu0 %v445
    %6412 = vmatpush.bf16.msra.mxu0 %v441
    %6413 = vmatpush.bf16.msra.mxu0 %v437
    %6414 = vmatpush.bf16.msra.mxu0 %v433
    %6415 = vmatpush.bf16.msra.mxu0 %v429
    %6416 = vmatpush.bf16.msra.mxu0 %v425
    %6417 = vmatpush.bf16.msra.mxu0 %v421
    %6418 = vmatmul.bf16.gmra.mxu0 %v6326
    %v6419 = vpop.f32.mrf.mxu0
    %v6420 = vadd.f32 0.0, %v6419
    %v6421 = vpop.f32.mrf.mxu0
    %6422 = vdwg.mxu0
    %6423 = vmatpush.bf16.msra.mxu0 %v481
    %6424 = vmatpush.bf16.msra.mxu0 %v477
    %6425 = vmatpush.bf16.msra.mxu0 %v473
    %6426 = vmatpush.bf16.msra.mxu0 %v469
    %6427 = vmatpush.bf16.msra.mxu0 %v465
    %6428 = vmatpush.bf16.msra.mxu0 %v461
    %6429 = vmatpush.bf16.msra.mxu0 %v457
    %6430 = vmatpush.bf16.msra.mxu0 %v453
    %6431 = vmatmul.bf16.gmra.mxu0 %v6327
    %v6432 = vpop.f32.mrf.mxu0
    %v6433 = vadd.f32 %v6420, %v6432
    %v6434 = vpop.f32.mrf.mxu0
    %6435 = vdwg.mxu0
    %6436 = vmatpush.bf16.msra.mxu0 %v513
    %6437 = vmatpush.bf16.msra.mxu0 %v509
    %6438 = vmatpush.bf16.msra.mxu0 %v505
    %6439 = vmatpush.bf16.msra.mxu0 %v501
    %6440 = vmatpush.bf16.msra.mxu0 %v497
    %6441 = vmatpush.bf16.msra.mxu0 %v493
    %6442 = vmatpush.bf16.msra.mxu0 %v489
    %6443 = vmatpush.bf16.msra.mxu0 %v485
    %6444 = vmatmul.bf16.gmra.mxu0 %v6328
    %v6445 = vpop.f32.mrf.mxu0
    %v6446 = vadd.f32 %v6433, %v6445
    %v6447 = vpop.f32.mrf.mxu0
    %6448 = vdwg.mxu0
    %6449 = vmatpush.bf16.msra.mxu0 %v450
    %6450 = vmatpush.bf16.msra.mxu0 %v446
    %6451 = vmatpush.bf16.msra.mxu0 %v442
    %6452 = vmatpush.bf16.msra.mxu0 %v438
    %6453 = vmatpush.bf16.msra.mxu0 %v434
    %6454 = vmatpush.bf16.msra.mxu0 %v430
    %6455 = vmatpush.bf16.msra.mxu0 %v426
    %6456 = vmatpush.bf16.msra.mxu0 %v422
    %6457 = vmatmul.bf16.gmra.mxu0 %v6326
    %v6458 = vpop.f32.mrf.mxu0
    %v6459 = vadd.f32 0.0, %v6458
    %v6460 = vpop.f32.mrf.mxu0
    %6461 = vdwg.mxu0
    %6462 = vmatpush.bf16.msra.mxu0 %v482
    %6463 = vmatpush.bf16.msra.mxu0 %v478
    %6464 = vmatpush.bf16.msra.mxu0 %v474
    %6465 = vmatpush.bf16.msra.mxu0 %v470
    %6466 = vmatpush.bf16.msra.mxu0 %v466
    %6467 = vmatpush.bf16.msra.mxu0 %v462
    %6468 = vmatpush.bf16.msra.mxu0 %v458
    %6469 = vmatpush.bf16.msra.mxu0 %v454
    %6470 = vmatmul.bf16.gmra.mxu0 %v6327
    %v6471 = vpop.f32.mrf.mxu0
    %v6472 = vadd.f32 %v6459, %v6471
    %v6473 = vpop.f32.mrf.mxu0
    %6474 = vdwg.mxu0
    %6475 = vmatpush.bf16.msra.mxu0 %v514
    %6476 = vmatpush.bf16.msra.mxu0 %v510
    %6477 = vmatpush.bf16.msra.mxu0 %v506
    %6478 = vmatpush.bf16.msra.mxu0 %v502
    %6479 = vmatpush.bf16.msra.mxu0 %v498
    %6480 = vmatpush.bf16.msra.mxu0 %v494
    %6481 = vmatpush.bf16.msra.mxu0 %v490
    %6482 = vmatpush.bf16.msra.mxu0 %v486
    %6483 = vmatmul.bf16.gmra.mxu0 %v6328
    %v6484 = vpop.f32.mrf.mxu0
    %v6485 = vadd.f32 %v6472, %v6484
    %v6486 = vpop.f32.mrf.mxu0
    %6487 = vdwg.mxu0
    %v6488 = vmax.f32 %v6368, 0.0
    %v6489 = vmax.f32 %v6407, 0.0
    %v6490 = vmax.f32 %v6446, 0.0
    %v6491 = vmax.f32 %v6485, 0.0
    %v6492 = vpack.c.bf16 %v6488, %v6488
    %v6493 = vpack.c.bf16 %v6489, %v6489
    %v6494 = vpack.c.bf16 %v6490, %v6490
    %v6495 = vpack.c.bf16 %v6491, %v6491
    %s6496 = scalar_lea.vmem %s2, 2880
    %v6497 = vld [vmem:[%s6496] sm:$0xf]
    %v6498 = vld [vmem:[%s6496 + $0x4] sm:$0xf]
    %v6499 = vld [vmem:[%s6496 + $0x8] sm:$0xf]
    %v6500 = vld [vmem:[%s6496 + $0xc] sm:$0xf]
    %v6501 = vld [vmem:[%s6496 + $0x10] sm:$0xf]
    %v6502 = vld [vmem:[%s6496 + $0x14] sm:$0xf]
    %v6503 = vld [vmem:[%s6496 + $0x18] sm:$0xf]
    %v6504 = vld [vmem:[%s6496 + $0x1c] sm:$0xf]
    %v6505 = vld [vmem:[%s6496 + $0x20] sm:$0xf]
    %v6506 = vld [vmem:[%s6496 + $0x24] sm:$0xf]
    %v6507 = vld [vmem:[%s6496 + $0x28] sm:$0xf]
    %v6508 = vld [vmem:[%s6496 + $0x2c] sm:$0xf]
    %v6509 = vld [vmem:[%s6496 + $0x30] sm:$0xf]
    %v6510 = vld [vmem:[%s6496 + $0x34] sm:$0xf]
    %v6511 = vld [vmem:[%s6496 + $0x38] sm:$0xf]
    %v6512 = vld [vmem:[%s6496 + $0x3c] sm:$0xf]
    %v6513 = vld [vmem:[%s6496 + $0x40] sm:$0xf]
    %v6514 = vld [vmem:[%s6496 + $0x44] sm:$0xf]
    %v6515 = vld [vmem:[%s6496 + $0x48] sm:$0xf]
    %v6516 = vld [vmem:[%s6496 + $0x4c] sm:$0xf]
    %v6517 = vld [vmem:[%s6496 + $0x50] sm:$0xf]
    %v6518 = vld [vmem:[%s6496 + $0x54] sm:$0xf]
    %v6519 = vld [vmem:[%s6496 + $0x58] sm:$0xf]
    %v6520 = vld [vmem:[%s6496 + $0x5c] sm:$0xf]
    %v6521 = vld [vmem:[%s6496 + $0x60] sm:$0xf]
    %v6522 = vld [vmem:[%s6496 + $0x64] sm:$0xf]
    %v6523 = vld [vmem:[%s6496 + $0x68] sm:$0xf]
    %v6524 = vld [vmem:[%s6496 + $0x6c] sm:$0xf]
    %v6525 = vld [vmem:[%s6496 + $0x70] sm:$0xf]
    %v6526 = vld [vmem:[%s6496 + $0x74] sm:$0xf]
    %v6527 = vld [vmem:[%s6496 + $0x78] sm:$0xf]
    %v6528 = vld [vmem:[%s6496 + $0x7c] sm:$0xf]
    %v6529 = vld [vmem:[%s6496 + $0x80] sm:$0xf]
    %v6530 = vld [vmem:[%s6496 + $0x84] sm:$0xf]
    %v6531 = vld [vmem:[%s6496 + $0x88] sm:$0xf]
    %v6532 = vld [vmem:[%s6496 + $0x8c] sm:$0xf]
    %v6533 = vld [vmem:[%s6496 + $0x90] sm:$0xf]
    %v6534 = vld [vmem:[%s6496 + $0x94] sm:$0xf]
    %v6535 = vld [vmem:[%s6496 + $0x98] sm:$0xf]
    %v6536 = vld [vmem:[%s6496 + $0x9c] sm:$0xf]
    %v6537 = vld [vmem:[%s6496 + $0xa0] sm:$0xf]
    %v6538 = vld [vmem:[%s6496 + $0xa4] sm:$0xf]
    %v6539 = vld [vmem:[%s6496 + $0xa8] sm:$0xf]
    %v6540 = vld [vmem:[%s6496 + $0xac] sm:$0xf]
    %v6541 = vld [vmem:[%s6496 + $0xb0] sm:$0xf]
    %v6542 = vld [vmem:[%s6496 + $0xb4] sm:$0xf]
    %v6543 = vld [vmem:[%s6496 + $0xb8] sm:$0xf]
    %v6544 = vld [vmem:[%s6496 + $0xbc] sm:$0xf]
    %v6545 = vld [vmem:[%s6496 + $0xc0] sm:$0xf]
    %v6546 = vld [vmem:[%s6496 + $0xc4] sm:$0xf]
    %v6547 = vld [vmem:[%s6496 + $0xc8] sm:$0xf]
    %v6548 = vld [vmem:[%s6496 + $0xcc] sm:$0xf]
    %v6549 = vld [vmem:[%s6496 + $0xd0] sm:$0xf]
    %v6550 = vld [vmem:[%s6496 + $0xd4] sm:$0xf]
    %v6551 = vld [vmem:[%s6496 + $0xd8] sm:$0xf]
    %v6552 = vld [vmem:[%s6496 + $0xdc] sm:$0xf]
    %v6553 = vld [vmem:[%s6496 + $0xe0] sm:$0xf]
    %v6554 = vld [vmem:[%s6496 + $0xe4] sm:$0xf]
    %v6555 = vld [vmem:[%s6496 + $0xe8] sm:$0xf]
    %v6556 = vld [vmem:[%s6496 + $0xec] sm:$0x3]
    %v6617 = vunpack.c.l.b16 %v6497
    %v6618 = vunpack.c.l.b16 %v6498
    %v6619 = vunpack.c.l.b16 %v6499
    %v6620 = vunpack.c.l.b16 %v6500
    %v6621 = vunpack.c.l.b16 %v6501
    %v6622 = vunpack.c.l.b16 %v6502
    %v6623 = vunpack.c.l.b16 %v6503
    %v6624 = vunpack.c.l.b16 %v6504
    %v6625 = vunpack.c.l.b16 %v6505
    %v6626 = vunpack.c.l.b16 %v6506
    %v6627 = vunpack.c.l.b16 %v6507
    %v6628 = vunpack.c.l.b16 %v6508
    %v6629 = vunpack.c.l.b16 %v6509
    %v6630 = vunpack.c.l.b16 %v6510
    %v6631 = vunpack.c.l.b16 %v6511
    %v6632 = vunpack.c.l.b16 %v6512
    %v6633 = vunpack.c.l.b16 %v6513
    %v6634 = vunpack.c.l.b16 %v6514
    %v6635 = vunpack.c.l.b16 %v6515
    %v6636 = vunpack.c.l.b16 %v6516
    %v6637 = vunpack.c.l.b16 %v6517
    %v6638 = vunpack.c.l.b16 %v6518
    %v6639 = vunpack.c.l.b16 %v6519
    %v6640 = vunpack.c.l.b16 %v6520
    %v6641 = vunpack.c.l.b16 %v6521
    %v6642 = vunpack.c.l.b16 %v6522
    %v6643 = vunpack.c.l.b16 %v6523
    %v6644 = vunpack.c.l.b16 %v6524
    %v6645 = vunpack.c.l.b16 %v6525
    %v6646 = vunpack.c.l.b16 %v6526
    %v6647 = vunpack.c.l.b16 %v6527
    %v6648 = vunpack.c.l.b16 %v6528
    %v6649 = vunpack.c.l.b16 %v6529
    %v6650 = vunpack.c.l.b16 %v6530
    %v6651 = vunpack.c.l.b16 %v6531
    %v6652 = vunpack.c.l.b16 %v6532
    %v6653 = vunpack.c.l.b16 %v6533
    %v6654 = vunpack.c.l.b16 %v6534
    %v6655 = vunpack.c.l.b16 %v6535
    %v6656 = vunpack.c.l.b16 %v6536
    %v6657 = vunpack.c.l.b16 %v6537
    %v6658 = vunpack.c.l.b16 %v6538
    %v6659 = vunpack.c.l.b16 %v6539
    %v6660 = vunpack.c.l.b16 %v6540
    %v6661 = vunpack.c.l.b16 %v6541
    %v6662 = vunpack.c.l.b16 %v6542
    %v6663 = vunpack.c.l.b16 %v6543
    %v6664 = vunpack.c.l.b16 %v6544
    %v6665 = vunpack.c.l.b16 %v6545
    %v6666 = vunpack.c.l.b16 %v6546
    %v6667 = vunpack.c.l.b16 %v6547
    %v6668 = vunpack.c.l.b16 %v6548
    %v6669 = vunpack.c.l.b16 %v6549
    %v6670 = vunpack.c.l.b16 %v6550
    %v6671 = vunpack.c.l.b16 %v6551
    %v6672 = vunpack.c.l.b16 %v6552
    %v6673 = vunpack.c.l.b16 %v6553
    %v6674 = vunpack.c.l.b16 %v6554
    %v6675 = vunpack.c.l.b16 %v6555
    %v6676 = vunpack.c.l.b16 %v6556
    %v6677 = vpack.c.b16 %v6618, %v6617
    %v6678 = vpack.c.b16 %v6620, %v6619
    %v6679 = vpack.c.b16 %v6622, %v6621
    %v6680 = vpack.c.b16 %v6624, %v6623
    %v6681 = vpack.c.b16 %v6626, %v6625
    %v6682 = vpack.c.b16 %v6628, %v6627
    %v6683 = vpack.c.b16 %v6630, %v6629
    %v6684 = vpack.c.b16 %v6632, %v6631
    %v6685 = vpack.c.b16 %v6634, %v6633
    %v6686 = vpack.c.b16 %v6636, %v6635
    %v6687 = vpack.c.b16 %v6638, %v6637
    %v6688 = vpack.c.b16 %v6640, %v6639
    %v6689 = vpack.c.b16 %v6642, %v6641
    %v6690 = vpack.c.b16 %v6644, %v6643
    %v6691 = vpack.c.b16 %v6646, %v6645
    %v6692 = vpack.c.b16 %v6648, %v6647
    %v6693 = vpack.c.b16 %v6650, %v6649
    %v6694 = vpack.c.b16 %v6652, %v6651
    %v6695 = vpack.c.b16 %v6654, %v6653
    %v6696 = vpack.c.b16 %v6656, %v6655
    %v6697 = vpack.c.b16 %v6658, %v6657
    %v6698 = vpack.c.b16 %v6660, %v6659
    %v6699 = vpack.c.b16 %v6662, %v6661
    %v6700 = vpack.c.b16 %v6664, %v6663
    %v6701 = vpack.c.b16 %v6666, %v6665
    %v6702 = vpack.c.b16 %v6668, %v6667
    %v6703 = vpack.c.b16 %v6670, %v6669
    %v6704 = vpack.c.b16 %v6672, %v6671
    %v6705 = vpack.c.b16 %v6674, %v6673
    %v6706 = vpack.c.b16 %v6676, %v6675
    %v6737 = vsel %vm1492, %v6495, 0
    %v6740 = vsel %vm1496, %v6706, 0
    %6742 = vmatpush.bf16.msra.mxu0 %v6684
    %6743 = vmatpush.bf16.msra.mxu0 %v6683
    %6744 = vmatpush.bf16.msra.mxu0 %v6682
    %6745 = vmatpush.bf16.msra.mxu0 %v6681
    %6746 = vmatpush.bf16.msra.mxu0 %v6680
    %6747 = vmatpush.bf16.msra.mxu0 %v6679
    %6748 = vmatpush.bf16.msra.mxu0 %v6678
    %6749 = vmatpush.bf16.msra.mxu0 %v6677
    %6750 = vmatmul.bf16.gmra.mxu0 %v6492
    %v6751 = vpop.f32.mrf.mxu0
    %v6752 = vadd.f32 0.0, %v6751
    %v6753 = vpop.f32.mrf.mxu0
    %6754 = vdwg.mxu0
    %6755 = vmatpush.bf16.msra.mxu0 %v6692
    %6756 = vmatpush.bf16.msra.mxu0 %v6691
    %6757 = vmatpush.bf16.msra.mxu0 %v6690
    %6758 = vmatpush.bf16.msra.mxu0 %v6689
    %6759 = vmatpush.bf16.msra.mxu0 %v6688
    %6760 = vmatpush.bf16.msra.mxu0 %v6687
    %6761 = vmatpush.bf16.msra.mxu0 %v6686
    %6762 = vmatpush.bf16.msra.mxu0 %v6685
    %6763 = vmatmul.bf16.gmra.mxu0 %v6493
    %v6764 = vpop.f32.mrf.mxu0
    %v6765 = vadd.f32 %v6752, %v6764
    %v6766 = vpop.f32.mrf.mxu0
    %6767 = vdwg.mxu0
    %6768 = vmatpush.bf16.msra.mxu0 %v6700
    %6769 = vmatpush.bf16.msra.mxu0 %v6699
    %6770 = vmatpush.bf16.msra.mxu0 %v6698
    %6771 = vmatpush.bf16.msra.mxu0 %v6697
    %6772 = vmatpush.bf16.msra.mxu0 %v6696
    %6773 = vmatpush.bf16.msra.mxu0 %v6695
    %6774 = vmatpush.bf16.msra.mxu0 %v6694
    %6775 = vmatpush.bf16.msra.mxu0 %v6693
    %6776 = vmatmul.bf16.gmra.mxu0 %v6494
    %v6777 = vpop.f32.mrf.mxu0
    %v6778 = vadd.f32 %v6765, %v6777
    %v6779 = vpop.f32.mrf.mxu0
    %6780 = vdwg.mxu0
    %6781 = vmatpush.bf16.msra.mxu0 0
    %6782 = vmatpush.bf16.msra.mxu0 0
    %6783 = vmatpush.bf16.msra.mxu0 %v6740
    %6784 = vmatpush.bf16.msra.mxu0 %v6705
    %6785 = vmatpush.bf16.msra.mxu0 %v6704
    %6786 = vmatpush.bf16.msra.mxu0 %v6703
    %6787 = vmatpush.bf16.msra.mxu0 %v6702
    %6788 = vmatpush.bf16.msra.mxu0 %v6701
    %6789 = vmatmul.bf16.gmra.mxu0 %v6737
    %v6790 = vpop.f32.mrf.mxu0
    %v6791 = vadd.f32 %v6778, %v6790
    %v6792 = vpop.f32.mrf.mxu0
    %6793 = vdwg.mxu0
    %v6794 = vadd.f32 %v5840, %v6791
    %s6795 = scalar_lea.vmem %s0, 156
    %v6796 = vld [vmem:[%s6795] sm:$0xff]
    %v6797 = vld [vmem:[%s6795 + $0x8] sm:$0xf]
    %v6800 = vunpack.c.l.b16 %v6796
    %v6801 = vunpack.c.h.b16 %v6796
    %v6802 = vunpack.c.l.b16 %v6797
    %v6803 = vpack.c.b16 %v6800, %v6800
    %v6804 = vpack.c.b16 %v6801, %v6801
    %v6805 = vpack.c.b16 %v6802, %v6802
    %6809 = vmatpush.bf16.msra.mxu0 %v447
    %6810 = vmatpush.bf16.msra.mxu0 %v443
    %6811 = vmatpush.bf16.msra.mxu0 %v439
    %6812 = vmatpush.bf16.msra.mxu0 %v435
    %6813 = vmatpush.bf16.msra.mxu0 %v431
    %6814 = vmatpush.bf16.msra.mxu0 %v427
    %6815 = vmatpush.bf16.msra.mxu0 %v423
    %6816 = vmatpush.bf16.msra.mxu0 %v419
    %6817 = vmatmul.bf16.gmra.mxu0 %v6803
    %v6818 = vpop.f32.mrf.mxu0
    %v6819 = vadd.f32 0.0, %v6818
    %v6820 = vpop.f32.mrf.mxu0
    %6821 = vdwg.mxu0
    %6822 = vmatpush.bf16.msra.mxu0 %v479
    %6823 = vmatpush.bf16.msra.mxu0 %v475
    %6824 = vmatpush.bf16.msra.mxu0 %v471
    %6825 = vmatpush.bf16.msra.mxu0 %v467
    %6826 = vmatpush.bf16.msra.mxu0 %v463
    %6827 = vmatpush.bf16.msra.mxu0 %v459
    %6828 = vmatpush.bf16.msra.mxu0 %v455
    %6829 = vmatpush.bf16.msra.mxu0 %v451
    %6830 = vmatmul.bf16.gmra.mxu0 %v6804
    %v6831 = vpop.f32.mrf.mxu0
    %v6832 = vadd.f32 %v6819, %v6831
    %v6833 = vpop.f32.mrf.mxu0
    %6834 = vdwg.mxu0
    %6835 = vmatpush.bf16.msra.mxu0 %v511
    %6836 = vmatpush.bf16.msra.mxu0 %v507
    %6837 = vmatpush.bf16.msra.mxu0 %v503
    %6838 = vmatpush.bf16.msra.mxu0 %v499
    %6839 = vmatpush.bf16.msra.mxu0 %v495
    %6840 = vmatpush.bf16.msra.mxu0 %v491
    %6841 = vmatpush.bf16.msra.mxu0 %v487
    %6842 = vmatpush.bf16.msra.mxu0 %v483
    %6843 = vmatmul.bf16.gmra.mxu0 %v6805
    %v6844 = vpop.f32.mrf.mxu0
    %v6845 = vadd.f32 %v6832, %v6844
    %v6846 = vpop.f32.mrf.mxu0
    %6847 = vdwg.mxu0
    %6848 = vmatpush.bf16.msra.mxu0 %v448
    %6849 = vmatpush.bf16.msra.mxu0 %v444
    %6850 = vmatpush.bf16.msra.mxu0 %v440
    %6851 = vmatpush.bf16.msra.mxu0 %v436
    %6852 = vmatpush.bf16.msra.mxu0 %v432
    %6853 = vmatpush.bf16.msra.mxu0 %v428
    %6854 = vmatpush.bf16.msra.mxu0 %v424
    %6855 = vmatpush.bf16.msra.mxu0 %v420
    %6856 = vmatmul.bf16.gmra.mxu0 %v6803
    %v6857 = vpop.f32.mrf.mxu0
    %v6858 = vadd.f32 0.0, %v6857
    %v6859 = vpop.f32.mrf.mxu0
    %6860 = vdwg.mxu0
    %6861 = vmatpush.bf16.msra.mxu0 %v480
    %6862 = vmatpush.bf16.msra.mxu0 %v476
    %6863 = vmatpush.bf16.msra.mxu0 %v472
    %6864 = vmatpush.bf16.msra.mxu0 %v468
    %6865 = vmatpush.bf16.msra.mxu0 %v464
    %6866 = vmatpush.bf16.msra.mxu0 %v460
    %6867 = vmatpush.bf16.msra.mxu0 %v456
    %6868 = vmatpush.bf16.msra.mxu0 %v452
    %6869 = vmatmul.bf16.gmra.mxu0 %v6804
    %v6870 = vpop.f32.mrf.mxu0
    %v6871 = vadd.f32 %v6858, %v6870
    %v6872 = vpop.f32.mrf.mxu0
    %6873 = vdwg.mxu0
    %6874 = vmatpush.bf16.msra.mxu0 %v512
    %6875 = vmatpush.bf16.msra.mxu0 %v508
    %6876 = vmatpush.bf16.msra.mxu0 %v504
    %6877 = vmatpush.bf16.msra.mxu0 %v500
    %6878 = vmatpush.bf16.msra.mxu0 %v496
    %6879 = vmatpush.bf16.msra.mxu0 %v492
    %6880 = vmatpush.bf16.msra.mxu0 %v488
    %6881 = vmatpush.bf16.msra.mxu0 %v484
    %6882 = vmatmul.bf16.gmra.mxu0 %v6805
    %v6883 = vpop.f32.mrf.mxu0
    %v6884 = vadd.f32 %v6871, %v6883
    %v6885 = vpop.f32.mrf.mxu0
    %6886 = vdwg.mxu0
    %6887 = vmatpush.bf16.msra.mxu0 %v449
    %6888 = vmatpush.bf16.msra.mxu0 %v445
    %6889 = vmatpush.bf16.msra.mxu0 %v441
    %6890 = vmatpush.bf16.msra.mxu0 %v437
    %6891 = vmatpush.bf16.msra.mxu0 %v433
    %6892 = vmatpush.bf16.msra.mxu0 %v429
    %6893 = vmatpush.bf16.msra.mxu0 %v425
    %6894 = vmatpush.bf16.msra.mxu0 %v421
    %6895 = vmatmul.bf16.gmra.mxu0 %v6803
    %v6896 = vpop.f32.mrf.mxu0
    %v6897 = vadd.f32 0.0, %v6896
    %v6898 = vpop.f32.mrf.mxu0
    %6899 = vdwg.mxu0
    %6900 = vmatpush.bf16.msra.mxu0 %v481
    %6901 = vmatpush.bf16.msra.mxu0 %v477
    %6902 = vmatpush.bf16.msra.mxu0 %v473
    %6903 = vmatpush.bf16.msra.mxu0 %v469
    %6904 = vmatpush.bf16.msra.mxu0 %v465
    %6905 = vmatpush.bf16.msra.mxu0 %v461
    %6906 = vmatpush.bf16.msra.mxu0 %v457
    %6907 = vmatpush.bf16.msra.mxu0 %v453
    %6908 = vmatmul.bf16.gmra.mxu0 %v6804
    %v6909 = vpop.f32.mrf.mxu0
    %v6910 = vadd.f32 %v6897, %v6909
    %v6911 = vpop.f32.mrf.mxu0
    %6912 = vdwg.mxu0
    %6913 = vmatpush.bf16.msra.mxu0 %v513
    %6914 = vmatpush.bf16.msra.mxu0 %v509
    %6915 = vmatpush.bf16.msra.mxu0 %v505
    %6916 = vmatpush.bf16.msra.mxu0 %v501
    %6917 = vmatpush.bf16.msra.mxu0 %v497
    %6918 = vmatpush.bf16.msra.mxu0 %v493
    %6919 = vmatpush.bf16.msra.mxu0 %v489
    %6920 = vmatpush.bf16.msra.mxu0 %v485
    %6921 = vmatmul.bf16.gmra.mxu0 %v6805
    %v6922 = vpop.f32.mrf.mxu0
    %v6923 = vadd.f32 %v6910, %v6922
    %v6924 = vpop.f32.mrf.mxu0
    %6925 = vdwg.mxu0
    %6926 = vmatpush.bf16.msra.mxu0 %v450
    %6927 = vmatpush.bf16.msra.mxu0 %v446
    %6928 = vmatpush.bf16.msra.mxu0 %v442
    %6929 = vmatpush.bf16.msra.mxu0 %v438
    %6930 = vmatpush.bf16.msra.mxu0 %v434
    %6931 = vmatpush.bf16.msra.mxu0 %v430
    %6932 = vmatpush.bf16.msra.mxu0 %v426
    %6933 = vmatpush.bf16.msra.mxu0 %v422
    %6934 = vmatmul.bf16.gmra.mxu0 %v6803
    %v6935 = vpop.f32.mrf.mxu0
    %v6936 = vadd.f32 0.0, %v6935
    %v6937 = vpop.f32.mrf.mxu0
    %6938 = vdwg.mxu0
    %6939 = vmatpush.bf16.msra.mxu0 %v482
    %6940 = vmatpush.bf16.msra.mxu0 %v478
    %6941 = vmatpush.bf16.msra.mxu0 %v474
    %6942 = vmatpush.bf16.msra.mxu0 %v470
    %6943 = vmatpush.bf16.msra.mxu0 %v466
    %6944 = vmatpush.bf16.msra.mxu0 %v462
    %6945 = vmatpush.bf16.msra.mxu0 %v458
    %6946 = vmatpush.bf16.msra.mxu0 %v454
    %6947 = vmatmul.bf16.gmra.mxu0 %v6804
    %v6948 = vpop.f32.mrf.mxu0
    %v6949 = vadd.f32 %v6936, %v6948
    %v6950 = vpop.f32.mrf.mxu0
    %6951 = vdwg.mxu0
    %6952 = vmatpush.bf16.msra.mxu0 %v514
    %6953 = vmatpush.bf16.msra.mxu0 %v510
    %6954 = vmatpush.bf16.msra.mxu0 %v506
    %6955 = vmatpush.bf16.msra.mxu0 %v502
    %6956 = vmatpush.bf16.msra.mxu0 %v498
    %6957 = vmatpush.bf16.msra.mxu0 %v494
    %6958 = vmatpush.bf16.msra.mxu0 %v490
    %6959 = vmatpush.bf16.msra.mxu0 %v486
    %6960 = vmatmul.bf16.gmra.mxu0 %v6805
    %v6961 = vpop.f32.mrf.mxu0
    %v6962 = vadd.f32 %v6949, %v6961
    %v6963 = vpop.f32.mrf.mxu0
    %6964 = vdwg.mxu0
    %v6965 = vmax.f32 %v6845, 0.0
    %v6966 = vmax.f32 %v6884, 0.0
    %v6967 = vmax.f32 %v6923, 0.0
    %v6968 = vmax.f32 %v6962, 0.0
    %v6969 = vpack.c.bf16 %v6965, %v6965
    %v6970 = vpack.c.bf16 %v6966, %v6966
    %v6971 = vpack.c.bf16 %v6967, %v6967
    %v6972 = vpack.c.bf16 %v6968, %v6968
    %s6973 = scalar_lea.vmem %s2, 3120
    %v6974 = vld [vmem:[%s6973] sm:$0xf]
    %v6975 = vld [vmem:[%s6973 + $0x4] sm:$0xf]
    %v6976 = vld [vmem:[%s6973 + $0x8] sm:$0xf]
    %v6977 = vld [vmem:[%s6973 + $0xc] sm:$0xf]
    %v6978 = vld [vmem:[%s6973 + $0x10] sm:$0xf]
    %v6979 = vld [vmem:[%s6973 + $0x14] sm:$0xf]
    %v6980 = vld [vmem:[%s6973 + $0x18] sm:$0xf]
    %v6981 = vld [vmem:[%s6973 + $0x1c] sm:$0xf]
    %v6982 = vld [vmem:[%s6973 + $0x20] sm:$0xf]
    %v6983 = vld [vmem:[%s6973 + $0x24] sm:$0xf]
    %v6984 = vld [vmem:[%s6973 + $0x28] sm:$0xf]
    %v6985 = vld [vmem:[%s6973 + $0x2c] sm:$0xf]
    %v6986 = vld [vmem:[%s6973 + $0x30] sm:$0xf]
    %v6987 = vld [vmem:[%s6973 + $0x34] sm:$0xf]
    %v6988 = vld [vmem:[%s6973 + $0x38] sm:$0xf]
    %v6989 = vld [vmem:[%s6973 + $0x3c] sm:$0xf]
    %v6990 = vld [vmem:[%s6973 + $0x40] sm:$0xf]
    %v6991 = vld [vmem:[%s6973 + $0x44] sm:$0xf]
    %v6992 = vld [vmem:[%s6973 + $0x48] sm:$0xf]
    %v6993 = vld [vmem:[%s6973 + $0x4c] sm:$0xf]
    %v6994 = vld [vmem:[%s6973 + $0x50] sm:$0xf]
    %v6995 = vld [vmem:[%s6973 + $0x54] sm:$0xf]
    %v6996 = vld [vmem:[%s6973 + $0x58] sm:$0xf]
    %v6997 = vld [vmem:[%s6973 + $0x5c] sm:$0xf]
    %v6998 = vld [vmem:[%s6973 + $0x60] sm:$0xf]
    %v6999 = vld [vmem:[%s6973 + $0x64] sm:$0xf]
    %v7000 = vld [vmem:[%s6973 + $0x68] sm:$0xf]
    %v7001 = vld [vmem:[%s6973 + $0x6c] sm:$0xf]
    %v7002 = vld [vmem:[%s6973 + $0x70] sm:$0xf]
    %v7003 = vld [vmem:[%s6973 + $0x74] sm:$0xf]
    %v7004 = vld [vmem:[%s6973 + $0x78] sm:$0xf]
    %v7005 = vld [vmem:[%s6973 + $0x7c] sm:$0xf]
    %v7006 = vld [vmem:[%s6973 + $0x80] sm:$0xf]
    %v7007 = vld [vmem:[%s6973 + $0x84] sm:$0xf]
    %v7008 = vld [vmem:[%s6973 + $0x88] sm:$0xf]
    %v7009 = vld [vmem:[%s6973 + $0x8c] sm:$0xf]
    %v7010 = vld [vmem:[%s6973 + $0x90] sm:$0xf]
    %v7011 = vld [vmem:[%s6973 + $0x94] sm:$0xf]
    %v7012 = vld [vmem:[%s6973 + $0x98] sm:$0xf]
    %v7013 = vld [vmem:[%s6973 + $0x9c] sm:$0xf]
    %v7014 = vld [vmem:[%s6973 + $0xa0] sm:$0xf]
    %v7015 = vld [vmem:[%s6973 + $0xa4] sm:$0xf]
    %v7016 = vld [vmem:[%s6973 + $0xa8] sm:$0xf]
    %v7017 = vld [vmem:[%s6973 + $0xac] sm:$0xf]
    %v7018 = vld [vmem:[%s6973 + $0xb0] sm:$0xf]
    %v7019 = vld [vmem:[%s6973 + $0xb4] sm:$0xf]
    %v7020 = vld [vmem:[%s6973 + $0xb8] sm:$0xf]
    %v7021 = vld [vmem:[%s6973 + $0xbc] sm:$0xf]
    %v7022 = vld [vmem:[%s6973 + $0xc0] sm:$0xf]
    %v7023 = vld [vmem:[%s6973 + $0xc4] sm:$0xf]
    %v7024 = vld [vmem:[%s6973 + $0xc8] sm:$0xf]
    %v7025 = vld [vmem:[%s6973 + $0xcc] sm:$0xf]
    %v7026 = vld [vmem:[%s6973 + $0xd0] sm:$0xf]
    %v7027 = vld [vmem:[%s6973 + $0xd4] sm:$0xf]
    %v7028 = vld [vmem:[%s6973 + $0xd8] sm:$0xf]
    %v7029 = vld [vmem:[%s6973 + $0xdc] sm:$0xf]
    %v7030 = vld [vmem:[%s6973 + $0xe0] sm:$0xf]
    %v7031 = vld [vmem:[%s6973 + $0xe4] sm:$0xf]
    %v7032 = vld [vmem:[%s6973 + $0xe8] sm:$0xf]
    %v7033 = vld [vmem:[%s6973 + $0xec] sm:$0x3]
    %v7094 = vunpack.c.l.b16 %v6974
    %v7095 = vunpack.c.l.b16 %v6975
    %v7096 = vunpack.c.l.b16 %v6976
    %v7097 = vunpack.c.l.b16 %v6977
    %v7098 = vunpack.c.l.b16 %v6978
    %v7099 = vunpack.c.l.b16 %v6979
    %v7100 = vunpack.c.l.b16 %v6980
    %v7101 = vunpack.c.l.b16 %v6981
    %v7102 = vunpack.c.l.b16 %v6982
    %v7103 = vunpack.c.l.b16 %v6983
    %v7104 = vunpack.c.l.b16 %v6984
    %v7105 = vunpack.c.l.b16 %v6985
    %v7106 = vunpack.c.l.b16 %v6986
    %v7107 = vunpack.c.l.b16 %v6987
    %v7108 = vunpack.c.l.b16 %v6988
    %v7109 = vunpack.c.l.b16 %v6989
    %v7110 = vunpack.c.l.b16 %v6990
    %v7111 = vunpack.c.l.b16 %v6991
    %v7112 = vunpack.c.l.b16 %v6992
    %v7113 = vunpack.c.l.b16 %v6993
    %v7114 = vunpack.c.l.b16 %v6994
    %v7115 = vunpack.c.l.b16 %v6995
    %v7116 = vunpack.c.l.b16 %v6996
    %v7117 = vunpack.c.l.b16 %v6997
    %v7118 = vunpack.c.l.b16 %v6998
    %v7119 = vunpack.c.l.b16 %v6999
    %v7120 = vunpack.c.l.b16 %v7000
    %v7121 = vunpack.c.l.b16 %v7001
    %v7122 = vunpack.c.l.b16 %v7002
    %v7123 = vunpack.c.l.b16 %v7003
    %v7124 = vunpack.c.l.b16 %v7004
    %v7125 = vunpack.c.l.b16 %v7005
    %v7126 = vunpack.c.l.b16 %v7006
    %v7127 = vunpack.c.l.b16 %v7007
    %v7128 = vunpack.c.l.b16 %v7008
    %v7129 = vunpack.c.l.b16 %v7009
    %v7130 = vunpack.c.l.b16 %v7010
    %v7131 = vunpack.c.l.b16 %v7011
    %v7132 = vunpack.c.l.b16 %v7012
    %v7133 = vunpack.c.l.b16 %v7013
    %v7134 = vunpack.c.l.b16 %v7014
    %v7135 = vunpack.c.l.b16 %v7015
    %v7136 = vunpack.c.l.b16 %v7016
    %v7137 = vunpack.c.l.b16 %v7017
    %v7138 = vunpack.c.l.b16 %v7018
    %v7139 = vunpack.c.l.b16 %v7019
    %v7140 = vunpack.c.l.b16 %v7020
    %v7141 = vunpack.c.l.b16 %v7021
    %v7142 = vunpack.c.l.b16 %v7022
    %v7143 = vunpack.c.l.b16 %v7023
    %v7144 = vunpack.c.l.b16 %v7024
    %v7145 = vunpack.c.l.b16 %v7025
    %v7146 = vunpack.c.l.b16 %v7026
    %v7147 = vunpack.c.l.b16 %v7027
    %v7148 = vunpack.c.l.b16 %v7028
    %v7149 = vunpack.c.l.b16 %v7029
    %v7150 = vunpack.c.l.b16 %v7030
    %v7151 = vunpack.c.l.b16 %v7031
    %v7152 = vunpack.c.l.b16 %v7032
    %v7153 = vunpack.c.l.b16 %v7033
    %v7154 = vpack.c.b16 %v7095, %v7094
    %v7155 = vpack.c.b16 %v7097, %v7096
    %v7156 = vpack.c.b16 %v7099, %v7098
    %v7157 = vpack.c.b16 %v7101, %v7100
    %v7158 = vpack.c.b16 %v7103, %v7102
    %v7159 = vpack.c.b16 %v7105, %v7104
    %v7160 = vpack.c.b16 %v7107, %v7106
    %v7161 = vpack.c.b16 %v7109, %v7108
    %v7162 = vpack.c.b16 %v7111, %v7110
    %v7163 = vpack.c.b16 %v7113, %v7112
    %v7164 = vpack.c.b16 %v7115, %v7114
    %v7165 = vpack.c.b16 %v7117, %v7116
    %v7166 = vpack.c.b16 %v7119, %v7118
    %v7167 = vpack.c.b16 %v7121, %v7120
    %v7168 = vpack.c.b16 %v7123, %v7122
    %v7169 = vpack.c.b16 %v7125, %v7124
    %v7170 = vpack.c.b16 %v7127, %v7126
    %v7171 = vpack.c.b16 %v7129, %v7128
    %v7172 = vpack.c.b16 %v7131, %v7130
    %v7173 = vpack.c.b16 %v7133, %v7132
    %v7174 = vpack.c.b16 %v7135, %v7134
    %v7175 = vpack.c.b16 %v7137, %v7136
    %v7176 = vpack.c.b16 %v7139, %v7138
    %v7177 = vpack.c.b16 %v7141, %v7140
    %v7178 = vpack.c.b16 %v7143, %v7142
    %v7179 = vpack.c.b16 %v7145, %v7144
    %v7180 = vpack.c.b16 %v7147, %v7146
    %v7181 = vpack.c.b16 %v7149, %v7148
    %v7182 = vpack.c.b16 %v7151, %v7150
    %v7183 = vpack.c.b16 %v7153, %v7152
    %v7214 = vsel %vm1492, %v6972, 0
    %v7217 = vsel %vm1496, %v7183, 0
    %7219 = vmatpush.bf16.msra.mxu0 %v7161
    %7220 = vmatpush.bf16.msra.mxu0 %v7160
    %7221 = vmatpush.bf16.msra.mxu0 %v7159
    %7222 = vmatpush.bf16.msra.mxu0 %v7158
    %7223 = vmatpush.bf16.msra.mxu0 %v7157
    %7224 = vmatpush.bf16.msra.mxu0 %v7156
    %7225 = vmatpush.bf16.msra.mxu0 %v7155
    %7226 = vmatpush.bf16.msra.mxu0 %v7154
    %7227 = vmatmul.bf16.gmra.mxu0 %v6969
    %v7228 = vpop.f32.mrf.mxu0
    %v7229 = vadd.f32 0.0, %v7228
    %v7230 = vpop.f32.mrf.mxu0
    %7231 = vdwg.mxu0
    %7232 = vmatpush.bf16.msra.mxu0 %v7169
    %7233 = vmatpush.bf16.msra.mxu0 %v7168
    %7234 = vmatpush.bf16.msra.mxu0 %v7167
    %7235 = vmatpush.bf16.msra.mxu0 %v7166
    %7236 = vmatpush.bf16.msra.mxu0 %v7165
    %7237 = vmatpush.bf16.msra.mxu0 %v7164
    %7238 = vmatpush.bf16.msra.mxu0 %v7163
    %7239 = vmatpush.bf16.msra.mxu0 %v7162
    %7240 = vmatmul.bf16.gmra.mxu0 %v6970
    %v7241 = vpop.f32.mrf.mxu0
    %v7242 = vadd.f32 %v7229, %v7241
    %v7243 = vpop.f32.mrf.mxu0
    %7244 = vdwg.mxu0
    %7245 = vmatpush.bf16.msra.mxu0 %v7177
    %7246 = vmatpush.bf16.msra.mxu0 %v7176
    %7247 = vmatpush.bf16.msra.mxu0 %v7175
    %7248 = vmatpush.bf16.msra.mxu0 %v7174
    %7249 = vmatpush.bf16.msra.mxu0 %v7173
    %7250 = vmatpush.bf16.msra.mxu0 %v7172
    %7251 = vmatpush.bf16.msra.mxu0 %v7171
    %7252 = vmatpush.bf16.msra.mxu0 %v7170
    %7253 = vmatmul.bf16.gmra.mxu0 %v6971
    %v7254 = vpop.f32.mrf.mxu0
    %v7255 = vadd.f32 %v7242, %v7254
    %v7256 = vpop.f32.mrf.mxu0
    %7257 = vdwg.mxu0
    %7258 = vmatpush.bf16.msra.mxu0 0
    %7259 = vmatpush.bf16.msra.mxu0 0
    %7260 = vmatpush.bf16.msra.mxu0 %v7217
    %7261 = vmatpush.bf16.msra.mxu0 %v7182
    %7262 = vmatpush.bf16.msra.mxu0 %v7181
    %7263 = vmatpush.bf16.msra.mxu0 %v7180
    %7264 = vmatpush.bf16.msra.mxu0 %v7179
    %7265 = vmatpush.bf16.msra.mxu0 %v7178
    %7266 = vmatmul.bf16.gmra.mxu0 %v7214
    %v7267 = vpop.f32.mrf.mxu0
    %v7268 = vadd.f32 %v7255, %v7267
    %v7269 = vpop.f32.mrf.mxu0
    %7270 = vdwg.mxu0
    %v7271 = vadd.f32 %v6317, %v7268
    %s7272 = scalar_lea.vmem %s0, 168
    %v7273 = vld [vmem:[%s7272] sm:$0xff]
    %v7274 = vld [vmem:[%s7272 + $0x8] sm:$0xf]
    %v7277 = vunpack.c.l.b16 %v7273
    %v7278 = vunpack.c.h.b16 %v7273
    %v7279 = vunpack.c.l.b16 %v7274
    %v7280 = vpack.c.b16 %v7277, %v7277
    %v7281 = vpack.c.b16 %v7278, %v7278
    %v7282 = vpack.c.b16 %v7279, %v7279
    %7286 = vmatpush.bf16.msra.mxu0 %v447
    %7287 = vmatpush.bf16.msra.mxu0 %v443
    %7288 = vmatpush.bf16.msra.mxu0 %v439
    %7289 = vmatpush.bf16.msra.mxu0 %v435
    %7290 = vmatpush.bf16.msra.mxu0 %v431
    %7291 = vmatpush.bf16.msra.mxu0 %v427
    %7292 = vmatpush.bf16.msra.mxu0 %v423
    %7293 = vmatpush.bf16.msra.mxu0 %v419
    %7294 = vmatmul.bf16.gmra.mxu0 %v7280
    %v7295 = vpop.f32.mrf.mxu0
    %v7296 = vadd.f32 0.0, %v7295
    %v7297 = vpop.f32.mrf.mxu0
    %7298 = vdwg.mxu0
    %7299 = vmatpush.bf16.msra.mxu0 %v479
    %7300 = vmatpush.bf16.msra.mxu0 %v475
    %7301 = vmatpush.bf16.msra.mxu0 %v471
    %7302 = vmatpush.bf16.msra.mxu0 %v467
    %7303 = vmatpush.bf16.msra.mxu0 %v463
    %7304 = vmatpush.bf16.msra.mxu0 %v459
    %7305 = vmatpush.bf16.msra.mxu0 %v455
    %7306 = vmatpush.bf16.msra.mxu0 %v451
    %7307 = vmatmul.bf16.gmra.mxu0 %v7281
    %v7308 = vpop.f32.mrf.mxu0
    %v7309 = vadd.f32 %v7296, %v7308
    %v7310 = vpop.f32.mrf.mxu0
    %7311 = vdwg.mxu0
    %7312 = vmatpush.bf16.msra.mxu0 %v511
    %7313 = vmatpush.bf16.msra.mxu0 %v507
    %7314 = vmatpush.bf16.msra.mxu0 %v503
    %7315 = vmatpush.bf16.msra.mxu0 %v499
    %7316 = vmatpush.bf16.msra.mxu0 %v495
    %7317 = vmatpush.bf16.msra.mxu0 %v491
    %7318 = vmatpush.bf16.msra.mxu0 %v487
    %7319 = vmatpush.bf16.msra.mxu0 %v483
    %7320 = vmatmul.bf16.gmra.mxu0 %v7282
    %v7321 = vpop.f32.mrf.mxu0
    %v7322 = vadd.f32 %v7309, %v7321
    %v7323 = vpop.f32.mrf.mxu0
    %7324 = vdwg.mxu0
    %7325 = vmatpush.bf16.msra.mxu0 %v448
    %7326 = vmatpush.bf16.msra.mxu0 %v444
    %7327 = vmatpush.bf16.msra.mxu0 %v440
    %7328 = vmatpush.bf16.msra.mxu0 %v436
    %7329 = vmatpush.bf16.msra.mxu0 %v432
    %7330 = vmatpush.bf16.msra.mxu0 %v428
    %7331 = vmatpush.bf16.msra.mxu0 %v424
    %7332 = vmatpush.bf16.msra.mxu0 %v420
    %7333 = vmatmul.bf16.gmra.mxu0 %v7280
    %v7334 = vpop.f32.mrf.mxu0
    %v7335 = vadd.f32 0.0, %v7334
    %v7336 = vpop.f32.mrf.mxu0
    %7337 = vdwg.mxu0
    %7338 = vmatpush.bf16.msra.mxu0 %v480
    %7339 = vmatpush.bf16.msra.mxu0 %v476
    %7340 = vmatpush.bf16.msra.mxu0 %v472
    %7341 = vmatpush.bf16.msra.mxu0 %v468
    %7342 = vmatpush.bf16.msra.mxu0 %v464
    %7343 = vmatpush.bf16.msra.mxu0 %v460
    %7344 = vmatpush.bf16.msra.mxu0 %v456
    %7345 = vmatpush.bf16.msra.mxu0 %v452
    %7346 = vmatmul.bf16.gmra.mxu0 %v7281
    %v7347 = vpop.f32.mrf.mxu0
    %v7348 = vadd.f32 %v7335, %v7347
    %v7349 = vpop.f32.mrf.mxu0
    %7350 = vdwg.mxu0
    %7351 = vmatpush.bf16.msra.mxu0 %v512
    %7352 = vmatpush.bf16.msra.mxu0 %v508
    %7353 = vmatpush.bf16.msra.mxu0 %v504
    %7354 = vmatpush.bf16.msra.mxu0 %v500
    %7355 = vmatpush.bf16.msra.mxu0 %v496
    %7356 = vmatpush.bf16.msra.mxu0 %v492
    %7357 = vmatpush.bf16.msra.mxu0 %v488
    %7358 = vmatpush.bf16.msra.mxu0 %v484
    %7359 = vmatmul.bf16.gmra.mxu0 %v7282
    %v7360 = vpop.f32.mrf.mxu0
    %v7361 = vadd.f32 %v7348, %v7360
    %v7362 = vpop.f32.mrf.mxu0
    %7363 = vdwg.mxu0
    %7364 = vmatpush.bf16.msra.mxu0 %v449
    %7365 = vmatpush.bf16.msra.mxu0 %v445
    %7366 = vmatpush.bf16.msra.mxu0 %v441
    %7367 = vmatpush.bf16.msra.mxu0 %v437
    %7368 = vmatpush.bf16.msra.mxu0 %v433
    %7369 = vmatpush.bf16.msra.mxu0 %v429
    %7370 = vmatpush.bf16.msra.mxu0 %v425
    %7371 = vmatpush.bf16.msra.mxu0 %v421
    %7372 = vmatmul.bf16.gmra.mxu0 %v7280
    %v7373 = vpop.f32.mrf.mxu0
    %v7374 = vadd.f32 0.0, %v7373
    %v7375 = vpop.f32.mrf.mxu0
    %7376 = vdwg.mxu0
    %7377 = vmatpush.bf16.msra.mxu0 %v481
    %7378 = vmatpush.bf16.msra.mxu0 %v477
    %7379 = vmatpush.bf16.msra.mxu0 %v473
    %7380 = vmatpush.bf16.msra.mxu0 %v469
    %7381 = vmatpush.bf16.msra.mxu0 %v465
    %7382 = vmatpush.bf16.msra.mxu0 %v461
    %7383 = vmatpush.bf16.msra.mxu0 %v457
    %7384 = vmatpush.bf16.msra.mxu0 %v453
    %7385 = vmatmul.bf16.gmra.mxu0 %v7281
    %v7386 = vpop.f32.mrf.mxu0
    %v7387 = vadd.f32 %v7374, %v7386
    %v7388 = vpop.f32.mrf.mxu0
    %7389 = vdwg.mxu0
    %7390 = vmatpush.bf16.msra.mxu0 %v513
    %7391 = vmatpush.bf16.msra.mxu0 %v509
    %7392 = vmatpush.bf16.msra.mxu0 %v505
    %7393 = vmatpush.bf16.msra.mxu0 %v501
    %7394 = vmatpush.bf16.msra.mxu0 %v497
    %7395 = vmatpush.bf16.msra.mxu0 %v493
    %7396 = vmatpush.bf16.msra.mxu0 %v489
    %7397 = vmatpush.bf16.msra.mxu0 %v485
    %7398 = vmatmul.bf16.gmra.mxu0 %v7282
    %v7399 = vpop.f32.mrf.mxu0
    %v7400 = vadd.f32 %v7387, %v7399
    %v7401 = vpop.f32.mrf.mxu0
    %7402 = vdwg.mxu0
    %7403 = vmatpush.bf16.msra.mxu0 %v450
    %7404 = vmatpush.bf16.msra.mxu0 %v446
    %7405 = vmatpush.bf16.msra.mxu0 %v442
    %7406 = vmatpush.bf16.msra.mxu0 %v438
    %7407 = vmatpush.bf16.msra.mxu0 %v434
    %7408 = vmatpush.bf16.msra.mxu0 %v430
    %7409 = vmatpush.bf16.msra.mxu0 %v426
    %7410 = vmatpush.bf16.msra.mxu0 %v422
    %7411 = vmatmul.bf16.gmra.mxu0 %v7280
    %v7412 = vpop.f32.mrf.mxu0
    %v7413 = vadd.f32 0.0, %v7412
    %v7414 = vpop.f32.mrf.mxu0
    %7415 = vdwg.mxu0
    %7416 = vmatpush.bf16.msra.mxu0 %v482
    %7417 = vmatpush.bf16.msra.mxu0 %v478
    %7418 = vmatpush.bf16.msra.mxu0 %v474
    %7419 = vmatpush.bf16.msra.mxu0 %v470
    %7420 = vmatpush.bf16.msra.mxu0 %v466
    %7421 = vmatpush.bf16.msra.mxu0 %v462
    %7422 = vmatpush.bf16.msra.mxu0 %v458
    %7423 = vmatpush.bf16.msra.mxu0 %v454
    %7424 = vmatmul.bf16.gmra.mxu0 %v7281
    %v7425 = vpop.f32.mrf.mxu0
    %v7426 = vadd.f32 %v7413, %v7425
    %v7427 = vpop.f32.mrf.mxu0
    %7428 = vdwg.mxu0
    %7429 = vmatpush.bf16.msra.mxu0 %v514
    %7430 = vmatpush.bf16.msra.mxu0 %v510
    %7431 = vmatpush.bf16.msra.mxu0 %v506
    %7432 = vmatpush.bf16.msra.mxu0 %v502
    %7433 = vmatpush.bf16.msra.mxu0 %v498
    %7434 = vmatpush.bf16.msra.mxu0 %v494
    %7435 = vmatpush.bf16.msra.mxu0 %v490
    %7436 = vmatpush.bf16.msra.mxu0 %v486
    %7437 = vmatmul.bf16.gmra.mxu0 %v7282
    %v7438 = vpop.f32.mrf.mxu0
    %v7439 = vadd.f32 %v7426, %v7438
    %v7440 = vpop.f32.mrf.mxu0
    %7441 = vdwg.mxu0
    %v7442 = vmax.f32 %v7322, 0.0
    %v7443 = vmax.f32 %v7361, 0.0
    %v7444 = vmax.f32 %v7400, 0.0
    %v7445 = vmax.f32 %v7439, 0.0
    %v7446 = vpack.c.bf16 %v7442, %v7442
    %v7447 = vpack.c.bf16 %v7443, %v7443
    %v7448 = vpack.c.bf16 %v7444, %v7444
    %v7449 = vpack.c.bf16 %v7445, %v7445
    %s7450 = scalar_lea.vmem %s2, 3360
    %v7451 = vld [vmem:[%s7450] sm:$0xf]
    %v7452 = vld [vmem:[%s7450 + $0x4] sm:$0xf]
    %v7453 = vld [vmem:[%s7450 + $0x8] sm:$0xf]
    %v7454 = vld [vmem:[%s7450 + $0xc] sm:$0xf]
    %v7455 = vld [vmem:[%s7450 + $0x10] sm:$0xf]
    %v7456 = vld [vmem:[%s7450 + $0x14] sm:$0xf]
    %v7457 = vld [vmem:[%s7450 + $0x18] sm:$0xf]
    %v7458 = vld [vmem:[%s7450 + $0x1c] sm:$0xf]
    %v7459 = vld [vmem:[%s7450 + $0x20] sm:$0xf]
    %v7460 = vld [vmem:[%s7450 + $0x24] sm:$0xf]
    %v7461 = vld [vmem:[%s7450 + $0x28] sm:$0xf]
    %v7462 = vld [vmem:[%s7450 + $0x2c] sm:$0xf]
    %v7463 = vld [vmem:[%s7450 + $0x30] sm:$0xf]
    %v7464 = vld [vmem:[%s7450 + $0x34] sm:$0xf]
    %v7465 = vld [vmem:[%s7450 + $0x38] sm:$0xf]
    %v7466 = vld [vmem:[%s7450 + $0x3c] sm:$0xf]
    %v7467 = vld [vmem:[%s7450 + $0x40] sm:$0xf]
    %v7468 = vld [vmem:[%s7450 + $0x44] sm:$0xf]
    %v7469 = vld [vmem:[%s7450 + $0x48] sm:$0xf]
    %v7470 = vld [vmem:[%s7450 + $0x4c] sm:$0xf]
    %v7471 = vld [vmem:[%s7450 + $0x50] sm:$0xf]
    %v7472 = vld [vmem:[%s7450 + $0x54] sm:$0xf]
    %v7473 = vld [vmem:[%s7450 + $0x58] sm:$0xf]
    %v7474 = vld [vmem:[%s7450 + $0x5c] sm:$0xf]
    %v7475 = vld [vmem:[%s7450 + $0x60] sm:$0xf]
    %v7476 = vld [vmem:[%s7450 + $0x64] sm:$0xf]
    %v7477 = vld [vmem:[%s7450 + $0x68] sm:$0xf]
    %v7478 = vld [vmem:[%s7450 + $0x6c] sm:$0xf]
    %v7479 = vld [vmem:[%s7450 + $0x70] sm:$0xf]
    %v7480 = vld [vmem:[%s7450 + $0x74] sm:$0xf]
    %v7481 = vld [vmem:[%s7450 + $0x78] sm:$0xf]
    %v7482 = vld [vmem:[%s7450 + $0x7c] sm:$0xf]
    %v7483 = vld [vmem:[%s7450 + $0x80] sm:$0xf]
    %v7484 = vld [vmem:[%s7450 + $0x84] sm:$0xf]
    %v7485 = vld [vmem:[%s7450 + $0x88] sm:$0xf]
    %v7486 = vld [vmem:[%s7450 + $0x8c] sm:$0xf]
    %v7487 = vld [vmem:[%s7450 + $0x90] sm:$0xf]
    %v7488 = vld [vmem:[%s7450 + $0x94] sm:$0xf]
    %v7489 = vld [vmem:[%s7450 + $0x98] sm:$0xf]
    %v7490 = vld [vmem:[%s7450 + $0x9c] sm:$0xf]
    %v7491 = vld [vmem:[%s7450 + $0xa0] sm:$0xf]
    %v7492 = vld [vmem:[%s7450 + $0xa4] sm:$0xf]
    %v7493 = vld [vmem:[%s7450 + $0xa8] sm:$0xf]
    %v7494 = vld [vmem:[%s7450 + $0xac] sm:$0xf]
    %v7495 = vld [vmem:[%s7450 + $0xb0] sm:$0xf]
    %v7496 = vld [vmem:[%s7450 + $0xb4] sm:$0xf]
    %v7497 = vld [vmem:[%s7450 + $0xb8] sm:$0xf]
    %v7498 = vld [vmem:[%s7450 + $0xbc] sm:$0xf]
    %v7499 = vld [vmem:[%s7450 + $0xc0] sm:$0xf]
    %v7500 = vld [vmem:[%s7450 + $0xc4] sm:$0xf]
    %v7501 = vld [vmem:[%s7450 + $0xc8] sm:$0xf]
    %v7502 = vld [vmem:[%s7450 + $0xcc] sm:$0xf]
    %v7503 = vld [vmem:[%s7450 + $0xd0] sm:$0xf]
    %v7504 = vld [vmem:[%s7450 + $0xd4] sm:$0xf]
    %v7505 = vld [vmem:[%s7450 + $0xd8] sm:$0xf]
    %v7506 = vld [vmem:[%s7450 + $0xdc] sm:$0xf]
    %v7507 = vld [vmem:[%s7450 + $0xe0] sm:$0xf]
    %v7508 = vld [vmem:[%s7450 + $0xe4] sm:$0xf]
    %v7509 = vld [vmem:[%s7450 + $0xe8] sm:$0xf]
    %v7510 = vld [vmem:[%s7450 + $0xec] sm:$0x3]
    %v7571 = vunpack.c.l.b16 %v7451
    %v7572 = vunpack.c.l.b16 %v7452
    %v7573 = vunpack.c.l.b16 %v7453
    %v7574 = vunpack.c.l.b16 %v7454
    %v7575 = vunpack.c.l.b16 %v7455
    %v7576 = vunpack.c.l.b16 %v7456
    %v7577 = vunpack.c.l.b16 %v7457
    %v7578 = vunpack.c.l.b16 %v7458
    %v7579 = vunpack.c.l.b16 %v7459
    %v7580 = vunpack.c.l.b16 %v7460
    %v7581 = vunpack.c.l.b16 %v7461
    %v7582 = vunpack.c.l.b16 %v7462
    %v7583 = vunpack.c.l.b16 %v7463
    %v7584 = vunpack.c.l.b16 %v7464
    %v7585 = vunpack.c.l.b16 %v7465
    %v7586 = vunpack.c.l.b16 %v7466
    %v7587 = vunpack.c.l.b16 %v7467
    %v7588 = vunpack.c.l.b16 %v7468
    %v7589 = vunpack.c.l.b16 %v7469
    %v7590 = vunpack.c.l.b16 %v7470
    %v7591 = vunpack.c.l.b16 %v7471
    %v7592 = vunpack.c.l.b16 %v7472
    %v7593 = vunpack.c.l.b16 %v7473
    %v7594 = vunpack.c.l.b16 %v7474
    %v7595 = vunpack.c.l.b16 %v7475
    %v7596 = vunpack.c.l.b16 %v7476
    %v7597 = vunpack.c.l.b16 %v7477
    %v7598 = vunpack.c.l.b16 %v7478
    %v7599 = vunpack.c.l.b16 %v7479
    %v7600 = vunpack.c.l.b16 %v7480
    %v7601 = vunpack.c.l.b16 %v7481
    %v7602 = vunpack.c.l.b16 %v7482
    %v7603 = vunpack.c.l.b16 %v7483
    %v7604 = vunpack.c.l.b16 %v7484
    %v7605 = vunpack.c.l.b16 %v7485
    %v7606 = vunpack.c.l.b16 %v7486
    %v7607 = vunpack.c.l.b16 %v7487
    %v7608 = vunpack.c.l.b16 %v7488
    %v7609 = vunpack.c.l.b16 %v7489
    %v7610 = vunpack.c.l.b16 %v7490
    %v7611 = vunpack.c.l.b16 %v7491
    %v7612 = vunpack.c.l.b16 %v7492
    %v7613 = vunpack.c.l.b16 %v7493
    %v7614 = vunpack.c.l.b16 %v7494
    %v7615 = vunpack.c.l.b16 %v7495
    %v7616 = vunpack.c.l.b16 %v7496
    %v7617 = vunpack.c.l.b16 %v7497
    %v7618 = vunpack.c.l.b16 %v7498
    %v7619 = vunpack.c.l.b16 %v7499
    %v7620 = vunpack.c.l.b16 %v7500
    %v7621 = vunpack.c.l.b16 %v7501
    %v7622 = vunpack.c.l.b16 %v7502
    %v7623 = vunpack.c.l.b16 %v7503
    %v7624 = vunpack.c.l.b16 %v7504
    %v7625 = vunpack.c.l.b16 %v7505
    %v7626 = vunpack.c.l.b16 %v7506
    %v7627 = vunpack.c.l.b16 %v7507
    %v7628 = vunpack.c.l.b16 %v7508
    %v7629 = vunpack.c.l.b16 %v7509
    %v7630 = vunpack.c.l.b16 %v7510
    %v7631 = vpack.c.b16 %v7572, %v7571
    %v7632 = vpack.c.b16 %v7574, %v7573
    %v7633 = vpack.c.b16 %v7576, %v7575
    %v7634 = vpack.c.b16 %v7578, %v7577
    %v7635 = vpack.c.b16 %v7580, %v7579
    %v7636 = vpack.c.b16 %v7582, %v7581
    %v7637 = vpack.c.b16 %v7584, %v7583
    %v7638 = vpack.c.b16 %v7586, %v7585
    %v7639 = vpack.c.b16 %v7588, %v7587
    %v7640 = vpack.c.b16 %v7590, %v7589
    %v7641 = vpack.c.b16 %v7592, %v7591
    %v7642 = vpack.c.b16 %v7594, %v7593
    %v7643 = vpack.c.b16 %v7596, %v7595
    %v7644 = vpack.c.b16 %v7598, %v7597
    %v7645 = vpack.c.b16 %v7600, %v7599
    %v7646 = vpack.c.b16 %v7602, %v7601
    %v7647 = vpack.c.b16 %v7604, %v7603
    %v7648 = vpack.c.b16 %v7606, %v7605
    %v7649 = vpack.c.b16 %v7608, %v7607
    %v7650 = vpack.c.b16 %v7610, %v7609
    %v7651 = vpack.c.b16 %v7612, %v7611
    %v7652 = vpack.c.b16 %v7614, %v7613
    %v7653 = vpack.c.b16 %v7616, %v7615
    %v7654 = vpack.c.b16 %v7618, %v7617
    %v7655 = vpack.c.b16 %v7620, %v7619
    %v7656 = vpack.c.b16 %v7622, %v7621
    %v7657 = vpack.c.b16 %v7624, %v7623
    %v7658 = vpack.c.b16 %v7626, %v7625
    %v7659 = vpack.c.b16 %v7628, %v7627
    %v7660 = vpack.c.b16 %v7630, %v7629
    %v7691 = vsel %vm1492, %v7449, 0
    %v7694 = vsel %vm1496, %v7660, 0
    %7696 = vmatpush.bf16.msra.mxu0 %v7638
    %7697 = vmatpush.bf16.msra.mxu0 %v7637
    %7698 = vmatpush.bf16.msra.mxu0 %v7636
    %7699 = vmatpush.bf16.msra.mxu0 %v7635
    %7700 = vmatpush.bf16.msra.mxu0 %v7634
    %7701 = vmatpush.bf16.msra.mxu0 %v7633
    %7702 = vmatpush.bf16.msra.mxu0 %v7632
    %7703 = vmatpush.bf16.msra.mxu0 %v7631
    %7704 = vmatmul.bf16.gmra.mxu0 %v7446
    %v7705 = vpop.f32.mrf.mxu0
    %v7706 = vadd.f32 0.0, %v7705
    %v7707 = vpop.f32.mrf.mxu0
    %7708 = vdwg.mxu0
    %7709 = vmatpush.bf16.msra.mxu0 %v7646
    %7710 = vmatpush.bf16.msra.mxu0 %v7645
    %7711 = vmatpush.bf16.msra.mxu0 %v7644
    %7712 = vmatpush.bf16.msra.mxu0 %v7643
    %7713 = vmatpush.bf16.msra.mxu0 %v7642
    %7714 = vmatpush.bf16.msra.mxu0 %v7641
    %7715 = vmatpush.bf16.msra.mxu0 %v7640
    %7716 = vmatpush.bf16.msra.mxu0 %v7639
    %7717 = vmatmul.bf16.gmra.mxu0 %v7447
    %v7718 = vpop.f32.mrf.mxu0
    %v7719 = vadd.f32 %v7706, %v7718
    %v7720 = vpop.f32.mrf.mxu0
    %7721 = vdwg.mxu0
    %7722 = vmatpush.bf16.msra.mxu0 %v7654
    %7723 = vmatpush.bf16.msra.mxu0 %v7653
    %7724 = vmatpush.bf16.msra.mxu0 %v7652
    %7725 = vmatpush.bf16.msra.mxu0 %v7651
    %7726 = vmatpush.bf16.msra.mxu0 %v7650
    %7727 = vmatpush.bf16.msra.mxu0 %v7649
    %7728 = vmatpush.bf16.msra.mxu0 %v7648
    %7729 = vmatpush.bf16.msra.mxu0 %v7647
    %7730 = vmatmul.bf16.gmra.mxu0 %v7448
    %v7731 = vpop.f32.mrf.mxu0
    %v7732 = vadd.f32 %v7719, %v7731
    %v7733 = vpop.f32.mrf.mxu0
    %7734 = vdwg.mxu0
    %7735 = vmatpush.bf16.msra.mxu0 0
    %7736 = vmatpush.bf16.msra.mxu0 0
    %7737 = vmatpush.bf16.msra.mxu0 %v7694
    %7738 = vmatpush.bf16.msra.mxu0 %v7659
    %7739 = vmatpush.bf16.msra.mxu0 %v7658
    %7740 = vmatpush.bf16.msra.mxu0 %v7657
    %7741 = vmatpush.bf16.msra.mxu0 %v7656
    %7742 = vmatpush.bf16.msra.mxu0 %v7655
    %7743 = vmatmul.bf16.gmra.mxu0 %v7691
    %v7744 = vpop.f32.mrf.mxu0
    %v7745 = vadd.f32 %v7732, %v7744
    %v7746 = vpop.f32.mrf.mxu0
    %7747 = vdwg.mxu0
    %v7748 = vadd.f32 %v6794, %v7745
    %s7749 = scalar_lea.vmem %s0, 180
    %v7750 = vld [vmem:[%s7749] sm:$0xff]
    %v7751 = vld [vmem:[%s7749 + $0x8] sm:$0xf]
    %v7754 = vunpack.c.l.b16 %v7750
    %v7755 = vunpack.c.h.b16 %v7750
    %v7756 = vunpack.c.l.b16 %v7751
    %v7757 = vpack.c.b16 %v7754, %v7754
    %v7758 = vpack.c.b16 %v7755, %v7755
    %v7759 = vpack.c.b16 %v7756, %v7756
    %7763 = vmatpush.bf16.msra.mxu0 %v447
    %7764 = vmatpush.bf16.msra.mxu0 %v443
    %7765 = vmatpush.bf16.msra.mxu0 %v439
    %7766 = vmatpush.bf16.msra.mxu0 %v435
    %7767 = vmatpush.bf16.msra.mxu0 %v431
    %7768 = vmatpush.bf16.msra.mxu0 %v427
    %7769 = vmatpush.bf16.msra.mxu0 %v423
    %7770 = vmatpush.bf16.msra.mxu0 %v419
    %7771 = vmatmul.bf16.gmra.mxu0 %v7757
    %v7772 = vpop.f32.mrf.mxu0
    %v7773 = vadd.f32 0.0, %v7772
    %v7774 = vpop.f32.mrf.mxu0
    %7775 = vdwg.mxu0
    %7776 = vmatpush.bf16.msra.mxu0 %v479
    %7777 = vmatpush.bf16.msra.mxu0 %v475
    %7778 = vmatpush.bf16.msra.mxu0 %v471
    %7779 = vmatpush.bf16.msra.mxu0 %v467
    %7780 = vmatpush.bf16.msra.mxu0 %v463
    %7781 = vmatpush.bf16.msra.mxu0 %v459
    %7782 = vmatpush.bf16.msra.mxu0 %v455
    %7783 = vmatpush.bf16.msra.mxu0 %v451
    %7784 = vmatmul.bf16.gmra.mxu0 %v7758
    %v7785 = vpop.f32.mrf.mxu0
    %v7786 = vadd.f32 %v7773, %v7785
    %v7787 = vpop.f32.mrf.mxu0
    %7788 = vdwg.mxu0
    %7789 = vmatpush.bf16.msra.mxu0 %v511
    %7790 = vmatpush.bf16.msra.mxu0 %v507
    %7791 = vmatpush.bf16.msra.mxu0 %v503
    %7792 = vmatpush.bf16.msra.mxu0 %v499
    %7793 = vmatpush.bf16.msra.mxu0 %v495
    %7794 = vmatpush.bf16.msra.mxu0 %v491
    %7795 = vmatpush.bf16.msra.mxu0 %v487
    %7796 = vmatpush.bf16.msra.mxu0 %v483
    %7797 = vmatmul.bf16.gmra.mxu0 %v7759
    %v7798 = vpop.f32.mrf.mxu0
    %v7799 = vadd.f32 %v7786, %v7798
    %v7800 = vpop.f32.mrf.mxu0
    %7801 = vdwg.mxu0
    %7802 = vmatpush.bf16.msra.mxu0 %v448
    %7803 = vmatpush.bf16.msra.mxu0 %v444
    %7804 = vmatpush.bf16.msra.mxu0 %v440
    %7805 = vmatpush.bf16.msra.mxu0 %v436
    %7806 = vmatpush.bf16.msra.mxu0 %v432
    %7807 = vmatpush.bf16.msra.mxu0 %v428
    %7808 = vmatpush.bf16.msra.mxu0 %v424
    %7809 = vmatpush.bf16.msra.mxu0 %v420
    %7810 = vmatmul.bf16.gmra.mxu0 %v7757
    %v7811 = vpop.f32.mrf.mxu0
    %v7812 = vadd.f32 0.0, %v7811
    %v7813 = vpop.f32.mrf.mxu0
    %7814 = vdwg.mxu0
    %7815 = vmatpush.bf16.msra.mxu0 %v480
    %7816 = vmatpush.bf16.msra.mxu0 %v476
    %7817 = vmatpush.bf16.msra.mxu0 %v472
    %7818 = vmatpush.bf16.msra.mxu0 %v468
    %7819 = vmatpush.bf16.msra.mxu0 %v464
    %7820 = vmatpush.bf16.msra.mxu0 %v460
    %7821 = vmatpush.bf16.msra.mxu0 %v456
    %7822 = vmatpush.bf16.msra.mxu0 %v452
    %7823 = vmatmul.bf16.gmra.mxu0 %v7758
    %v7824 = vpop.f32.mrf.mxu0
    %v7825 = vadd.f32 %v7812, %v7824
    %v7826 = vpop.f32.mrf.mxu0
    %7827 = vdwg.mxu0
    %7828 = vmatpush.bf16.msra.mxu0 %v512
    %7829 = vmatpush.bf16.msra.mxu0 %v508
    %7830 = vmatpush.bf16.msra.mxu0 %v504
    %7831 = vmatpush.bf16.msra.mxu0 %v500
    %7832 = vmatpush.bf16.msra.mxu0 %v496
    %7833 = vmatpush.bf16.msra.mxu0 %v492
    %7834 = vmatpush.bf16.msra.mxu0 %v488
    %7835 = vmatpush.bf16.msra.mxu0 %v484
    %7836 = vmatmul.bf16.gmra.mxu0 %v7759
    %v7837 = vpop.f32.mrf.mxu0
    %v7838 = vadd.f32 %v7825, %v7837
    %v7839 = vpop.f32.mrf.mxu0
    %7840 = vdwg.mxu0
    %7841 = vmatpush.bf16.msra.mxu0 %v449
    %7842 = vmatpush.bf16.msra.mxu0 %v445
    %7843 = vmatpush.bf16.msra.mxu0 %v441
    %7844 = vmatpush.bf16.msra.mxu0 %v437
    %7845 = vmatpush.bf16.msra.mxu0 %v433
    %7846 = vmatpush.bf16.msra.mxu0 %v429
    %7847 = vmatpush.bf16.msra.mxu0 %v425
    %7848 = vmatpush.bf16.msra.mxu0 %v421
    %7849 = vmatmul.bf16.gmra.mxu0 %v7757
    %v7850 = vpop.f32.mrf.mxu0
    %v7851 = vadd.f32 0.0, %v7850
    %v7852 = vpop.f32.mrf.mxu0
    %7853 = vdwg.mxu0
    %7854 = vmatpush.bf16.msra.mxu0 %v481
    %7855 = vmatpush.bf16.msra.mxu0 %v477
    %7856 = vmatpush.bf16.msra.mxu0 %v473
    %7857 = vmatpush.bf16.msra.mxu0 %v469
    %7858 = vmatpush.bf16.msra.mxu0 %v465
    %7859 = vmatpush.bf16.msra.mxu0 %v461
    %7860 = vmatpush.bf16.msra.mxu0 %v457
    %7861 = vmatpush.bf16.msra.mxu0 %v453
    %7862 = vmatmul.bf16.gmra.mxu0 %v7758
    %v7863 = vpop.f32.mrf.mxu0
    %v7864 = vadd.f32 %v7851, %v7863
    %v7865 = vpop.f32.mrf.mxu0
    %7866 = vdwg.mxu0
    %7867 = vmatpush.bf16.msra.mxu0 %v513
    %7868 = vmatpush.bf16.msra.mxu0 %v509
    %7869 = vmatpush.bf16.msra.mxu0 %v505
    %7870 = vmatpush.bf16.msra.mxu0 %v501
    %7871 = vmatpush.bf16.msra.mxu0 %v497
    %7872 = vmatpush.bf16.msra.mxu0 %v493
    %7873 = vmatpush.bf16.msra.mxu0 %v489
    %7874 = vmatpush.bf16.msra.mxu0 %v485
    %7875 = vmatmul.bf16.gmra.mxu0 %v7759
    %v7876 = vpop.f32.mrf.mxu0
    %v7877 = vadd.f32 %v7864, %v7876
    %v7878 = vpop.f32.mrf.mxu0
    %7879 = vdwg.mxu0
    %7880 = vmatpush.bf16.msra.mxu0 %v450
    %7881 = vmatpush.bf16.msra.mxu0 %v446
    %7882 = vmatpush.bf16.msra.mxu0 %v442
    %7883 = vmatpush.bf16.msra.mxu0 %v438
    %7884 = vmatpush.bf16.msra.mxu0 %v434
    %7885 = vmatpush.bf16.msra.mxu0 %v430
    %7886 = vmatpush.bf16.msra.mxu0 %v426
    %7887 = vmatpush.bf16.msra.mxu0 %v422
    %7888 = vmatmul.bf16.gmra.mxu0 %v7757
    %v7889 = vpop.f32.mrf.mxu0
    %v7890 = vadd.f32 0.0, %v7889
    %v7891 = vpop.f32.mrf.mxu0
    %7892 = vdwg.mxu0
    %7893 = vmatpush.bf16.msra.mxu0 %v482
    %7894 = vmatpush.bf16.msra.mxu0 %v478
    %7895 = vmatpush.bf16.msra.mxu0 %v474
    %7896 = vmatpush.bf16.msra.mxu0 %v470
    %7897 = vmatpush.bf16.msra.mxu0 %v466
    %7898 = vmatpush.bf16.msra.mxu0 %v462
    %7899 = vmatpush.bf16.msra.mxu0 %v458
    %7900 = vmatpush.bf16.msra.mxu0 %v454
    %7901 = vmatmul.bf16.gmra.mxu0 %v7758
    %v7902 = vpop.f32.mrf.mxu0
    %v7903 = vadd.f32 %v7890, %v7902
    %v7904 = vpop.f32.mrf.mxu0
    %7905 = vdwg.mxu0
    %7906 = vmatpush.bf16.msra.mxu0 %v514
    %7907 = vmatpush.bf16.msra.mxu0 %v510
    %7908 = vmatpush.bf16.msra.mxu0 %v506
    %7909 = vmatpush.bf16.msra.mxu0 %v502
    %7910 = vmatpush.bf16.msra.mxu0 %v498
    %7911 = vmatpush.bf16.msra.mxu0 %v494
    %7912 = vmatpush.bf16.msra.mxu0 %v490
    %7913 = vmatpush.bf16.msra.mxu0 %v486
    %7914 = vmatmul.bf16.gmra.mxu0 %v7759
    %v7915 = vpop.f32.mrf.mxu0
    %v7916 = vadd.f32 %v7903, %v7915
    %v7917 = vpop.f32.mrf.mxu0
    %7918 = vdwg.mxu0
    %v7919 = vmax.f32 %v7799, 0.0
    %v7920 = vmax.f32 %v7838, 0.0
    %v7921 = vmax.f32 %v7877, 0.0
    %v7922 = vmax.f32 %v7916, 0.0
    %v7923 = vpack.c.bf16 %v7919, %v7919
    %v7924 = vpack.c.bf16 %v7920, %v7920
    %v7925 = vpack.c.bf16 %v7921, %v7921
    %v7926 = vpack.c.bf16 %v7922, %v7922
    %s7927 = scalar_lea.vmem %s2, 3600
    %v7928 = vld [vmem:[%s7927] sm:$0xf]
    %v7929 = vld [vmem:[%s7927 + $0x4] sm:$0xf]
    %v7930 = vld [vmem:[%s7927 + $0x8] sm:$0xf]
    %v7931 = vld [vmem:[%s7927 + $0xc] sm:$0xf]
    %v7932 = vld [vmem:[%s7927 + $0x10] sm:$0xf]
    %v7933 = vld [vmem:[%s7927 + $0x14] sm:$0xf]
    %v7934 = vld [vmem:[%s7927 + $0x18] sm:$0xf]
    %v7935 = vld [vmem:[%s7927 + $0x1c] sm:$0xf]
    %v7936 = vld [vmem:[%s7927 + $0x20] sm:$0xf]
    %v7937 = vld [vmem:[%s7927 + $0x24] sm:$0xf]
    %v7938 = vld [vmem:[%s7927 + $0x28] sm:$0xf]
    %v7939 = vld [vmem:[%s7927 + $0x2c] sm:$0xf]
    %v7940 = vld [vmem:[%s7927 + $0x30] sm:$0xf]
    %v7941 = vld [vmem:[%s7927 + $0x34] sm:$0xf]
    %v7942 = vld [vmem:[%s7927 + $0x38] sm:$0xf]
    %v7943 = vld [vmem:[%s7927 + $0x3c] sm:$0xf]
    %v7944 = vld [vmem:[%s7927 + $0x40] sm:$0xf]
    %v7945 = vld [vmem:[%s7927 + $0x44] sm:$0xf]
    %v7946 = vld [vmem:[%s7927 + $0x48] sm:$0xf]
    %v7947 = vld [vmem:[%s7927 + $0x4c] sm:$0xf]
    %v7948 = vld [vmem:[%s7927 + $0x50] sm:$0xf]
    %v7949 = vld [vmem:[%s7927 + $0x54] sm:$0xf]
    %v7950 = vld [vmem:[%s7927 + $0x58] sm:$0xf]
    %v7951 = vld [vmem:[%s7927 + $0x5c] sm:$0xf]
    %v7952 = vld [vmem:[%s7927 + $0x60] sm:$0xf]
    %v7953 = vld [vmem:[%s7927 + $0x64] sm:$0xf]
    %v7954 = vld [vmem:[%s7927 + $0x68] sm:$0xf]
    %v7955 = vld [vmem:[%s7927 + $0x6c] sm:$0xf]
    %v7956 = vld [vmem:[%s7927 + $0x70] sm:$0xf]
    %v7957 = vld [vmem:[%s7927 + $0x74] sm:$0xf]
    %v7958 = vld [vmem:[%s7927 + $0x78] sm:$0xf]
    %v7959 = vld [vmem:[%s7927 + $0x7c] sm:$0xf]
    %v7960 = vld [vmem:[%s7927 + $0x80] sm:$0xf]
    %v7961 = vld [vmem:[%s7927 + $0x84] sm:$0xf]
    %v7962 = vld [vmem:[%s7927 + $0x88] sm:$0xf]
    %v7963 = vld [vmem:[%s7927 + $0x8c] sm:$0xf]
    %v7964 = vld [vmem:[%s7927 + $0x90] sm:$0xf]
    %v7965 = vld [vmem:[%s7927 + $0x94] sm:$0xf]
    %v7966 = vld [vmem:[%s7927 + $0x98] sm:$0xf]
    %v7967 = vld [vmem:[%s7927 + $0x9c] sm:$0xf]
    %v7968 = vld [vmem:[%s7927 + $0xa0] sm:$0xf]
    %v7969 = vld [vmem:[%s7927 + $0xa4] sm:$0xf]
    %v7970 = vld [vmem:[%s7927 + $0xa8] sm:$0xf]
    %v7971 = vld [vmem:[%s7927 + $0xac] sm:$0xf]
    %v7972 = vld [vmem:[%s7927 + $0xb0] sm:$0xf]
    %v7973 = vld [vmem:[%s7927 + $0xb4] sm:$0xf]
    %v7974 = vld [vmem:[%s7927 + $0xb8] sm:$0xf]
    %v7975 = vld [vmem:[%s7927 + $0xbc] sm:$0xf]
    %v7976 = vld [vmem:[%s7927 + $0xc0] sm:$0xf]
    %v7977 = vld [vmem:[%s7927 + $0xc4] sm:$0xf]
    %v7978 = vld [vmem:[%s7927 + $0xc8] sm:$0xf]
    %v7979 = vld [vmem:[%s7927 + $0xcc] sm:$0xf]
    %v7980 = vld [vmem:[%s7927 + $0xd0] sm:$0xf]
    %v7981 = vld [vmem:[%s7927 + $0xd4] sm:$0xf]
    %v7982 = vld [vmem:[%s7927 + $0xd8] sm:$0xf]
    %v7983 = vld [vmem:[%s7927 + $0xdc] sm:$0xf]
    %v7984 = vld [vmem:[%s7927 + $0xe0] sm:$0xf]
    %v7985 = vld [vmem:[%s7927 + $0xe4] sm:$0xf]
    %v7986 = vld [vmem:[%s7927 + $0xe8] sm:$0xf]
    %v7987 = vld [vmem:[%s7927 + $0xec] sm:$0x3]
    %v8048 = vunpack.c.l.b16 %v7928
    %v8049 = vunpack.c.l.b16 %v7929
    %v8050 = vunpack.c.l.b16 %v7930
    %v8051 = vunpack.c.l.b16 %v7931
    %v8052 = vunpack.c.l.b16 %v7932
    %v8053 = vunpack.c.l.b16 %v7933
    %v8054 = vunpack.c.l.b16 %v7934
    %v8055 = vunpack.c.l.b16 %v7935
    %v8056 = vunpack.c.l.b16 %v7936
    %v8057 = vunpack.c.l.b16 %v7937
    %v8058 = vunpack.c.l.b16 %v7938
    %v8059 = vunpack.c.l.b16 %v7939
    %v8060 = vunpack.c.l.b16 %v7940
    %v8061 = vunpack.c.l.b16 %v7941
    %v8062 = vunpack.c.l.b16 %v7942
    %v8063 = vunpack.c.l.b16 %v7943
    %v8064 = vunpack.c.l.b16 %v7944
    %v8065 = vunpack.c.l.b16 %v7945
    %v8066 = vunpack.c.l.b16 %v7946
    %v8067 = vunpack.c.l.b16 %v7947
    %v8068 = vunpack.c.l.b16 %v7948
    %v8069 = vunpack.c.l.b16 %v7949
    %v8070 = vunpack.c.l.b16 %v7950
    %v8071 = vunpack.c.l.b16 %v7951
    %v8072 = vunpack.c.l.b16 %v7952
    %v8073 = vunpack.c.l.b16 %v7953
    %v8074 = vunpack.c.l.b16 %v7954
    %v8075 = vunpack.c.l.b16 %v7955
    %v8076 = vunpack.c.l.b16 %v7956
    %v8077 = vunpack.c.l.b16 %v7957
    %v8078 = vunpack.c.l.b16 %v7958
    %v8079 = vunpack.c.l.b16 %v7959
    %v8080 = vunpack.c.l.b16 %v7960
    %v8081 = vunpack.c.l.b16 %v7961
    %v8082 = vunpack.c.l.b16 %v7962
    %v8083 = vunpack.c.l.b16 %v7963
    %v8084 = vunpack.c.l.b16 %v7964
    %v8085 = vunpack.c.l.b16 %v7965
    %v8086 = vunpack.c.l.b16 %v7966
    %v8087 = vunpack.c.l.b16 %v7967
    %v8088 = vunpack.c.l.b16 %v7968
    %v8089 = vunpack.c.l.b16 %v7969
    %v8090 = vunpack.c.l.b16 %v7970
    %v8091 = vunpack.c.l.b16 %v7971
    %v8092 = vunpack.c.l.b16 %v7972
    %v8093 = vunpack.c.l.b16 %v7973
    %v8094 = vunpack.c.l.b16 %v7974
    %v8095 = vunpack.c.l.b16 %v7975
    %v8096 = vunpack.c.l.b16 %v7976
    %v8097 = vunpack.c.l.b16 %v7977
    %v8098 = vunpack.c.l.b16 %v7978
    %v8099 = vunpack.c.l.b16 %v7979
    %v8100 = vunpack.c.l.b16 %v7980
    %v8101 = vunpack.c.l.b16 %v7981
    %v8102 = vunpack.c.l.b16 %v7982
    %v8103 = vunpack.c.l.b16 %v7983
    %v8104 = vunpack.c.l.b16 %v7984
    %v8105 = vunpack.c.l.b16 %v7985
    %v8106 = vunpack.c.l.b16 %v7986
    %v8107 = vunpack.c.l.b16 %v7987
    %v8108 = vpack.c.b16 %v8049, %v8048
    %v8109 = vpack.c.b16 %v8051, %v8050
    %v8110 = vpack.c.b16 %v8053, %v8052
    %v8111 = vpack.c.b16 %v8055, %v8054
    %v8112 = vpack.c.b16 %v8057, %v8056
    %v8113 = vpack.c.b16 %v8059, %v8058
    %v8114 = vpack.c.b16 %v8061, %v8060
    %v8115 = vpack.c.b16 %v8063, %v8062
    %v8116 = vpack.c.b16 %v8065, %v8064
    %v8117 = vpack.c.b16 %v8067, %v8066
    %v8118 = vpack.c.b16 %v8069, %v8068
    %v8119 = vpack.c.b16 %v8071, %v8070
    %v8120 = vpack.c.b16 %v8073, %v8072
    %v8121 = vpack.c.b16 %v8075, %v8074
    %v8122 = vpack.c.b16 %v8077, %v8076
    %v8123 = vpack.c.b16 %v8079, %v8078
    %v8124 = vpack.c.b16 %v8081, %v8080
    %v8125 = vpack.c.b16 %v8083, %v8082
    %v8126 = vpack.c.b16 %v8085, %v8084
    %v8127 = vpack.c.b16 %v8087, %v8086
    %v8128 = vpack.c.b16 %v8089, %v8088
    %v8129 = vpack.c.b16 %v8091, %v8090
    %v8130 = vpack.c.b16 %v8093, %v8092
    %v8131 = vpack.c.b16 %v8095, %v8094
    %v8132 = vpack.c.b16 %v8097, %v8096
    %v8133 = vpack.c.b16 %v8099, %v8098
    %v8134 = vpack.c.b16 %v8101, %v8100
    %v8135 = vpack.c.b16 %v8103, %v8102
    %v8136 = vpack.c.b16 %v8105, %v8104
    %v8137 = vpack.c.b16 %v8107, %v8106
    %v8168 = vsel %vm1492, %v7926, 0
    %v8171 = vsel %vm1496, %v8137, 0
    %8173 = vmatpush.bf16.msra.mxu0 %v8115
    %8174 = vmatpush.bf16.msra.mxu0 %v8114
    %8175 = vmatpush.bf16.msra.mxu0 %v8113
    %8176 = vmatpush.bf16.msra.mxu0 %v8112
    %8177 = vmatpush.bf16.msra.mxu0 %v8111
    %8178 = vmatpush.bf16.msra.mxu0 %v8110
    %8179 = vmatpush.bf16.msra.mxu0 %v8109
    %8180 = vmatpush.bf16.msra.mxu0 %v8108
    %8181 = vmatmul.bf16.gmra.mxu0 %v7923
    %v8182 = vpop.f32.mrf.mxu0
    %v8183 = vadd.f32 0.0, %v8182
    %v8184 = vpop.f32.mrf.mxu0
    %8185 = vdwg.mxu0
    %8186 = vmatpush.bf16.msra.mxu0 %v8123
    %8187 = vmatpush.bf16.msra.mxu0 %v8122
    %8188 = vmatpush.bf16.msra.mxu0 %v8121
    %8189 = vmatpush.bf16.msra.mxu0 %v8120
    %8190 = vmatpush.bf16.msra.mxu0 %v8119
    %8191 = vmatpush.bf16.msra.mxu0 %v8118
    %8192 = vmatpush.bf16.msra.mxu0 %v8117
    %8193 = vmatpush.bf16.msra.mxu0 %v8116
    %8194 = vmatmul.bf16.gmra.mxu0 %v7924
    %v8195 = vpop.f32.mrf.mxu0
    %v8196 = vadd.f32 %v8183, %v8195
    %v8197 = vpop.f32.mrf.mxu0
    %8198 = vdwg.mxu0
    %8199 = vmatpush.bf16.msra.mxu0 %v8131
    %8200 = vmatpush.bf16.msra.mxu0 %v8130
    %8201 = vmatpush.bf16.msra.mxu0 %v8129
    %8202 = vmatpush.bf16.msra.mxu0 %v8128
    %8203 = vmatpush.bf16.msra.mxu0 %v8127
    %8204 = vmatpush.bf16.msra.mxu0 %v8126
    %8205 = vmatpush.bf16.msra.mxu0 %v8125
    %8206 = vmatpush.bf16.msra.mxu0 %v8124
    %8207 = vmatmul.bf16.gmra.mxu0 %v7925
    %v8208 = vpop.f32.mrf.mxu0
    %v8209 = vadd.f32 %v8196, %v8208
    %v8210 = vpop.f32.mrf.mxu0
    %8211 = vdwg.mxu0
    %8212 = vmatpush.bf16.msra.mxu0 0
    %8213 = vmatpush.bf16.msra.mxu0 0
    %8214 = vmatpush.bf16.msra.mxu0 %v8171
    %8215 = vmatpush.bf16.msra.mxu0 %v8136
    %8216 = vmatpush.bf16.msra.mxu0 %v8135
    %8217 = vmatpush.bf16.msra.mxu0 %v8134
    %8218 = vmatpush.bf16.msra.mxu0 %v8133
    %8219 = vmatpush.bf16.msra.mxu0 %v8132
    %8220 = vmatmul.bf16.gmra.mxu0 %v8168
    %v8221 = vpop.f32.mrf.mxu0
    %v8222 = vadd.f32 %v8209, %v8221
    %v8223 = vpop.f32.mrf.mxu0
    %8224 = vdwg.mxu0
    %v8225 = vadd.f32 %v7271, %v8222
    %s8226 = scalar_lea.vmem %s0, 192
    %v8227 = vld [vmem:[%s8226] sm:$0xff]
    %v8228 = vld [vmem:[%s8226 + $0x8] sm:$0xf]
    %v8231 = vunpack.c.l.b16 %v8227
    %v8232 = vunpack.c.h.b16 %v8227
    %v8233 = vunpack.c.l.b16 %v8228
    %v8234 = vpack.c.b16 %v8231, %v8231
    %v8235 = vpack.c.b16 %v8232, %v8232
    %v8236 = vpack.c.b16 %v8233, %v8233
    %8240 = vmatpush.bf16.msra.mxu0 %v447
    %8241 = vmatpush.bf16.msra.mxu0 %v443
    %8242 = vmatpush.bf16.msra.mxu0 %v439
    %8243 = vmatpush.bf16.msra.mxu0 %v435
    %8244 = vmatpush.bf16.msra.mxu0 %v431
    %8245 = vmatpush.bf16.msra.mxu0 %v427
    %8246 = vmatpush.bf16.msra.mxu0 %v423
    %8247 = vmatpush.bf16.msra.mxu0 %v419
    %8248 = vmatmul.bf16.gmra.mxu0 %v8234
    %v8249 = vpop.f32.mrf.mxu0
    %v8250 = vadd.f32 0.0, %v8249
    %v8251 = vpop.f32.mrf.mxu0
    %8252 = vdwg.mxu0
    %8253 = vmatpush.bf16.msra.mxu0 %v479
    %8254 = vmatpush.bf16.msra.mxu0 %v475
    %8255 = vmatpush.bf16.msra.mxu0 %v471
    %8256 = vmatpush.bf16.msra.mxu0 %v467
    %8257 = vmatpush.bf16.msra.mxu0 %v463
    %8258 = vmatpush.bf16.msra.mxu0 %v459
    %8259 = vmatpush.bf16.msra.mxu0 %v455
    %8260 = vmatpush.bf16.msra.mxu0 %v451
    %8261 = vmatmul.bf16.gmra.mxu0 %v8235
    %v8262 = vpop.f32.mrf.mxu0
    %v8263 = vadd.f32 %v8250, %v8262
    %v8264 = vpop.f32.mrf.mxu0
    %8265 = vdwg.mxu0
    %8266 = vmatpush.bf16.msra.mxu0 %v511
    %8267 = vmatpush.bf16.msra.mxu0 %v507
    %8268 = vmatpush.bf16.msra.mxu0 %v503
    %8269 = vmatpush.bf16.msra.mxu0 %v499
    %8270 = vmatpush.bf16.msra.mxu0 %v495
    %8271 = vmatpush.bf16.msra.mxu0 %v491
    %8272 = vmatpush.bf16.msra.mxu0 %v487
    %8273 = vmatpush.bf16.msra.mxu0 %v483
    %8274 = vmatmul.bf16.gmra.mxu0 %v8236
    %v8275 = vpop.f32.mrf.mxu0
    %v8276 = vadd.f32 %v8263, %v8275
    %v8277 = vpop.f32.mrf.mxu0
    %8278 = vdwg.mxu0
    %8279 = vmatpush.bf16.msra.mxu0 %v448
    %8280 = vmatpush.bf16.msra.mxu0 %v444
    %8281 = vmatpush.bf16.msra.mxu0 %v440
    %8282 = vmatpush.bf16.msra.mxu0 %v436
    %8283 = vmatpush.bf16.msra.mxu0 %v432
    %8284 = vmatpush.bf16.msra.mxu0 %v428
    %8285 = vmatpush.bf16.msra.mxu0 %v424
    %8286 = vmatpush.bf16.msra.mxu0 %v420
    %8287 = vmatmul.bf16.gmra.mxu0 %v8234
    %v8288 = vpop.f32.mrf.mxu0
    %v8289 = vadd.f32 0.0, %v8288
    %v8290 = vpop.f32.mrf.mxu0
    %8291 = vdwg.mxu0
    %8292 = vmatpush.bf16.msra.mxu0 %v480
    %8293 = vmatpush.bf16.msra.mxu0 %v476
    %8294 = vmatpush.bf16.msra.mxu0 %v472
    %8295 = vmatpush.bf16.msra.mxu0 %v468
    %8296 = vmatpush.bf16.msra.mxu0 %v464
    %8297 = vmatpush.bf16.msra.mxu0 %v460
    %8298 = vmatpush.bf16.msra.mxu0 %v456
    %8299 = vmatpush.bf16.msra.mxu0 %v452
    %8300 = vmatmul.bf16.gmra.mxu0 %v8235
    %v8301 = vpop.f32.mrf.mxu0
    %v8302 = vadd.f32 %v8289, %v8301
    %v8303 = vpop.f32.mrf.mxu0
    %8304 = vdwg.mxu0
    %8305 = vmatpush.bf16.msra.mxu0 %v512
    %8306 = vmatpush.bf16.msra.mxu0 %v508
    %8307 = vmatpush.bf16.msra.mxu0 %v504
    %8308 = vmatpush.bf16.msra.mxu0 %v500
    %8309 = vmatpush.bf16.msra.mxu0 %v496
    %8310 = vmatpush.bf16.msra.mxu0 %v492
    %8311 = vmatpush.bf16.msra.mxu0 %v488
    %8312 = vmatpush.bf16.msra.mxu0 %v484
    %8313 = vmatmul.bf16.gmra.mxu0 %v8236
    %v8314 = vpop.f32.mrf.mxu0
    %v8315 = vadd.f32 %v8302, %v8314
    %v8316 = vpop.f32.mrf.mxu0
    %8317 = vdwg.mxu0
    %8318 = vmatpush.bf16.msra.mxu0 %v449
    %8319 = vmatpush.bf16.msra.mxu0 %v445
    %8320 = vmatpush.bf16.msra.mxu0 %v441
    %8321 = vmatpush.bf16.msra.mxu0 %v437
    %8322 = vmatpush.bf16.msra.mxu0 %v433
    %8323 = vmatpush.bf16.msra.mxu0 %v429
    %8324 = vmatpush.bf16.msra.mxu0 %v425
    %8325 = vmatpush.bf16.msra.mxu0 %v421
    %8326 = vmatmul.bf16.gmra.mxu0 %v8234
    %v8327 = vpop.f32.mrf.mxu0
    %v8328 = vadd.f32 0.0, %v8327
    %v8329 = vpop.f32.mrf.mxu0
    %8330 = vdwg.mxu0
    %8331 = vmatpush.bf16.msra.mxu0 %v481
    %8332 = vmatpush.bf16.msra.mxu0 %v477
    %8333 = vmatpush.bf16.msra.mxu0 %v473
    %8334 = vmatpush.bf16.msra.mxu0 %v469
    %8335 = vmatpush.bf16.msra.mxu0 %v465
    %8336 = vmatpush.bf16.msra.mxu0 %v461
    %8337 = vmatpush.bf16.msra.mxu0 %v457
    %8338 = vmatpush.bf16.msra.mxu0 %v453
    %8339 = vmatmul.bf16.gmra.mxu0 %v8235
    %v8340 = vpop.f32.mrf.mxu0
    %v8341 = vadd.f32 %v8328, %v8340
    %v8342 = vpop.f32.mrf.mxu0
    %8343 = vdwg.mxu0
    %8344 = vmatpush.bf16.msra.mxu0 %v513
    %8345 = vmatpush.bf16.msra.mxu0 %v509
    %8346 = vmatpush.bf16.msra.mxu0 %v505
    %8347 = vmatpush.bf16.msra.mxu0 %v501
    %8348 = vmatpush.bf16.msra.mxu0 %v497
    %8349 = vmatpush.bf16.msra.mxu0 %v493
    %8350 = vmatpush.bf16.msra.mxu0 %v489
    %8351 = vmatpush.bf16.msra.mxu0 %v485
    %8352 = vmatmul.bf16.gmra.mxu0 %v8236
    %v8353 = vpop.f32.mrf.mxu0
    %v8354 = vadd.f32 %v8341, %v8353
    %v8355 = vpop.f32.mrf.mxu0
    %8356 = vdwg.mxu0
    %8357 = vmatpush.bf16.msra.mxu0 %v450
    %8358 = vmatpush.bf16.msra.mxu0 %v446
    %8359 = vmatpush.bf16.msra.mxu0 %v442
    %8360 = vmatpush.bf16.msra.mxu0 %v438
    %8361 = vmatpush.bf16.msra.mxu0 %v434
    %8362 = vmatpush.bf16.msra.mxu0 %v430
    %8363 = vmatpush.bf16.msra.mxu0 %v426
    %8364 = vmatpush.bf16.msra.mxu0 %v422
    %8365 = vmatmul.bf16.gmra.mxu0 %v8234
    %v8366 = vpop.f32.mrf.mxu0
    %v8367 = vadd.f32 0.0, %v8366
    %v8368 = vpop.f32.mrf.mxu0
    %8369 = vdwg.mxu0
    %8370 = vmatpush.bf16.msra.mxu0 %v482
    %8371 = vmatpush.bf16.msra.mxu0 %v478
    %8372 = vmatpush.bf16.msra.mxu0 %v474
    %8373 = vmatpush.bf16.msra.mxu0 %v470
    %8374 = vmatpush.bf16.msra.mxu0 %v466
    %8375 = vmatpush.bf16.msra.mxu0 %v462
    %8376 = vmatpush.bf16.msra.mxu0 %v458
    %8377 = vmatpush.bf16.msra.mxu0 %v454
    %8378 = vmatmul.bf16.gmra.mxu0 %v8235
    %v8379 = vpop.f32.mrf.mxu0
    %v8380 = vadd.f32 %v8367, %v8379
    %v8381 = vpop.f32.mrf.mxu0
    %8382 = vdwg.mxu0
    %8383 = vmatpush.bf16.msra.mxu0 %v514
    %8384 = vmatpush.bf16.msra.mxu0 %v510
    %8385 = vmatpush.bf16.msra.mxu0 %v506
    %8386 = vmatpush.bf16.msra.mxu0 %v502
    %8387 = vmatpush.bf16.msra.mxu0 %v498
    %8388 = vmatpush.bf16.msra.mxu0 %v494
    %8389 = vmatpush.bf16.msra.mxu0 %v490
    %8390 = vmatpush.bf16.msra.mxu0 %v486
    %8391 = vmatmul.bf16.gmra.mxu0 %v8236
    %v8392 = vpop.f32.mrf.mxu0
    %v8393 = vadd.f32 %v8380, %v8392
    %v8394 = vpop.f32.mrf.mxu0
    %8395 = vdwg.mxu0
    %v8396 = vmax.f32 %v8276, 0.0
    %v8397 = vmax.f32 %v8315, 0.0
    %v8398 = vmax.f32 %v8354, 0.0
    %v8399 = vmax.f32 %v8393, 0.0
    %v8400 = vpack.c.bf16 %v8396, %v8396
    %v8401 = vpack.c.bf16 %v8397, %v8397
    %v8402 = vpack.c.bf16 %v8398, %v8398
    %v8403 = vpack.c.bf16 %v8399, %v8399
    %s8404 = scalar_lea.vmem %s2, 3840
    %v8405 = vld [vmem:[%s8404] sm:$0xf]
    %v8406 = vld [vmem:[%s8404 + $0x4] sm:$0xf]
    %v8407 = vld [vmem:[%s8404 + $0x8] sm:$0xf]
    %v8408 = vld [vmem:[%s8404 + $0xc] sm:$0xf]
    %v8409 = vld [vmem:[%s8404 + $0x10] sm:$0xf]
    %v8410 = vld [vmem:[%s8404 + $0x14] sm:$0xf]
    %v8411 = vld [vmem:[%s8404 + $0x18] sm:$0xf]
    %v8412 = vld [vmem:[%s8404 + $0x1c] sm:$0xf]
    %v8413 = vld [vmem:[%s8404 + $0x20] sm:$0xf]
    %v8414 = vld [vmem:[%s8404 + $0x24] sm:$0xf]
    %v8415 = vld [vmem:[%s8404 + $0x28] sm:$0xf]
    %v8416 = vld [vmem:[%s8404 + $0x2c] sm:$0xf]
    %v8417 = vld [vmem:[%s8404 + $0x30] sm:$0xf]
    %v8418 = vld [vmem:[%s8404 + $0x34] sm:$0xf]
    %v8419 = vld [vmem:[%s8404 + $0x38] sm:$0xf]
    %v8420 = vld [vmem:[%s8404 + $0x3c] sm:$0xf]
    %v8421 = vld [vmem:[%s8404 + $0x40] sm:$0xf]
    %v8422 = vld [vmem:[%s8404 + $0x44] sm:$0xf]
    %v8423 = vld [vmem:[%s8404 + $0x48] sm:$0xf]
    %v8424 = vld [vmem:[%s8404 + $0x4c] sm:$0xf]
    %v8425 = vld [vmem:[%s8404 + $0x50] sm:$0xf]
    %v8426 = vld [vmem:[%s8404 + $0x54] sm:$0xf]
    %v8427 = vld [vmem:[%s8404 + $0x58] sm:$0xf]
    %v8428 = vld [vmem:[%s8404 + $0x5c] sm:$0xf]
    %v8429 = vld [vmem:[%s8404 + $0x60] sm:$0xf]
    %v8430 = vld [vmem:[%s8404 + $0x64] sm:$0xf]
    %v8431 = vld [vmem:[%s8404 + $0x68] sm:$0xf]
    %v8432 = vld [vmem:[%s8404 + $0x6c] sm:$0xf]
    %v8433 = vld [vmem:[%s8404 + $0x70] sm:$0xf]
    %v8434 = vld [vmem:[%s8404 + $0x74] sm:$0xf]
    %v8435 = vld [vmem:[%s8404 + $0x78] sm:$0xf]
    %v8436 = vld [vmem:[%s8404 + $0x7c] sm:$0xf]
    %v8437 = vld [vmem:[%s8404 + $0x80] sm:$0xf]
    %v8438 = vld [vmem:[%s8404 + $0x84] sm:$0xf]
    %v8439 = vld [vmem:[%s8404 + $0x88] sm:$0xf]
    %v8440 = vld [vmem:[%s8404 + $0x8c] sm:$0xf]
    %v8441 = vld [vmem:[%s8404 + $0x90] sm:$0xf]
    %v8442 = vld [vmem:[%s8404 + $0x94] sm:$0xf]
    %v8443 = vld [vmem:[%s8404 + $0x98] sm:$0xf]
    %v8444 = vld [vmem:[%s8404 + $0x9c] sm:$0xf]
    %v8445 = vld [vmem:[%s8404 + $0xa0] sm:$0xf]
    %v8446 = vld [vmem:[%s8404 + $0xa4] sm:$0xf]
    %v8447 = vld [vmem:[%s8404 + $0xa8] sm:$0xf]
    %v8448 = vld [vmem:[%s8404 + $0xac] sm:$0xf]
    %v8449 = vld [vmem:[%s8404 + $0xb0] sm:$0xf]
    %v8450 = vld [vmem:[%s8404 + $0xb4] sm:$0xf]
    %v8451 = vld [vmem:[%s8404 + $0xb8] sm:$0xf]
    %v8452 = vld [vmem:[%s8404 + $0xbc] sm:$0xf]
    %v8453 = vld [vmem:[%s8404 + $0xc0] sm:$0xf]
    %v8454 = vld [vmem:[%s8404 + $0xc4] sm:$0xf]
    %v8455 = vld [vmem:[%s8404 + $0xc8] sm:$0xf]
    %v8456 = vld [vmem:[%s8404 + $0xcc] sm:$0xf]
    %v8457 = vld [vmem:[%s8404 + $0xd0] sm:$0xf]
    %v8458 = vld [vmem:[%s8404 + $0xd4] sm:$0xf]
    %v8459 = vld [vmem:[%s8404 + $0xd8] sm:$0xf]
    %v8460 = vld [vmem:[%s8404 + $0xdc] sm:$0xf]
    %v8461 = vld [vmem:[%s8404 + $0xe0] sm:$0xf]
    %v8462 = vld [vmem:[%s8404 + $0xe4] sm:$0xf]
    %v8463 = vld [vmem:[%s8404 + $0xe8] sm:$0xf]
    %v8464 = vld [vmem:[%s8404 + $0xec] sm:$0x3]
    %v8525 = vunpack.c.l.b16 %v8405
    %v8526 = vunpack.c.l.b16 %v8406
    %v8527 = vunpack.c.l.b16 %v8407
    %v8528 = vunpack.c.l.b16 %v8408
    %v8529 = vunpack.c.l.b16 %v8409
    %v8530 = vunpack.c.l.b16 %v8410
    %v8531 = vunpack.c.l.b16 %v8411
    %v8532 = vunpack.c.l.b16 %v8412
    %v8533 = vunpack.c.l.b16 %v8413
    %v8534 = vunpack.c.l.b16 %v8414
    %v8535 = vunpack.c.l.b16 %v8415
    %v8536 = vunpack.c.l.b16 %v8416
    %v8537 = vunpack.c.l.b16 %v8417
    %v8538 = vunpack.c.l.b16 %v8418
    %v8539 = vunpack.c.l.b16 %v8419
    %v8540 = vunpack.c.l.b16 %v8420
    %v8541 = vunpack.c.l.b16 %v8421
    %v8542 = vunpack.c.l.b16 %v8422
    %v8543 = vunpack.c.l.b16 %v8423
    %v8544 = vunpack.c.l.b16 %v8424
    %v8545 = vunpack.c.l.b16 %v8425
    %v8546 = vunpack.c.l.b16 %v8426
    %v8547 = vunpack.c.l.b16 %v8427
    %v8548 = vunpack.c.l.b16 %v8428
    %v8549 = vunpack.c.l.b16 %v8429
    %v8550 = vunpack.c.l.b16 %v8430
    %v8551 = vunpack.c.l.b16 %v8431
    %v8552 = vunpack.c.l.b16 %v8432
    %v8553 = vunpack.c.l.b16 %v8433
    %v8554 = vunpack.c.l.b16 %v8434
    %v8555 = vunpack.c.l.b16 %v8435
    %v8556 = vunpack.c.l.b16 %v8436
    %v8557 = vunpack.c.l.b16 %v8437
    %v8558 = vunpack.c.l.b16 %v8438
    %v8559 = vunpack.c.l.b16 %v8439
    %v8560 = vunpack.c.l.b16 %v8440
    %v8561 = vunpack.c.l.b16 %v8441
    %v8562 = vunpack.c.l.b16 %v8442
    %v8563 = vunpack.c.l.b16 %v8443
    %v8564 = vunpack.c.l.b16 %v8444
    %v8565 = vunpack.c.l.b16 %v8445
    %v8566 = vunpack.c.l.b16 %v8446
    %v8567 = vunpack.c.l.b16 %v8447
    %v8568 = vunpack.c.l.b16 %v8448
    %v8569 = vunpack.c.l.b16 %v8449
    %v8570 = vunpack.c.l.b16 %v8450
    %v8571 = vunpack.c.l.b16 %v8451
    %v8572 = vunpack.c.l.b16 %v8452
    %v8573 = vunpack.c.l.b16 %v8453
    %v8574 = vunpack.c.l.b16 %v8454
    %v8575 = vunpack.c.l.b16 %v8455
    %v8576 = vunpack.c.l.b16 %v8456
    %v8577 = vunpack.c.l.b16 %v8457
    %v8578 = vunpack.c.l.b16 %v8458
    %v8579 = vunpack.c.l.b16 %v8459
    %v8580 = vunpack.c.l.b16 %v8460
    %v8581 = vunpack.c.l.b16 %v8461
    %v8582 = vunpack.c.l.b16 %v8462
    %v8583 = vunpack.c.l.b16 %v8463
    %v8584 = vunpack.c.l.b16 %v8464
    %v8585 = vpack.c.b16 %v8526, %v8525
    %v8586 = vpack.c.b16 %v8528, %v8527
    %v8587 = vpack.c.b16 %v8530, %v8529
    %v8588 = vpack.c.b16 %v8532, %v8531
    %v8589 = vpack.c.b16 %v8534, %v8533
    %v8590 = vpack.c.b16 %v8536, %v8535
    %v8591 = vpack.c.b16 %v8538, %v8537
    %v8592 = vpack.c.b16 %v8540, %v8539
    %v8593 = vpack.c.b16 %v8542, %v8541
    %v8594 = vpack.c.b16 %v8544, %v8543
    %v8595 = vpack.c.b16 %v8546, %v8545
    %v8596 = vpack.c.b16 %v8548, %v8547
    %v8597 = vpack.c.b16 %v8550, %v8549
    %v8598 = vpack.c.b16 %v8552, %v8551
    %v8599 = vpack.c.b16 %v8554, %v8553
    %v8600 = vpack.c.b16 %v8556, %v8555
    %v8601 = vpack.c.b16 %v8558, %v8557
    %v8602 = vpack.c.b16 %v8560, %v8559
    %v8603 = vpack.c.b16 %v8562, %v8561
    %v8604 = vpack.c.b16 %v8564, %v8563
    %v8605 = vpack.c.b16 %v8566, %v8565
    %v8606 = vpack.c.b16 %v8568, %v8567
    %v8607 = vpack.c.b16 %v8570, %v8569
    %v8608 = vpack.c.b16 %v8572, %v8571
    %v8609 = vpack.c.b16 %v8574, %v8573
    %v8610 = vpack.c.b16 %v8576, %v8575
    %v8611 = vpack.c.b16 %v8578, %v8577
    %v8612 = vpack.c.b16 %v8580, %v8579
    %v8613 = vpack.c.b16 %v8582, %v8581
    %v8614 = vpack.c.b16 %v8584, %v8583
    %v8645 = vsel %vm1492, %v8403, 0
    %v8648 = vsel %vm1496, %v8614, 0
    %8650 = vmatpush.bf16.msra.mxu0 %v8592
    %8651 = vmatpush.bf16.msra.mxu0 %v8591
    %8652 = vmatpush.bf16.msra.mxu0 %v8590
    %8653 = vmatpush.bf16.msra.mxu0 %v8589
    %8654 = vmatpush.bf16.msra.mxu0 %v8588
    %8655 = vmatpush.bf16.msra.mxu0 %v8587
    %8656 = vmatpush.bf16.msra.mxu0 %v8586
    %8657 = vmatpush.bf16.msra.mxu0 %v8585
    %8658 = vmatmul.bf16.gmra.mxu0 %v8400
    %v8659 = vpop.f32.mrf.mxu0
    %v8660 = vadd.f32 0.0, %v8659
    %v8661 = vpop.f32.mrf.mxu0
    %8662 = vdwg.mxu0
    %8663 = vmatpush.bf16.msra.mxu0 %v8600
    %8664 = vmatpush.bf16.msra.mxu0 %v8599
    %8665 = vmatpush.bf16.msra.mxu0 %v8598
    %8666 = vmatpush.bf16.msra.mxu0 %v8597
    %8667 = vmatpush.bf16.msra.mxu0 %v8596
    %8668 = vmatpush.bf16.msra.mxu0 %v8595
    %8669 = vmatpush.bf16.msra.mxu0 %v8594
    %8670 = vmatpush.bf16.msra.mxu0 %v8593
    %8671 = vmatmul.bf16.gmra.mxu0 %v8401
    %v8672 = vpop.f32.mrf.mxu0
    %v8673 = vadd.f32 %v8660, %v8672
    %v8674 = vpop.f32.mrf.mxu0
    %8675 = vdwg.mxu0
    %8676 = vmatpush.bf16.msra.mxu0 %v8608
    %8677 = vmatpush.bf16.msra.mxu0 %v8607
    %8678 = vmatpush.bf16.msra.mxu0 %v8606
    %8679 = vmatpush.bf16.msra.mxu0 %v8605
    %8680 = vmatpush.bf16.msra.mxu0 %v8604
    %8681 = vmatpush.bf16.msra.mxu0 %v8603
    %8682 = vmatpush.bf16.msra.mxu0 %v8602
    %8683 = vmatpush.bf16.msra.mxu0 %v8601
    %8684 = vmatmul.bf16.gmra.mxu0 %v8402
    %v8685 = vpop.f32.mrf.mxu0
    %v8686 = vadd.f32 %v8673, %v8685
    %v8687 = vpop.f32.mrf.mxu0
    %8688 = vdwg.mxu0
    %8689 = vmatpush.bf16.msra.mxu0 0
    %8690 = vmatpush.bf16.msra.mxu0 0
    %8691 = vmatpush.bf16.msra.mxu0 %v8648
    %8692 = vmatpush.bf16.msra.mxu0 %v8613
    %8693 = vmatpush.bf16.msra.mxu0 %v8612
    %8694 = vmatpush.bf16.msra.mxu0 %v8611
    %8695 = vmatpush.bf16.msra.mxu0 %v8610
    %8696 = vmatpush.bf16.msra.mxu0 %v8609
    %8697 = vmatmul.bf16.gmra.mxu0 %v8645
    %v8698 = vpop.f32.mrf.mxu0
    %v8699 = vadd.f32 %v8686, %v8698
    %v8700 = vpop.f32.mrf.mxu0
    %8701 = vdwg.mxu0
    %v8702 = vadd.f32 %v7748, %v8699
    %v8703 = vadd.f32 %v8702, %v8225
    %v8704 = vld [vmem:[%s3] sm:$0x1]
    %v8706 = vperm.slane %v8704, 0
    %v8708 = vadd.f32 %v8703, %v8706
    %v8709 = vmax.f32 %v8708, 0.0
    %v8710 = vld [vmem:[%s4] sm:$0xff]
    %v8711 = vld [vmem:[%s4 + $0x8] sm:$0xff]
    %v8712 = vld [vmem:[%s4 + $0x10] sm:$0x1f]
    %vm8713 = vcmask 171008
    %v8715 = vsel %vm8713, %v8709, 0
    %vm8717 = vcmask 1044480
    %v8719 = vsel %vm8717, %v8712, 0
    %8721 = vmatpush.msra.mxu0 0.0
    %8722 = vmatpush.msra.mxu0 0.0
    %8723 = vmatpush.msra.mxu0 0.0
    %8724 = vmatpush.msra.mxu0 0.0
    %8725 = vmatpush.msra.mxu0 0.0
    %8726 = vmatpush.msra.mxu0 0.0
    %8727 = vmatpush.msra.mxu0 0.0
    %8728 = vmatpush.msra.mxu0 0.0
    %8729 = vmatpush.msra.mxu0 0.0
    %8730 = vmatpush.msra.mxu0 0.0
    %8731 = vmatpush.msra.mxu0 0.0
    %8732 = vmatpush.msra.mxu0 0.0
    %8733 = vmatpush.msra.mxu0 0.0
    %8734 = vmatpush.msra.mxu0 %v8719
    %8735 = vmatpush.msra.mxu0 %v8711
    %8736 = vmatpush.msra.mxu0 %v8710
    %8737 = vmatmul.f32.gmra.mxu0 %v8715
    %v8738 = vpop.f32.mrf.mxu0
    %v8739 = vadd.f32 0.0, %v8738
    %8740 = vdwg.mxu0
    %vm8741 = vcmask 80896
    %v8742 = vsel %vm8741, %v8739, -inf
    %8743 = vmax.xlane.f32.xlu0 %v8742
    %v8744 = vpop.xlane.xlu0 %8743
    %v8745 = vsub.f32 %v8739, %v8744
    %v8746 = vmul.f32 %v8745, 1.442695
    %v8747 = vpow.pop %v8746
    %v8748 = vsel %vm8741, %v8747, 0.0
    %8749 = vadd.xlane.f32.xlu0 %v8748
    %v8750 = vpop.xlane.xlu0 %8749
    %v8751 = vlog2.pop %v8750
    %v8752 = vmul.f32 %v8751, 0.6931472
    %v8753 = vsub.f32 %v8745, %v8752
    %8754 = vst.msk [vmem:[#allocation2] sm:$0xff] %vm8741, %v8753
    // Predicated region
    $region22: #{tpu_custom_call.1} parent=1 // pred_check
      _
    $region23: #{tpu_custom_call.1} parent=1 // pred_check_branch
      %8756 = sbr.rel (0) target = $region25
    $region24: #{tpu_custom_call.1} parent=1 // pred_region
      %8758 = vsyncadd [#allocation3], 0
      %s8760 = sshll.u32 [#allocation2], 4
      %s8761 = int_to_ptr.vmem [resolvable:$true] %s8760
      %s8762 = sshll.u32 %s5, 4
      %s8763 = int_to_ptr.hbm [resolvable:$true] %s8762
      %8765 = dma.vmem_to_hbm [thread:$0]  %s8761, 128, %s8763, [#allocation3]
    $region25: #{tpu_custom_call.1} parent=1 // pred_fallthru
      _
    // Predicated region
    $region26: #{tpu_custom_call.1} parent=1 // pred_check
      _
    $region27: #{tpu_custom_call.1} parent=1 // pred_check_branch
      %8767 = sbr.rel (0) target = $region29
    $region28: #{tpu_custom_call.1} parent=1 // pred_region
      %8769 = dma.done [#allocation3], 128
    $region29: #{tpu_custom_call.1} parent=1 // pred_fallthru
      _
    %8770 = vsyncpa [#allocation3], 1

</llo_original>
